<compile_context>
chip_gen: v7x
topology: tpu7x:2x2x1
jax: 0.10.0
libtpu: 0.0.40
codegen_flags: <defaults>
</compile_context>

<pallas_src>
import functools

import numpy as np
import jax
import jax.numpy as jnp
from jax.experimental import pallas as pl
from jax.experimental.pallas import tpu as pltpu

LRELU_SLOPE = 0.01   # nn.LeakyReLU() default negative_slope
IN_EPS = 1e-5        # nn.InstanceNorm2d default eps
N_ATTRS_PAD = 128    # lane-dense padded logits width


# ---------------------------------------------------------------------------
# Fused Pallas kernel: all conv blocks + fc_cls for one batch element
# ---------------------------------------------------------------------------
def fused_classifier_kernel(n_conv, a_ref, *refs):
    """refs = [R_1, M_1, bias_1, S_1, BC_1, ..., R_L, M_L, bias_L, S_L, BC_L,
               W1, b1, W2, b2, out].

    a_ref  : [1, H, W*Cin]            bf16 (channel-last input, (w, c) flattened in lanes)
    R_l    : [4, Ho, H]               bf16 0/1 row-select (also applies the H zero padding)
    M_l    : [4, W*Cin, Wo*Cout]      bf16 banded conv weights (stride-2 + W padding baked in)
    bias_l : [1, Wo*Cout]             f32  conv bias tiled over output columns
    S_l    : [Wo*Cout, Cout]          bf16 per-channel reduce matrix, entries 1/(Ho*Wo)
    BC_l   : [Cout, Wo*Cout]          bf16 0/1 per-channel broadcast-back matrix
    W1     : [fs*fs*C5, fc_dim]       bf16 (rows permuted so NCHW .view(B,-1) order is kept)
    b1     : [1, fc_dim]              f32
    W2     : [fc_dim, N_ATTRS_PAD]    bf16 (zero padded past n_attrs)
    b2     : [1, N_ATTRS_PAD]         f32
    out    : [1, 1, N_ATTRS_PAD]      f32
    """
    base = 5 * n_conv
    w1_ref, b1_ref, w2_ref, b2_ref = refs[base:base + 4]
    out_ref = refs[base + 4]

    a = a_ref[0]                                            # [H, W*Cin]  bf16

    for l in range(n_conv):
        r_ref, m_ref, bias_ref, s_ref, bc_ref = refs[5 * l:5 * l + 5]

        H = a.shape[0]
        Ho = H // 2
        n_cols = m_ref.shape[2]                             # Wo * Cout

        # Conv2d(4x4, stride 2, pad 1): 4 x (precomputed row-select matmul) + (banded matmul).
        acc = jnp.zeros((Ho, n_cols), jnp.float32)
        for kh in range(4):
            # R[kh] @ a selects input rows h = 2*ho - 1 + kh (zero rows handle H padding);
            # entries are 0/1 so the bf16 round-trip is exact.
            bh = jnp.dot(r_ref[kh], a,
                         preferred_element_type=jnp.float32).astype(jnp.bfloat16)
            acc = acc + jnp.dot(bh, m_ref[kh], preferred_element_type=jnp.float32)
        acc = acc + bias_ref[...]

        # InstanceNorm2d (affine=False, biased variance, eps=1e-5), per output channel.
        # Reduce with the rectangular S (bf16 on the MXU), broadcast back with BC.
        s_mat = s_ref[...]
        bc_mat = bc_ref[...]
        sum_row = jnp.sum(acc, axis=0, keepdims=True)                       # [1, Wo*Cout] f32
        mean_c = jnp.dot(sum_row.astype(jnp.bfloat16), s_mat,
                         preferred_element_type=jnp.float32)                # [1, Cout]
        mean_b = jnp.dot(mean_c.astype(jnp.bfloat16), bc_mat,
                         preferred_element_type=jnp.float32)                # [1, Wo*Cout]
        yc = acc - mean_b
        sq_row = jnp.sum(yc * yc, axis=0, keepdims=True)
        var_c = jnp.dot(sq_row.astype(jnp.bfloat16), s_mat,
                        preferred_element_type=jnp.float32)
        var_b = jnp.dot(var_c.astype(jnp.bfloat16), bc_mat,
                        preferred_element_type=jnp.float32)
        y = yc * jax.lax.rsqrt(var_b + IN_EPS)
        # LeakyReLU(0.01) (epilogue kept in f32 — right choice on v5e's f32-only VPU too)
        y = jnp.where(y >= 0, y, LRELU_SLOPE * y)

        a = y.astype(jnp.bfloat16)                          # [Ho, Wo*Cout] for next layer

    # fc_cls: Linear -> LeakyReLU -> Linear (output already lane-padded to 128).
    # Flatten the [fs, fs*C5] activation into one lane-dense row (128-aligned concat),
    # so FC1 is a single matmul instead of fs tiny M=1 matmuls.
    fs = a.shape[0]
    if fs > 1:
        z_in = jnp.concatenate([a[h:h + 1, :] for h in range(fs)], axis=1)  # [1, fs*fs*C5]
    else:
        z_in = a
    z = jnp.dot(z_in, w1_ref[...], preferred_element_type=jnp.float32) + b1_ref[...]
    z = jnp.where(z >= 0, z, LRELU_SLOPE * z)
    logits = jnp.dot(z.astype(jnp.bfloat16), w2_ref[...],
                     preferred_element_type=jnp.float32) + b2_ref[...]

    out_ref[0] = logits.astype(out_ref.dtype)


# ---------------------------------------------------------------------------
# Parameter construction / preparation (host-side, done once)
# ---------------------------------------------------------------------------
def init_params(key, dim, max_dim, n_layers, f_size, fc_dim, n_attrs):
    """Raw parameters in PyTorch layout (Conv: [Cout, Cin, 4, 4]; Linear: [in, out])."""
    params = {"conv": [], "fc": {}}
    n_in = 3
    for i in range(n_layers):
        n_out = min(dim * 2 ** i, max_dim)
        key, kw, kb = jax.random.split(key, 3)
        w = 0.05 * jax.random.normal(kw, (n_out, n_in, 4, 4), jnp.float32)
        b = 0.05 * jax.random.normal(kb, (n_out,), jnp.float32)
        params["conv"].append((w, b))
        n_in = n_out
    fc_in = n_in * f_size * f_size
    key, k1, k2, k3, k4 = jax.random.split(key, 5)
    params["fc"]["w1"] = 0.05 * jax.random.normal(k1, (fc_in, fc_dim), jnp.float32)
    params["fc"]["b1"] = 0.05 * jax.random.normal(k2, (1, fc_dim), jnp.float32)
    params["fc"]["w2"] = 0.05 * jax.random.normal(k3, (fc_dim, n_attrs), jnp.float32)
    params["fc"]["b2"] = 0.05 * jax.random.normal(k4, (1, n_attrs), jnp.float32)
    return params


def prepare_params(params, img_size, n_attrs, n_attrs_pad=N_ATTRS_PAD):
    """Bake conv weights into banded matrices, precompute row-select / reduce / broadcast
    matrices, tile biases, and permute+flatten fc.w1 so the channel-last kernel layout
    reproduces the PyTorch NCHW .view(B,-1) flatten exactly."""
    prep = {"conv": [], "fc": {}}
    H = img_size
    for (w, b) in params["conv"]:
        w = np.asarray(w, np.float32)
        b = np.asarray(b, np.float32)
        Cout, Cin, KH, KW = w.shape
        W = H                                               # square feature maps
        Ho, Wo = H // 2, W // 2

        # R[kh, ho, h] = 1 iff h = 2*ho - 1 + kh  (rows outside [0,H) stay 0 -> H padding)
        R = np.zeros((KH, Ho, H), np.float32)
        for kh in range(KH):
            for ho in range(Ho):
                h = 2 * ho - 1 + kh
                if 0 <= h < H:
                    R[kh, ho, h] = 1.0

        # M[kh, wi*Cin + ci, wo*Cout + co] = w[co, ci, kh, wi - (2*wo - 1)]
        # (stride 2, pad 1; out-of-range columns stay zero -> W zero padding).
        M = np.zeros((KH, W * Cin, Wo * Cout), np.float32)
        wt = np.transpose(w, (2, 3, 1, 0))                  # [kh, kw, Cin, Cout]
        for kh in range(KH):
            for kw in range(KW):
                for wo in range(Wo):
                    wi = 2 * wo - 1 + kw
                    if 0 <= wi < W:
                        M[kh, wi * Cin:(wi + 1) * Cin, wo * Cout:(wo + 1) * Cout] = wt[kh, kw]

        bias_b = np.tile(b, Wo).reshape(1, Wo * Cout).astype(np.float32)

        # Rectangular per-channel reduce S (entries 1/(Ho*Wo), exact powers of two in bf16)
        # and 0/1 broadcast-back BC; together ~2*Wo*Cout*Cout elems vs (Wo*Cout)^2 before.
        j = np.arange(Wo * Cout)
        S = np.zeros((Wo * Cout, Cout), np.float32)
        S[j, j % Cout] = 1.0 / float(Ho * Wo)
        BC = (j[None, :] % Cout == np.arange(Cout)[:, None]).astype(np.float32)

        prep["conv"].append((jnp.asarray(R, jnp.bfloat16),
                             jnp.asarray(M, jnp.bfloat16),
                             jnp.asarray(bias_b, jnp.float32),
                             jnp.asarray(S, jnp.bfloat16),
                             jnp.asarray(BC, jnp.bfloat16)))
        H = Ho

    # ---- fc head ----
    fs = H                                                  # spatial size after the convs
    C5 = np.asarray(params["conv"][-1][0]).shape[0]
    w1 = np.asarray(params["fc"]["w1"], np.float32)
    b1 = np.asarray(params["fc"]["b1"], np.float32)
    w2 = np.asarray(params["fc"]["w2"], np.float32)
    b2 = np.asarray(params["fc"]["b2"], np.float32)
    fc_dim = w1.shape[1]

    # kernel flatten order is (h, w, c); torch .view(B,-1) on NCHW is (c, h, w).
    hh, ww, cc = np.meshgrid(np.arange(fs), np.arange(fs), np.arange(C5), indexing="ij")
    torch_rows = (cc * fs * fs + hh * fs + ww).reshape(-1)
    w1p = w1[torch_rows]                                    # [fs*fs*C5, fc_dim], (h,w,c) order

    w2p = np.zeros((fc_dim, n_attrs_pad), np.float32)
    w2p[:, :n_attrs] = w2
    b2p = np.zeros((1, n_attrs_pad), np.float32)
    b2p[0, :n_attrs] = b2.reshape(-1)

    prep["fc"] = {
        "w1": jnp.asarray(w1p, jnp.bfloat16),
        "b1": jnp.asarray(b1.reshape(1, fc_dim), jnp.float32),
        "w2": jnp.asarray(w2p, jnp.bfloat16),
        "b2": jnp.asarray(b2p, jnp.float32),
    }
    return prep


# ---------------------------------------------------------------------------
# Forward: one fused pallas_call for the whole classifier
# ---------------------------------------------------------------------------
def classifier_forward(prep, x, n_attrs):
    B, Cin, H, W = x.shape
    # NCHW -> channel-last [B, H, W*Cin], bf16 (single cheap XLA transform at the boundary).
    a0 = jnp.transpose(x, (0, 2, 3, 1)).reshape(B, H, W * Cin).astype(jnp.bfloat16)

    def const_spec(arr):
        nd = arr.ndim
        idx = lambda i, nd=nd: (0,) * nd
        # Constant-index blocks are never re-DMA'd -> single-buffer them to halve their
        # VMEM footprint (falls back gracefully on jax versions without pipeline_mode).
        if hasattr(pl, "Buffered"):
            try:
                return pl.BlockSpec(arr.shape, idx, pipeline_mode=pl.Buffered(1))
            except TypeError:
                pass
        return pl.BlockSpec(arr.shape, idx)

    operands = [a0]
    in_specs = [pl.BlockSpec((1, H, W * Cin), lambda i: (i, 0, 0))]
    for layer_ops in prep["conv"]:
        for arr in layer_ops:                               # (R, M, bias, S, BC)
            operands.append(arr)
            in_specs.append(const_spec(arr))
    for name in ("w1", "b1", "w2", "b2"):
        arr = prep["fc"][name]
        operands.append(arr)
        in_specs.append(const_spec(arr))

    npad = prep["fc"]["w2"].shape[1]
    n_conv = len(prep["conv"])

    # Explicit VMEM budget: constants (x2 safety in case of double-buffer fallback) +
    # double-buffered activation/output blocks + workspace headroom; clamp to v7x physical.
    def _nbytes(a):
        return int(np.prod(a.shape)) * jnp.dtype(a.dtype).itemsize
    const_bytes = sum(_nbytes(a) for a in operands[1:])
    io_bytes = 2 * (H * W * Cin * 2 + npad * 4)
    vmem_limit = 2 * const_bytes + io_bytes + (8 << 20)
    vmem_limit = min(max(vmem_limit, 16 << 20), 64 << 20)

    out = pl.pallas_call(
        functools.partial(fused_classifier_kernel, n_conv),
        out_shape=jax.ShapeDtypeStruct((B, 1, npad), jnp.float32),
        grid=(B,),
        in_specs=in_specs,
        out_specs=pl.BlockSpec((1, 1, npad), lambda i: (i, 0, 0)),
        compiler_params=pltpu.CompilerParams(
            dimension_semantics=("parallel",),
            vmem_limit_bytes=int(vmem_limit)),
    )(*operands)

    return out[:, 0, :n_attrs]


# ---------------------------------------------------------------------------
# Pure-JAX f32 reference (PyTorch semantics) for a loose-tolerance sanity check
# ---------------------------------------------------------------------------
def reference_forward(params, x):
    h = x
    for (w, b) in params["conv"]:
        h = jax.lax.conv_general_dilated(
            h, w, window_strides=(2, 2), padding=((1, 1), (1, 1)),
            dimension_numbers=("NCHW", "OIHW", "NCHW"))
        h = h + b.reshape(1, -1, 1, 1)
        mean = jnp.mean(h, axis=(2, 3), keepdims=True)
        var = jnp.mean((h - mean) ** 2, axis=(2, 3), keepdims=True)
        h = (h - mean) * jax.lax.rsqrt(var + IN_EPS)
        h = jnp.where(h >= 0, h, LRELU_SLOPE * h)
    hf = h.reshape(h.shape[0], -1)                          # NCHW flatten (c, h, w)
    z = hf @ params["fc"]["w1"] + params["fc"]["b1"]
    z = jnp.where(z >= 0, z, LRELU_SLOPE * z)
    return z @ params["fc"]["w2"] + params["fc"]["b2"]


# ---------------------------------------------------------------------------
if __name__ == "__main__":
    # Small, self-consistent hyperparameters (same construction logic as the module):
    # dim=8, MAX_DIM=8*16=128, n_layers=5, img_size=64 -> f_size=2,
    # channels 3 -> 8 -> 16 -> 32 -> 64 -> 128, fc input = 128*2*2 = 512.
    DIM, MAX_DIM, N_LAYERS = 8, 8 * 16, 5
    IMG_SIZE, FC_DIM, N_ATTRS = 64, 32, 13
    BATCH = 2
    F_SIZE = IMG_SIZE // 2 ** N_LAYERS

    key = jax.random.PRNGKey(0)
    key, kx = jax.random.split(key)
    x = jax.random.normal(kx, (BATCH, 3, IMG_SIZE, IMG_SIZE), jnp.float32)

    params = init_params(key, DIM, MAX_DIM, N_LAYERS, F_SIZE, FC_DIM, N_ATTRS)
    prep = prepare_params(params, IMG_SIZE, N_ATTRS)

    fwd = jax.jit(functools.partial(classifier_forward, n_attrs=N_ATTRS))
    logits = fwd(prep, x)
    jax.block_until_ready(logits)

    assert logits.shape == (BATCH, N_ATTRS), logits.shape
    assert bool(jnp.all(jnp.isfinite(logits)))

    # Loose-tolerance check vs. the f32 reference (kernel uses bf16 weights/activations).
    ref = reference_forward(params, x)
    max_err = float(jnp.max(jnp.abs(logits - ref)))
    assert max_err < 0.1, f"max abs error vs reference too large: {max_err}"

    print("KERNEL_OK")
</pallas_src>

<mosaic_0001>
module attributes {stable_mosaic.version = 11 : i64} {
  func.func @fused_classifier_kernel(%arg0: i32, %arg1: memref<1x64x192xbf16, #tpu.memory_space<vmem>>, %arg2: memref<4x32x64xbf16, #tpu.memory_space<vmem>>, %arg3: memref<4x192x256xbf16, #tpu.memory_space<vmem>>, %arg4: memref<1x256xf32, #tpu.memory_space<vmem>>, %arg5: memref<256x8xbf16, #tpu.memory_space<vmem>>, %arg6: memref<8x256xbf16, #tpu.memory_space<vmem>>, %arg7: memref<4x16x32xbf16, #tpu.memory_space<vmem>>, %arg8: memref<4x256x256xbf16, #tpu.memory_space<vmem>>, %arg9: memref<1x256xf32, #tpu.memory_space<vmem>>, %arg10: memref<256x16xbf16, #tpu.memory_space<vmem>>, %arg11: memref<16x256xbf16, #tpu.memory_space<vmem>>, %arg12: memref<4x8x16xbf16, #tpu.memory_space<vmem>>, %arg13: memref<4x256x256xbf16, #tpu.memory_space<vmem>>, %arg14: memref<1x256xf32, #tpu.memory_space<vmem>>, %arg15: memref<256x32xbf16, #tpu.memory_space<vmem>>, %arg16: memref<32x256xbf16, #tpu.memory_space<vmem>>, %arg17: memref<4x4x8xbf16, #tpu.memory_space<vmem>>, %arg18: memref<4x256x256xbf16, #tpu.memory_space<vmem>>, %arg19: memref<1x256xf32, #tpu.memory_space<vmem>>, %arg20: memref<256x64xbf16, #tpu.memory_space<vmem>>, %arg21: memref<64x256xbf16, #tpu.memory_space<vmem>>, %arg22: memref<4x2x4xbf16, #tpu.memory_space<vmem>>, %arg23: memref<4x256x256xbf16, #tpu.memory_space<vmem>>, %arg24: memref<1x256xf32, #tpu.memory_space<vmem>>, %arg25: memref<256x128xbf16, #tpu.memory_space<vmem>>, %arg26: memref<128x256xbf16, #tpu.memory_space<vmem>>, %arg27: memref<512x32xbf16, #tpu.memory_space<vmem>>, %arg28: memref<1x32xf32, #tpu.memory_space<vmem>>, %arg29: memref<32x128xbf16, #tpu.memory_space<vmem>>, %arg30: memref<1x128xf32, #tpu.memory_space<vmem>>, %arg31: memref<1x1x128xf32, #tpu.memory_space<vmem>>) attributes {dimension_semantics = [#tpu.dimension_semantics<parallel>], iteration_bounds = array<i64: 2>, scalar_prefetch = 0 : i64, scratch_operands = 0 : i64, tpu.core_type = #tpu.core_type<tc>, window_params = [{transform_indices = @transform_0, window_bounds = array<i64: 1, 64, 192>}, {pipeline_mode = #tpu.pipeline_mode<synchronous>, transform_indices = @transform_1, window_bounds = array<i64: 4, 32, 64>}, {pipeline_mode = #tpu.pipeline_mode<synchronous>, transform_indices = @transform_2, window_bounds = array<i64: 4, 192, 256>}, {pipeline_mode = #tpu.pipeline_mode<synchronous>, transform_indices = @transform_3, window_bounds = array<i64: 1, 256>}, {pipeline_mode = #tpu.pipeline_mode<synchronous>, transform_indices = @transform_4, window_bounds = array<i64: 256, 8>}, {pipeline_mode = #tpu.pipeline_mode<synchronous>, transform_indices = @transform_5, window_bounds = array<i64: 8, 256>}, {pipeline_mode = #tpu.pipeline_mode<synchronous>, transform_indices = @transform_6, window_bounds = array<i64: 4, 16, 32>}, {pipeline_mode = #tpu.pipeline_mode<synchronous>, transform_indices = @transform_7, window_bounds = array<i64: 4, 256, 256>}, {pipeline_mode = #tpu.pipeline_mode<synchronous>, transform_indices = @transform_8, window_bounds = array<i64: 1, 256>}, {pipeline_mode = #tpu.pipeline_mode<synchronous>, transform_indices = @transform_9, window_bounds = array<i64: 256, 16>}, {pipeline_mode = #tpu.pipeline_mode<synchronous>, transform_indices = @transform_10, window_bounds = array<i64: 16, 256>}, {pipeline_mode = #tpu.pipeline_mode<synchronous>, transform_indices = @transform_11, window_bounds = array<i64: 4, 8, 16>}, {pipeline_mode = #tpu.pipeline_mode<synchronous>, transform_indices = @transform_12, window_bounds = array<i64: 4, 256, 256>}, {pipeline_mode = #tpu.pipeline_mode<synchronous>, transform_indices = @transform_13, window_bounds = array<i64: 1, 256>}, {pipeline_mode = #tpu.pipeline_mode<synchronous>, transform_indices = @transform_14, window_bounds = array<i64: 256, 32>}, {pipeline_mode = #tpu.pipeline_mode<synchronous>, transform_indices = @transform_15, window_bounds = array<i64: 32, 256>}, {pipeline_mode = #tpu.pipeline_mode<synchronous>, transform_indices = @transform_16, window_bounds = array<i64: 4, 4, 8>}, {pipeline_mode = #tpu.pipeline_mode<synchronous>, transform_indices = @transform_17, window_bounds = array<i64: 4, 256, 256>}, {pipeline_mode = #tpu.pipeline_mode<synchronous>, transform_indices = @transform_18, window_bounds = array<i64: 1, 256>}, {pipeline_mode = #tpu.pipeline_mode<synchronous>, transform_indices = @transform_19, window_bounds = array<i64: 256, 64>}, {pipeline_mode = #tpu.pipeline_mode<synchronous>, transform_indices = @transform_20, window_bounds = array<i64: 64, 256>}, {pipeline_mode = #tpu.pipeline_mode<synchronous>, transform_indices = @transform_21, window_bounds = array<i64: 4, 2, 4>}, {pipeline_mode = #tpu.pipeline_mode<synchronous>, transform_indices = @transform_22, window_bounds = array<i64: 4, 256, 256>}, {pipeline_mode = #tpu.pipeline_mode<synchronous>, transform_indices = @transform_23, window_bounds = array<i64: 1, 256>}, {pipeline_mode = #tpu.pipeline_mode<synchronous>, transform_indices = @transform_24, window_bounds = array<i64: 256, 128>}, {pipeline_mode = #tpu.pipeline_mode<synchronous>, transform_indices = @transform_25, window_bounds = array<i64: 128, 256>}, {pipeline_mode = #tpu.pipeline_mode<synchronous>, transform_indices = @transform_26, window_bounds = array<i64: 512, 32>}, {pipeline_mode = #tpu.pipeline_mode<synchronous>, transform_indices = @transform_27, window_bounds = array<i64: 1, 32>}, {pipeline_mode = #tpu.pipeline_mode<synchronous>, transform_indices = @transform_28, window_bounds = array<i64: 32, 128>}, {pipeline_mode = #tpu.pipeline_mode<synchronous>, transform_indices = @transform_29, window_bounds = array<i64: 1, 128>}, {transform_indices = @transform_30, window_bounds = array<i64: 1, 1, 128>}]} {
    %c0 = arith.constant 0 : index
    %c0_0 = arith.constant 0 : index
    %c0_1 = arith.constant 0 : index
    %0 = vector.load %arg1[%c0, %c0_0, %c0_1] : memref<1x64x192xbf16, #tpu.memory_space<vmem>>, vector<1x64x192xbf16>
    %1 = vector.shape_cast %0 : vector<1x64x192xbf16> to vector<64x192xbf16>
    %cst = arith.constant 0.000000e+00 : f32
    %2 = vector.broadcast %cst : f32 to vector<32x256xf32>
    %c0_2 = arith.constant 0 : index
    %c0_3 = arith.constant 0 : index
    %c0_4 = arith.constant 0 : index
    %3 = vector.load %arg2[%c0_2, %c0_3, %c0_4] : memref<4x32x64xbf16, #tpu.memory_space<vmem>>, vector<1x32x64xbf16>
    %4 = vector.shape_cast %3 : vector<1x32x64xbf16> to vector<32x64xbf16>
    %cst_5 = arith.constant dense<0.000000e+00> : vector<32x192xf32>
    %5 = tpu.matmul %4, %1, %cst_5 {dimension_numbers = #tpu.dot_dimension_numbers<[1], [0], [0], [1], [0, 0, 1, 1], [], []>} : vector<32x64xbf16>, vector<64x192xbf16>, vector<32x192xf32> -> vector<32x192xf32>
    %6 = arith.truncf %5 : vector<32x192xf32> to vector<32x192xbf16>
    %c0_6 = arith.constant 0 : index
    %c0_7 = arith.constant 0 : index
    %c0_8 = arith.constant 0 : index
    %7 = vector.load %arg3[%c0_6, %c0_7, %c0_8] : memref<4x192x256xbf16, #tpu.memory_space<vmem>>, vector<1x192x256xbf16>
    %8 = vector.shape_cast %7 : vector<1x192x256xbf16> to vector<192x256xbf16>
    %cst_9 = arith.constant dense<0.000000e+00> : vector<32x256xf32>
    %9 = tpu.matmul %6, %8, %cst_9 {dimension_numbers = #tpu.dot_dimension_numbers<[1], [0], [0], [1], [0, 0, 1, 1], [], []>} : vector<32x192xbf16>, vector<192x256xbf16>, vector<32x256xf32> -> vector<32x256xf32>
    %10 = arith.addf %2, %9 : vector<32x256xf32>
    %c1 = arith.constant 1 : index
    %c0_10 = arith.constant 0 : index
    %c0_11 = arith.constant 0 : index
    %11 = vector.load %arg2[%c1, %c0_10, %c0_11] : memref<4x32x64xbf16, #tpu.memory_space<vmem>>, vector<1x32x64xbf16>
    %12 = vector.shape_cast %11 : vector<1x32x64xbf16> to vector<32x64xbf16>
    %cst_12 = arith.constant dense<0.000000e+00> : vector<32x192xf32>
    %13 = tpu.matmul %12, %1, %cst_12 {dimension_numbers = #tpu.dot_dimension_numbers<[1], [0], [0], [1], [0, 0, 1, 1], [], []>} : vector<32x64xbf16>, vector<64x192xbf16>, vector<32x192xf32> -> vector<32x192xf32>
    %14 = arith.truncf %13 : vector<32x192xf32> to vector<32x192xbf16>
    %c1_13 = arith.constant 1 : index
    %c0_14 = arith.constant 0 : index
    %c0_15 = arith.constant 0 : index
    %15 = vector.load %arg3[%c1_13, %c0_14, %c0_15] : memref<4x192x256xbf16, #tpu.memory_space<vmem>>, vector<1x192x256xbf16>
    %16 = vector.shape_cast %15 : vector<1x192x256xbf16> to vector<192x256xbf16>
    %cst_16 = arith.constant dense<0.000000e+00> : vector<32x256xf32>
    %17 = tpu.matmul %14, %16, %cst_16 {dimension_numbers = #tpu.dot_dimension_numbers<[1], [0], [0], [1], [0, 0, 1, 1], [], []>} : vector<32x192xbf16>, vector<192x256xbf16>, vector<32x256xf32> -> vector<32x256xf32>
    %18 = arith.addf %10, %17 : vector<32x256xf32>
    %c2 = arith.constant 2 : index
    %c0_17 = arith.constant 0 : index
    %c0_18 = arith.constant 0 : index
    %19 = vector.load %arg2[%c2, %c0_17, %c0_18] : memref<4x32x64xbf16, #tpu.memory_space<vmem>>, vector<1x32x64xbf16>
    %20 = vector.shape_cast %19 : vector<1x32x64xbf16> to vector<32x64xbf16>
    %cst_19 = arith.constant dense<0.000000e+00> : vector<32x192xf32>
    %21 = tpu.matmul %20, %1, %cst_19 {dimension_numbers = #tpu.dot_dimension_numbers<[1], [0], [0], [1], [0, 0, 1, 1], [], []>} : vector<32x64xbf16>, vector<64x192xbf16>, vector<32x192xf32> -> vector<32x192xf32>
    %22 = arith.truncf %21 : vector<32x192xf32> to vector<32x192xbf16>
    %c2_20 = arith.constant 2 : index
    %c0_21 = arith.constant 0 : index
    %c0_22 = arith.constant 0 : index
    %23 = vector.load %arg3[%c2_20, %c0_21, %c0_22] : memref<4x192x256xbf16, #tpu.memory_space<vmem>>, vector<1x192x256xbf16>
    %24 = vector.shape_cast %23 : vector<1x192x256xbf16> to vector<192x256xbf16>
    %cst_23 = arith.constant dense<0.000000e+00> : vector<32x256xf32>
    %25 = tpu.matmul %22, %24, %cst_23 {dimension_numbers = #tpu.dot_dimension_numbers<[1], [0], [0], [1], [0, 0, 1, 1], [], []>} : vector<32x192xbf16>, vector<192x256xbf16>, vector<32x256xf32> -> vector<32x256xf32>
    %26 = arith.addf %18, %25 : vector<32x256xf32>
    %c3 = arith.constant 3 : index
    %c0_24 = arith.constant 0 : index
    %c0_25 = arith.constant 0 : index
    %27 = vector.load %arg2[%c3, %c0_24, %c0_25] : memref<4x32x64xbf16, #tpu.memory_space<vmem>>, vector<1x32x64xbf16>
    %28 = vector.shape_cast %27 : vector<1x32x64xbf16> to vector<32x64xbf16>
    %cst_26 = arith.constant dense<0.000000e+00> : vector<32x192xf32>
    %29 = tpu.matmul %28, %1, %cst_26 {dimension_numbers = #tpu.dot_dimension_numbers<[1], [0], [0], [1], [0, 0, 1, 1], [], []>} : vector<32x64xbf16>, vector<64x192xbf16>, vector<32x192xf32> -> vector<32x192xf32>
    %30 = arith.truncf %29 : vector<32x192xf32> to vector<32x192xbf16>
    %c3_27 = arith.constant 3 : index
    %c0_28 = arith.constant 0 : index
    %c0_29 = arith.constant 0 : index
    %31 = vector.load %arg3[%c3_27, %c0_28, %c0_29] : memref<4x192x256xbf16, #tpu.memory_space<vmem>>, vector<1x192x256xbf16>
    %32 = vector.shape_cast %31 : vector<1x192x256xbf16> to vector<192x256xbf16>
    %cst_30 = arith.constant dense<0.000000e+00> : vector<32x256xf32>
    %33 = tpu.matmul %30, %32, %cst_30 {dimension_numbers = #tpu.dot_dimension_numbers<[1], [0], [0], [1], [0, 0, 1, 1], [], []>} : vector<32x192xbf16>, vector<192x256xbf16>, vector<32x256xf32> -> vector<32x256xf32>
    %34 = arith.addf %26, %33 : vector<32x256xf32>
    %c0_31 = arith.constant 0 : index
    %c0_32 = arith.constant 0 : index
    %35 = vector.load %arg4[%c0_31, %c0_32] : memref<1x256xf32, #tpu.memory_space<vmem>>, vector<1x256xf32>
    %36 = vector.broadcast %35 : vector<1x256xf32> to vector<32x256xf32>
    %37 = arith.addf %34, %36 : vector<32x256xf32>
    %c0_33 = arith.constant 0 : index
    %c0_34 = arith.constant 0 : index
    %38 = vector.load %arg5[%c0_33, %c0_34] : memref<256x8xbf16, #tpu.memory_space<vmem>>, vector<256x8xbf16>
    %c0_35 = arith.constant 0 : index
    %c0_36 = arith.constant 0 : index
    %39 = vector.load %arg6[%c0_35, %c0_36] : memref<8x256xbf16, #tpu.memory_space<vmem>>, vector<8x256xbf16>
    %cst_37 = arith.constant dense<0.000000e+00> : vector<256xf32>
    %40 = vector.multi_reduction <add>, %37, %cst_37 [0] : vector<32x256xf32> to vector<256xf32>
    %41 = vector.shape_cast %40 : vector<256xf32> to vector<1x256xf32>
    %42 = arith.truncf %41 : vector<1x256xf32> to vector<1x256xbf16>
    %cst_38 = arith.constant dense<0.000000e+00> : vector<1x8xf32>
    %43 = tpu.matmul %42, %38, %cst_38 {dimension_numbers = #tpu.dot_dimension_numbers<[1], [0], [0], [1], [0, 0, 1, 1], [], []>} : vector<1x256xbf16>, vector<256x8xbf16>, vector<1x8xf32> -> vector<1x8xf32>
    %44 = arith.truncf %43 : vector<1x8xf32> to vector<1x8xbf16>
    %cst_39 = arith.constant dense<0.000000e+00> : vector<1x256xf32>
    %45 = tpu.matmul %44, %39, %cst_39 {dimension_numbers = #tpu.dot_dimension_numbers<[1], [0], [0], [1], [0, 0, 1, 1], [], []>} : vector<1x8xbf16>, vector<8x256xbf16>, vector<1x256xf32> -> vector<1x256xf32>
    %46 = vector.broadcast %45 : vector<1x256xf32> to vector<32x256xf32>
    %47 = arith.subf %37, %46 : vector<32x256xf32>
    %48 = arith.mulf %47, %47 : vector<32x256xf32>
    %cst_40 = arith.constant dense<0.000000e+00> : vector<256xf32>
    %49 = vector.multi_reduction <add>, %48, %cst_40 [0] : vector<32x256xf32> to vector<256xf32>
    %50 = vector.shape_cast %49 : vector<256xf32> to vector<1x256xf32>
    %51 = arith.truncf %50 : vector<1x256xf32> to vector<1x256xbf16>
    %cst_41 = arith.constant dense<0.000000e+00> : vector<1x8xf32>
    %52 = tpu.matmul %51, %38, %cst_41 {dimension_numbers = #tpu.dot_dimension_numbers<[1], [0], [0], [1], [0, 0, 1, 1], [], []>} : vector<1x256xbf16>, vector<256x8xbf16>, vector<1x8xf32> -> vector<1x8xf32>
    %53 = arith.truncf %52 : vector<1x8xf32> to vector<1x8xbf16>
    %cst_42 = arith.constant dense<0.000000e+00> : vector<1x256xf32>
    %54 = tpu.matmul %53, %39, %cst_42 {dimension_numbers = #tpu.dot_dimension_numbers<[1], [0], [0], [1], [0, 0, 1, 1], [], []>} : vector<1x8xbf16>, vector<8x256xbf16>, vector<1x256xf32> -> vector<1x256xf32>
    %cst_43 = arith.constant 9.99999974E-6 : f32
    %55 = vector.broadcast %cst_43 : f32 to vector<1x256xf32>
    %56 = arith.addf %54, %55 : vector<1x256xf32>
    %57 = math.rsqrt %56 : vector<1x256xf32>
    %58 = vector.broadcast %57 : vector<1x256xf32> to vector<32x256xf32>
    %59 = arith.mulf %47, %58 : vector<32x256xf32>
    %cst_44 = arith.constant 0.000000e+00 : f32
    %60 = vector.broadcast %cst_44 : f32 to vector<32x256xf32>
    %61 = arith.cmpf oge, %59, %60 : vector<32x256xf32>
    %cst_45 = arith.constant 0.00999999977 : f32
    %62 = vector.broadcast %cst_45 : f32 to vector<32x256xf32>
    %63 = arith.mulf %62, %59 : vector<32x256xf32>
    %64 = arith.select %61, %59, %63 : vector<32x256xi1>, vector<32x256xf32>
    %65 = arith.truncf %64 : vector<32x256xf32> to vector<32x256xbf16>
    %cst_46 = arith.constant 0.000000e+00 : f32
    %66 = vector.broadcast %cst_46 : f32 to vector<16x256xf32>
    %c0_47 = arith.constant 0 : index
    %c0_48 = arith.constant 0 : index
    %c0_49 = arith.constant 0 : index
    %67 = vector.load %arg7[%c0_47, %c0_48, %c0_49] : memref<4x16x32xbf16, #tpu.memory_space<vmem>>, vector<1x16x32xbf16>
    %68 = vector.shape_cast %67 : vector<1x16x32xbf16> to vector<16x32xbf16>
    %cst_50 = arith.constant dense<0.000000e+00> : vector<16x256xf32>
    %69 = tpu.matmul %68, %65, %cst_50 {dimension_numbers = #tpu.dot_dimension_numbers<[1], [0], [0], [1], [0, 0, 1, 1], [], []>} : vector<16x32xbf16>, vector<32x256xbf16>, vector<16x256xf32> -> vector<16x256xf32>
    %70 = arith.truncf %69 : vector<16x256xf32> to vector<16x256xbf16>
    %c0_51 = arith.constant 0 : index
    %c0_52 = arith.constant 0 : index
    %c0_53 = arith.constant 0 : index
    %71 = vector.load %arg8[%c0_51, %c0_52, %c0_53] : memref<4x256x256xbf16, #tpu.memory_space<vmem>>, vector<1x256x256xbf16>
    %72 = vector.shape_cast %71 : vector<1x256x256xbf16> to vector<256x256xbf16>
    %cst_54 = arith.constant dense<0.000000e+00> : vector<16x256xf32>
    %73 = tpu.matmul %70, %72, %cst_54 {dimension_numbers = #tpu.dot_dimension_numbers<[1], [0], [0], [1], [0, 0, 1, 1], [], []>} : vector<16x256xbf16>, vector<256x256xbf16>, vector<16x256xf32> -> vector<16x256xf32>
    %74 = arith.addf %66, %73 : vector<16x256xf32>
    %c1_55 = arith.constant 1 : index
    %c0_56 = arith.constant 0 : index
    %c0_57 = arith.constant 0 : index
    %75 = vector.load %arg7[%c1_55, %c0_56, %c0_57] : memref<4x16x32xbf16, #tpu.memory_space<vmem>>, vector<1x16x32xbf16>
    %76 = vector.shape_cast %75 : vector<1x16x32xbf16> to vector<16x32xbf16>
    %cst_58 = arith.constant dense<0.000000e+00> : vector<16x256xf32>
    %77 = tpu.matmul %76, %65, %cst_58 {dimension_numbers = #tpu.dot_dimension_numbers<[1], [0], [0], [1], [0, 0, 1, 1], [], []>} : vector<16x32xbf16>, vector<32x256xbf16>, vector<16x256xf32> -> vector<16x256xf32>
    %78 = arith.truncf %77 : vector<16x256xf32> to vector<16x256xbf16>
    %c1_59 = arith.constant 1 : index
    %c0_60 = arith.constant 0 : index
    %c0_61 = arith.constant 0 : index
    %79 = vector.load %arg8[%c1_59, %c0_60, %c0_61] : memref<4x256x256xbf16, #tpu.memory_space<vmem>>, vector<1x256x256xbf16>
    %80 = vector.shape_cast %79 : vector<1x256x256xbf16> to vector<256x256xbf16>
    %cst_62 = arith.constant dense<0.000000e+00> : vector<16x256xf32>
    %81 = tpu.matmul %78, %80, %cst_62 {dimension_numbers = #tpu.dot_dimension_numbers<[1], [0], [0], [1], [0, 0, 1, 1], [], []>} : vector<16x256xbf16>, vector<256x256xbf16>, vector<16x256xf32> -> vector<16x256xf32>
    %82 = arith.addf %74, %81 : vector<16x256xf32>
    %c2_63 = arith.constant 2 : index
    %c0_64 = arith.constant 0 : index
    %c0_65 = arith.constant 0 : index
    %83 = vector.load %arg7[%c2_63, %c0_64, %c0_65] : memref<4x16x32xbf16, #tpu.memory_space<vmem>>, vector<1x16x32xbf16>
    %84 = vector.shape_cast %83 : vector<1x16x32xbf16> to vector<16x32xbf16>
    %cst_66 = arith.constant dense<0.000000e+00> : vector<16x256xf32>
    %85 = tpu.matmul %84, %65, %cst_66 {dimension_numbers = #tpu.dot_dimension_numbers<[1], [0], [0], [1], [0, 0, 1, 1], [], []>} : vector<16x32xbf16>, vector<32x256xbf16>, vector<16x256xf32> -> vector<16x256xf32>
    %86 = arith.truncf %85 : vector<16x256xf32> to vector<16x256xbf16>
    %c2_67 = arith.constant 2 : index
    %c0_68 = arith.constant 0 : index
    %c0_69 = arith.constant 0 : index
    %87 = vector.load %arg8[%c2_67, %c0_68, %c0_69] : memref<4x256x256xbf16, #tpu.memory_space<vmem>>, vector<1x256x256xbf16>
    %88 = vector.shape_cast %87 : vector<1x256x256xbf16> to vector<256x256xbf16>
    %cst_70 = arith.constant dense<0.000000e+00> : vector<16x256xf32>
    %89 = tpu.matmul %86, %88, %cst_70 {dimension_numbers = #tpu.dot_dimension_numbers<[1], [0], [0], [1], [0, 0, 1, 1], [], []>} : vector<16x256xbf16>, vector<256x256xbf16>, vector<16x256xf32> -> vector<16x256xf32>
    %90 = arith.addf %82, %89 : vector<16x256xf32>
    %c3_71 = arith.constant 3 : index
    %c0_72 = arith.constant 0 : index
    %c0_73 = arith.constant 0 : index
    %91 = vector.load %arg7[%c3_71, %c0_72, %c0_73] : memref<4x16x32xbf16, #tpu.memory_space<vmem>>, vector<1x16x32xbf16>
    %92 = vector.shape_cast %91 : vector<1x16x32xbf16> to vector<16x32xbf16>
    %cst_74 = arith.constant dense<0.000000e+00> : vector<16x256xf32>
    %93 = tpu.matmul %92, %65, %cst_74 {dimension_numbers = #tpu.dot_dimension_numbers<[1], [0], [0], [1], [0, 0, 1, 1], [], []>} : vector<16x32xbf16>, vector<32x256xbf16>, vector<16x256xf32> -> vector<16x256xf32>
    %94 = arith.truncf %93 : vector<16x256xf32> to vector<16x256xbf16>
    %c3_75 = arith.constant 3 : index
    %c0_76 = arith.constant 0 : index
    %c0_77 = arith.constant 0 : index
    %95 = vector.load %arg8[%c3_75, %c0_76, %c0_77] : memref<4x256x256xbf16, #tpu.memory_space<vmem>>, vector<1x256x256xbf16>
    %96 = vector.shape_cast %95 : vector<1x256x256xbf16> to vector<256x256xbf16>
    %cst_78 = arith.constant dense<0.000000e+00> : vector<16x256xf32>
    %97 = tpu.matmul %94, %96, %cst_78 {dimension_numbers = #tpu.dot_dimension_numbers<[1], [0], [0], [1], [0, 0, 1, 1], [], []>} : vector<16x256xbf16>, vector<256x256xbf16>, vector<16x256xf32> -> vector<16x256xf32>
    %98 = arith.addf %90, %97 : vector<16x256xf32>
    %c0_79 = arith.constant 0 : index
    %c0_80 = arith.constant 0 : index
    %99 = vector.load %arg9[%c0_79, %c0_80] : memref<1x256xf32, #tpu.memory_space<vmem>>, vector<1x256xf32>
    %100 = vector.broadcast %99 : vector<1x256xf32> to vector<16x256xf32>
    %101 = arith.addf %98, %100 : vector<16x256xf32>
    %c0_81 = arith.constant 0 : index
    %c0_82 = arith.constant 0 : index
    %102 = vector.load %arg10[%c0_81, %c0_82] : memref<256x16xbf16, #tpu.memory_space<vmem>>, vector<256x16xbf16>
    %c0_83 = arith.constant 0 : index
    %c0_84 = arith.constant 0 : index
    %103 = vector.load %arg11[%c0_83, %c0_84] : memref<16x256xbf16, #tpu.memory_space<vmem>>, vector<16x256xbf16>
    %cst_85 = arith.constant dense<0.000000e+00> : vector<256xf32>
    %104 = vector.multi_reduction <add>, %101, %cst_85 [0] : vector<16x256xf32> to vector<256xf32>
    %105 = vector.shape_cast %104 : vector<256xf32> to vector<1x256xf32>
    %106 = arith.truncf %105 : vector<1x256xf32> to vector<1x256xbf16>
    %cst_86 = arith.constant dense<0.000000e+00> : vector<1x16xf32>
    %107 = tpu.matmul %106, %102, %cst_86 {dimension_numbers = #tpu.dot_dimension_numbers<[1], [0], [0], [1], [0, 0, 1, 1], [], []>} : vector<1x256xbf16>, vector<256x16xbf16>, vector<1x16xf32> -> vector<1x16xf32>
    %108 = arith.truncf %107 : vector<1x16xf32> to vector<1x16xbf16>
    %cst_87 = arith.constant dense<0.000000e+00> : vector<1x256xf32>
    %109 = tpu.matmul %108, %103, %cst_87 {dimension_numbers = #tpu.dot_dimension_numbers<[1], [0], [0], [1], [0, 0, 1, 1], [], []>} : vector<1x16xbf16>, vector<16x256xbf16>, vector<1x256xf32> -> vector<1x256xf32>
    %110 = vector.broadcast %109 : vector<1x256xf32> to vector<16x256xf32>
    %111 = arith.subf %101, %110 : vector<16x256xf32>
    %112 = arith.mulf %111, %111 : vector<16x256xf32>
    %cst_88 = arith.constant dense<0.000000e+00> : vector<256xf32>
    %113 = vector.multi_reduction <add>, %112, %cst_88 [0] : vector<16x256xf32> to vector<256xf32>
    %114 = vector.shape_cast %113 : vector<256xf32> to vector<1x256xf32>
    %115 = arith.truncf %114 : vector<1x256xf32> to vector<1x256xbf16>
    %cst_89 = arith.constant dense<0.000000e+00> : vector<1x16xf32>
    %116 = tpu.matmul %115, %102, %cst_89 {dimension_numbers = #tpu.dot_dimension_numbers<[1], [0], [0], [1], [0, 0, 1, 1], [], []>} : vector<1x256xbf16>, vector<256x16xbf16>, vector<1x16xf32> -> vector<1x16xf32>
    %117 = arith.truncf %116 : vector<1x16xf32> to vector<1x16xbf16>
    %cst_90 = arith.constant dense<0.000000e+00> : vector<1x256xf32>
    %118 = tpu.matmul %117, %103, %cst_90 {dimension_numbers = #tpu.dot_dimension_numbers<[1], [0], [0], [1], [0, 0, 1, 1], [], []>} : vector<1x16xbf16>, vector<16x256xbf16>, vector<1x256xf32> -> vector<1x256xf32>
    %cst_91 = arith.constant 9.99999974E-6 : f32
    %119 = vector.broadcast %cst_91 : f32 to vector<1x256xf32>
    %120 = arith.addf %118, %119 : vector<1x256xf32>
    %121 = math.rsqrt %120 : vector<1x256xf32>
    %122 = vector.broadcast %121 : vector<1x256xf32> to vector<16x256xf32>
    %123 = arith.mulf %111, %122 : vector<16x256xf32>
    %cst_92 = arith.constant 0.000000e+00 : f32
    %124 = vector.broadcast %cst_92 : f32 to vector<16x256xf32>
    %125 = arith.cmpf oge, %123, %124 : vector<16x256xf32>
    %cst_93 = arith.constant 0.00999999977 : f32
    %126 = vector.broadcast %cst_93 : f32 to vector<16x256xf32>
    %127 = arith.mulf %126, %123 : vector<16x256xf32>
    %128 = arith.select %125, %123, %127 : vector<16x256xi1>, vector<16x256xf32>
    %129 = arith.truncf %128 : vector<16x256xf32> to vector<16x256xbf16>
    %cst_94 = arith.constant 0.000000e+00 : f32
    %130 = vector.broadcast %cst_94 : f32 to vector<8x256xf32>
    %c0_95 = arith.constant 0 : index
    %c0_96 = arith.constant 0 : index
    %c0_97 = arith.constant 0 : index
    %131 = vector.load %arg12[%c0_95, %c0_96, %c0_97] : memref<4x8x16xbf16, #tpu.memory_space<vmem>>, vector<1x8x16xbf16>
    %132 = vector.shape_cast %131 : vector<1x8x16xbf16> to vector<8x16xbf16>
    %cst_98 = arith.constant dense<0.000000e+00> : vector<8x256xf32>
    %133 = tpu.matmul %132, %129, %cst_98 {dimension_numbers = #tpu.dot_dimension_numbers<[1], [0], [0], [1], [0, 0, 1, 1], [], []>} : vector<8x16xbf16>, vector<16x256xbf16>, vector<8x256xf32> -> vector<8x256xf32>
    %134 = arith.truncf %133 : vector<8x256xf32> to vector<8x256xbf16>
    %c0_99 = arith.constant 0 : index
    %c0_100 = arith.constant 0 : index
    %c0_101 = arith.constant 0 : index
    %135 = vector.load %arg13[%c0_99, %c0_100, %c0_101] : memref<4x256x256xbf16, #tpu.memory_space<vmem>>, vector<1x256x256xbf16>
    %136 = vector.shape_cast %135 : vector<1x256x256xbf16> to vector<256x256xbf16>
    %cst_102 = arith.constant dense<0.000000e+00> : vector<8x256xf32>
    %137 = tpu.matmul %134, %136, %cst_102 {dimension_numbers = #tpu.dot_dimension_numbers<[1], [0], [0], [1], [0, 0, 1, 1], [], []>} : vector<8x256xbf16>, vector<256x256xbf16>, vector<8x256xf32> -> vector<8x256xf32>
    %138 = arith.addf %130, %137 : vector<8x256xf32>
    %c1_103 = arith.constant 1 : index
    %c0_104 = arith.constant 0 : index
    %c0_105 = arith.constant 0 : index
    %139 = vector.load %arg12[%c1_103, %c0_104, %c0_105] : memref<4x8x16xbf16, #tpu.memory_space<vmem>>, vector<1x8x16xbf16>
    %140 = vector.shape_cast %139 : vector<1x8x16xbf16> to vector<8x16xbf16>
    %cst_106 = arith.constant dense<0.000000e+00> : vector<8x256xf32>
    %141 = tpu.matmul %140, %129, %cst_106 {dimension_numbers = #tpu.dot_dimension_numbers<[1], [0], [0], [1], [0, 0, 1, 1], [], []>} : vector<8x16xbf16>, vector<16x256xbf16>, vector<8x256xf32> -> vector<8x256xf32>
    %142 = arith.truncf %141 : vector<8x256xf32> to vector<8x256xbf16>
    %c1_107 = arith.constant 1 : index
    %c0_108 = arith.constant 0 : index
    %c0_109 = arith.constant 0 : index
    %143 = vector.load %arg13[%c1_107, %c0_108, %c0_109] : memref<4x256x256xbf16, #tpu.memory_space<vmem>>, vector<1x256x256xbf16>
    %144 = vector.shape_cast %143 : vector<1x256x256xbf16> to vector<256x256xbf16>
    %cst_110 = arith.constant dense<0.000000e+00> : vector<8x256xf32>
    %145 = tpu.matmul %142, %144, %cst_110 {dimension_numbers = #tpu.dot_dimension_numbers<[1], [0], [0], [1], [0, 0, 1, 1], [], []>} : vector<8x256xbf16>, vector<256x256xbf16>, vector<8x256xf32> -> vector<8x256xf32>
    %146 = arith.addf %138, %145 : vector<8x256xf32>
    %c2_111 = arith.constant 2 : index
    %c0_112 = arith.constant 0 : index
    %c0_113 = arith.constant 0 : index
    %147 = vector.load %arg12[%c2_111, %c0_112, %c0_113] : memref<4x8x16xbf16, #tpu.memory_space<vmem>>, vector<1x8x16xbf16>
    %148 = vector.shape_cast %147 : vector<1x8x16xbf16> to vector<8x16xbf16>
    %cst_114 = arith.constant dense<0.000000e+00> : vector<8x256xf32>
    %149 = tpu.matmul %148, %129, %cst_114 {dimension_numbers = #tpu.dot_dimension_numbers<[1], [0], [0], [1], [0, 0, 1, 1], [], []>} : vector<8x16xbf16>, vector<16x256xbf16>, vector<8x256xf32> -> vector<8x256xf32>
    %150 = arith.truncf %149 : vector<8x256xf32> to vector<8x256xbf16>
    %c2_115 = arith.constant 2 : index
    %c0_116 = arith.constant 0 : index
    %c0_117 = arith.constant 0 : index
    %151 = vector.load %arg13[%c2_115, %c0_116, %c0_117] : memref<4x256x256xbf16, #tpu.memory_space<vmem>>, vector<1x256x256xbf16>
    %152 = vector.shape_cast %151 : vector<1x256x256xbf16> to vector<256x256xbf16>
    %cst_118 = arith.constant dense<0.000000e+00> : vector<8x256xf32>
    %153 = tpu.matmul %150, %152, %cst_118 {dimension_numbers = #tpu.dot_dimension_numbers<[1], [0], [0], [1], [0, 0, 1, 1], [], []>} : vector<8x256xbf16>, vector<256x256xbf16>, vector<8x256xf32> -> vector<8x256xf32>
    %154 = arith.addf %146, %153 : vector<8x256xf32>
    %c3_119 = arith.constant 3 : index
    %c0_120 = arith.constant 0 : index
    %c0_121 = arith.constant 0 : index
    %155 = vector.load %arg12[%c3_119, %c0_120, %c0_121] : memref<4x8x16xbf16, #tpu.memory_space<vmem>>, vector<1x8x16xbf16>
    %156 = vector.shape_cast %155 : vector<1x8x16xbf16> to vector<8x16xbf16>
    %cst_122 = arith.constant dense<0.000000e+00> : vector<8x256xf32>
    %157 = tpu.matmul %156, %129, %cst_122 {dimension_numbers = #tpu.dot_dimension_numbers<[1], [0], [0], [1], [0, 0, 1, 1], [], []>} : vector<8x16xbf16>, vector<16x256xbf16>, vector<8x256xf32> -> vector<8x256xf32>
    %158 = arith.truncf %157 : vector<8x256xf32> to vector<8x256xbf16>
    %c3_123 = arith.constant 3 : index
    %c0_124 = arith.constant 0 : index
    %c0_125 = arith.constant 0 : index
    %159 = vector.load %arg13[%c3_123, %c0_124, %c0_125] : memref<4x256x256xbf16, #tpu.memory_space<vmem>>, vector<1x256x256xbf16>
    %160 = vector.shape_cast %159 : vector<1x256x256xbf16> to vector<256x256xbf16>
    %cst_126 = arith.constant dense<0.000000e+00> : vector<8x256xf32>
    %161 = tpu.matmul %158, %160, %cst_126 {dimension_numbers = #tpu.dot_dimension_numbers<[1], [0], [0], [1], [0, 0, 1, 1], [], []>} : vector<8x256xbf16>, vector<256x256xbf16>, vector<8x256xf32> -> vector<8x256xf32>
    %162 = arith.addf %154, %161 : vector<8x256xf32>
    %c0_127 = arith.constant 0 : index
    %c0_128 = arith.constant 0 : index
    %163 = vector.load %arg14[%c0_127, %c0_128] : memref<1x256xf32, #tpu.memory_space<vmem>>, vector<1x256xf32>
    %164 = vector.broadcast %163 : vector<1x256xf32> to vector<8x256xf32>
    %165 = arith.addf %162, %164 : vector<8x256xf32>
    %c0_129 = arith.constant 0 : index
    %c0_130 = arith.constant 0 : index
    %166 = vector.load %arg15[%c0_129, %c0_130] : memref<256x32xbf16, #tpu.memory_space<vmem>>, vector<256x32xbf16>
    %c0_131 = arith.constant 0 : index
    %c0_132 = arith.constant 0 : index
    %167 = vector.load %arg16[%c0_131, %c0_132] : memref<32x256xbf16, #tpu.memory_space<vmem>>, vector<32x256xbf16>
    %cst_133 = arith.constant dense<0.000000e+00> : vector<256xf32>
    %168 = vector.multi_reduction <add>, %165, %cst_133 [0] : vector<8x256xf32> to vector<256xf32>
    %169 = vector.shape_cast %168 : vector<256xf32> to vector<1x256xf32>
    %170 = arith.truncf %169 : vector<1x256xf32> to vector<1x256xbf16>
    %cst_134 = arith.constant dense<0.000000e+00> : vector<1x32xf32>
    %171 = tpu.matmul %170, %166, %cst_134 {dimension_numbers = #tpu.dot_dimension_numbers<[1], [0], [0], [1], [0, 0, 1, 1], [], []>} : vector<1x256xbf16>, vector<256x32xbf16>, vector<1x32xf32> -> vector<1x32xf32>
    %172 = arith.truncf %171 : vector<1x32xf32> to vector<1x32xbf16>
    %cst_135 = arith.constant dense<0.000000e+00> : vector<1x256xf32>
    %173 = tpu.matmul %172, %167, %cst_135 {dimension_numbers = #tpu.dot_dimension_numbers<[1], [0], [0], [1], [0, 0, 1, 1], [], []>} : vector<1x32xbf16>, vector<32x256xbf16>, vector<1x256xf32> -> vector<1x256xf32>
    %174 = vector.broadcast %173 : vector<1x256xf32> to vector<8x256xf32>
    %175 = arith.subf %165, %174 : vector<8x256xf32>
    %176 = arith.mulf %175, %175 : vector<8x256xf32>
    %cst_136 = arith.constant dense<0.000000e+00> : vector<256xf32>
    %177 = vector.multi_reduction <add>, %176, %cst_136 [0] : vector<8x256xf32> to vector<256xf32>
    %178 = vector.shape_cast %177 : vector<256xf32> to vector<1x256xf32>
    %179 = arith.truncf %178 : vector<1x256xf32> to vector<1x256xbf16>
    %cst_137 = arith.constant dense<0.000000e+00> : vector<1x32xf32>
    %180 = tpu.matmul %179, %166, %cst_137 {dimension_numbers = #tpu.dot_dimension_numbers<[1], [0], [0], [1], [0, 0, 1, 1], [], []>} : vector<1x256xbf16>, vector<256x32xbf16>, vector<1x32xf32> -> vector<1x32xf32>
    %181 = arith.truncf %180 : vector<1x32xf32> to vector<1x32xbf16>
    %cst_138 = arith.constant dense<0.000000e+00> : vector<1x256xf32>
    %182 = tpu.matmul %181, %167, %cst_138 {dimension_numbers = #tpu.dot_dimension_numbers<[1], [0], [0], [1], [0, 0, 1, 1], [], []>} : vector<1x32xbf16>, vector<32x256xbf16>, vector<1x256xf32> -> vector<1x256xf32>
    %cst_139 = arith.constant 9.99999974E-6 : f32
    %183 = vector.broadcast %cst_139 : f32 to vector<1x256xf32>
    %184 = arith.addf %182, %183 : vector<1x256xf32>
    %185 = math.rsqrt %184 : vector<1x256xf32>
    %186 = vector.broadcast %185 : vector<1x256xf32> to vector<8x256xf32>
    %187 = arith.mulf %175, %186 : vector<8x256xf32>
    %cst_140 = arith.constant 0.000000e+00 : f32
    %188 = vector.broadcast %cst_140 : f32 to vector<8x256xf32>
    %189 = arith.cmpf oge, %187, %188 : vector<8x256xf32>
    %cst_141 = arith.constant 0.00999999977 : f32
    %190 = vector.broadcast %cst_141 : f32 to vector<8x256xf32>
    %191 = arith.mulf %190, %187 : vector<8x256xf32>
    %192 = arith.select %189, %187, %191 : vector<8x256xi1>, vector<8x256xf32>
    %193 = arith.truncf %192 : vector<8x256xf32> to vector<8x256xbf16>
    %cst_142 = arith.constant 0.000000e+00 : f32
    %194 = vector.broadcast %cst_142 : f32 to vector<4x256xf32>
    %c0_143 = arith.constant 0 : index
    %c0_144 = arith.constant 0 : index
    %c0_145 = arith.constant 0 : index
    %195 = vector.load %arg17[%c0_143, %c0_144, %c0_145] : memref<4x4x8xbf16, #tpu.memory_space<vmem>>, vector<1x4x8xbf16>
    %196 = vector.shape_cast %195 : vector<1x4x8xbf16> to vector<4x8xbf16>
    %cst_146 = arith.constant dense<0.000000e+00> : vector<4x256xf32>
    %197 = tpu.matmul %196, %193, %cst_146 {dimension_numbers = #tpu.dot_dimension_numbers<[1], [0], [0], [1], [0, 0, 1, 1], [], []>} : vector<4x8xbf16>, vector<8x256xbf16>, vector<4x256xf32> -> vector<4x256xf32>
    %198 = arith.truncf %197 : vector<4x256xf32> to vector<4x256xbf16>
    %c0_147 = arith.constant 0 : index
    %c0_148 = arith.constant 0 : index
    %c0_149 = arith.constant 0 : index
    %199 = vector.load %arg18[%c0_147, %c0_148, %c0_149] : memref<4x256x256xbf16, #tpu.memory_space<vmem>>, vector<1x256x256xbf16>
    %200 = vector.shape_cast %199 : vector<1x256x256xbf16> to vector<256x256xbf16>
    %cst_150 = arith.constant dense<0.000000e+00> : vector<4x256xf32>
    %201 = tpu.matmul %198, %200, %cst_150 {dimension_numbers = #tpu.dot_dimension_numbers<[1], [0], [0], [1], [0, 0, 1, 1], [], []>} : vector<4x256xbf16>, vector<256x256xbf16>, vector<4x256xf32> -> vector<4x256xf32>
    %202 = arith.addf %194, %201 : vector<4x256xf32>
    %c1_151 = arith.constant 1 : index
    %c0_152 = arith.constant 0 : index
    %c0_153 = arith.constant 0 : index
    %203 = vector.load %arg17[%c1_151, %c0_152, %c0_153] : memref<4x4x8xbf16, #tpu.memory_space<vmem>>, vector<1x4x8xbf16>
    %204 = vector.shape_cast %203 : vector<1x4x8xbf16> to vector<4x8xbf16>
    %cst_154 = arith.constant dense<0.000000e+00> : vector<4x256xf32>
    %205 = tpu.matmul %204, %193, %cst_154 {dimension_numbers = #tpu.dot_dimension_numbers<[1], [0], [0], [1], [0, 0, 1, 1], [], []>} : vector<4x8xbf16>, vector<8x256xbf16>, vector<4x256xf32> -> vector<4x256xf32>
    %206 = arith.truncf %205 : vector<4x256xf32> to vector<4x256xbf16>
    %c1_155 = arith.constant 1 : index
    %c0_156 = arith.constant 0 : index
    %c0_157 = arith.constant 0 : index
    %207 = vector.load %arg18[%c1_155, %c0_156, %c0_157] : memref<4x256x256xbf16, #tpu.memory_space<vmem>>, vector<1x256x256xbf16>
    %208 = vector.shape_cast %207 : vector<1x256x256xbf16> to vector<256x256xbf16>
    %cst_158 = arith.constant dense<0.000000e+00> : vector<4x256xf32>
    %209 = tpu.matmul %206, %208, %cst_158 {dimension_numbers = #tpu.dot_dimension_numbers<[1], [0], [0], [1], [0, 0, 1, 1], [], []>} : vector<4x256xbf16>, vector<256x256xbf16>, vector<4x256xf32> -> vector<4x256xf32>
    %210 = arith.addf %202, %209 : vector<4x256xf32>
    %c2_159 = arith.constant 2 : index
    %c0_160 = arith.constant 0 : index
    %c0_161 = arith.constant 0 : index
    %211 = vector.load %arg17[%c2_159, %c0_160, %c0_161] : memref<4x4x8xbf16, #tpu.memory_space<vmem>>, vector<1x4x8xbf16>
    %212 = vector.shape_cast %211 : vector<1x4x8xbf16> to vector<4x8xbf16>
    %cst_162 = arith.constant dense<0.000000e+00> : vector<4x256xf32>
    %213 = tpu.matmul %212, %193, %cst_162 {dimension_numbers = #tpu.dot_dimension_numbers<[1], [0], [0], [1], [0, 0, 1, 1], [], []>} : vector<4x8xbf16>, vector<8x256xbf16>, vector<4x256xf32> -> vector<4x256xf32>
    %214 = arith.truncf %213 : vector<4x256xf32> to vector<4x256xbf16>
    %c2_163 = arith.constant 2 : index
    %c0_164 = arith.constant 0 : index
    %c0_165 = arith.constant 0 : index
    %215 = vector.load %arg18[%c2_163, %c0_164, %c0_165] : memref<4x256x256xbf16, #tpu.memory_space<vmem>>, vector<1x256x256xbf16>
    %216 = vector.shape_cast %215 : vector<1x256x256xbf16> to vector<256x256xbf16>
    %cst_166 = arith.constant dense<0.000000e+00> : vector<4x256xf32>
    %217 = tpu.matmul %214, %216, %cst_166 {dimension_numbers = #tpu.dot_dimension_numbers<[1], [0], [0], [1], [0, 0, 1, 1], [], []>} : vector<4x256xbf16>, vector<256x256xbf16>, vector<4x256xf32> -> vector<4x256xf32>
    %218 = arith.addf %210, %217 : vector<4x256xf32>
    %c3_167 = arith.constant 3 : index
    %c0_168 = arith.constant 0 : index
    %c0_169 = arith.constant 0 : index
    %219 = vector.load %arg17[%c3_167, %c0_168, %c0_169] : memref<4x4x8xbf16, #tpu.memory_space<vmem>>, vector<1x4x8xbf16>
    %220 = vector.shape_cast %219 : vector<1x4x8xbf16> to vector<4x8xbf16>
    %cst_170 = arith.constant dense<0.000000e+00> : vector<4x256xf32>
    %221 = tpu.matmul %220, %193, %cst_170 {dimension_numbers = #tpu.dot_dimension_numbers<[1], [0], [0], [1], [0, 0, 1, 1], [], []>} : vector<4x8xbf16>, vector<8x256xbf16>, vector<4x256xf32> -> vector<4x256xf32>
    %222 = arith.truncf %221 : vector<4x256xf32> to vector<4x256xbf16>
    %c3_171 = arith.constant 3 : index
    %c0_172 = arith.constant 0 : index
    %c0_173 = arith.constant 0 : index
    %223 = vector.load %arg18[%c3_171, %c0_172, %c0_173] : memref<4x256x256xbf16, #tpu.memory_space<vmem>>, vector<1x256x256xbf16>
    %224 = vector.shape_cast %223 : vector<1x256x256xbf16> to vector<256x256xbf16>
    %cst_174 = arith.constant dense<0.000000e+00> : vector<4x256xf32>
    %225 = tpu.matmul %222, %224, %cst_174 {dimension_numbers = #tpu.dot_dimension_numbers<[1], [0], [0], [1], [0, 0, 1, 1], [], []>} : vector<4x256xbf16>, vector<256x256xbf16>, vector<4x256xf32> -> vector<4x256xf32>
    %226 = arith.addf %218, %225 : vector<4x256xf32>
    %c0_175 = arith.constant 0 : index
    %c0_176 = arith.constant 0 : index
    %227 = vector.load %arg19[%c0_175, %c0_176] : memref<1x256xf32, #tpu.memory_space<vmem>>, vector<1x256xf32>
    %228 = vector.broadcast %227 : vector<1x256xf32> to vector<4x256xf32>
    %229 = arith.addf %226, %228 : vector<4x256xf32>
    %c0_177 = arith.constant 0 : index
    %c0_178 = arith.constant 0 : index
    %230 = vector.load %arg20[%c0_177, %c0_178] : memref<256x64xbf16, #tpu.memory_space<vmem>>, vector<256x64xbf16>
    %c0_179 = arith.constant 0 : index
    %c0_180 = arith.constant 0 : index
    %231 = vector.load %arg21[%c0_179, %c0_180] : memref<64x256xbf16, #tpu.memory_space<vmem>>, vector<64x256xbf16>
    %cst_181 = arith.constant dense<0.000000e+00> : vector<256xf32>
    %232 = vector.multi_reduction <add>, %229, %cst_181 [0] : vector<4x256xf32> to vector<256xf32>
    %233 = vector.shape_cast %232 : vector<256xf32> to vector<1x256xf32>
    %234 = arith.truncf %233 : vector<1x256xf32> to vector<1x256xbf16>
    %cst_182 = arith.constant dense<0.000000e+00> : vector<1x64xf32>
    %235 = tpu.matmul %234, %230, %cst_182 {dimension_numbers = #tpu.dot_dimension_numbers<[1], [0], [0], [1], [0, 0, 1, 1], [], []>} : vector<1x256xbf16>, vector<256x64xbf16>, vector<1x64xf32> -> vector<1x64xf32>
    %236 = arith.truncf %235 : vector<1x64xf32> to vector<1x64xbf16>
    %cst_183 = arith.constant dense<0.000000e+00> : vector<1x256xf32>
    %237 = tpu.matmul %236, %231, %cst_183 {dimension_numbers = #tpu.dot_dimension_numbers<[1], [0], [0], [1], [0, 0, 1, 1], [], []>} : vector<1x64xbf16>, vector<64x256xbf16>, vector<1x256xf32> -> vector<1x256xf32>
    %238 = vector.broadcast %237 : vector<1x256xf32> to vector<4x256xf32>
    %239 = arith.subf %229, %238 : vector<4x256xf32>
    %240 = arith.mulf %239, %239 : vector<4x256xf32>
    %cst_184 = arith.constant dense<0.000000e+00> : vector<256xf32>
    %241 = vector.multi_reduction <add>, %240, %cst_184 [0] : vector<4x256xf32> to vector<256xf32>
    %242 = vector.shape_cast %241 : vector<256xf32> to vector<1x256xf32>
    %243 = arith.truncf %242 : vector<1x256xf32> to vector<1x256xbf16>
    %cst_185 = arith.constant dense<0.000000e+00> : vector<1x64xf32>
    %244 = tpu.matmul %243, %230, %cst_185 {dimension_numbers = #tpu.dot_dimension_numbers<[1], [0], [0], [1], [0, 0, 1, 1], [], []>} : vector<1x256xbf16>, vector<256x64xbf16>, vector<1x64xf32> -> vector<1x64xf32>
    %245 = arith.truncf %244 : vector<1x64xf32> to vector<1x64xbf16>
    %cst_186 = arith.constant dense<0.000000e+00> : vector<1x256xf32>
    %246 = tpu.matmul %245, %231, %cst_186 {dimension_numbers = #tpu.dot_dimension_numbers<[1], [0], [0], [1], [0, 0, 1, 1], [], []>} : vector<1x64xbf16>, vector<64x256xbf16>, vector<1x256xf32> -> vector<1x256xf32>
    %cst_187 = arith.constant 9.99999974E-6 : f32
    %247 = vector.broadcast %cst_187 : f32 to vector<1x256xf32>
    %248 = arith.addf %246, %247 : vector<1x256xf32>
    %249 = math.rsqrt %248 : vector<1x256xf32>
    %250 = vector.broadcast %249 : vector<1x256xf32> to vector<4x256xf32>
    %251 = arith.mulf %239, %250 : vector<4x256xf32>
    %cst_188 = arith.constant 0.000000e+00 : f32
    %252 = vector.broadcast %cst_188 : f32 to vector<4x256xf32>
    %253 = arith.cmpf oge, %251, %252 : vector<4x256xf32>
    %cst_189 = arith.constant 0.00999999977 : f32
    %254 = vector.broadcast %cst_189 : f32 to vector<4x256xf32>
    %255 = arith.mulf %254, %251 : vector<4x256xf32>
    %256 = arith.select %253, %251, %255 : vector<4x256xi1>, vector<4x256xf32>
    %257 = arith.truncf %256 : vector<4x256xf32> to vector<4x256xbf16>
    %cst_190 = arith.constant 0.000000e+00 : f32
    %258 = vector.broadcast %cst_190 : f32 to vector<2x256xf32>
    %c0_191 = arith.constant 0 : index
    %c0_192 = arith.constant 0 : index
    %c0_193 = arith.constant 0 : index
    %259 = vector.load %arg22[%c0_191, %c0_192, %c0_193] : memref<4x2x4xbf16, #tpu.memory_space<vmem>>, vector<1x2x4xbf16>
    %260 = vector.shape_cast %259 : vector<1x2x4xbf16> to vector<2x4xbf16>
    %cst_194 = arith.constant dense<0.000000e+00> : vector<2x256xf32>
    %261 = tpu.matmul %260, %257, %cst_194 {dimension_numbers = #tpu.dot_dimension_numbers<[1], [0], [0], [1], [0, 0, 1, 1], [], []>} : vector<2x4xbf16>, vector<4x256xbf16>, vector<2x256xf32> -> vector<2x256xf32>
    %262 = arith.truncf %261 : vector<2x256xf32> to vector<2x256xbf16>
    %c0_195 = arith.constant 0 : index
    %c0_196 = arith.constant 0 : index
    %c0_197 = arith.constant 0 : index
    %263 = vector.load %arg23[%c0_195, %c0_196, %c0_197] : memref<4x256x256xbf16, #tpu.memory_space<vmem>>, vector<1x256x256xbf16>
    %264 = vector.shape_cast %263 : vector<1x256x256xbf16> to vector<256x256xbf16>
    %cst_198 = arith.constant dense<0.000000e+00> : vector<2x256xf32>
    %265 = tpu.matmul %262, %264, %cst_198 {dimension_numbers = #tpu.dot_dimension_numbers<[1], [0], [0], [1], [0, 0, 1, 1], [], []>} : vector<2x256xbf16>, vector<256x256xbf16>, vector<2x256xf32> -> vector<2x256xf32>
    %266 = arith.addf %258, %265 : vector<2x256xf32>
    %c1_199 = arith.constant 1 : index
    %c0_200 = arith.constant 0 : index
    %c0_201 = arith.constant 0 : index
    %267 = vector.load %arg22[%c1_199, %c0_200, %c0_201] : memref<4x2x4xbf16, #tpu.memory_space<vmem>>, vector<1x2x4xbf16>
    %268 = vector.shape_cast %267 : vector<1x2x4xbf16> to vector<2x4xbf16>
    %cst_202 = arith.constant dense<0.000000e+00> : vector<2x256xf32>
    %269 = tpu.matmul %268, %257, %cst_202 {dimension_numbers = #tpu.dot_dimension_numbers<[1], [0], [0], [1], [0, 0, 1, 1], [], []>} : vector<2x4xbf16>, vector<4x256xbf16>, vector<2x256xf32> -> vector<2x256xf32>
    %270 = arith.truncf %269 : vector<2x256xf32> to vector<2x256xbf16>
    %c1_203 = arith.constant 1 : index
    %c0_204 = arith.constant 0 : index
    %c0_205 = arith.constant 0 : index
    %271 = vector.load %arg23[%c1_203, %c0_204, %c0_205] : memref<4x256x256xbf16, #tpu.memory_space<vmem>>, vector<1x256x256xbf16>
    %272 = vector.shape_cast %271 : vector<1x256x256xbf16> to vector<256x256xbf16>
    %cst_206 = arith.constant dense<0.000000e+00> : vector<2x256xf32>
    %273 = tpu.matmul %270, %272, %cst_206 {dimension_numbers = #tpu.dot_dimension_numbers<[1], [0], [0], [1], [0, 0, 1, 1], [], []>} : vector<2x256xbf16>, vector<256x256xbf16>, vector<2x256xf32> -> vector<2x256xf32>
    %274 = arith.addf %266, %273 : vector<2x256xf32>
    %c2_207 = arith.constant 2 : index
    %c0_208 = arith.constant 0 : index
    %c0_209 = arith.constant 0 : index
    %275 = vector.load %arg22[%c2_207, %c0_208, %c0_209] : memref<4x2x4xbf16, #tpu.memory_space<vmem>>, vector<1x2x4xbf16>
    %276 = vector.shape_cast %275 : vector<1x2x4xbf16> to vector<2x4xbf16>
    %cst_210 = arith.constant dense<0.000000e+00> : vector<2x256xf32>
    %277 = tpu.matmul %276, %257, %cst_210 {dimension_numbers = #tpu.dot_dimension_numbers<[1], [0], [0], [1], [0, 0, 1, 1], [], []>} : vector<2x4xbf16>, vector<4x256xbf16>, vector<2x256xf32> -> vector<2x256xf32>
    %278 = arith.truncf %277 : vector<2x256xf32> to vector<2x256xbf16>
    %c2_211 = arith.constant 2 : index
    %c0_212 = arith.constant 0 : index
    %c0_213 = arith.constant 0 : index
    %279 = vector.load %arg23[%c2_211, %c0_212, %c0_213] : memref<4x256x256xbf16, #tpu.memory_space<vmem>>, vector<1x256x256xbf16>
    %280 = vector.shape_cast %279 : vector<1x256x256xbf16> to vector<256x256xbf16>
    %cst_214 = arith.constant dense<0.000000e+00> : vector<2x256xf32>
    %281 = tpu.matmul %278, %280, %cst_214 {dimension_numbers = #tpu.dot_dimension_numbers<[1], [0], [0], [1], [0, 0, 1, 1], [], []>} : vector<2x256xbf16>, vector<256x256xbf16>, vector<2x256xf32> -> vector<2x256xf32>
    %282 = arith.addf %274, %281 : vector<2x256xf32>
    %c3_215 = arith.constant 3 : index
    %c0_216 = arith.constant 0 : index
    %c0_217 = arith.constant 0 : index
    %283 = vector.load %arg22[%c3_215, %c0_216, %c0_217] : memref<4x2x4xbf16, #tpu.memory_space<vmem>>, vector<1x2x4xbf16>
    %284 = vector.shape_cast %283 : vector<1x2x4xbf16> to vector<2x4xbf16>
    %cst_218 = arith.constant dense<0.000000e+00> : vector<2x256xf32>
    %285 = tpu.matmul %284, %257, %cst_218 {dimension_numbers = #tpu.dot_dimension_numbers<[1], [0], [0], [1], [0, 0, 1, 1], [], []>} : vector<2x4xbf16>, vector<4x256xbf16>, vector<2x256xf32> -> vector<2x256xf32>
    %286 = arith.truncf %285 : vector<2x256xf32> to vector<2x256xbf16>
    %c3_219 = arith.constant 3 : index
    %c0_220 = arith.constant 0 : index
    %c0_221 = arith.constant 0 : index
    %287 = vector.load %arg23[%c3_219, %c0_220, %c0_221] : memref<4x256x256xbf16, #tpu.memory_space<vmem>>, vector<1x256x256xbf16>
    %288 = vector.shape_cast %287 : vector<1x256x256xbf16> to vector<256x256xbf16>
    %cst_222 = arith.constant dense<0.000000e+00> : vector<2x256xf32>
    %289 = tpu.matmul %286, %288, %cst_222 {dimension_numbers = #tpu.dot_dimension_numbers<[1], [0], [0], [1], [0, 0, 1, 1], [], []>} : vector<2x256xbf16>, vector<256x256xbf16>, vector<2x256xf32> -> vector<2x256xf32>
    %290 = arith.addf %282, %289 : vector<2x256xf32>
    %c0_223 = arith.constant 0 : index
    %c0_224 = arith.constant 0 : index
    %291 = vector.load %arg24[%c0_223, %c0_224] : memref<1x256xf32, #tpu.memory_space<vmem>>, vector<1x256xf32>
    %292 = vector.broadcast %291 : vector<1x256xf32> to vector<2x256xf32>
    %293 = arith.addf %290, %292 : vector<2x256xf32>
    %c0_225 = arith.constant 0 : index
    %c0_226 = arith.constant 0 : index
    %294 = vector.load %arg25[%c0_225, %c0_226] : memref<256x128xbf16, #tpu.memory_space<vmem>>, vector<256x128xbf16>
    %c0_227 = arith.constant 0 : index
    %c0_228 = arith.constant 0 : index
    %295 = vector.load %arg26[%c0_227, %c0_228] : memref<128x256xbf16, #tpu.memory_space<vmem>>, vector<128x256xbf16>
    %cst_229 = arith.constant dense<0.000000e+00> : vector<256xf32>
    %296 = vector.multi_reduction <add>, %293, %cst_229 [0] : vector<2x256xf32> to vector<256xf32>
    %297 = vector.shape_cast %296 : vector<256xf32> to vector<1x256xf32>
    %298 = arith.truncf %297 : vector<1x256xf32> to vector<1x256xbf16>
    %cst_230 = arith.constant dense<0.000000e+00> : vector<1x128xf32>
    %299 = tpu.matmul %298, %294, %cst_230 {dimension_numbers = #tpu.dot_dimension_numbers<[1], [0], [0], [1], [0, 0, 1, 1], [], []>} : vector<1x256xbf16>, vector<256x128xbf16>, vector<1x128xf32> -> vector<1x128xf32>
    %300 = arith.truncf %299 : vector<1x128xf32> to vector<1x128xbf16>
    %cst_231 = arith.constant dense<0.000000e+00> : vector<1x256xf32>
    %301 = tpu.matmul %300, %295, %cst_231 {dimension_numbers = #tpu.dot_dimension_numbers<[1], [0], [0], [1], [0, 0, 1, 1], [], []>} : vector<1x128xbf16>, vector<128x256xbf16>, vector<1x256xf32> -> vector<1x256xf32>
    %302 = vector.broadcast %301 : vector<1x256xf32> to vector<2x256xf32>
    %303 = arith.subf %293, %302 : vector<2x256xf32>
    %304 = arith.mulf %303, %303 : vector<2x256xf32>
    %cst_232 = arith.constant dense<0.000000e+00> : vector<256xf32>
    %305 = vector.multi_reduction <add>, %304, %cst_232 [0] : vector<2x256xf32> to vector<256xf32>
    %306 = vector.shape_cast %305 : vector<256xf32> to vector<1x256xf32>
    %307 = arith.truncf %306 : vector<1x256xf32> to vector<1x256xbf16>
    %cst_233 = arith.constant dense<0.000000e+00> : vector<1x128xf32>
    %308 = tpu.matmul %307, %294, %cst_233 {dimension_numbers = #tpu.dot_dimension_numbers<[1], [0], [0], [1], [0, 0, 1, 1], [], []>} : vector<1x256xbf16>, vector<256x128xbf16>, vector<1x128xf32> -> vector<1x128xf32>
    %309 = arith.truncf %308 : vector<1x128xf32> to vector<1x128xbf16>
    %cst_234 = arith.constant dense<0.000000e+00> : vector<1x256xf32>
    %310 = tpu.matmul %309, %295, %cst_234 {dimension_numbers = #tpu.dot_dimension_numbers<[1], [0], [0], [1], [0, 0, 1, 1], [], []>} : vector<1x128xbf16>, vector<128x256xbf16>, vector<1x256xf32> -> vector<1x256xf32>
    %cst_235 = arith.constant 9.99999974E-6 : f32
    %311 = vector.broadcast %cst_235 : f32 to vector<1x256xf32>
    %312 = arith.addf %310, %311 : vector<1x256xf32>
    %313 = math.rsqrt %312 : vector<1x256xf32>
    %314 = vector.broadcast %313 : vector<1x256xf32> to vector<2x256xf32>
    %315 = arith.mulf %303, %314 : vector<2x256xf32>
    %cst_236 = arith.constant 0.000000e+00 : f32
    %316 = vector.broadcast %cst_236 : f32 to vector<2x256xf32>
    %317 = arith.cmpf oge, %315, %316 : vector<2x256xf32>
    %cst_237 = arith.constant 0.00999999977 : f32
    %318 = vector.broadcast %cst_237 : f32 to vector<2x256xf32>
    %319 = arith.mulf %318, %315 : vector<2x256xf32>
    %320 = arith.select %317, %315, %319 : vector<2x256xi1>, vector<2x256xf32>
    %321 = arith.truncf %320 : vector<2x256xf32> to vector<2x256xbf16>
    %322 = vector.extract_strided_slice %321 {offsets = [0, 0], sizes = [1, 256], strides = [1, 1]} : vector<2x256xbf16> to vector<1x256xbf16>
    %323 = vector.extract_strided_slice %321 {offsets = [1, 0], sizes = [1, 256], strides = [1, 1]} : vector<2x256xbf16> to vector<1x256xbf16>
    %324 = tpu.concatenate %322, %323 in 1 : vector<1x256xbf16>, vector<1x256xbf16> -> vector<1x512xbf16>
    %c0_238 = arith.constant 0 : index
    %c0_239 = arith.constant 0 : index
    %325 = vector.load %arg27[%c0_238, %c0_239] : memref<512x32xbf16, #tpu.memory_space<vmem>>, vector<512x32xbf16>
    %cst_240 = arith.constant dense<0.000000e+00> : vector<1x32xf32>
    %326 = tpu.matmul %324, %325, %cst_240 {dimension_numbers = #tpu.dot_dimension_numbers<[1], [0], [0], [1], [0, 0, 1, 1], [], []>} : vector<1x512xbf16>, vector<512x32xbf16>, vector<1x32xf32> -> vector<1x32xf32>
    %c0_241 = arith.constant 0 : index
    %c0_242 = arith.constant 0 : index
    %327 = vector.load %arg28[%c0_241, %c0_242] : memref<1x32xf32, #tpu.memory_space<vmem>>, vector<1x32xf32>
    %328 = arith.addf %326, %327 : vector<1x32xf32>
    %cst_243 = arith.constant 0.000000e+00 : f32
    %329 = vector.broadcast %cst_243 : f32 to vector<1x32xf32>
    %330 = arith.cmpf oge, %328, %329 : vector<1x32xf32>
    %cst_244 = arith.constant 0.00999999977 : f32
    %331 = vector.broadcast %cst_244 : f32 to vector<1x32xf32>
    %332 = arith.mulf %331, %328 : vector<1x32xf32>
    %333 = arith.select %330, %328, %332 : vector<1x32xi1>, vector<1x32xf32>
    %334 = arith.truncf %333 : vector<1x32xf32> to vector<1x32xbf16>
    %c0_245 = arith.constant 0 : index
    %c0_246 = arith.constant 0 : index
    %335 = vector.load %arg29[%c0_245, %c0_246] : memref<32x128xbf16, #tpu.memory_space<vmem>>, vector<32x128xbf16>
    %cst_247 = arith.constant dense<0.000000e+00> : vector<1x128xf32>
    %336 = tpu.matmul %334, %335, %cst_247 {dimension_numbers = #tpu.dot_dimension_numbers<[1], [0], [0], [1], [0, 0, 1, 1], [], []>} : vector<1x32xbf16>, vector<32x128xbf16>, vector<1x128xf32> -> vector<1x128xf32>
    %c0_248 = arith.constant 0 : index
    %c0_249 = arith.constant 0 : index
    %337 = vector.load %arg30[%c0_248, %c0_249] : memref<1x128xf32, #tpu.memory_space<vmem>>, vector<1x128xf32>
    %338 = arith.addf %336, %337 : vector<1x128xf32>
    %c0_250 = arith.constant 0 : index
    %c0_251 = arith.constant 0 : index
    %c0_252 = arith.constant 0 : index
    %339 = vector.load %arg31[%c0_250, %c0_251, %c0_252] : memref<1x1x128xf32, #tpu.memory_space<vmem>>, vector<1x1x128xf32>
    %340 = vector.shape_cast %339 : vector<1x1x128xf32> to vector<1x128xf32>
    %341 = vector.shape_cast %338 : vector<1x128xf32> to vector<1x1x128xf32>
    tpu.vector_store %arg31[%c0_250, %c0_251, %c0_252], %341 {strides = array<i32>} : memref<1x1x128xf32, #tpu.memory_space<vmem>>, vector<1x1x128xf32>,
    return
  }
  func.func @transform_0(%arg0: i32) -> (i32, i32, i32) {
    %c0_i32 = arith.constant 0 : i32
    %c0_i32_0 = arith.constant 0 : i32
    %c0_i32_1 = arith.constant 0 : i32
    return %arg0, %c0_i32, %c0_i32_0 : i32, i32, i32
  }
  func.func @transform_1(%arg0: i32) -> (i32, i32, i32) {
    %c0_i32 = arith.constant 0 : i32
    %c0_i32_0 = arith.constant 0 : i32
    %c0_i32_1 = arith.constant 0 : i32
    %c0_i32_2 = arith.constant 0 : i32
    return %c0_i32, %c0_i32_0, %c0_i32_1 : i32, i32, i32
  }
  func.func @transform_2(%arg0: i32) -> (i32, i32, i32) {
    %c0_i32 = arith.constant 0 : i32
    %c0_i32_0 = arith.constant 0 : i32
    %c0_i32_1 = arith.constant 0 : i32
    %c0_i32_2 = arith.constant 0 : i32
    return %c0_i32, %c0_i32_0, %c0_i32_1 : i32, i32, i32
  }
  func.func @transform_3(%arg0: i32) -> (i32, i32) {
    %c0_i32 = arith.constant 0 : i32
    %c0_i32_0 = arith.constant 0 : i32
    %c0_i32_1 = arith.constant 0 : i32
    return %c0_i32, %c0_i32_0 : i32, i32
  }
  func.func @transform_4(%arg0: i32) -> (i32, i32) {
    %c0_i32 = arith.constant 0 : i32
    %c0_i32_0 = arith.constant 0 : i32
    %c0_i32_1 = arith.constant 0 : i32
    return %c0_i32, %c0_i32_0 : i32, i32
  }
  func.func @transform_5(%arg0: i32) -> (i32, i32) {
    %c0_i32 = arith.constant 0 : i32
    %c0_i32_0 = arith.constant 0 : i32
    %c0_i32_1 = arith.constant 0 : i32
    return %c0_i32, %c0_i32_0 : i32, i32
  }
  func.func @transform_6(%arg0: i32) -> (i32, i32, i32) {
    %c0_i32 = arith.constant 0 : i32
    %c0_i32_0 = arith.constant 0 : i32
    %c0_i32_1 = arith.constant 0 : i32
    %c0_i32_2 = arith.constant 0 : i32
    return %c0_i32, %c0_i32_0, %c0_i32_1 : i32, i32, i32
  }
  func.func @transform_7(%arg0: i32) -> (i32, i32, i32) {
    %c0_i32 = arith.constant 0 : i32
    %c0_i32_0 = arith.constant 0 : i32
    %c0_i32_1 = arith.constant 0 : i32
    %c0_i32_2 = arith.constant 0 : i32
    return %c0_i32, %c0_i32_0, %c0_i32_1 : i32, i32, i32
  }
  func.func @transform_8(%arg0: i32) -> (i32, i32) {
    %c0_i32 = arith.constant 0 : i32
    %c0_i32_0 = arith.constant 0 : i32
    %c0_i32_1 = arith.constant 0 : i32
    return %c0_i32, %c0_i32_0 : i32, i32
  }
  func.func @transform_9(%arg0: i32) -> (i32, i32) {
    %c0_i32 = arith.constant 0 : i32
    %c0_i32_0 = arith.constant 0 : i32
    %c0_i32_1 = arith.constant 0 : i32
    return %c0_i32, %c0_i32_0 : i32, i32
  }
  func.func @transform_10(%arg0: i32) -> (i32, i32) {
    %c0_i32 = arith.constant 0 : i32
    %c0_i32_0 = arith.constant 0 : i32
    %c0_i32_1 = arith.constant 0 : i32
    return %c0_i32, %c0_i32_0 : i32, i32
  }
  func.func @transform_11(%arg0: i32) -> (i32, i32, i32) {
    %c0_i32 = arith.constant 0 : i32
    %c0_i32_0 = arith.constant 0 : i32
    %c0_i32_1 = arith.constant 0 : i32
    %c0_i32_2 = arith.constant 0 : i32
    return %c0_i32, %c0_i32_0, %c0_i32_1 : i32, i32, i32
  }
  func.func @transform_12(%arg0: i32) -> (i32, i32, i32) {
    %c0_i32 = arith.constant 0 : i32
    %c0_i32_0 = arith.constant 0 : i32
    %c0_i32_1 = arith.constant 0 : i32
    %c0_i32_2 = arith.constant 0 : i32
    return %c0_i32, %c0_i32_0, %c0_i32_1 : i32, i32, i32
  }
  func.func @transform_13(%arg0: i32) -> (i32, i32) {
    %c0_i32 = arith.constant 0 : i32
    %c0_i32_0 = arith.constant 0 : i32
    %c0_i32_1 = arith.constant 0 : i32
    return %c0_i32, %c0_i32_0 : i32, i32
  }
  func.func @transform_14(%arg0: i32) -> (i32, i32) {
    %c0_i32 = arith.constant 0 : i32
    %c0_i32_0 = arith.constant 0 : i32
    %c0_i32_1 = arith.constant 0 : i32
    return %c0_i32, %c0_i32_0 : i32, i32
  }
  func.func @transform_15(%arg0: i32) -> (i32, i32) {
    %c0_i32 = arith.constant 0 : i32
    %c0_i32_0 = arith.constant 0 : i32
    %c0_i32_1 = arith.constant 0 : i32
    return %c0_i32, %c0_i32_0 : i32, i32
  }
  func.func @transform_16(%arg0: i32) -> (i32, i32, i32) {
    %c0_i32 = arith.constant 0 : i32
    %c0_i32_0 = arith.constant 0 : i32
    %c0_i32_1 = arith.constant 0 : i32
    %c0_i32_2 = arith.constant 0 : i32
    return %c0_i32, %c0_i32_0, %c0_i32_1 : i32, i32, i32
  }
  func.func @transform_17(%arg0: i32) -> (i32, i32, i32) {
    %c0_i32 = arith.constant 0 : i32
    %c0_i32_0 = arith.constant 0 : i32
    %c0_i32_1 = arith.constant 0 : i32
    %c0_i32_2 = arith.constant 0 : i32
    return %c0_i32, %c0_i32_0, %c0_i32_1 : i32, i32, i32
  }
  func.func @transform_18(%arg0: i32) -> (i32, i32) {
    %c0_i32 = arith.constant 0 : i32
    %c0_i32_0 = arith.constant 0 : i32
    %c0_i32_1 = arith.constant 0 : i32
    return %c0_i32, %c0_i32_0 : i32, i32
  }
  func.func @transform_19(%arg0: i32) -> (i32, i32) {
    %c0_i32 = arith.constant 0 : i32
    %c0_i32_0 = arith.constant 0 : i32
    %c0_i32_1 = arith.constant 0 : i32
    return %c0_i32, %c0_i32_0 : i32, i32
  }
  func.func @transform_20(%arg0: i32) -> (i32, i32) {
    %c0_i32 = arith.constant 0 : i32
    %c0_i32_0 = arith.constant 0 : i32
    %c0_i32_1 = arith.constant 0 : i32
    return %c0_i32, %c0_i32_0 : i32, i32
  }
  func.func @transform_21(%arg0: i32) -> (i32, i32, i32) {
    %c0_i32 = arith.constant 0 : i32
    %c0_i32_0 = arith.constant 0 : i32
    %c0_i32_1 = arith.constant 0 : i32
    %c0_i32_2 = arith.constant 0 : i32
    return %c0_i32, %c0_i32_0, %c0_i32_1 : i32, i32, i32
  }
  func.func @transform_22(%arg0: i32) -> (i32, i32, i32) {
    %c0_i32 = arith.constant 0 : i32
    %c0_i32_0 = arith.constant 0 : i32
    %c0_i32_1 = arith.constant 0 : i32
    %c0_i32_2 = arith.constant 0 : i32
    return %c0_i32, %c0_i32_0, %c0_i32_1 : i32, i32, i32
  }
  func.func @transform_23(%arg0: i32) -> (i32, i32) {
    %c0_i32 = arith.constant 0 : i32
    %c0_i32_0 = arith.constant 0 : i32
    %c0_i32_1 = arith.constant 0 : i32
    return %c0_i32, %c0_i32_0 : i32, i32
  }
  func.func @transform_24(%arg0: i32) -> (i32, i32) {
    %c0_i32 = arith.constant 0 : i32
    %c0_i32_0 = arith.constant 0 : i32
    %c0_i32_1 = arith.constant 0 : i32
    return %c0_i32, %c0_i32_0 : i32, i32
  }
  func.func @transform_25(%arg0: i32) -> (i32, i32) {
    %c0_i32 = arith.constant 0 : i32
    %c0_i32_0 = arith.constant 0 : i32
    %c0_i32_1 = arith.constant 0 : i32
    return %c0_i32, %c0_i32_0 : i32, i32
  }
  func.func @transform_26(%arg0: i32) -> (i32, i32) {
    %c0_i32 = arith.constant 0 : i32
    %c0_i32_0 = arith.constant 0 : i32
    %c0_i32_1 = arith.constant 0 : i32
    return %c0_i32, %c0_i32_0 : i32, i32
  }
  func.func @transform_27(%arg0: i32) -> (i32, i32) {
    %c0_i32 = arith.constant 0 : i32
    %c0_i32_0 = arith.constant 0 : i32
    %c0_i32_1 = arith.constant 0 : i32
    return %c0_i32, %c0_i32_0 : i32, i32
  }
  func.func @transform_28(%arg0: i32) -> (i32, i32) {
    %c0_i32 = arith.constant 0 : i32
    %c0_i32_0 = arith.constant 0 : i32
    %c0_i32_1 = arith.constant 0 : i32
    return %c0_i32, %c0_i32_0 : i32, i32
  }
  func.func @transform_29(%arg0: i32) -> (i32, i32) {
    %c0_i32 = arith.constant 0 : i32
    %c0_i32_0 = arith.constant 0 : i32
    %c0_i32_1 = arith.constant 0 : i32
    return %c0_i32, %c0_i32_0 : i32, i32
  }
  func.func @transform_30(%arg0: i32) -> (i32, i32, i32) {
    %c0_i32 = arith.constant 0 : i32
    %c0_i32_0 = arith.constant 0 : i32
    %c0_i32_1 = arith.constant 0 : i32
    return %arg0, %c0_i32, %c0_i32_0 : i32, i32, i32
  }
}

</mosaic_0001>

<llo_original>
// kernel: classifier_forward.1
$region0: #{classifier_forward.1}
  #allocation0 [shape = 'u32[]', space=smem, size = 0x4, offset = 0x4, fixed_abs, tag = 'smem constant byte address 0x4 - core index']
  #allocation1 [shape = 'u32[144,128]{1,0:T(1,128)}', space=vmem, size = 0x12000, scoped, tag = 'internal scratch']
  %s0 = inlined_call_operand.smem [shape: u32[31], index: -1, kind: input, shape index: {}]
  %s1 = sld [smem:[%s0]]
  %s2 = scalar_lea.smem %s0, 1
  %s3 = sld [smem:[%s2]]
  %s4 = scalar_lea.smem %s0, 2
  %s5 = sld [smem:[%s4]]
  %s6 = scalar_lea.smem %s0, 3
  %s7 = sld [smem:[%s6]]
  %s8 = scalar_lea.smem %s0, 4
  %s9 = sld [smem:[%s8]]
  %s10 = scalar_lea.smem %s0, 5
  %s11 = sld [smem:[%s10]]
  %s12 = scalar_lea.smem %s0, 6
  %s13 = sld [smem:[%s12]]
  %s14 = scalar_lea.smem %s0, 7
  %s15 = sld [smem:[%s14]]
  %s16 = scalar_lea.smem %s0, 8
  %s17 = sld [smem:[%s16]]
  %s18 = scalar_lea.smem %s0, 9
  %s19 = sld [smem:[%s18]]
  %s20 = scalar_lea.smem %s0, 10
  %s21 = sld [smem:[%s20]]
  %s22 = scalar_lea.smem %s0, 11
  %s23 = sld [smem:[%s22]]
  %s24 = scalar_lea.smem %s0, 12
  %s25 = sld [smem:[%s24]]
  %s26 = scalar_lea.smem %s0, 13
  %s27 = sld [smem:[%s26]]
  %s28 = scalar_lea.smem %s0, 14
  %s29 = sld [smem:[%s28]]
  %s30 = scalar_lea.smem %s0, 15
  %s31 = sld [smem:[%s30]]
  %s32 = scalar_lea.smem %s0, 16
  %s33 = sld [smem:[%s32]]
  %s34 = scalar_lea.smem %s0, 17
  %s35 = sld [smem:[%s34]]
  %s36 = scalar_lea.smem %s0, 18
  %s37 = sld [smem:[%s36]]
  %s38 = scalar_lea.smem %s0, 19
  %s39 = sld [smem:[%s38]]
  %s40 = scalar_lea.smem %s0, 20
  %s41 = sld [smem:[%s40]]
  %s42 = scalar_lea.smem %s0, 21
  %s43 = sld [smem:[%s42]]
  %s44 = scalar_lea.smem %s0, 22
  %s45 = sld [smem:[%s44]]
  %s46 = scalar_lea.smem %s0, 23
  %s47 = sld [smem:[%s46]]
  %s48 = scalar_lea.smem %s0, 24
  %s49 = sld [smem:[%s48]]
  %s50 = scalar_lea.smem %s0, 25
  %s51 = sld [smem:[%s50]]
  %s52 = scalar_lea.smem %s0, 26
  %s53 = sld [smem:[%s52]]
  %s54 = scalar_lea.smem %s0, 27
  %s55 = sld [smem:[%s54]]
  %s56 = scalar_lea.smem %s0, 28
  %s57 = sld [smem:[%s56]]
  %s58 = scalar_lea.smem %s0, 29
  %s59 = sld [smem:[%s58]]
  %s60 = scalar_lea.smem %s0, 30
  %s61 = sld [smem:[%s60]]
  %s62 = sld [smem:[#allocation0]]
  $region217: #{classifier_forward.1} parent=0
    _
  %s64 = ssub.s32 1, %s62
  %s65 = scalar_select 0, %s64, %s62
  $region1: #{classifier_forward.1} parent=0
    #allocation2 [shape = 'u8[32768]{0}', space=vmem, size = 0x8000, scoped, tag = 'input window, operand 1, single buffered']
    #allocation3 [shape = 's32[2]{0}', space=sflag, size = 0x8, scoped, tag = 'scoped memory for classifier_forward.1']
    #allocation4 [shape = 's32[2]{0}', space=sflag, size = 0x8, scoped, tag = 'scoped memory for classifier_forward.1']
    #allocation5 [shape = 'u8[393216]{0}', space=vmem, size = 0x60000, scoped, tag = 'input window, operand 2, single buffered']
    #allocation6 [shape = 's32[1]{0}', space=sflag, size = 0x4, scoped, tag = 'scoped memory for classifier_forward.1']
    #allocation7 [shape = 'u8[16384]{0}', space=vmem, size = 0x4000, scoped, tag = 'input window, operand 6, single buffered']
    #allocation8 [shape = 'u8[1024]{0}', space=vmem, size = 0x400, scoped, tag = 'input window, operand 8, single buffered']
    #allocation9 [shape = 's32[1]{0}', space=sflag, size = 0x4, scoped, tag = 'scoped memory for classifier_forward.1']
    #allocation10 [shape = 'u8[8192]{0}', space=vmem, size = 0x2000, scoped, tag = 'input window, operand 10, single buffered']
    #allocation11 [shape = 'u8[8192]{0}', space=vmem, size = 0x2000, scoped, tag = 'input window, operand 11, single buffered']
    #allocation12 [shape = 's32[1]{0}', space=sflag, size = 0x4, scoped, tag = 'scoped memory for classifier_forward.1']
    #allocation13 [shape = 'u8[1024]{0}', space=vmem, size = 0x400, scoped, tag = 'input window, operand 13, single buffered']
    #allocation14 [shape = 'u8[16384]{0}', space=vmem, size = 0x4000, scoped, tag = 'input window, operand 15, single buffered']
    #allocation15 [shape = 's32[1]{0}', space=sflag, size = 0x4, scoped, tag = 'scoped memory for classifier_forward.1']
    #allocation16 [shape = 'u8[4096]{0}', space=vmem, size = 0x1000, scoped, tag = 'input window, operand 16, single buffered']
    #allocation17 [shape = 'u8[524288]{0}', space=vmem, size = 0x80000, scoped, tag = 'input window, operand 17, single buffered']
    #allocation18 [shape = 's32[1]{0}', space=sflag, size = 0x4, scoped, tag = 'scoped memory for classifier_forward.1']
    #allocation19 [shape = 'u8[1024]{0}', space=vmem, size = 0x400, scoped, tag = 'input window, operand 18, single buffered']
    #allocation20 [shape = 'u8[32768]{0}', space=vmem, size = 0x8000, scoped, tag = 'input window, operand 20, single buffered']
    #allocation21 [shape = 's32[1]{0}', space=sflag, size = 0x4, scoped, tag = 'scoped memory for classifier_forward.1']
    #allocation22 [shape = 'u8[2048]{0}', space=vmem, size = 0x800, scoped, tag = 'input window, operand 21, single buffered']
    #allocation23 [shape = 'u8[524288]{0}', space=vmem, size = 0x80000, scoped, tag = 'input window, operand 22, single buffered']
    #allocation24 [shape = 's32[1]{0}', space=sflag, size = 0x4, scoped, tag = 'scoped memory for classifier_forward.1']
    #allocation25 [shape = 'u8[1024]{0}', space=vmem, size = 0x400, scoped, tag = 'input window, operand 23, single buffered']
    #allocation26 [shape = 'u8[512]{0}', space=vmem, size = 0x400, scoped, tag = 'input window, operand 29, single buffered']
    #allocation27 [shape = 's32[1]{0}', space=sflag, size = 0x4, scoped, tag = 'scoped memory for classifier_forward.1']
    #allocation28 [shape = 'u8[1024]{0}', space=vmem, size = 0x400, scoped, tag = 'output window, operand 0']
    %66 = vsyncpa [#allocation3], 0
    %67 = vsyncpa [#allocation6], 0
    %68 = vsyncpa [#allocation9], 0
    %69 = vsyncpa [#allocation12], 0
    %70 = vsyncpa [#allocation15], 0
    %71 = vsyncpa [#allocation18], 0
    %72 = vsyncpa [#allocation21], 0
    %73 = vsyncpa [#allocation24], 0
    %74 = vsyncpa [#allocation27], 0
    %75 = vsyncpa [#allocation4], 0
    %s76 = scalar_lea.sflag [#allocation4], 1
    %77 = vsyncpa %s76, 0
    loop: start=0, step=1, limit=4
    $region2: #{classifier_forward.1} parent=1 // loop_pre_header
      _
    $region3: #{classifier_forward.1} parent=1 // loop_header
      %s79 = sphi 0, %s83
      %p80 = scmp.ge.s32.totalorder %s79, 4
      %s89 = sphi 0, %s91
      %s92 = sphi 0, %s89
      %s93 = sphi 0, %s92
      %s109 = sphi 0, %s93
      %s113 = sphi 0, %s113
      %s115 = sphi 0, %s113
      %s116 = sphi 0, %s115
      %s130 = sphi 0, %s116
      %s134 = sphi 0, %s134
      %s136 = sphi 0, %s134
      %s137 = sphi 0, %s136
      %s151 = sphi 0, %s137
      %s155 = sphi 0, %s155
      %s157 = sphi 0, %s155
      %s158 = sphi 0, %s157
      %s172 = sphi 0, %s158
      %s176 = sphi 0, %s176
      %s178 = sphi 0, %s176
      %s179 = sphi 0, %s178
      %s193 = sphi 0, %s179
      %s197 = sphi 0, %s197
      %s199 = sphi 0, %s197
      %s200 = sphi 0, %s199
      %s214 = sphi 0, %s200
      %s218 = sphi 0, %s218
      %s220 = sphi 0, %s218
      %s221 = sphi 0, %s220
      %s235 = sphi 0, %s221
      %s239 = sphi 0, %s239
      %s241 = sphi 0, %s239
      %s242 = sphi 0, %s241
      %s256 = sphi 0, %s242
      %s260 = sphi 0, %s260
      %s262 = sphi 0, %s260
      %s263 = sphi 0, %s262
      %s277 = sphi 0, %s263
      %s281 = sphi 0, %s281
      %s283 = sphi 0, %s281
      %s284 = sphi 0, %s283
      %s298 = sphi 0, %s284
      %s302 = sphi 0, %s302
      %s304 = sphi 0, %s302
      %s305 = sphi 0, %s304
      %s319 = sphi 0, %s305
      %s323 = sphi 0, %s323
      %s325 = sphi 0, %s323
      %s326 = sphi 0, %s325
      %s340 = sphi 0, %s326
      %s344 = sphi 0, %s344
      %s346 = sphi 0, %s344
      %s347 = sphi 0, %s346
      %s361 = sphi 0, %s347
      %s365 = sphi 0, %s365
      %s367 = sphi 0, %s365
      %s368 = sphi 0, %s367
      %s382 = sphi 0, %s368
      %s386 = sphi 0, %s386
      %s388 = sphi 0, %s386
      %s389 = sphi 0, %s388
      %s403 = sphi 0, %s389
      %s407 = sphi 0, %s407
      %s409 = sphi 0, %s407
      %s410 = sphi 0, %s409
      %s424 = sphi 0, %s410
      %s428 = sphi 0, %s428
      %s430 = sphi 0, %s428
      %s431 = sphi 0, %s430
      %s445 = sphi 0, %s431
      %s449 = sphi 0, %s449
      %s451 = sphi 0, %s449
      %s452 = sphi 0, %s451
      %s466 = sphi 0, %s452
      %s470 = sphi 0, %s470
      %s472 = sphi 0, %s470
      %s473 = sphi 0, %s472
      %s487 = sphi 0, %s473
      %s491 = sphi 0, %s491
      %s493 = sphi 0, %s491
      %s494 = sphi 0, %s493
      %s508 = sphi 0, %s494
      %s512 = sphi 0, %s512
      %s514 = sphi 0, %s512
      %s515 = sphi 0, %s514
      %s529 = sphi 0, %s515
      %s533 = sphi 0, %s533
      %s535 = sphi 0, %s533
      %s536 = sphi 0, %s535
      %s550 = sphi 0, %s536
      %s554 = sphi 0, %s554
      %s556 = sphi 0, %s554
      %s557 = sphi 0, %s556
      %s571 = sphi 0, %s557
      %s575 = sphi 0, %s575
      %s577 = sphi 0, %s575
      %s578 = sphi 0, %s577
      %s592 = sphi 0, %s578
      %s596 = sphi 0, %s596
      %s598 = sphi 0, %s596
      %s599 = sphi 0, %s598
      %s613 = sphi 0, %s599
      %s617 = sphi 0, %s617
      %s619 = sphi 0, %s617
      %s620 = sphi 0, %s619
      %s634 = sphi 0, %s620
      %s638 = sphi 0, %s638
      %s640 = sphi 0, %s638
      %s641 = sphi 0, %s640
      %s655 = sphi 0, %s641
      %s659 = sphi 0, %s659
      %s661 = sphi 0, %s659
      %s662 = sphi 0, %s661
      %s676 = sphi 0, %s662
      %s680 = sphi 0, %s680
      %s682 = sphi 0, %s680
      %s683 = sphi 0, %s682
      %s697 = sphi 0, %s683
      %s701 = sphi 0, %s701
      %s703 = sphi 0, %s701
      %s704 = sphi 0, %s703
      %s718 = sphi 0, %s704
      %s724 = sphi 0, %s726
      %s727 = sphi 0, %s724
      %s728 = sphi 0, %s727
      %s744 = sphi 0, %s728
    $region4: #{classifier_forward.1} parent=1 // loop_header_branch
      %82 = sbr.rel (%p80) target = $region8
    $region5: #{classifier_forward.1} parent=1 // loop_body
      %s84 = ssub.s32 %s79, 1
      %s85 = ssub.s32 %s79, 2
      %s86 = sadd.s32 %s79, 1
      %s87 = ssub.s32 %s79, %s86
      %p88 = scmp.eq.s32.totalorder %s87, 0
      %s90 = sadd.s32 %s89, 1
      %s91 = scalar_select %p88, %s89, %s90
      %p94 = pneg %p88
      %p95 = scmp.eq.s32.totalorder %s79, 1
      %p96 = por %p94, %p95
      %p97 = scmp.ne.s32.totalorder %s89, %s92
      %p98 = scmp.eq.s32.totalorder %s79, 0
      %p99 = por %p97, %p98
      %p100 = scmp.ne.s32.totalorder %s89, %s92
      %p101 = scmp.eq.s32.totalorder %s84, 1
      %p102 = por %p100, %p101
      %p103 = scmp.ne.s32.totalorder %s92, %s93
      %p104 = scmp.eq.s32.totalorder %s84, 0
      %p105 = por %p103, %p104
      %p106 = scmp.ne.s32.totalorder %s92, %s93
      %p107 = scmp.eq.s32.totalorder %s85, 1
      %p108 = por %p106, %p107
      %p110 = scmp.ne.s32.totalorder %s93, %s109
      %p111 = scmp.eq.s32.totalorder %s85, 0
      %p112 = por %p110, %p111
      %s114 = sadd.s32 %s113, 1
      %p117 = scmp.eq.s32.totalorder %s79, 1
      %p118 = scmp.ne.s32.totalorder %s113, %s115
      %p119 = scmp.eq.s32.totalorder %s79, 0
      %p120 = por %p118, %p119
      %p121 = scmp.ne.s32.totalorder %s113, %s115
      %p122 = scmp.eq.s32.totalorder %s84, 1
      %p123 = por %p121, %p122
      %p124 = scmp.ne.s32.totalorder %s115, %s116
      %p125 = scmp.eq.s32.totalorder %s84, 0
      %p126 = por %p124, %p125
      %p127 = scmp.ne.s32.totalorder %s115, %s116
      %p128 = scmp.eq.s32.totalorder %s85, 1
      %p129 = por %p127, %p128
      %p131 = scmp.ne.s32.totalorder %s116, %s130
      %p132 = scmp.eq.s32.totalorder %s85, 0
      %p133 = por %p131, %p132
      %s135 = sadd.s32 %s134, 1
      %p138 = scmp.eq.s32.totalorder %s79, 1
      %p139 = scmp.ne.s32.totalorder %s134, %s136
      %p140 = scmp.eq.s32.totalorder %s79, 0
      %p141 = por %p139, %p140
      %p142 = scmp.ne.s32.totalorder %s134, %s136
      %p143 = scmp.eq.s32.totalorder %s84, 1
      %p144 = por %p142, %p143
      %p145 = scmp.ne.s32.totalorder %s136, %s137
      %p146 = scmp.eq.s32.totalorder %s84, 0
      %p147 = por %p145, %p146
      %p148 = scmp.ne.s32.totalorder %s136, %s137
      %p149 = scmp.eq.s32.totalorder %s85, 1
      %p150 = por %p148, %p149
      %p152 = scmp.ne.s32.totalorder %s137, %s151
      %p153 = scmp.eq.s32.totalorder %s85, 0
      %p154 = por %p152, %p153
      %s156 = sadd.s32 %s155, 1
      %p159 = scmp.eq.s32.totalorder %s79, 1
      %p160 = scmp.ne.s32.totalorder %s155, %s157
      %p161 = scmp.eq.s32.totalorder %s79, 0
      %p162 = por %p160, %p161
      %p163 = scmp.ne.s32.totalorder %s155, %s157
      %p164 = scmp.eq.s32.totalorder %s84, 1
      %p165 = por %p163, %p164
      %p166 = scmp.ne.s32.totalorder %s157, %s158
      %p167 = scmp.eq.s32.totalorder %s84, 0
      %p168 = por %p166, %p167
      %p169 = scmp.ne.s32.totalorder %s157, %s158
      %p170 = scmp.eq.s32.totalorder %s85, 1
      %p171 = por %p169, %p170
      %p173 = scmp.ne.s32.totalorder %s158, %s172
      %p174 = scmp.eq.s32.totalorder %s85, 0
      %p175 = por %p173, %p174
      %s177 = sadd.s32 %s176, 1
      %p180 = scmp.eq.s32.totalorder %s79, 1
      %p181 = scmp.ne.s32.totalorder %s176, %s178
      %p182 = scmp.eq.s32.totalorder %s79, 0
      %p183 = por %p181, %p182
      %p184 = scmp.ne.s32.totalorder %s176, %s178
      %p185 = scmp.eq.s32.totalorder %s84, 1
      %p186 = por %p184, %p185
      %p187 = scmp.ne.s32.totalorder %s178, %s179
      %p188 = scmp.eq.s32.totalorder %s84, 0
      %p189 = por %p187, %p188
      %p190 = scmp.ne.s32.totalorder %s178, %s179
      %p191 = scmp.eq.s32.totalorder %s85, 1
      %p192 = por %p190, %p191
      %p194 = scmp.ne.s32.totalorder %s179, %s193
      %p195 = scmp.eq.s32.totalorder %s85, 0
      %p196 = por %p194, %p195
      %s198 = sadd.s32 %s197, 1
      %p201 = scmp.eq.s32.totalorder %s79, 1
      %p202 = scmp.ne.s32.totalorder %s197, %s199
      %p203 = scmp.eq.s32.totalorder %s79, 0
      %p204 = por %p202, %p203
      %p205 = scmp.ne.s32.totalorder %s197, %s199
      %p206 = scmp.eq.s32.totalorder %s84, 1
      %p207 = por %p205, %p206
      %p208 = scmp.ne.s32.totalorder %s199, %s200
      %p209 = scmp.eq.s32.totalorder %s84, 0
      %p210 = por %p208, %p209
      %p211 = scmp.ne.s32.totalorder %s199, %s200
      %p212 = scmp.eq.s32.totalorder %s85, 1
      %p213 = por %p211, %p212
      %p215 = scmp.ne.s32.totalorder %s200, %s214
      %p216 = scmp.eq.s32.totalorder %s85, 0
      %p217 = por %p215, %p216
      %s219 = sadd.s32 %s218, 1
      %p222 = scmp.eq.s32.totalorder %s79, 1
      %p223 = scmp.ne.s32.totalorder %s218, %s220
      %p224 = scmp.eq.s32.totalorder %s79, 0
      %p225 = por %p223, %p224
      %p226 = scmp.ne.s32.totalorder %s218, %s220
      %p227 = scmp.eq.s32.totalorder %s84, 1
      %p228 = por %p226, %p227
      %p229 = scmp.ne.s32.totalorder %s220, %s221
      %p230 = scmp.eq.s32.totalorder %s84, 0
      %p231 = por %p229, %p230
      %p232 = scmp.ne.s32.totalorder %s220, %s221
      %p233 = scmp.eq.s32.totalorder %s85, 1
      %p234 = por %p232, %p233
      %p236 = scmp.ne.s32.totalorder %s221, %s235
      %p237 = scmp.eq.s32.totalorder %s85, 0
      %p238 = por %p236, %p237
      %s240 = sadd.s32 %s239, 1
      %p243 = scmp.eq.s32.totalorder %s79, 1
      %p244 = scmp.ne.s32.totalorder %s239, %s241
      %p245 = scmp.eq.s32.totalorder %s79, 0
      %p246 = por %p244, %p245
      %p247 = scmp.ne.s32.totalorder %s239, %s241
      %p248 = scmp.eq.s32.totalorder %s84, 1
      %p249 = por %p247, %p248
      %p250 = scmp.ne.s32.totalorder %s241, %s242
      %p251 = scmp.eq.s32.totalorder %s84, 0
      %p252 = por %p250, %p251
      %p253 = scmp.ne.s32.totalorder %s241, %s242
      %p254 = scmp.eq.s32.totalorder %s85, 1
      %p255 = por %p253, %p254
      %p257 = scmp.ne.s32.totalorder %s242, %s256
      %p258 = scmp.eq.s32.totalorder %s85, 0
      %p259 = por %p257, %p258
      %s261 = sadd.s32 %s260, 1
      %p264 = scmp.eq.s32.totalorder %s79, 1
      %p265 = scmp.ne.s32.totalorder %s260, %s262
      %p266 = scmp.eq.s32.totalorder %s79, 0
      %p267 = por %p265, %p266
      %p268 = scmp.ne.s32.totalorder %s260, %s262
      %p269 = scmp.eq.s32.totalorder %s84, 1
      %p270 = por %p268, %p269
      %p271 = scmp.ne.s32.totalorder %s262, %s263
      %p272 = scmp.eq.s32.totalorder %s84, 0
      %p273 = por %p271, %p272
      %p274 = scmp.ne.s32.totalorder %s262, %s263
      %p275 = scmp.eq.s32.totalorder %s85, 1
      %p276 = por %p274, %p275
      %p278 = scmp.ne.s32.totalorder %s263, %s277
      %p279 = scmp.eq.s32.totalorder %s85, 0
      %p280 = por %p278, %p279
      %s282 = sadd.s32 %s281, 1
      %p285 = scmp.eq.s32.totalorder %s79, 1
      %p286 = scmp.ne.s32.totalorder %s281, %s283
      %p287 = scmp.eq.s32.totalorder %s79, 0
      %p288 = por %p286, %p287
      %p289 = scmp.ne.s32.totalorder %s281, %s283
      %p290 = scmp.eq.s32.totalorder %s84, 1
      %p291 = por %p289, %p290
      %p292 = scmp.ne.s32.totalorder %s283, %s284
      %p293 = scmp.eq.s32.totalorder %s84, 0
      %p294 = por %p292, %p293
      %p295 = scmp.ne.s32.totalorder %s283, %s284
      %p296 = scmp.eq.s32.totalorder %s85, 1
      %p297 = por %p295, %p296
      %p299 = scmp.ne.s32.totalorder %s284, %s298
      %p300 = scmp.eq.s32.totalorder %s85, 0
      %p301 = por %p299, %p300
      %s303 = sadd.s32 %s302, 1
      %p306 = scmp.eq.s32.totalorder %s79, 1
      %p307 = scmp.ne.s32.totalorder %s302, %s304
      %p308 = scmp.eq.s32.totalorder %s79, 0
      %p309 = por %p307, %p308
      %p310 = scmp.ne.s32.totalorder %s302, %s304
      %p311 = scmp.eq.s32.totalorder %s84, 1
      %p312 = por %p310, %p311
      %p313 = scmp.ne.s32.totalorder %s304, %s305
      %p314 = scmp.eq.s32.totalorder %s84, 0
      %p315 = por %p313, %p314
      %p316 = scmp.ne.s32.totalorder %s304, %s305
      %p317 = scmp.eq.s32.totalorder %s85, 1
      %p318 = por %p316, %p317
      %p320 = scmp.ne.s32.totalorder %s305, %s319
      %p321 = scmp.eq.s32.totalorder %s85, 0
      %p322 = por %p320, %p321
      %s324 = sadd.s32 %s323, 1
      %p327 = scmp.eq.s32.totalorder %s79, 1
      %p328 = scmp.ne.s32.totalorder %s323, %s325
      %p329 = scmp.eq.s32.totalorder %s79, 0
      %p330 = por %p328, %p329
      %p331 = scmp.ne.s32.totalorder %s323, %s325
      %p332 = scmp.eq.s32.totalorder %s84, 1
      %p333 = por %p331, %p332
      %p334 = scmp.ne.s32.totalorder %s325, %s326
      %p335 = scmp.eq.s32.totalorder %s84, 0
      %p336 = por %p334, %p335
      %p337 = scmp.ne.s32.totalorder %s325, %s326
      %p338 = scmp.eq.s32.totalorder %s85, 1
      %p339 = por %p337, %p338
      %p341 = scmp.ne.s32.totalorder %s326, %s340
      %p342 = scmp.eq.s32.totalorder %s85, 0
      %p343 = por %p341, %p342
      %s345 = sadd.s32 %s344, 1
      %p348 = scmp.eq.s32.totalorder %s79, 1
      %p349 = scmp.ne.s32.totalorder %s344, %s346
      %p350 = scmp.eq.s32.totalorder %s79, 0
      %p351 = por %p349, %p350
      %p352 = scmp.ne.s32.totalorder %s344, %s346
      %p353 = scmp.eq.s32.totalorder %s84, 1
      %p354 = por %p352, %p353
      %p355 = scmp.ne.s32.totalorder %s346, %s347
      %p356 = scmp.eq.s32.totalorder %s84, 0
      %p357 = por %p355, %p356
      %p358 = scmp.ne.s32.totalorder %s346, %s347
      %p359 = scmp.eq.s32.totalorder %s85, 1
      %p360 = por %p358, %p359
      %p362 = scmp.ne.s32.totalorder %s347, %s361
      %p363 = scmp.eq.s32.totalorder %s85, 0
      %p364 = por %p362, %p363
      %s366 = sadd.s32 %s365, 1
      %p369 = scmp.eq.s32.totalorder %s79, 1
      %p370 = scmp.ne.s32.totalorder %s365, %s367
      %p371 = scmp.eq.s32.totalorder %s79, 0
      %p372 = por %p370, %p371
      %p373 = scmp.ne.s32.totalorder %s365, %s367
      %p374 = scmp.eq.s32.totalorder %s84, 1
      %p375 = por %p373, %p374
      %p376 = scmp.ne.s32.totalorder %s367, %s368
      %p377 = scmp.eq.s32.totalorder %s84, 0
      %p378 = por %p376, %p377
      %p379 = scmp.ne.s32.totalorder %s367, %s368
      %p380 = scmp.eq.s32.totalorder %s85, 1
      %p381 = por %p379, %p380
      %p383 = scmp.ne.s32.totalorder %s368, %s382
      %p384 = scmp.eq.s32.totalorder %s85, 0
      %p385 = por %p383, %p384
      %s387 = sadd.s32 %s386, 1
      %p390 = scmp.eq.s32.totalorder %s79, 1
      %p391 = scmp.ne.s32.totalorder %s386, %s388
      %p392 = scmp.eq.s32.totalorder %s79, 0
      %p393 = por %p391, %p392
      %p394 = scmp.ne.s32.totalorder %s386, %s388
      %p395 = scmp.eq.s32.totalorder %s84, 1
      %p396 = por %p394, %p395
      %p397 = scmp.ne.s32.totalorder %s388, %s389
      %p398 = scmp.eq.s32.totalorder %s84, 0
      %p399 = por %p397, %p398
      %p400 = scmp.ne.s32.totalorder %s388, %s389
      %p401 = scmp.eq.s32.totalorder %s85, 1
      %p402 = por %p400, %p401
      %p404 = scmp.ne.s32.totalorder %s389, %s403
      %p405 = scmp.eq.s32.totalorder %s85, 0
      %p406 = por %p404, %p405
      %s408 = sadd.s32 %s407, 1
      %p411 = scmp.eq.s32.totalorder %s79, 1
      %p412 = scmp.ne.s32.totalorder %s407, %s409
      %p413 = scmp.eq.s32.totalorder %s79, 0
      %p414 = por %p412, %p413
      %p415 = scmp.ne.s32.totalorder %s407, %s409
      %p416 = scmp.eq.s32.totalorder %s84, 1
      %p417 = por %p415, %p416
      %p418 = scmp.ne.s32.totalorder %s409, %s410
      %p419 = scmp.eq.s32.totalorder %s84, 0
      %p420 = por %p418, %p419
      %p421 = scmp.ne.s32.totalorder %s409, %s410
      %p422 = scmp.eq.s32.totalorder %s85, 1
      %p423 = por %p421, %p422
      %p425 = scmp.ne.s32.totalorder %s410, %s424
      %p426 = scmp.eq.s32.totalorder %s85, 0
      %p427 = por %p425, %p426
      %s429 = sadd.s32 %s428, 1
      %p432 = scmp.eq.s32.totalorder %s79, 1
      %p433 = scmp.ne.s32.totalorder %s428, %s430
      %p434 = scmp.eq.s32.totalorder %s79, 0
      %p435 = por %p433, %p434
      %p436 = scmp.ne.s32.totalorder %s428, %s430
      %p437 = scmp.eq.s32.totalorder %s84, 1
      %p438 = por %p436, %p437
      %p439 = scmp.ne.s32.totalorder %s430, %s431
      %p440 = scmp.eq.s32.totalorder %s84, 0
      %p441 = por %p439, %p440
      %p442 = scmp.ne.s32.totalorder %s430, %s431
      %p443 = scmp.eq.s32.totalorder %s85, 1
      %p444 = por %p442, %p443
      %p446 = scmp.ne.s32.totalorder %s431, %s445
      %p447 = scmp.eq.s32.totalorder %s85, 0
      %p448 = por %p446, %p447
      %s450 = sadd.s32 %s449, 1
      %p453 = scmp.eq.s32.totalorder %s79, 1
      %p454 = scmp.ne.s32.totalorder %s449, %s451
      %p455 = scmp.eq.s32.totalorder %s79, 0
      %p456 = por %p454, %p455
      %p457 = scmp.ne.s32.totalorder %s449, %s451
      %p458 = scmp.eq.s32.totalorder %s84, 1
      %p459 = por %p457, %p458
      %p460 = scmp.ne.s32.totalorder %s451, %s452
      %p461 = scmp.eq.s32.totalorder %s84, 0
      %p462 = por %p460, %p461
      %p463 = scmp.ne.s32.totalorder %s451, %s452
      %p464 = scmp.eq.s32.totalorder %s85, 1
      %p465 = por %p463, %p464
      %p467 = scmp.ne.s32.totalorder %s452, %s466
      %p468 = scmp.eq.s32.totalorder %s85, 0
      %p469 = por %p467, %p468
      %s471 = sadd.s32 %s470, 1
      %p474 = scmp.eq.s32.totalorder %s79, 1
      %p475 = scmp.ne.s32.totalorder %s470, %s472
      %p476 = scmp.eq.s32.totalorder %s79, 0
      %p477 = por %p475, %p476
      %p478 = scmp.ne.s32.totalorder %s470, %s472
      %p479 = scmp.eq.s32.totalorder %s84, 1
      %p480 = por %p478, %p479
      %p481 = scmp.ne.s32.totalorder %s472, %s473
      %p482 = scmp.eq.s32.totalorder %s84, 0
      %p483 = por %p481, %p482
      %p484 = scmp.ne.s32.totalorder %s472, %s473
      %p485 = scmp.eq.s32.totalorder %s85, 1
      %p486 = por %p484, %p485
      %p488 = scmp.ne.s32.totalorder %s473, %s487
      %p489 = scmp.eq.s32.totalorder %s85, 0
      %p490 = por %p488, %p489
      %s492 = sadd.s32 %s491, 1
      %p495 = scmp.eq.s32.totalorder %s79, 1
      %p496 = scmp.ne.s32.totalorder %s491, %s493
      %p497 = scmp.eq.s32.totalorder %s79, 0
      %p498 = por %p496, %p497
      %p499 = scmp.ne.s32.totalorder %s491, %s493
      %p500 = scmp.eq.s32.totalorder %s84, 1
      %p501 = por %p499, %p500
      %p502 = scmp.ne.s32.totalorder %s493, %s494
      %p503 = scmp.eq.s32.totalorder %s84, 0
      %p504 = por %p502, %p503
      %p505 = scmp.ne.s32.totalorder %s493, %s494
      %p506 = scmp.eq.s32.totalorder %s85, 1
      %p507 = por %p505, %p506
      %p509 = scmp.ne.s32.totalorder %s494, %s508
      %p510 = scmp.eq.s32.totalorder %s85, 0
      %p511 = por %p509, %p510
      %s513 = sadd.s32 %s512, 1
      %p516 = scmp.eq.s32.totalorder %s79, 1
      %p517 = scmp.ne.s32.totalorder %s512, %s514
      %p518 = scmp.eq.s32.totalorder %s79, 0
      %p519 = por %p517, %p518
      %p520 = scmp.ne.s32.totalorder %s512, %s514
      %p521 = scmp.eq.s32.totalorder %s84, 1
      %p522 = por %p520, %p521
      %p523 = scmp.ne.s32.totalorder %s514, %s515
      %p524 = scmp.eq.s32.totalorder %s84, 0
      %p525 = por %p523, %p524
      %p526 = scmp.ne.s32.totalorder %s514, %s515
      %p527 = scmp.eq.s32.totalorder %s85, 1
      %p528 = por %p526, %p527
      %p530 = scmp.ne.s32.totalorder %s515, %s529
      %p531 = scmp.eq.s32.totalorder %s85, 0
      %p532 = por %p530, %p531
      %s534 = sadd.s32 %s533, 1
      %p537 = scmp.eq.s32.totalorder %s79, 1
      %p538 = scmp.ne.s32.totalorder %s533, %s535
      %p539 = scmp.eq.s32.totalorder %s79, 0
      %p540 = por %p538, %p539
      %p541 = scmp.ne.s32.totalorder %s533, %s535
      %p542 = scmp.eq.s32.totalorder %s84, 1
      %p543 = por %p541, %p542
      %p544 = scmp.ne.s32.totalorder %s535, %s536
      %p545 = scmp.eq.s32.totalorder %s84, 0
      %p546 = por %p544, %p545
      %p547 = scmp.ne.s32.totalorder %s535, %s536
      %p548 = scmp.eq.s32.totalorder %s85, 1
      %p549 = por %p547, %p548
      %p551 = scmp.ne.s32.totalorder %s536, %s550
      %p552 = scmp.eq.s32.totalorder %s85, 0
      %p553 = por %p551, %p552
      %s555 = sadd.s32 %s554, 1
      %p558 = scmp.eq.s32.totalorder %s79, 1
      %p559 = scmp.ne.s32.totalorder %s554, %s556
      %p560 = scmp.eq.s32.totalorder %s79, 0
      %p561 = por %p559, %p560
      %p562 = scmp.ne.s32.totalorder %s554, %s556
      %p563 = scmp.eq.s32.totalorder %s84, 1
      %p564 = por %p562, %p563
      %p565 = scmp.ne.s32.totalorder %s556, %s557
      %p566 = scmp.eq.s32.totalorder %s84, 0
      %p567 = por %p565, %p566
      %p568 = scmp.ne.s32.totalorder %s556, %s557
      %p569 = scmp.eq.s32.totalorder %s85, 1
      %p570 = por %p568, %p569
      %p572 = scmp.ne.s32.totalorder %s557, %s571
      %p573 = scmp.eq.s32.totalorder %s85, 0
      %p574 = por %p572, %p573
      %s576 = sadd.s32 %s575, 1
      %p579 = scmp.eq.s32.totalorder %s79, 1
      %p580 = scmp.ne.s32.totalorder %s575, %s577
      %p581 = scmp.eq.s32.totalorder %s79, 0
      %p582 = por %p580, %p581
      %p583 = scmp.ne.s32.totalorder %s575, %s577
      %p584 = scmp.eq.s32.totalorder %s84, 1
      %p585 = por %p583, %p584
      %p586 = scmp.ne.s32.totalorder %s577, %s578
      %p587 = scmp.eq.s32.totalorder %s84, 0
      %p588 = por %p586, %p587
      %p589 = scmp.ne.s32.totalorder %s577, %s578
      %p590 = scmp.eq.s32.totalorder %s85, 1
      %p591 = por %p589, %p590
      %p593 = scmp.ne.s32.totalorder %s578, %s592
      %p594 = scmp.eq.s32.totalorder %s85, 0
      %p595 = por %p593, %p594
      %s597 = sadd.s32 %s596, 1
      %p600 = scmp.eq.s32.totalorder %s79, 1
      %p601 = scmp.ne.s32.totalorder %s596, %s598
      %p602 = scmp.eq.s32.totalorder %s79, 0
      %p603 = por %p601, %p602
      %p604 = scmp.ne.s32.totalorder %s596, %s598
      %p605 = scmp.eq.s32.totalorder %s84, 1
      %p606 = por %p604, %p605
      %p607 = scmp.ne.s32.totalorder %s598, %s599
      %p608 = scmp.eq.s32.totalorder %s84, 0
      %p609 = por %p607, %p608
      %p610 = scmp.ne.s32.totalorder %s598, %s599
      %p611 = scmp.eq.s32.totalorder %s85, 1
      %p612 = por %p610, %p611
      %p614 = scmp.ne.s32.totalorder %s599, %s613
      %p615 = scmp.eq.s32.totalorder %s85, 0
      %p616 = por %p614, %p615
      %s618 = sadd.s32 %s617, 1
      %p621 = scmp.eq.s32.totalorder %s79, 1
      %p622 = scmp.ne.s32.totalorder %s617, %s619
      %p623 = scmp.eq.s32.totalorder %s79, 0
      %p624 = por %p622, %p623
      %p625 = scmp.ne.s32.totalorder %s617, %s619
      %p626 = scmp.eq.s32.totalorder %s84, 1
      %p627 = por %p625, %p626
      %p628 = scmp.ne.s32.totalorder %s619, %s620
      %p629 = scmp.eq.s32.totalorder %s84, 0
      %p630 = por %p628, %p629
      %p631 = scmp.ne.s32.totalorder %s619, %s620
      %p632 = scmp.eq.s32.totalorder %s85, 1
      %p633 = por %p631, %p632
      %p635 = scmp.ne.s32.totalorder %s620, %s634
      %p636 = scmp.eq.s32.totalorder %s85, 0
      %p637 = por %p635, %p636
      %s639 = sadd.s32 %s638, 1
      %p642 = scmp.eq.s32.totalorder %s79, 1
      %p643 = scmp.ne.s32.totalorder %s638, %s640
      %p644 = scmp.eq.s32.totalorder %s79, 0
      %p645 = por %p643, %p644
      %p646 = scmp.ne.s32.totalorder %s638, %s640
      %p647 = scmp.eq.s32.totalorder %s84, 1
      %p648 = por %p646, %p647
      %p649 = scmp.ne.s32.totalorder %s640, %s641
      %p650 = scmp.eq.s32.totalorder %s84, 0
      %p651 = por %p649, %p650
      %p652 = scmp.ne.s32.totalorder %s640, %s641
      %p653 = scmp.eq.s32.totalorder %s85, 1
      %p654 = por %p652, %p653
      %p656 = scmp.ne.s32.totalorder %s641, %s655
      %p657 = scmp.eq.s32.totalorder %s85, 0
      %p658 = por %p656, %p657
      %s660 = sadd.s32 %s659, 1
      %p663 = scmp.eq.s32.totalorder %s79, 1
      %p664 = scmp.ne.s32.totalorder %s659, %s661
      %p665 = scmp.eq.s32.totalorder %s79, 0
      %p666 = por %p664, %p665
      %p667 = scmp.ne.s32.totalorder %s659, %s661
      %p668 = scmp.eq.s32.totalorder %s84, 1
      %p669 = por %p667, %p668
      %p670 = scmp.ne.s32.totalorder %s661, %s662
      %p671 = scmp.eq.s32.totalorder %s84, 0
      %p672 = por %p670, %p671
      %p673 = scmp.ne.s32.totalorder %s661, %s662
      %p674 = scmp.eq.s32.totalorder %s85, 1
      %p675 = por %p673, %p674
      %p677 = scmp.ne.s32.totalorder %s662, %s676
      %p678 = scmp.eq.s32.totalorder %s85, 0
      %p679 = por %p677, %p678
      %s681 = sadd.s32 %s680, 1
      %p684 = scmp.eq.s32.totalorder %s79, 1
      %p685 = scmp.ne.s32.totalorder %s680, %s682
      %p686 = scmp.eq.s32.totalorder %s79, 0
      %p687 = por %p685, %p686
      %p688 = scmp.ne.s32.totalorder %s680, %s682
      %p689 = scmp.eq.s32.totalorder %s84, 1
      %p690 = por %p688, %p689
      %p691 = scmp.ne.s32.totalorder %s682, %s683
      %p692 = scmp.eq.s32.totalorder %s84, 0
      %p693 = por %p691, %p692
      %p694 = scmp.ne.s32.totalorder %s682, %s683
      %p695 = scmp.eq.s32.totalorder %s85, 1
      %p696 = por %p694, %p695
      %p698 = scmp.ne.s32.totalorder %s683, %s697
      %p699 = scmp.eq.s32.totalorder %s85, 0
      %p700 = por %p698, %p699
      %s702 = sadd.s32 %s701, 1
      %p705 = scmp.eq.s32.totalorder %s79, 1
      %p706 = scmp.ne.s32.totalorder %s701, %s703
      %p707 = scmp.eq.s32.totalorder %s79, 0
      %p708 = por %p706, %p707
      %p709 = scmp.ne.s32.totalorder %s701, %s703
      %p710 = scmp.eq.s32.totalorder %s84, 1
      %p711 = por %p709, %p710
      %p712 = scmp.ne.s32.totalorder %s703, %s704
      %p713 = scmp.eq.s32.totalorder %s84, 0
      %p714 = por %p712, %p713
      %p715 = scmp.ne.s32.totalorder %s703, %s704
      %p716 = scmp.eq.s32.totalorder %s85, 1
      %p717 = por %p715, %p716
      %p719 = scmp.ne.s32.totalorder %s704, %s718
      %p720 = scmp.eq.s32.totalorder %s85, 0
      %p721 = por %p719, %p720
      %s722 = ssub.s32 %s79, %s86
      %p723 = scmp.eq.s32.totalorder %s722, 0
      %s725 = sadd.s32 %s724, 1
      %s726 = scalar_select %p723, %s724, %s725
      %p729 = pneg %p723
      %p730 = scmp.eq.s32.totalorder %s79, 1
      %p731 = por %p729, %p730
      %p732 = scmp.ne.s32.totalorder %s724, %s727
      %p733 = scmp.eq.s32.totalorder %s79, 0
      %p734 = por %p732, %p733
      %p735 = scmp.ne.s32.totalorder %s724, %s727
      %p736 = scmp.eq.s32.totalorder %s84, 1
      %p737 = por %p735, %p736
      %p738 = scmp.ne.s32.totalorder %s727, %s728
      %p739 = scmp.eq.s32.totalorder %s84, 0
      %p740 = por %p738, %p739
      %p741 = scmp.ne.s32.totalorder %s727, %s728
      %p742 = scmp.eq.s32.totalorder %s85, 1
      %p743 = por %p741, %p742
      %p745 = scmp.ne.s32.totalorder %s728, %s744
      %p746 = scmp.eq.s32.totalorder %s85, 0
      %p747 = por %p745, %p746
      %p748 = scmp.le.s32.totalorder 1, %s79
      %p749 = scmp.lt.s32.totalorder %s79, 3
      %p750 = pnand %p748, %p749
      %p751 = pneg %p750
      // Predicated region
      $region9: #{classifier_forward.1} parent=5 // pred_check
        _
      $region10: #{classifier_forward.1} parent=5 // pred_check_branch
        %753 = sbr.rel (%p750) target = $region12
      $region11: #{classifier_forward.1} parent=5 // pred_region
        %s754 = ssub.s32 %s79, 1
        // Predicated region
        $region13: #{classifier_forward.1} parent=11 // pred_check
          %p755 = pneg %p126
        $region14: #{classifier_forward.1} parent=11 // pred_check_branch
          %757 = sbr.rel (%p755) target = $region16
        $region15: #{classifier_forward.1} parent=11 // pred_region
          %s759 = ssub.s32 1024, 1024
          %760 = vsyncadd [#allocation3], %s759
          %s761 = sshll.u32 [#allocation2], 4
          %s762 = int_to_ptr.vmem [resolvable:$true] %s761
          %767 = dma.hbm_to_vmem [thread:$0]  %s3, 1024, %s762, [#allocation3], 64, 64, 4
        $region16: #{classifier_forward.1} parent=11 // pred_fallthru
          _
        // Predicated region
        $region17: #{classifier_forward.1} parent=11 // pred_check
          %p768 = pneg %p147
        $region18: #{classifier_forward.1} parent=11 // pred_check_branch
          %770 = sbr.rel (%p768) target = $region20
        $region19: #{classifier_forward.1} parent=11 // pred_region
          %s772 = ssub.s32 12288, 12288
          %773 = vsyncadd [#allocation6], %s772
          %s774 = sshll.u32 [#allocation5], 4
          %s775 = int_to_ptr.vmem [resolvable:$true] %s774
          %780 = dma.hbm_to_vmem [thread:$0]  %s5, 12288, %s775, [#allocation6], 128, 128, 8
        $region20: #{classifier_forward.1} parent=11 // pred_fallthru
          _
        // Predicated region
        $region21: #{classifier_forward.1} parent=11 // pred_check
          %p781 = pneg %p168
        $region22: #{classifier_forward.1} parent=11 // pred_check_branch
          %783 = sbr.rel (%p781) target = $region24
        $region23: #{classifier_forward.1} parent=11 // pred_region
          _
        $region24: #{classifier_forward.1} parent=11 // pred_fallthru
          _
        // Predicated region
        $region25: #{classifier_forward.1} parent=11 // pred_check
          %p784 = pneg %p189
        $region26: #{classifier_forward.1} parent=11 // pred_check_branch
          %786 = sbr.rel (%p784) target = $region28
        $region27: #{classifier_forward.1} parent=11 // pred_region
          _
        $region28: #{classifier_forward.1} parent=11 // pred_fallthru
          _
        // Predicated region
        $region29: #{classifier_forward.1} parent=11 // pred_check
          %p787 = pneg %p210
        $region30: #{classifier_forward.1} parent=11 // pred_check_branch
          %789 = sbr.rel (%p787) target = $region32
        $region31: #{classifier_forward.1} parent=11 // pred_region
          _
        $region32: #{classifier_forward.1} parent=11 // pred_fallthru
          _
        // Predicated region
        $region33: #{classifier_forward.1} parent=11 // pred_check
          %p790 = pneg %p231
        $region34: #{classifier_forward.1} parent=11 // pred_check_branch
          %792 = sbr.rel (%p790) target = $region36
        $region35: #{classifier_forward.1} parent=11 // pred_region
          %s794 = ssub.s32 512, 512
          %795 = vsyncadd [#allocation6], %s794
          %s796 = sshll.u32 [#allocation7], 4
          %s797 = int_to_ptr.vmem [resolvable:$true] %s796
          %802 = dma.hbm_to_vmem [thread:$0]  %s13, 512, %s797, [#allocation6], 64, 64, 4
        $region36: #{classifier_forward.1} parent=11 // pred_fallthru
          _
        // Predicated region
        $region37: #{classifier_forward.1} parent=11 // pred_check
          %p803 = pneg %p252
        $region38: #{classifier_forward.1} parent=11 // pred_check_branch
          %805 = sbr.rel (%p803) target = $region40
        $region39: #{classifier_forward.1} parent=11 // pred_region
          _
        $region40: #{classifier_forward.1} parent=11 // pred_fallthru
          _
        // Predicated region
        $region41: #{classifier_forward.1} parent=11 // pred_check
          %p806 = pneg %p273
        $region42: #{classifier_forward.1} parent=11 // pred_check_branch
          %808 = sbr.rel (%p806) target = $region44
        $region43: #{classifier_forward.1} parent=11 // pred_region
          %s810 = ssub.s32 32, 32
          %811 = vsyncadd [#allocation9], %s810
          %s813 = sshll.u32 [#allocation8], 4
          %s814 = int_to_ptr.vmem [resolvable:$true] %s813
          %816 = dma.hbm_to_vmem [thread:$0]  %s17, 32, %s814, [#allocation9]
        $region44: #{classifier_forward.1} parent=11 // pred_fallthru
          _
        // Predicated region
        $region45: #{classifier_forward.1} parent=11 // pred_check
          %p817 = pneg %p294
        $region46: #{classifier_forward.1} parent=11 // pred_check_branch
          %819 = sbr.rel (%p817) target = $region48
        $region47: #{classifier_forward.1} parent=11 // pred_region
          _
        $region48: #{classifier_forward.1} parent=11 // pred_fallthru
          _
        // Predicated region
        $region49: #{classifier_forward.1} parent=11 // pred_check
          %p820 = pneg %p315
        $region50: #{classifier_forward.1} parent=11 // pred_check_branch
          %822 = sbr.rel (%p820) target = $region52
        $region51: #{classifier_forward.1} parent=11 // pred_region
          %s824 = ssub.s32 256, 256
          %825 = vsyncadd [#allocation9], %s824
          %s826 = sshll.u32 [#allocation10], 4
          %s827 = int_to_ptr.vmem [resolvable:$true] %s826
          %832 = dma.hbm_to_vmem [thread:$0]  %s21, 256, %s827, [#allocation9], 128, 128, 8
        $region52: #{classifier_forward.1} parent=11 // pred_fallthru
          _
        // Predicated region
        $region53: #{classifier_forward.1} parent=11 // pred_check
          %p833 = pneg %p336
        $region54: #{classifier_forward.1} parent=11 // pred_check_branch
          %835 = sbr.rel (%p833) target = $region56
        $region55: #{classifier_forward.1} parent=11 // pred_region
          %s837 = ssub.s32 256, 256
          %838 = vsyncadd [#allocation12], %s837
          %s839 = sshll.u32 [#allocation11], 4
          %s840 = int_to_ptr.vmem [resolvable:$true] %s839
          %845 = dma.hbm_to_vmem [thread:$0]  %s23, 256, %s840, [#allocation12], 64, 64, 4
        $region56: #{classifier_forward.1} parent=11 // pred_fallthru
          _
        // Predicated region
        $region57: #{classifier_forward.1} parent=11 // pred_check
          %p846 = pneg %p357
        $region58: #{classifier_forward.1} parent=11 // pred_check_branch
          %848 = sbr.rel (%p846) target = $region60
        $region59: #{classifier_forward.1} parent=11 // pred_region
          _
        $region60: #{classifier_forward.1} parent=11 // pred_fallthru
          _
        // Predicated region
        $region61: #{classifier_forward.1} parent=11 // pred_check
          %p849 = pneg %p378
        $region62: #{classifier_forward.1} parent=11 // pred_check_branch
          %851 = sbr.rel (%p849) target = $region64
        $region63: #{classifier_forward.1} parent=11 // pred_region
          %s853 = ssub.s32 32, 32
          %854 = vsyncadd [#allocation12], %s853
          %s856 = sshll.u32 [#allocation13], 4
          %s857 = int_to_ptr.vmem [resolvable:$true] %s856
          %859 = dma.hbm_to_vmem [thread:$0]  %s27, 32, %s857, [#allocation12]
        $region64: #{classifier_forward.1} parent=11 // pred_fallthru
          _
        // Predicated region
        $region65: #{classifier_forward.1} parent=11 // pred_check
          %p860 = pneg %p399
        $region66: #{classifier_forward.1} parent=11 // pred_check_branch
          %862 = sbr.rel (%p860) target = $region68
        $region67: #{classifier_forward.1} parent=11 // pred_region
          _
        $region68: #{classifier_forward.1} parent=11 // pred_fallthru
          _
        // Predicated region
        $region69: #{classifier_forward.1} parent=11 // pred_check
          %p863 = pneg %p420
        $region70: #{classifier_forward.1} parent=11 // pred_check_branch
          %865 = sbr.rel (%p863) target = $region72
        $region71: #{classifier_forward.1} parent=11 // pred_region
          %s867 = ssub.s32 512, 512
          %868 = vsyncadd [#allocation15], %s867
          %s869 = sshll.u32 [#allocation14], 4
          %s870 = int_to_ptr.vmem [resolvable:$true] %s869
          %875 = dma.hbm_to_vmem [thread:$0]  %s31, 512, %s870, [#allocation15], 128, 128, 8
        $region72: #{classifier_forward.1} parent=11 // pred_fallthru
          _
        // Predicated region
        $region73: #{classifier_forward.1} parent=11 // pred_check
          %p876 = pneg %p441
        $region74: #{classifier_forward.1} parent=11 // pred_check_branch
          %878 = sbr.rel (%p876) target = $region76
        $region75: #{classifier_forward.1} parent=11 // pred_region
          %s880 = ssub.s32 128, 128
          %881 = vsyncadd [#allocation15], %s880
          %s882 = sshll.u32 [#allocation16], 4
          %s883 = int_to_ptr.vmem [resolvable:$true] %s882
          %888 = dma.hbm_to_vmem [thread:$0]  %s33, 128, %s883, [#allocation15], 32, 32, 2
        $region76: #{classifier_forward.1} parent=11 // pred_fallthru
          _
        // Predicated region
        $region77: #{classifier_forward.1} parent=11 // pred_check
          %p889 = pneg %p462
        $region78: #{classifier_forward.1} parent=11 // pred_check_branch
          %891 = sbr.rel (%p889) target = $region80
        $region79: #{classifier_forward.1} parent=11 // pred_region
          %s893 = ssub.s32 16384, 16384
          %894 = vsyncadd [#allocation18], %s893
          %s895 = sshll.u32 [#allocation17], 4
          %s896 = int_to_ptr.vmem [resolvable:$true] %s895
          %901 = dma.hbm_to_vmem [thread:$0]  %s35, 16384, %s896, [#allocation18], 128, 128, 8
        $region80: #{classifier_forward.1} parent=11 // pred_fallthru
          _
        // Predicated region
        $region81: #{classifier_forward.1} parent=11 // pred_check
          %p902 = pneg %p483
        $region82: #{classifier_forward.1} parent=11 // pred_check_branch
          %904 = sbr.rel (%p902) target = $region84
        $region83: #{classifier_forward.1} parent=11 // pred_region
          %s906 = ssub.s32 32, 32
          %907 = vsyncadd [#allocation18], %s906
          %s909 = sshll.u32 [#allocation19], 4
          %s910 = int_to_ptr.vmem [resolvable:$true] %s909
          %912 = dma.hbm_to_vmem [thread:$0]  %s37, 32, %s910, [#allocation18]
        $region84: #{classifier_forward.1} parent=11 // pred_fallthru
          _
        // Predicated region
        $region85: #{classifier_forward.1} parent=11 // pred_check
          %p913 = pneg %p504
        $region86: #{classifier_forward.1} parent=11 // pred_check_branch
          %915 = sbr.rel (%p913) target = $region88
        $region87: #{classifier_forward.1} parent=11 // pred_region
          _
        $region88: #{classifier_forward.1} parent=11 // pred_fallthru
          _
        // Predicated region
        $region89: #{classifier_forward.1} parent=11 // pred_check
          %p916 = pneg %p525
        $region90: #{classifier_forward.1} parent=11 // pred_check_branch
          %918 = sbr.rel (%p916) target = $region92
        $region91: #{classifier_forward.1} parent=11 // pred_region
          %s920 = ssub.s32 1024, 1024
          %921 = vsyncadd [#allocation21], %s920
          %s922 = sshll.u32 [#allocation20], 4
          %s923 = int_to_ptr.vmem [resolvable:$true] %s922
          %928 = dma.hbm_to_vmem [thread:$0]  %s41, 1024, %s923, [#allocation21], 128, 128, 8
        $region92: #{classifier_forward.1} parent=11 // pred_fallthru
          _
        // Predicated region
        $region93: #{classifier_forward.1} parent=11 // pred_check
          %p929 = pneg %p546
        $region94: #{classifier_forward.1} parent=11 // pred_check_branch
          %931 = sbr.rel (%p929) target = $region96
        $region95: #{classifier_forward.1} parent=11 // pred_region
          %s933 = ssub.s32 64, 64
          %934 = vsyncadd [#allocation21], %s933
          %s935 = sshll.u32 [#allocation22], 4
          %s936 = int_to_ptr.vmem [resolvable:$true] %s935
          %941 = dma.hbm_to_vmem [thread:$0]  %s43, 64, %s936, [#allocation21], 16, 16, 1
        $region96: #{classifier_forward.1} parent=11 // pred_fallthru
          _
        // Predicated region
        $region97: #{classifier_forward.1} parent=11 // pred_check
          %p942 = pneg %p567
        $region98: #{classifier_forward.1} parent=11 // pred_check_branch
          %944 = sbr.rel (%p942) target = $region100
        $region99: #{classifier_forward.1} parent=11 // pred_region
          %s946 = ssub.s32 16384, 16384
          %947 = vsyncadd [#allocation24], %s946
          %s948 = sshll.u32 [#allocation23], 4
          %s949 = int_to_ptr.vmem [resolvable:$true] %s948
          %954 = dma.hbm_to_vmem [thread:$0]  %s45, 16384, %s949, [#allocation24], 128, 128, 8
        $region100: #{classifier_forward.1} parent=11 // pred_fallthru
          _
        // Predicated region
        $region101: #{classifier_forward.1} parent=11 // pred_check
          %p955 = pneg %p588
        $region102: #{classifier_forward.1} parent=11 // pred_check_branch
          %957 = sbr.rel (%p955) target = $region104
        $region103: #{classifier_forward.1} parent=11 // pred_region
          %s959 = ssub.s32 32, 32
          %960 = vsyncadd [#allocation24], %s959
          %s962 = sshll.u32 [#allocation25], 4
          %s963 = int_to_ptr.vmem [resolvable:$true] %s962
          %965 = dma.hbm_to_vmem [thread:$0]  %s47, 32, %s963, [#allocation24]
        $region104: #{classifier_forward.1} parent=11 // pred_fallthru
          _
        // Predicated region
        $region105: #{classifier_forward.1} parent=11 // pred_check
          %p966 = pneg %p609
        $region106: #{classifier_forward.1} parent=11 // pred_check_branch
          %968 = sbr.rel (%p966) target = $region108
        $region107: #{classifier_forward.1} parent=11 // pred_region
          _
        $region108: #{classifier_forward.1} parent=11 // pred_fallthru
          _
        // Predicated region
        $region109: #{classifier_forward.1} parent=11 // pred_check
          %p969 = pneg %p630
        $region110: #{classifier_forward.1} parent=11 // pred_check_branch
          %971 = sbr.rel (%p969) target = $region112
        $region111: #{classifier_forward.1} parent=11 // pred_region
          _
        $region112: #{classifier_forward.1} parent=11 // pred_fallthru
          _
        // Predicated region
        $region113: #{classifier_forward.1} parent=11 // pred_check
          %p972 = pneg %p651
        $region114: #{classifier_forward.1} parent=11 // pred_check_branch
          %974 = sbr.rel (%p972) target = $region116
        $region115: #{classifier_forward.1} parent=11 // pred_region
          _
        $region116: #{classifier_forward.1} parent=11 // pred_fallthru
          _
        // Predicated region
        $region117: #{classifier_forward.1} parent=11 // pred_check
          %p975 = pneg %p672
        $region118: #{classifier_forward.1} parent=11 // pred_check_branch
          %977 = sbr.rel (%p975) target = $region120
        $region119: #{classifier_forward.1} parent=11 // pred_region
          _
        $region120: #{classifier_forward.1} parent=11 // pred_fallthru
          _
        // Predicated region
        $region121: #{classifier_forward.1} parent=11 // pred_check
          %p978 = pneg %p693
        $region122: #{classifier_forward.1} parent=11 // pred_check_branch
          %980 = sbr.rel (%p978) target = $region124
        $region123: #{classifier_forward.1} parent=11 // pred_region
          _
        $region124: #{classifier_forward.1} parent=11 // pred_fallthru
          _
        // Predicated region
        $region125: #{classifier_forward.1} parent=11 // pred_check
          %p981 = pneg %p714
        $region126: #{classifier_forward.1} parent=11 // pred_check_branch
          %983 = sbr.rel (%p981) target = $region128
        $region127: #{classifier_forward.1} parent=11 // pred_region
          %s985 = ssub.s32 16, 16
          %986 = vsyncadd [#allocation27], %s985
          %s988 = sshll.u32 [#allocation26], 4
          %s989 = int_to_ptr.vmem [resolvable:$true] %s988
          %991 = dma.hbm_to_vmem [thread:$0]  %s59, 16, %s989, [#allocation27]
        $region128: #{classifier_forward.1} parent=11 // pred_fallthru
          _
      $region12: #{classifier_forward.1} parent=5 // pred_fallthru
        _
      %p992 = scmp.lt.s32.totalorder %s79, 2
      // Predicated region
      $region129: #{classifier_forward.1} parent=5 // pred_check
        %p993 = pneg %p992
      $region130: #{classifier_forward.1} parent=5 // pred_check_branch
        %995 = sbr.rel (%p993) target = $region132
      $region131: #{classifier_forward.1} parent=5 // pred_region
        // Predicated region
        $region133: #{classifier_forward.1} parent=131 // pred_check
          %p996 = pneg %p99
        $region134: #{classifier_forward.1} parent=131 // pred_check_branch
          %998 = sbr.rel (%p996) target = $region136
        $region135: #{classifier_forward.1} parent=131 // pred_region
          %p999 = scmp.lt.s32.totalorder %s79, 1
          %s1000 = scalar_select %p999, %s79, 1
          %s1001 = smul.addr %s1000, 16
          %s1002 = smul.addr %s1001, 4
          %s1003 = scalar_lea.vmem %s1, %s1002
        $region136: #{classifier_forward.1} parent=131 // pred_fallthru
          _
      $region132: #{classifier_forward.1} parent=5 // pred_fallthru
        _
      %p1004 = scmp.le.s32.totalorder 1, %s79
      %p1005 = scmp.lt.s32.totalorder %s79, 3
      %p1006 = pnand %p1004, %p1005
      %p1007 = pneg %p1006
      // Predicated region
      $region137: #{classifier_forward.1} parent=5 // pred_check
        _
      $region138: #{classifier_forward.1} parent=5 // pred_check_branch
        %1009 = sbr.rel (%p1006) target = $region140
      $region139: #{classifier_forward.1} parent=5 // pred_region
        %s1010 = ssub.s32 %s79, 1
        // Predicated region
        $region141: #{classifier_forward.1} parent=139 // pred_check
          %p1011 = pneg %p126
        $region142: #{classifier_forward.1} parent=139 // pred_check_branch
          %1013 = sbr.rel (%p1011) target = $region144
        $region143: #{classifier_forward.1} parent=139 // pred_region
          %1014 = dma.done [#allocation3], 1024
        $region144: #{classifier_forward.1} parent=139 // pred_fallthru
          _
        // Predicated region
        $region145: #{classifier_forward.1} parent=139 // pred_check
          %p1015 = pneg %p147
        $region146: #{classifier_forward.1} parent=139 // pred_check_branch
          %1017 = sbr.rel (%p1015) target = $region148
        $region147: #{classifier_forward.1} parent=139 // pred_region
          %1018 = dma.done [#allocation6], 12288
        $region148: #{classifier_forward.1} parent=139 // pred_fallthru
          _
        // Predicated region
        $region149: #{classifier_forward.1} parent=139 // pred_check
          %p1019 = pneg %p231
        $region150: #{classifier_forward.1} parent=139 // pred_check_branch
          %1021 = sbr.rel (%p1019) target = $region152
        $region151: #{classifier_forward.1} parent=139 // pred_region
          %1022 = dma.done [#allocation6], 512
        $region152: #{classifier_forward.1} parent=139 // pred_fallthru
          _
        // Predicated region
        $region153: #{classifier_forward.1} parent=139 // pred_check
          %p1023 = pneg %p273
        $region154: #{classifier_forward.1} parent=139 // pred_check_branch
          %1025 = sbr.rel (%p1023) target = $region156
        $region155: #{classifier_forward.1} parent=139 // pred_region
          %1026 = dma.done [#allocation9], 32
        $region156: #{classifier_forward.1} parent=139 // pred_fallthru
          _
        // Predicated region
        $region157: #{classifier_forward.1} parent=139 // pred_check
          %p1027 = pneg %p315
        $region158: #{classifier_forward.1} parent=139 // pred_check_branch
          %1029 = sbr.rel (%p1027) target = $region160
        $region159: #{classifier_forward.1} parent=139 // pred_region
          %1030 = dma.done [#allocation9], 256
        $region160: #{classifier_forward.1} parent=139 // pred_fallthru
          _
        // Predicated region
        $region161: #{classifier_forward.1} parent=139 // pred_check
          %p1031 = pneg %p336
        $region162: #{classifier_forward.1} parent=139 // pred_check_branch
          %1033 = sbr.rel (%p1031) target = $region164
        $region163: #{classifier_forward.1} parent=139 // pred_region
          %1034 = dma.done [#allocation12], 256
        $region164: #{classifier_forward.1} parent=139 // pred_fallthru
          _
        // Predicated region
        $region165: #{classifier_forward.1} parent=139 // pred_check
          %p1035 = pneg %p378
        $region166: #{classifier_forward.1} parent=139 // pred_check_branch
          %1037 = sbr.rel (%p1035) target = $region168
        $region167: #{classifier_forward.1} parent=139 // pred_region
          %1038 = dma.done [#allocation12], 32
        $region168: #{classifier_forward.1} parent=139 // pred_fallthru
          _
        // Predicated region
        $region169: #{classifier_forward.1} parent=139 // pred_check
          %p1039 = pneg %p420
        $region170: #{classifier_forward.1} parent=139 // pred_check_branch
          %1041 = sbr.rel (%p1039) target = $region172
        $region171: #{classifier_forward.1} parent=139 // pred_region
          %1042 = dma.done [#allocation15], 512
        $region172: #{classifier_forward.1} parent=139 // pred_fallthru
          _
        // Predicated region
        $region173: #{classifier_forward.1} parent=139 // pred_check
          %p1043 = pneg %p441
        $region174: #{classifier_forward.1} parent=139 // pred_check_branch
          %1045 = sbr.rel (%p1043) target = $region176
        $region175: #{classifier_forward.1} parent=139 // pred_region
          %1046 = dma.done [#allocation15], 128
        $region176: #{classifier_forward.1} parent=139 // pred_fallthru
          _
        // Predicated region
        $region177: #{classifier_forward.1} parent=139 // pred_check
          %p1047 = pneg %p462
        $region178: #{classifier_forward.1} parent=139 // pred_check_branch
          %1049 = sbr.rel (%p1047) target = $region180
        $region179: #{classifier_forward.1} parent=139 // pred_region
          %1050 = dma.done [#allocation18], 16384
        $region180: #{classifier_forward.1} parent=139 // pred_fallthru
          _
        // Predicated region
        $region181: #{classifier_forward.1} parent=139 // pred_check
          %p1051 = pneg %p483
        $region182: #{classifier_forward.1} parent=139 // pred_check_branch
          %1053 = sbr.rel (%p1051) target = $region184
        $region183: #{classifier_forward.1} parent=139 // pred_region
          %1054 = dma.done [#allocation18], 32
        $region184: #{classifier_forward.1} parent=139 // pred_fallthru
          _
        // Predicated region
        $region185: #{classifier_forward.1} parent=139 // pred_check
          %p1055 = pneg %p525
        $region186: #{classifier_forward.1} parent=139 // pred_check_branch
          %1057 = sbr.rel (%p1055) target = $region188
        $region187: #{classifier_forward.1} parent=139 // pred_region
          %1058 = dma.done [#allocation21], 1024
        $region188: #{classifier_forward.1} parent=139 // pred_fallthru
          _
        // Predicated region
        $region189: #{classifier_forward.1} parent=139 // pred_check
          %p1059 = pneg %p546
        $region190: #{classifier_forward.1} parent=139 // pred_check_branch
          %1061 = sbr.rel (%p1059) target = $region192
        $region191: #{classifier_forward.1} parent=139 // pred_region
          %1062 = dma.done [#allocation21], 64
        $region192: #{classifier_forward.1} parent=139 // pred_fallthru
          _
        // Predicated region
        $region193: #{classifier_forward.1} parent=139 // pred_check
          %p1063 = pneg %p567
        $region194: #{classifier_forward.1} parent=139 // pred_check_branch
          %1065 = sbr.rel (%p1063) target = $region196
        $region195: #{classifier_forward.1} parent=139 // pred_region
          %1066 = dma.done [#allocation24], 16384
        $region196: #{classifier_forward.1} parent=139 // pred_fallthru
          _
        // Predicated region
        $region197: #{classifier_forward.1} parent=139 // pred_check
          %p1067 = pneg %p588
        $region198: #{classifier_forward.1} parent=139 // pred_check_branch
          %1069 = sbr.rel (%p1067) target = $region200
        $region199: #{classifier_forward.1} parent=139 // pred_region
          %1070 = dma.done [#allocation24], 32
        $region200: #{classifier_forward.1} parent=139 // pred_fallthru
          _
        // Predicated region
        $region201: #{classifier_forward.1} parent=139 // pred_check
          %p1071 = pneg %p714
        $region202: #{classifier_forward.1} parent=139 // pred_check_branch
          %1073 = sbr.rel (%p1071) target = $region204
        $region203: #{classifier_forward.1} parent=139 // pred_region
          %1074 = dma.done [#allocation27], 16
        $region204: #{classifier_forward.1} parent=139 // pred_fallthru
          _
        %p1075 = scmp.lt.s32.totalorder %s84, 1
        %s1076 = scalar_select %p1075, %s84, 1
        %s1077 = smul.addr %s1076, 16
        %s1078 = smul.addr %s1077, 4
        %s1079 = scalar_lea.vmem %s1, %s1078
        %p1080 = pneg %p105
        %p1081 = pneg %p102
        %p1082 = pneg %p126
        %p1083 = pneg %p123
        %p1084 = pneg %p147
        %p1085 = pneg %p144
        %p1086 = pneg %p168
        %p1087 = pneg %p165
        %p1088 = pneg %p189
        %p1089 = pneg %p186
        %p1090 = pneg %p210
        %p1091 = pneg %p207
        %p1092 = pneg %p231
        %p1093 = pneg %p228
        %p1094 = pneg %p252
        %p1095 = pneg %p249
        %p1096 = pneg %p273
        %p1097 = pneg %p270
        %p1098 = pneg %p294
        %p1099 = pneg %p291
        %p1100 = pneg %p315
        %p1101 = pneg %p312
        %p1102 = pneg %p336
        %p1103 = pneg %p333
        %p1104 = pneg %p357
        %p1105 = pneg %p354
        %p1106 = pneg %p378
        %p1107 = pneg %p375
        %p1108 = pneg %p399
        %p1109 = pneg %p396
        %p1110 = pneg %p420
        %p1111 = pneg %p417
        %p1112 = pneg %p441
        %p1113 = pneg %p438
        %p1114 = pneg %p462
        %p1115 = pneg %p459
        %p1116 = pneg %p483
        %p1117 = pneg %p480
        %p1118 = pneg %p504
        %p1119 = pneg %p501
        %p1120 = pneg %p525
        %p1121 = pneg %p522
        %p1122 = pneg %p546
        %p1123 = pneg %p543
        %p1124 = pneg %p567
        %p1125 = pneg %p564
        %p1126 = pneg %p588
        %p1127 = pneg %p585
        %p1128 = pneg %p609
        %p1129 = pneg %p606
        %p1130 = pneg %p630
        %p1131 = pneg %p627
        %p1132 = pneg %p651
        %p1133 = pneg %p648
        %p1134 = pneg %p672
        %p1135 = pneg %p669
        %p1136 = pneg %p693
        %p1137 = pneg %p690
        %p1138 = pneg %p714
        %p1139 = pneg %p711
        %p1140 = pneg %p740
        %p1141 = pneg %p737
        %s1142 = sand.u32 %s727, 1
        %s1143 = scalar_lea.sflag [#allocation4], %s1142
        %s1144 = sand.u32 %s727, 1
        %s1145 = scalar_lea.vmem [#allocation28], %s1144
        %p1146 = scmp.lt.s32.totalorder %s84, 1
        %s1147 = scalar_select %p1146, %s84, 1
        %s1148 = smul.addr %s1147, 16
        %s1149 = smul.addr %s1148, 4
        %s1150 = scalar_lea.vmem %s1, %s1149
        %v1152 = vld [vmem:[%s1150] sm:$0xff]
        %v1153 = vld [vmem:[%s1150 + $0x8] sm:$0xff]
        %v1154 = vld [vmem:[%s1150 + $0x10] sm:$0xff]
        %v1155 = vld [vmem:[%s1150 + $0x18] sm:$0xff]
        %v1156 = vld [vmem:[%s1150 + $0x20] sm:$0xff]
        %v1157 = vld [vmem:[%s1150 + $0x28] sm:$0xff]
        %v1158 = vld [vmem:[%s1150 + $0x30] sm:$0xff]
        %v1159 = vld [vmem:[%s1150 + $0x38] sm:$0xff]
        %v1160 = vld [vmem:[#allocation2] sm:$0xf]
        %v1161 = vld [vmem:[#allocation2 + $0x4] sm:$0xf]
        %v1162 = vld [vmem:[#allocation2 + $0x8] sm:$0xf]
        %v1163 = vld [vmem:[#allocation2 + $0xc] sm:$0xf]
        %v1168 = vunpack.c.l.b16 %v1160
        %v1169 = vunpack.c.l.b16 %v1161
        %v1170 = vunpack.c.l.b16 %v1162
        %v1171 = vunpack.c.l.b16 %v1163
        %v1172 = vpack.c.b16 %v1169, %v1168
        %v1173 = vpack.c.b16 %v1171, %v1170
        %v1182 = vunpack.c.l.b16 %v1152
        %v1183 = vunpack.c.h.b16 %v1152
        %v1184 = vunpack.c.l.b16 %v1153
        %v1185 = vunpack.c.h.b16 %v1153
        %v1186 = vunpack.c.l.b16 %v1154
        %v1187 = vunpack.c.h.b16 %v1154
        %v1188 = vunpack.c.l.b16 %v1155
        %v1189 = vunpack.c.h.b16 %v1155
        %v1190 = vunpack.c.l.b16 %v1156
        %v1191 = vunpack.c.h.b16 %v1156
        %v1192 = vunpack.c.l.b16 %v1157
        %v1193 = vunpack.c.h.b16 %v1157
        %v1194 = vunpack.c.l.b16 %v1158
        %v1195 = vunpack.c.h.b16 %v1158
        %v1196 = vunpack.c.l.b16 %v1159
        %v1197 = vunpack.c.h.b16 %v1159
        %v1198 = vpack.c.b16 %v1184, %v1182
        %v1199 = vpack.c.b16 %v1185, %v1183
        %v1200 = vpack.c.b16 %v1188, %v1186
        %v1201 = vpack.c.b16 %v1189, %v1187
        %v1202 = vpack.c.b16 %v1192, %v1190
        %v1203 = vpack.c.b16 %v1193, %v1191
        %v1204 = vpack.c.b16 %v1196, %v1194
        %v1205 = vpack.c.b16 %v1197, %v1195
        %vm1214 = vcmask 523264
        %v1216 = vsel %vm1214, %v1172, 0
        %v1219 = vsel %vm1214, %v1173, 0
        %1221 = vmatprep.subr.bf16.mxu0 %v1199
        %1222 = vmatpush1.bf16.msra.mxu0 %v1198
        %1223 = vmatprep.subr.bf16.mxu0 %v1201
        %1224 = vmatpush1.bf16.msra.mxu0 %v1200
        %1225 = vmatprep.subr.bf16.mxu0 %v1203
        %1226 = vmatpush1.bf16.msra.mxu0 %v1202
        %1227 = vmatprep.subr.bf16.mxu0 %v1205
        %1228 = vmatpush1.bf16.msra.mxu0 %v1204
        %1229 = vmatprep.subr.bf16.mxu0 0
        %1230 = vmatpush1.bf16.msra.mxu0 0
        %1231 = vmatprep.subr.bf16.mxu0 0
        %1232 = vmatpush1.bf16.msra.mxu0 0
        %1233 = vmatprep.subr.bf16.mxu0 0
        %1234 = vmatpush1.bf16.msra.mxu0 0
        %1235 = vmatprep.subr.bf16.mxu0 0
        %1236 = vmatpush1.bf16.msra.mxu0 0
        %1237 = vmatprep.subr.bf16.mxu0 0
        %1238 = vmatpush1.bf16.msra.mxu0 0
        %1239 = vmatprep.subr.bf16.mxu0 0
        %1240 = vmatpush1.bf16.msra.mxu0 0
        %1241 = vmatprep.subr.bf16.mxu0 0
        %1242 = vmatpush1.bf16.msra.mxu0 0
        %1243 = vmatprep.subr.bf16.mxu0 0
        %1244 = vmatpush1.bf16.msra.mxu0 0
        %1245 = vmatprep.subr.bf16.mxu0 0
        %1246 = vmatpush1.bf16.msra.mxu0 0
        %1247 = vmatprep.subr.bf16.mxu0 0
        %1248 = vmatpush1.bf16.msra.mxu0 0
        %1249 = vmatprep.subr.bf16.mxu0 0
        %1250 = vmatpush1.bf16.msra.mxu0 0
        %1251 = vmatprep.subr.bf16.mxu0 0
        %1252 = vmatpush1.bf16.msra.mxu0 0
        %1253 = vmatprep.mubr.bf16.mxu0 0
        %1254 = vmatmul.mubr.bf16.gmra.mrb[0].mxu0 %v1216
        %v1255 = vpop.f32.mrb[0].mxu0
        %v1256 = vadd.f32 0.0, %v1255
        %v1257 = vpop.f32.mrb[0].mxu0
        %v1258 = vadd.f32 0.0, %v1257
        %v1259 = vpop.f32.mrb[0].mxu0
        %v1260 = vadd.f32 0.0, %v1259
        %v1261 = vpop.f32.mrb[0].mxu0
        %v1262 = vadd.f32 0.0, %v1261
        %1263 = vmatprep.mubr.bf16.mxu0 0
        %1264 = vmatmul.mubr.bf16.gmra.mrb[0].mxu0 %v1219
        %v1265 = vpop.f32.mrb[0].mxu0
        %v1266 = vadd.f32 0.0, %v1265
        %v1267 = vpop.f32.mrb[0].mxu0
        %v1268 = vadd.f32 0.0, %v1267
        %v1269 = vpop.f32.mrb[0].mxu0
        %v1270 = vadd.f32 0.0, %v1269
        %v1271 = vpop.f32.mrb[0].mxu0
        %v1272 = vadd.f32 0.0, %v1271
        %1273 = vdwg.mxu0
        %v1274 = vpack.c.bf16 %v1260, %v1256
        %v1275 = vpack.c.bf16 %v1262, %v1258
        %v1276 = vpack.c.bf16 %v1270, %v1266
        %v1277 = vpack.c.bf16 %v1272, %v1268
        %v1278 = vld [vmem:[#allocation5] sm:$0xff]
        %v1279 = vld [vmem:[#allocation5 + $0x8] sm:$0xff]
        %v1280 = vld [vmem:[#allocation5 + $0x10] sm:$0xff]
        %v1281 = vld [vmem:[#allocation5 + $0x18] sm:$0xff]
        %v1282 = vld [vmem:[#allocation5 + $0x20] sm:$0xff]
        %v1283 = vld [vmem:[#allocation5 + $0x28] sm:$0xff]
        %v1284 = vld [vmem:[#allocation5 + $0x30] sm:$0xff]
        %v1285 = vld [vmem:[#allocation5 + $0x38] sm:$0xff]
        %v1286 = vld [vmem:[#allocation5 + $0x40] sm:$0xff]
        %v1287 = vld [vmem:[#allocation5 + $0x48] sm:$0xff]
        %v1288 = vld [vmem:[#allocation5 + $0x50] sm:$0xff]
        %v1289 = vld [vmem:[#allocation5 + $0x58] sm:$0xff]
        %v1290 = vld [vmem:[#allocation5 + $0x60] sm:$0xff]
        %v1291 = vld [vmem:[#allocation5 + $0x68] sm:$0xff]
        %v1292 = vld [vmem:[#allocation5 + $0x70] sm:$0xff]
        %v1293 = vld [vmem:[#allocation5 + $0x78] sm:$0xff]
        %v1294 = vld [vmem:[#allocation5 + $0x80] sm:$0xff]
        %v1295 = vld [vmem:[#allocation5 + $0x88] sm:$0xff]
        %v1296 = vld [vmem:[#allocation5 + $0x90] sm:$0xff]
        %v1297 = vld [vmem:[#allocation5 + $0x98] sm:$0xff]
        %v1298 = vld [vmem:[#allocation5 + $0xa0] sm:$0xff]
        %v1299 = vld [vmem:[#allocation5 + $0xa8] sm:$0xff]
        %v1300 = vld [vmem:[#allocation5 + $0xb0] sm:$0xff]
        %v1301 = vld [vmem:[#allocation5 + $0xb8] sm:$0xff]
        %s1302 = scalar_lea.vmem [#allocation2], 16
        %v1303 = vld [vmem:[%s1302] sm:$0xf]
        %v1304 = vld [vmem:[%s1302 + $0x4] sm:$0xf]
        %v1305 = vld [vmem:[%s1302 + $0x8] sm:$0xf]
        %v1306 = vld [vmem:[%s1302 + $0xc] sm:$0xf]
        %v1311 = vunpack.c.l.b16 %v1303
        %v1312 = vunpack.c.l.b16 %v1304
        %v1313 = vunpack.c.l.b16 %v1305
        %v1314 = vunpack.c.l.b16 %v1306
        %v1315 = vpack.c.b16 %v1312, %v1311
        %v1316 = vpack.c.b16 %v1314, %v1313
        %v1318 = vsel %vm1214, %v1315, 0
        %v1321 = vsel %vm1214, %v1316, 0
        %1323 = vmatprep.subr.bf16.mxu0 %v1199
        %1324 = vmatpush1.bf16.msra.mxu0 %v1198
        %1325 = vmatprep.subr.bf16.mxu0 %v1201
        %1326 = vmatpush1.bf16.msra.mxu0 %v1200
        %1327 = vmatprep.subr.bf16.mxu0 %v1203
        %1328 = vmatpush1.bf16.msra.mxu0 %v1202
        %1329 = vmatprep.subr.bf16.mxu0 %v1205
        %1330 = vmatpush1.bf16.msra.mxu0 %v1204
        %1331 = vmatprep.subr.bf16.mxu0 0
        %1332 = vmatpush1.bf16.msra.mxu0 0
        %1333 = vmatprep.subr.bf16.mxu0 0
        %1334 = vmatpush1.bf16.msra.mxu0 0
        %1335 = vmatprep.subr.bf16.mxu0 0
        %1336 = vmatpush1.bf16.msra.mxu0 0
        %1337 = vmatprep.subr.bf16.mxu0 0
        %1338 = vmatpush1.bf16.msra.mxu0 0
        %1339 = vmatprep.subr.bf16.mxu0 0
        %1340 = vmatpush1.bf16.msra.mxu0 0
        %1341 = vmatprep.subr.bf16.mxu0 0
        %1342 = vmatpush1.bf16.msra.mxu0 0
        %1343 = vmatprep.subr.bf16.mxu0 0
        %1344 = vmatpush1.bf16.msra.mxu0 0
        %1345 = vmatprep.subr.bf16.mxu0 0
        %1346 = vmatpush1.bf16.msra.mxu0 0
        %1347 = vmatprep.subr.bf16.mxu0 0
        %1348 = vmatpush1.bf16.msra.mxu0 0
        %1349 = vmatprep.subr.bf16.mxu0 0
        %1350 = vmatpush1.bf16.msra.mxu0 0
        %1351 = vmatprep.subr.bf16.mxu0 0
        %1352 = vmatpush1.bf16.msra.mxu0 0
        %1353 = vmatprep.subr.bf16.mxu0 0
        %1354 = vmatpush1.bf16.msra.mxu0 0
        %1355 = vmatprep.mubr.bf16.mxu0 0
        %1356 = vmatmul.mubr.bf16.gmra.mrb[0].mxu0 %v1318
        %v1357 = vpop.f32.mrb[0].mxu0
        %v1358 = vadd.f32 0.0, %v1357
        %v1359 = vpop.f32.mrb[0].mxu0
        %v1360 = vadd.f32 0.0, %v1359
        %v1361 = vpop.f32.mrb[0].mxu0
        %v1362 = vadd.f32 0.0, %v1361
        %v1363 = vpop.f32.mrb[0].mxu0
        %v1364 = vadd.f32 0.0, %v1363
        %1365 = vmatprep.mubr.bf16.mxu0 0
        %1366 = vmatmul.mubr.bf16.gmra.mrb[0].mxu0 %v1321
        %v1367 = vpop.f32.mrb[0].mxu0
        %v1368 = vadd.f32 0.0, %v1367
        %v1369 = vpop.f32.mrb[0].mxu0
        %v1370 = vadd.f32 0.0, %v1369
        %v1371 = vpop.f32.mrb[0].mxu0
        %v1372 = vadd.f32 0.0, %v1371
        %v1373 = vpop.f32.mrb[0].mxu0
        %v1374 = vadd.f32 0.0, %v1373
        %1375 = vdwg.mxu0
        %v1376 = vpack.c.bf16 %v1362, %v1358
        %v1377 = vpack.c.bf16 %v1364, %v1360
        %v1378 = vpack.c.bf16 %v1372, %v1368
        %v1379 = vpack.c.bf16 %v1374, %v1370
        %s1380 = scalar_lea.vmem [#allocation5], 192
        %v1381 = vld [vmem:[%s1380] sm:$0xff]
        %v1382 = vld [vmem:[%s1380 + $0x8] sm:$0xff]
        %v1383 = vld [vmem:[%s1380 + $0x10] sm:$0xff]
        %v1384 = vld [vmem:[%s1380 + $0x18] sm:$0xff]
        %v1385 = vld [vmem:[%s1380 + $0x20] sm:$0xff]
        %v1386 = vld [vmem:[%s1380 + $0x28] sm:$0xff]
        %v1387 = vld [vmem:[%s1380 + $0x30] sm:$0xff]
        %v1388 = vld [vmem:[%s1380 + $0x38] sm:$0xff]
        %v1389 = vld [vmem:[%s1380 + $0x40] sm:$0xff]
        %v1390 = vld [vmem:[%s1380 + $0x48] sm:$0xff]
        %v1391 = vld [vmem:[%s1380 + $0x50] sm:$0xff]
        %v1392 = vld [vmem:[%s1380 + $0x58] sm:$0xff]
        %v1393 = vld [vmem:[%s1380 + $0x60] sm:$0xff]
        %v1394 = vld [vmem:[%s1380 + $0x68] sm:$0xff]
        %v1395 = vld [vmem:[%s1380 + $0x70] sm:$0xff]
        %v1396 = vld [vmem:[%s1380 + $0x78] sm:$0xff]
        %v1397 = vld [vmem:[%s1380 + $0x80] sm:$0xff]
        %v1398 = vld [vmem:[%s1380 + $0x88] sm:$0xff]
        %v1399 = vld [vmem:[%s1380 + $0x90] sm:$0xff]
        %v1400 = vld [vmem:[%s1380 + $0x98] sm:$0xff]
        %v1401 = vld [vmem:[%s1380 + $0xa0] sm:$0xff]
        %v1402 = vld [vmem:[%s1380 + $0xa8] sm:$0xff]
        %v1403 = vld [vmem:[%s1380 + $0xb0] sm:$0xff]
        %v1404 = vld [vmem:[%s1380 + $0xb8] sm:$0xff]
        %v1429 = vunpack.c.l.b16 %v1381
        %v1430 = vunpack.c.h.b16 %v1381
        %v1431 = vunpack.c.l.b16 %v1382
        %v1432 = vunpack.c.h.b16 %v1382
        %v1433 = vunpack.c.l.b16 %v1383
        %v1434 = vunpack.c.h.b16 %v1383
        %v1435 = vunpack.c.l.b16 %v1384
        %v1436 = vunpack.c.h.b16 %v1384
        %v1437 = vunpack.c.l.b16 %v1385
        %v1438 = vunpack.c.h.b16 %v1385
        %v1439 = vunpack.c.l.b16 %v1386
        %v1440 = vunpack.c.h.b16 %v1386
        %v1441 = vunpack.c.l.b16 %v1387
        %v1442 = vunpack.c.h.b16 %v1387
        %v1443 = vunpack.c.l.b16 %v1388
        %v1444 = vunpack.c.h.b16 %v1388
        %v1445 = vunpack.c.l.b16 %v1389
        %v1446 = vunpack.c.h.b16 %v1389
        %v1447 = vunpack.c.l.b16 %v1390
        %v1448 = vunpack.c.h.b16 %v1390
        %v1449 = vunpack.c.l.b16 %v1391
        %v1450 = vunpack.c.h.b16 %v1391
        %v1451 = vunpack.c.l.b16 %v1392
        %v1452 = vunpack.c.h.b16 %v1392
        %v1453 = vunpack.c.l.b16 %v1393
        %v1454 = vunpack.c.h.b16 %v1393
        %v1455 = vunpack.c.l.b16 %v1394
        %v1456 = vunpack.c.h.b16 %v1394
        %v1457 = vunpack.c.l.b16 %v1395
        %v1458 = vunpack.c.h.b16 %v1395
        %v1459 = vunpack.c.l.b16 %v1396
        %v1460 = vunpack.c.h.b16 %v1396
        %v1461 = vunpack.c.l.b16 %v1397
        %v1462 = vunpack.c.h.b16 %v1397
        %v1463 = vunpack.c.l.b16 %v1398
        %v1464 = vunpack.c.h.b16 %v1398
        %v1465 = vunpack.c.l.b16 %v1399
        %v1466 = vunpack.c.h.b16 %v1399
        %v1467 = vunpack.c.l.b16 %v1400
        %v1468 = vunpack.c.h.b16 %v1400
        %v1469 = vunpack.c.l.b16 %v1401
        %v1470 = vunpack.c.h.b16 %v1401
        %v1471 = vunpack.c.l.b16 %v1402
        %v1472 = vunpack.c.h.b16 %v1402
        %v1473 = vunpack.c.l.b16 %v1403
        %v1474 = vunpack.c.h.b16 %v1403
        %v1475 = vunpack.c.l.b16 %v1404
        %v1476 = vunpack.c.h.b16 %v1404
        %v1477 = vpack.c.b16 %v1431, %v1429
        %v1478 = vpack.c.b16 %v1432, %v1430
        %v1479 = vpack.c.b16 %v1435, %v1433
        %v1480 = vpack.c.b16 %v1436, %v1434
        %v1481 = vpack.c.b16 %v1439, %v1437
        %v1482 = vpack.c.b16 %v1440, %v1438
        %v1483 = vpack.c.b16 %v1443, %v1441
        %v1484 = vpack.c.b16 %v1444, %v1442
        %v1485 = vpack.c.b16 %v1447, %v1445
        %v1486 = vpack.c.b16 %v1448, %v1446
        %v1487 = vpack.c.b16 %v1451, %v1449
        %v1488 = vpack.c.b16 %v1452, %v1450
        %v1489 = vpack.c.b16 %v1455, %v1453
        %v1490 = vpack.c.b16 %v1456, %v1454
        %v1491 = vpack.c.b16 %v1459, %v1457
        %v1492 = vpack.c.b16 %v1460, %v1458
        %v1493 = vpack.c.b16 %v1463, %v1461
        %v1494 = vpack.c.b16 %v1464, %v1462
        %v1495 = vpack.c.b16 %v1467, %v1465
        %v1496 = vpack.c.b16 %v1468, %v1466
        %v1497 = vpack.c.b16 %v1471, %v1469
        %v1498 = vpack.c.b16 %v1472, %v1470
        %v1499 = vpack.c.b16 %v1475, %v1473
        %v1500 = vpack.c.b16 %v1476, %v1474
        %v1526 = vsel %vm1214, %v1377, 0
        %v1529 = vsel %vm1214, %v1379, 0
        %1531 = vmatprep.subr.bf16.mxu0 %v1478
        %1532 = vmatpush1.bf16.msra.mxu0 %v1477
        %1533 = vmatprep.subr.bf16.mxu0 %v1480
        %1534 = vmatpush1.bf16.msra.mxu0 %v1479
        %1535 = vmatprep.subr.bf16.mxu0 %v1482
        %1536 = vmatpush1.bf16.msra.mxu0 %v1481
        %1537 = vmatprep.subr.bf16.mxu0 %v1484
        %1538 = vmatpush1.bf16.msra.mxu0 %v1483
        %1539 = vmatprep.subr.bf16.mxu0 %v1486
        %1540 = vmatpush1.bf16.msra.mxu0 %v1485
        %1541 = vmatprep.subr.bf16.mxu0 %v1488
        %1542 = vmatpush1.bf16.msra.mxu0 %v1487
        %1543 = vmatprep.subr.bf16.mxu0 %v1490
        %1544 = vmatpush1.bf16.msra.mxu0 %v1489
        %1545 = vmatprep.subr.bf16.mxu0 %v1492
        %1546 = vmatpush1.bf16.msra.mxu0 %v1491
        %1547 = vmatprep.subr.bf16.mxu0 %v1494
        %1548 = vmatpush1.bf16.msra.mxu0 %v1493
        %1549 = vmatprep.subr.bf16.mxu0 %v1496
        %1550 = vmatpush1.bf16.msra.mxu0 %v1495
        %1551 = vmatprep.subr.bf16.mxu0 %v1498
        %1552 = vmatpush1.bf16.msra.mxu0 %v1497
        %1553 = vmatprep.subr.bf16.mxu0 %v1500
        %1554 = vmatpush1.bf16.msra.mxu0 %v1499
        %1555 = vmatprep.subr.bf16.mxu0 0
        %1556 = vmatpush1.bf16.msra.mxu0 0
        %1557 = vmatprep.subr.bf16.mxu0 0
        %1558 = vmatpush1.bf16.msra.mxu0 0
        %1559 = vmatprep.subr.bf16.mxu0 0
        %1560 = vmatpush1.bf16.msra.mxu0 0
        %1561 = vmatprep.subr.bf16.mxu0 0
        %1562 = vmatpush1.bf16.msra.mxu0 0
        %1563 = vmatprep.mubr.bf16.mxu0 %v1526
        %1564 = vmatmul.mubr.bf16.gmra.mrb[0].mxu0 %v1376
        %v1565 = vpop.f32.mrb[0].mxu0
        %v1566 = vadd.f32 0.0, %v1565
        %v1567 = vpop.f32.mrb[0].mxu0
        %v1568 = vadd.f32 0.0, %v1567
        %v1569 = vpop.f32.mrb[0].mxu0
        %v1570 = vadd.f32 0.0, %v1569
        %v1571 = vpop.f32.mrb[0].mxu0
        %v1572 = vadd.f32 0.0, %v1571
        %1573 = vmatprep.mubr.bf16.mxu0 %v1529
        %1574 = vmatmul.mubr.bf16.gmra.mrb[0].mxu0 %v1378
        %v1575 = vpop.f32.mrb[0].mxu0
        %v1576 = vadd.f32 0.0, %v1575
        %v1577 = vpop.f32.mrb[0].mxu0
        %v1578 = vadd.f32 0.0, %v1577
        %v1579 = vpop.f32.mrb[0].mxu0
        %v1580 = vadd.f32 0.0, %v1579
        %v1581 = vpop.f32.mrb[0].mxu0
        %v1582 = vadd.f32 0.0, %v1581
        %1583 = vdwg.mxu0
        %v1608 = vunpack.c.l.b16 %v1278
        %v1609 = vunpack.c.h.b16 %v1278
        %v1610 = vunpack.c.l.b16 %v1279
        %v1611 = vunpack.c.h.b16 %v1279
        %v1612 = vunpack.c.l.b16 %v1280
        %v1613 = vunpack.c.h.b16 %v1280
        %v1614 = vunpack.c.l.b16 %v1281
        %v1615 = vunpack.c.h.b16 %v1281
        %v1616 = vunpack.c.l.b16 %v1282
        %v1617 = vunpack.c.h.b16 %v1282
        %v1618 = vunpack.c.l.b16 %v1283
        %v1619 = vunpack.c.h.b16 %v1283
        %v1620 = vunpack.c.l.b16 %v1284
        %v1621 = vunpack.c.h.b16 %v1284
        %v1622 = vunpack.c.l.b16 %v1285
        %v1623 = vunpack.c.h.b16 %v1285
        %v1624 = vunpack.c.l.b16 %v1286
        %v1625 = vunpack.c.h.b16 %v1286
        %v1626 = vunpack.c.l.b16 %v1287
        %v1627 = vunpack.c.h.b16 %v1287
        %v1628 = vunpack.c.l.b16 %v1288
        %v1629 = vunpack.c.h.b16 %v1288
        %v1630 = vunpack.c.l.b16 %v1289
        %v1631 = vunpack.c.h.b16 %v1289
        %v1632 = vunpack.c.l.b16 %v1290
        %v1633 = vunpack.c.h.b16 %v1290
        %v1634 = vunpack.c.l.b16 %v1291
        %v1635 = vunpack.c.h.b16 %v1291
        %v1636 = vunpack.c.l.b16 %v1292
        %v1637 = vunpack.c.h.b16 %v1292
        %v1638 = vunpack.c.l.b16 %v1293
        %v1639 = vunpack.c.h.b16 %v1293
        %v1640 = vunpack.c.l.b16 %v1294
        %v1641 = vunpack.c.h.b16 %v1294
        %v1642 = vunpack.c.l.b16 %v1295
        %v1643 = vunpack.c.h.b16 %v1295
        %v1644 = vunpack.c.l.b16 %v1296
        %v1645 = vunpack.c.h.b16 %v1296
        %v1646 = vunpack.c.l.b16 %v1297
        %v1647 = vunpack.c.h.b16 %v1297
        %v1648 = vunpack.c.l.b16 %v1298
        %v1649 = vunpack.c.h.b16 %v1298
        %v1650 = vunpack.c.l.b16 %v1299
        %v1651 = vunpack.c.h.b16 %v1299
        %v1652 = vunpack.c.l.b16 %v1300
        %v1653 = vunpack.c.h.b16 %v1300
        %v1654 = vunpack.c.l.b16 %v1301
        %v1655 = vunpack.c.h.b16 %v1301
        %v1656 = vpack.c.b16 %v1610, %v1608
        %v1657 = vpack.c.b16 %v1611, %v1609
        %v1658 = vpack.c.b16 %v1614, %v1612
        %v1659 = vpack.c.b16 %v1615, %v1613
        %v1660 = vpack.c.b16 %v1618, %v1616
        %v1661 = vpack.c.b16 %v1619, %v1617
        %v1662 = vpack.c.b16 %v1622, %v1620
        %v1663 = vpack.c.b16 %v1623, %v1621
        %v1664 = vpack.c.b16 %v1626, %v1624
        %v1665 = vpack.c.b16 %v1627, %v1625
        %v1666 = vpack.c.b16 %v1630, %v1628
        %v1667 = vpack.c.b16 %v1631, %v1629
        %v1668 = vpack.c.b16 %v1634, %v1632
        %v1669 = vpack.c.b16 %v1635, %v1633
        %v1670 = vpack.c.b16 %v1638, %v1636
        %v1671 = vpack.c.b16 %v1639, %v1637
        %v1672 = vpack.c.b16 %v1642, %v1640
        %v1673 = vpack.c.b16 %v1643, %v1641
        %v1674 = vpack.c.b16 %v1646, %v1644
        %v1675 = vpack.c.b16 %v1647, %v1645
        %v1676 = vpack.c.b16 %v1650, %v1648
        %v1677 = vpack.c.b16 %v1651, %v1649
        %v1678 = vpack.c.b16 %v1654, %v1652
        %v1679 = vpack.c.b16 %v1655, %v1653
        %v1705 = vsel %vm1214, %v1275, 0
        %v1708 = vsel %vm1214, %v1277, 0
        %1710 = vmatprep.subr.bf16.mxu0 %v1657
        %1711 = vmatpush1.bf16.msra.mxu0 %v1656
        %1712 = vmatprep.subr.bf16.mxu0 %v1659
        %1713 = vmatpush1.bf16.msra.mxu0 %v1658
        %1714 = vmatprep.subr.bf16.mxu0 %v1661
        %1715 = vmatpush1.bf16.msra.mxu0 %v1660
        %1716 = vmatprep.subr.bf16.mxu0 %v1663
        %1717 = vmatpush1.bf16.msra.mxu0 %v1662
        %1718 = vmatprep.subr.bf16.mxu0 %v1665
        %1719 = vmatpush1.bf16.msra.mxu0 %v1664
        %1720 = vmatprep.subr.bf16.mxu0 %v1667
        %1721 = vmatpush1.bf16.msra.mxu0 %v1666
        %1722 = vmatprep.subr.bf16.mxu0 %v1669
        %1723 = vmatpush1.bf16.msra.mxu0 %v1668
        %1724 = vmatprep.subr.bf16.mxu0 %v1671
        %1725 = vmatpush1.bf16.msra.mxu0 %v1670
        %1726 = vmatprep.subr.bf16.mxu0 %v1673
        %1727 = vmatpush1.bf16.msra.mxu0 %v1672
        %1728 = vmatprep.subr.bf16.mxu0 %v1675
        %1729 = vmatpush1.bf16.msra.mxu0 %v1674
        %1730 = vmatprep.subr.bf16.mxu0 %v1677
        %1731 = vmatpush1.bf16.msra.mxu0 %v1676
        %1732 = vmatprep.subr.bf16.mxu0 %v1679
        %1733 = vmatpush1.bf16.msra.mxu0 %v1678
        %1734 = vmatprep.subr.bf16.mxu0 0
        %1735 = vmatpush1.bf16.msra.mxu0 0
        %1736 = vmatprep.subr.bf16.mxu0 0
        %1737 = vmatpush1.bf16.msra.mxu0 0
        %1738 = vmatprep.subr.bf16.mxu0 0
        %1739 = vmatpush1.bf16.msra.mxu0 0
        %1740 = vmatprep.subr.bf16.mxu0 0
        %1741 = vmatpush1.bf16.msra.mxu0 0
        %1742 = vmatprep.mubr.bf16.mxu0 %v1705
        %1743 = vmatmul.mubr.bf16.gmra.mrb[0].mxu0 %v1274
        %v1744 = vpop.f32.mrb[0].mxu0
        %v1745 = vadd.f32 %v1566, %v1744
        %v1746 = vpop.f32.mrb[0].mxu0
        %v1747 = vadd.f32 %v1568, %v1746
        %v1748 = vpop.f32.mrb[0].mxu0
        %v1749 = vadd.f32 %v1570, %v1748
        %v1750 = vpop.f32.mrb[0].mxu0
        %v1751 = vadd.f32 %v1572, %v1750
        %1752 = vmatprep.mubr.bf16.mxu0 %v1708
        %1753 = vmatmul.mubr.bf16.gmra.mrb[0].mxu0 %v1276
        %v1754 = vpop.f32.mrb[0].mxu0
        %v1755 = vadd.f32 %v1576, %v1754
        %v1756 = vpop.f32.mrb[0].mxu0
        %v1757 = vadd.f32 %v1578, %v1756
        %v1758 = vpop.f32.mrb[0].mxu0
        %v1759 = vadd.f32 %v1580, %v1758
        %v1760 = vpop.f32.mrb[0].mxu0
        %v1761 = vadd.f32 %v1582, %v1760
        %1762 = vdwg.mxu0
        %s1763 = scalar_lea.vmem [#allocation2], 32
        %v1764 = vld [vmem:[%s1763] sm:$0xf]
        %v1765 = vld [vmem:[%s1763 + $0x4] sm:$0xf]
        %v1766 = vld [vmem:[%s1763 + $0x8] sm:$0xf]
        %v1767 = vld [vmem:[%s1763 + $0xc] sm:$0xf]
        %v1772 = vunpack.c.l.b16 %v1764
        %v1773 = vunpack.c.l.b16 %v1765
        %v1774 = vunpack.c.l.b16 %v1766
        %v1775 = vunpack.c.l.b16 %v1767
        %v1776 = vpack.c.b16 %v1773, %v1772
        %v1777 = vpack.c.b16 %v1775, %v1774
        %v1779 = vsel %vm1214, %v1776, 0
        %v1782 = vsel %vm1214, %v1777, 0
        %1784 = vmatprep.subr.bf16.mxu0 %v1199
        %1785 = vmatpush1.bf16.msra.mxu0 %v1198
        %1786 = vmatprep.subr.bf16.mxu0 %v1201
        %1787 = vmatpush1.bf16.msra.mxu0 %v1200
        %1788 = vmatprep.subr.bf16.mxu0 %v1203
        %1789 = vmatpush1.bf16.msra.mxu0 %v1202
        %1790 = vmatprep.subr.bf16.mxu0 %v1205
        %1791 = vmatpush1.bf16.msra.mxu0 %v1204
        %1792 = vmatprep.subr.bf16.mxu0 0
        %1793 = vmatpush1.bf16.msra.mxu0 0
        %1794 = vmatprep.subr.bf16.mxu0 0
        %1795 = vmatpush1.bf16.msra.mxu0 0
        %1796 = vmatprep.subr.bf16.mxu0 0
        %1797 = vmatpush1.bf16.msra.mxu0 0
        %1798 = vmatprep.subr.bf16.mxu0 0
        %1799 = vmatpush1.bf16.msra.mxu0 0
        %1800 = vmatprep.subr.bf16.mxu0 0
        %1801 = vmatpush1.bf16.msra.mxu0 0
        %1802 = vmatprep.subr.bf16.mxu0 0
        %1803 = vmatpush1.bf16.msra.mxu0 0
        %1804 = vmatprep.subr.bf16.mxu0 0
        %1805 = vmatpush1.bf16.msra.mxu0 0
        %1806 = vmatprep.subr.bf16.mxu0 0
        %1807 = vmatpush1.bf16.msra.mxu0 0
        %1808 = vmatprep.subr.bf16.mxu0 0
        %1809 = vmatpush1.bf16.msra.mxu0 0
        %1810 = vmatprep.subr.bf16.mxu0 0
        %1811 = vmatpush1.bf16.msra.mxu0 0
        %1812 = vmatprep.subr.bf16.mxu0 0
        %1813 = vmatpush1.bf16.msra.mxu0 0
        %1814 = vmatprep.subr.bf16.mxu0 0
        %1815 = vmatpush1.bf16.msra.mxu0 0
        %1816 = vmatprep.mubr.bf16.mxu0 0
        %1817 = vmatmul.mubr.bf16.gmra.mrb[0].mxu0 %v1779
        %v1818 = vpop.f32.mrb[0].mxu0
        %v1819 = vadd.f32 0.0, %v1818
        %v1820 = vpop.f32.mrb[0].mxu0
        %v1821 = vadd.f32 0.0, %v1820
        %v1822 = vpop.f32.mrb[0].mxu0
        %v1823 = vadd.f32 0.0, %v1822
        %v1824 = vpop.f32.mrb[0].mxu0
        %v1825 = vadd.f32 0.0, %v1824
        %1826 = vmatprep.mubr.bf16.mxu0 0
        %1827 = vmatmul.mubr.bf16.gmra.mrb[0].mxu0 %v1782
        %v1828 = vpop.f32.mrb[0].mxu0
        %v1829 = vadd.f32 0.0, %v1828
        %v1830 = vpop.f32.mrb[0].mxu0
        %v1831 = vadd.f32 0.0, %v1830
        %v1832 = vpop.f32.mrb[0].mxu0
        %v1833 = vadd.f32 0.0, %v1832
        %v1834 = vpop.f32.mrb[0].mxu0
        %v1835 = vadd.f32 0.0, %v1834
        %1836 = vdwg.mxu0
        %v1837 = vpack.c.bf16 %v1823, %v1819
        %v1838 = vpack.c.bf16 %v1825, %v1821
        %v1839 = vpack.c.bf16 %v1833, %v1829
        %v1840 = vpack.c.bf16 %v1835, %v1831
        %s1841 = scalar_lea.vmem [#allocation5], 384
        %v1842 = vld [vmem:[%s1841] sm:$0xff]
        %v1843 = vld [vmem:[%s1841 + $0x8] sm:$0xff]
        %v1844 = vld [vmem:[%s1841 + $0x10] sm:$0xff]
        %v1845 = vld [vmem:[%s1841 + $0x18] sm:$0xff]
        %v1846 = vld [vmem:[%s1841 + $0x20] sm:$0xff]
        %v1847 = vld [vmem:[%s1841 + $0x28] sm:$0xff]
        %v1848 = vld [vmem:[%s1841 + $0x30] sm:$0xff]
        %v1849 = vld [vmem:[%s1841 + $0x38] sm:$0xff]
        %v1850 = vld [vmem:[%s1841 + $0x40] sm:$0xff]
        %v1851 = vld [vmem:[%s1841 + $0x48] sm:$0xff]
        %v1852 = vld [vmem:[%s1841 + $0x50] sm:$0xff]
        %v1853 = vld [vmem:[%s1841 + $0x58] sm:$0xff]
        %v1854 = vld [vmem:[%s1841 + $0x60] sm:$0xff]
        %v1855 = vld [vmem:[%s1841 + $0x68] sm:$0xff]
        %v1856 = vld [vmem:[%s1841 + $0x70] sm:$0xff]
        %v1857 = vld [vmem:[%s1841 + $0x78] sm:$0xff]
        %v1858 = vld [vmem:[%s1841 + $0x80] sm:$0xff]
        %v1859 = vld [vmem:[%s1841 + $0x88] sm:$0xff]
        %v1860 = vld [vmem:[%s1841 + $0x90] sm:$0xff]
        %v1861 = vld [vmem:[%s1841 + $0x98] sm:$0xff]
        %v1862 = vld [vmem:[%s1841 + $0xa0] sm:$0xff]
        %v1863 = vld [vmem:[%s1841 + $0xa8] sm:$0xff]
        %v1864 = vld [vmem:[%s1841 + $0xb0] sm:$0xff]
        %v1865 = vld [vmem:[%s1841 + $0xb8] sm:$0xff]
        %v1890 = vunpack.c.l.b16 %v1842
        %v1891 = vunpack.c.h.b16 %v1842
        %v1892 = vunpack.c.l.b16 %v1843
        %v1893 = vunpack.c.h.b16 %v1843
        %v1894 = vunpack.c.l.b16 %v1844
        %v1895 = vunpack.c.h.b16 %v1844
        %v1896 = vunpack.c.l.b16 %v1845
        %v1897 = vunpack.c.h.b16 %v1845
        %v1898 = vunpack.c.l.b16 %v1846
        %v1899 = vunpack.c.h.b16 %v1846
        %v1900 = vunpack.c.l.b16 %v1847
        %v1901 = vunpack.c.h.b16 %v1847
        %v1902 = vunpack.c.l.b16 %v1848
        %v1903 = vunpack.c.h.b16 %v1848
        %v1904 = vunpack.c.l.b16 %v1849
        %v1905 = vunpack.c.h.b16 %v1849
        %v1906 = vunpack.c.l.b16 %v1850
        %v1907 = vunpack.c.h.b16 %v1850
        %v1908 = vunpack.c.l.b16 %v1851
        %v1909 = vunpack.c.h.b16 %v1851
        %v1910 = vunpack.c.l.b16 %v1852
        %v1911 = vunpack.c.h.b16 %v1852
        %v1912 = vunpack.c.l.b16 %v1853
        %v1913 = vunpack.c.h.b16 %v1853
        %v1914 = vunpack.c.l.b16 %v1854
        %v1915 = vunpack.c.h.b16 %v1854
        %v1916 = vunpack.c.l.b16 %v1855
        %v1917 = vunpack.c.h.b16 %v1855
        %v1918 = vunpack.c.l.b16 %v1856
        %v1919 = vunpack.c.h.b16 %v1856
        %v1920 = vunpack.c.l.b16 %v1857
        %v1921 = vunpack.c.h.b16 %v1857
        %v1922 = vunpack.c.l.b16 %v1858
        %v1923 = vunpack.c.h.b16 %v1858
        %v1924 = vunpack.c.l.b16 %v1859
        %v1925 = vunpack.c.h.b16 %v1859
        %v1926 = vunpack.c.l.b16 %v1860
        %v1927 = vunpack.c.h.b16 %v1860
        %v1928 = vunpack.c.l.b16 %v1861
        %v1929 = vunpack.c.h.b16 %v1861
        %v1930 = vunpack.c.l.b16 %v1862
        %v1931 = vunpack.c.h.b16 %v1862
        %v1932 = vunpack.c.l.b16 %v1863
        %v1933 = vunpack.c.h.b16 %v1863
        %v1934 = vunpack.c.l.b16 %v1864
        %v1935 = vunpack.c.h.b16 %v1864
        %v1936 = vunpack.c.l.b16 %v1865
        %v1937 = vunpack.c.h.b16 %v1865
        %v1938 = vpack.c.b16 %v1892, %v1890
        %v1939 = vpack.c.b16 %v1893, %v1891
        %v1940 = vpack.c.b16 %v1896, %v1894
        %v1941 = vpack.c.b16 %v1897, %v1895
        %v1942 = vpack.c.b16 %v1900, %v1898
        %v1943 = vpack.c.b16 %v1901, %v1899
        %v1944 = vpack.c.b16 %v1904, %v1902
        %v1945 = vpack.c.b16 %v1905, %v1903
        %v1946 = vpack.c.b16 %v1908, %v1906
        %v1947 = vpack.c.b16 %v1909, %v1907
        %v1948 = vpack.c.b16 %v1912, %v1910
        %v1949 = vpack.c.b16 %v1913, %v1911
        %v1950 = vpack.c.b16 %v1916, %v1914
        %v1951 = vpack.c.b16 %v1917, %v1915
        %v1952 = vpack.c.b16 %v1920, %v1918
        %v1953 = vpack.c.b16 %v1921, %v1919
        %v1954 = vpack.c.b16 %v1924, %v1922
        %v1955 = vpack.c.b16 %v1925, %v1923
        %v1956 = vpack.c.b16 %v1928, %v1926
        %v1957 = vpack.c.b16 %v1929, %v1927
        %v1958 = vpack.c.b16 %v1932, %v1930
        %v1959 = vpack.c.b16 %v1933, %v1931
        %v1960 = vpack.c.b16 %v1936, %v1934
        %v1961 = vpack.c.b16 %v1937, %v1935
        %v1987 = vsel %vm1214, %v1838, 0
        %v1990 = vsel %vm1214, %v1840, 0
        %1992 = vmatprep.subr.bf16.mxu0 %v1939
        %1993 = vmatpush1.bf16.msra.mxu0 %v1938
        %1994 = vmatprep.subr.bf16.mxu0 %v1941
        %1995 = vmatpush1.bf16.msra.mxu0 %v1940
        %1996 = vmatprep.subr.bf16.mxu0 %v1943
        %1997 = vmatpush1.bf16.msra.mxu0 %v1942
        %1998 = vmatprep.subr.bf16.mxu0 %v1945
        %1999 = vmatpush1.bf16.msra.mxu0 %v1944
        %2000 = vmatprep.subr.bf16.mxu0 %v1947
        %2001 = vmatpush1.bf16.msra.mxu0 %v1946
        %2002 = vmatprep.subr.bf16.mxu0 %v1949
        %2003 = vmatpush1.bf16.msra.mxu0 %v1948
        %2004 = vmatprep.subr.bf16.mxu0 %v1951
        %2005 = vmatpush1.bf16.msra.mxu0 %v1950
        %2006 = vmatprep.subr.bf16.mxu0 %v1953
        %2007 = vmatpush1.bf16.msra.mxu0 %v1952
        %2008 = vmatprep.subr.bf16.mxu0 %v1955
        %2009 = vmatpush1.bf16.msra.mxu0 %v1954
        %2010 = vmatprep.subr.bf16.mxu0 %v1957
        %2011 = vmatpush1.bf16.msra.mxu0 %v1956
        %2012 = vmatprep.subr.bf16.mxu0 %v1959
        %2013 = vmatpush1.bf16.msra.mxu0 %v1958
        %2014 = vmatprep.subr.bf16.mxu0 %v1961
        %2015 = vmatpush1.bf16.msra.mxu0 %v1960
        %2016 = vmatprep.subr.bf16.mxu0 0
        %2017 = vmatpush1.bf16.msra.mxu0 0
        %2018 = vmatprep.subr.bf16.mxu0 0
        %2019 = vmatpush1.bf16.msra.mxu0 0
        %2020 = vmatprep.subr.bf16.mxu0 0
        %2021 = vmatpush1.bf16.msra.mxu0 0
        %2022 = vmatprep.subr.bf16.mxu0 0
        %2023 = vmatpush1.bf16.msra.mxu0 0
        %2024 = vmatprep.mubr.bf16.mxu0 %v1987
        %2025 = vmatmul.mubr.bf16.gmra.mrb[0].mxu0 %v1837
        %v2026 = vpop.f32.mrb[0].mxu0
        %v2027 = vadd.f32 0.0, %v2026
        %v2028 = vpop.f32.mrb[0].mxu0
        %v2029 = vadd.f32 0.0, %v2028
        %v2030 = vpop.f32.mrb[0].mxu0
        %v2031 = vadd.f32 0.0, %v2030
        %v2032 = vpop.f32.mrb[0].mxu0
        %v2033 = vadd.f32 0.0, %v2032
        %2034 = vmatprep.mubr.bf16.mxu0 %v1990
        %2035 = vmatmul.mubr.bf16.gmra.mrb[0].mxu0 %v1839
        %v2036 = vpop.f32.mrb[0].mxu0
        %v2037 = vadd.f32 0.0, %v2036
        %v2038 = vpop.f32.mrb[0].mxu0
        %v2039 = vadd.f32 0.0, %v2038
        %v2040 = vpop.f32.mrb[0].mxu0
        %v2041 = vadd.f32 0.0, %v2040
        %v2042 = vpop.f32.mrb[0].mxu0
        %v2043 = vadd.f32 0.0, %v2042
        %2044 = vdwg.mxu0
        %v2045 = vadd.f32 %v1745, %v2027
        %v2046 = vadd.f32 %v1747, %v2029
        %v2047 = vadd.f32 %v1749, %v2031
        %v2048 = vadd.f32 %v1751, %v2033
        %v2049 = vadd.f32 %v1755, %v2037
        %v2050 = vadd.f32 %v1757, %v2039
        %v2051 = vadd.f32 %v1759, %v2041
        %v2052 = vadd.f32 %v1761, %v2043
        %s2053 = scalar_lea.vmem [#allocation2], 48
        %v2054 = vld [vmem:[%s2053] sm:$0xf]
        %v2055 = vld [vmem:[%s2053 + $0x4] sm:$0xf]
        %v2056 = vld [vmem:[%s2053 + $0x8] sm:$0xf]
        %v2057 = vld [vmem:[%s2053 + $0xc] sm:$0xf]
        %v2062 = vunpack.c.l.b16 %v2054
        %v2063 = vunpack.c.l.b16 %v2055
        %v2064 = vunpack.c.l.b16 %v2056
        %v2065 = vunpack.c.l.b16 %v2057
        %v2066 = vpack.c.b16 %v2063, %v2062
        %v2067 = vpack.c.b16 %v2065, %v2064
        %v2069 = vsel %vm1214, %v2066, 0
        %v2072 = vsel %vm1214, %v2067, 0
        %2074 = vmatprep.subr.bf16.mxu0 %v1199
        %2075 = vmatpush1.bf16.msra.mxu0 %v1198
        %2076 = vmatprep.subr.bf16.mxu0 %v1201
        %2077 = vmatpush1.bf16.msra.mxu0 %v1200
        %2078 = vmatprep.subr.bf16.mxu0 %v1203
        %2079 = vmatpush1.bf16.msra.mxu0 %v1202
        %2080 = vmatprep.subr.bf16.mxu0 %v1205
        %2081 = vmatpush1.bf16.msra.mxu0 %v1204
        %2082 = vmatprep.subr.bf16.mxu0 0
        %2083 = vmatpush1.bf16.msra.mxu0 0
        %2084 = vmatprep.subr.bf16.mxu0 0
        %2085 = vmatpush1.bf16.msra.mxu0 0
        %2086 = vmatprep.subr.bf16.mxu0 0
        %2087 = vmatpush1.bf16.msra.mxu0 0
        %2088 = vmatprep.subr.bf16.mxu0 0
        %2089 = vmatpush1.bf16.msra.mxu0 0
        %2090 = vmatprep.subr.bf16.mxu0 0
        %2091 = vmatpush1.bf16.msra.mxu0 0
        %2092 = vmatprep.subr.bf16.mxu0 0
        %2093 = vmatpush1.bf16.msra.mxu0 0
        %2094 = vmatprep.subr.bf16.mxu0 0
        %2095 = vmatpush1.bf16.msra.mxu0 0
        %2096 = vmatprep.subr.bf16.mxu0 0
        %2097 = vmatpush1.bf16.msra.mxu0 0
        %2098 = vmatprep.subr.bf16.mxu0 0
        %2099 = vmatpush1.bf16.msra.mxu0 0
        %2100 = vmatprep.subr.bf16.mxu0 0
        %2101 = vmatpush1.bf16.msra.mxu0 0
        %2102 = vmatprep.subr.bf16.mxu0 0
        %2103 = vmatpush1.bf16.msra.mxu0 0
        %2104 = vmatprep.subr.bf16.mxu0 0
        %2105 = vmatpush1.bf16.msra.mxu0 0
        %2106 = vmatprep.mubr.bf16.mxu0 0
        %2107 = vmatmul.mubr.bf16.gmra.mrb[0].mxu0 %v2069
        %v2108 = vpop.f32.mrb[0].mxu0
        %v2109 = vadd.f32 0.0, %v2108
        %v2110 = vpop.f32.mrb[0].mxu0
        %v2111 = vadd.f32 0.0, %v2110
        %v2112 = vpop.f32.mrb[0].mxu0
        %v2113 = vadd.f32 0.0, %v2112
        %v2114 = vpop.f32.mrb[0].mxu0
        %v2115 = vadd.f32 0.0, %v2114
        %2116 = vmatprep.mubr.bf16.mxu0 0
        %2117 = vmatmul.mubr.bf16.gmra.mrb[0].mxu0 %v2072
        %v2118 = vpop.f32.mrb[0].mxu0
        %v2119 = vadd.f32 0.0, %v2118
        %v2120 = vpop.f32.mrb[0].mxu0
        %v2121 = vadd.f32 0.0, %v2120
        %v2122 = vpop.f32.mrb[0].mxu0
        %v2123 = vadd.f32 0.0, %v2122
        %v2124 = vpop.f32.mrb[0].mxu0
        %v2125 = vadd.f32 0.0, %v2124
        %2126 = vdwg.mxu0
        %v2127 = vpack.c.bf16 %v2113, %v2109
        %v2128 = vpack.c.bf16 %v2115, %v2111
        %v2129 = vpack.c.bf16 %v2123, %v2119
        %v2130 = vpack.c.bf16 %v2125, %v2121
        %s2131 = scalar_lea.vmem [#allocation5], 576
        %v2132 = vld [vmem:[%s2131] sm:$0xff]
        %v2133 = vld [vmem:[%s2131 + $0x8] sm:$0xff]
        %v2134 = vld [vmem:[%s2131 + $0x10] sm:$0xff]
        %v2135 = vld [vmem:[%s2131 + $0x18] sm:$0xff]
        %v2136 = vld [vmem:[%s2131 + $0x20] sm:$0xff]
        %v2137 = vld [vmem:[%s2131 + $0x28] sm:$0xff]
        %v2138 = vld [vmem:[%s2131 + $0x30] sm:$0xff]
        %v2139 = vld [vmem:[%s2131 + $0x38] sm:$0xff]
        %v2140 = vld [vmem:[%s2131 + $0x40] sm:$0xff]
        %v2141 = vld [vmem:[%s2131 + $0x48] sm:$0xff]
        %v2142 = vld [vmem:[%s2131 + $0x50] sm:$0xff]
        %v2143 = vld [vmem:[%s2131 + $0x58] sm:$0xff]
        %v2144 = vld [vmem:[%s2131 + $0x60] sm:$0xff]
        %v2145 = vld [vmem:[%s2131 + $0x68] sm:$0xff]
        %v2146 = vld [vmem:[%s2131 + $0x70] sm:$0xff]
        %v2147 = vld [vmem:[%s2131 + $0x78] sm:$0xff]
        %v2148 = vld [vmem:[%s2131 + $0x80] sm:$0xff]
        %v2149 = vld [vmem:[%s2131 + $0x88] sm:$0xff]
        %v2150 = vld [vmem:[%s2131 + $0x90] sm:$0xff]
        %v2151 = vld [vmem:[%s2131 + $0x98] sm:$0xff]
        %v2152 = vld [vmem:[%s2131 + $0xa0] sm:$0xff]
        %v2153 = vld [vmem:[%s2131 + $0xa8] sm:$0xff]
        %v2154 = vld [vmem:[%s2131 + $0xb0] sm:$0xff]
        %v2155 = vld [vmem:[%s2131 + $0xb8] sm:$0xff]
        %v2180 = vunpack.c.l.b16 %v2132
        %v2181 = vunpack.c.h.b16 %v2132
        %v2182 = vunpack.c.l.b16 %v2133
        %v2183 = vunpack.c.h.b16 %v2133
        %v2184 = vunpack.c.l.b16 %v2134
        %v2185 = vunpack.c.h.b16 %v2134
        %v2186 = vunpack.c.l.b16 %v2135
        %v2187 = vunpack.c.h.b16 %v2135
        %v2188 = vunpack.c.l.b16 %v2136
        %v2189 = vunpack.c.h.b16 %v2136
        %v2190 = vunpack.c.l.b16 %v2137
        %v2191 = vunpack.c.h.b16 %v2137
        %v2192 = vunpack.c.l.b16 %v2138
        %v2193 = vunpack.c.h.b16 %v2138
        %v2194 = vunpack.c.l.b16 %v2139
        %v2195 = vunpack.c.h.b16 %v2139
        %v2196 = vunpack.c.l.b16 %v2140
        %v2197 = vunpack.c.h.b16 %v2140
        %v2198 = vunpack.c.l.b16 %v2141
        %v2199 = vunpack.c.h.b16 %v2141
        %v2200 = vunpack.c.l.b16 %v2142
        %v2201 = vunpack.c.h.b16 %v2142
        %v2202 = vunpack.c.l.b16 %v2143
        %v2203 = vunpack.c.h.b16 %v2143
        %v2204 = vunpack.c.l.b16 %v2144
        %v2205 = vunpack.c.h.b16 %v2144
        %v2206 = vunpack.c.l.b16 %v2145
        %v2207 = vunpack.c.h.b16 %v2145
        %v2208 = vunpack.c.l.b16 %v2146
        %v2209 = vunpack.c.h.b16 %v2146
        %v2210 = vunpack.c.l.b16 %v2147
        %v2211 = vunpack.c.h.b16 %v2147
        %v2212 = vunpack.c.l.b16 %v2148
        %v2213 = vunpack.c.h.b16 %v2148
        %v2214 = vunpack.c.l.b16 %v2149
        %v2215 = vunpack.c.h.b16 %v2149
        %v2216 = vunpack.c.l.b16 %v2150
        %v2217 = vunpack.c.h.b16 %v2150
        %v2218 = vunpack.c.l.b16 %v2151
        %v2219 = vunpack.c.h.b16 %v2151
        %v2220 = vunpack.c.l.b16 %v2152
        %v2221 = vunpack.c.h.b16 %v2152
        %v2222 = vunpack.c.l.b16 %v2153
        %v2223 = vunpack.c.h.b16 %v2153
        %v2224 = vunpack.c.l.b16 %v2154
        %v2225 = vunpack.c.h.b16 %v2154
        %v2226 = vunpack.c.l.b16 %v2155
        %v2227 = vunpack.c.h.b16 %v2155
        %v2228 = vpack.c.b16 %v2182, %v2180
        %v2229 = vpack.c.b16 %v2183, %v2181
        %v2230 = vpack.c.b16 %v2186, %v2184
        %v2231 = vpack.c.b16 %v2187, %v2185
        %v2232 = vpack.c.b16 %v2190, %v2188
        %v2233 = vpack.c.b16 %v2191, %v2189
        %v2234 = vpack.c.b16 %v2194, %v2192
        %v2235 = vpack.c.b16 %v2195, %v2193
        %v2236 = vpack.c.b16 %v2198, %v2196
        %v2237 = vpack.c.b16 %v2199, %v2197
        %v2238 = vpack.c.b16 %v2202, %v2200
        %v2239 = vpack.c.b16 %v2203, %v2201
        %v2240 = vpack.c.b16 %v2206, %v2204
        %v2241 = vpack.c.b16 %v2207, %v2205
        %v2242 = vpack.c.b16 %v2210, %v2208
        %v2243 = vpack.c.b16 %v2211, %v2209
        %v2244 = vpack.c.b16 %v2214, %v2212
        %v2245 = vpack.c.b16 %v2215, %v2213
        %v2246 = vpack.c.b16 %v2218, %v2216
        %v2247 = vpack.c.b16 %v2219, %v2217
        %v2248 = vpack.c.b16 %v2222, %v2220
        %v2249 = vpack.c.b16 %v2223, %v2221
        %v2250 = vpack.c.b16 %v2226, %v2224
        %v2251 = vpack.c.b16 %v2227, %v2225
        %v2277 = vsel %vm1214, %v2128, 0
        %v2280 = vsel %vm1214, %v2130, 0
        %2282 = vmatprep.subr.bf16.mxu0 %v2229
        %2283 = vmatpush1.bf16.msra.mxu0 %v2228
        %2284 = vmatprep.subr.bf16.mxu0 %v2231
        %2285 = vmatpush1.bf16.msra.mxu0 %v2230
        %2286 = vmatprep.subr.bf16.mxu0 %v2233
        %2287 = vmatpush1.bf16.msra.mxu0 %v2232
        %2288 = vmatprep.subr.bf16.mxu0 %v2235
        %2289 = vmatpush1.bf16.msra.mxu0 %v2234
        %2290 = vmatprep.subr.bf16.mxu0 %v2237
        %2291 = vmatpush1.bf16.msra.mxu0 %v2236
        %2292 = vmatprep.subr.bf16.mxu0 %v2239
        %2293 = vmatpush1.bf16.msra.mxu0 %v2238
        %2294 = vmatprep.subr.bf16.mxu0 %v2241
        %2295 = vmatpush1.bf16.msra.mxu0 %v2240
        %2296 = vmatprep.subr.bf16.mxu0 %v2243
        %2297 = vmatpush1.bf16.msra.mxu0 %v2242
        %2298 = vmatprep.subr.bf16.mxu0 %v2245
        %2299 = vmatpush1.bf16.msra.mxu0 %v2244
        %2300 = vmatprep.subr.bf16.mxu0 %v2247
        %2301 = vmatpush1.bf16.msra.mxu0 %v2246
        %2302 = vmatprep.subr.bf16.mxu0 %v2249
        %2303 = vmatpush1.bf16.msra.mxu0 %v2248
        %2304 = vmatprep.subr.bf16.mxu0 %v2251
        %2305 = vmatpush1.bf16.msra.mxu0 %v2250
        %2306 = vmatprep.subr.bf16.mxu0 0
        %2307 = vmatpush1.bf16.msra.mxu0 0
        %2308 = vmatprep.subr.bf16.mxu0 0
        %2309 = vmatpush1.bf16.msra.mxu0 0
        %2310 = vmatprep.subr.bf16.mxu0 0
        %2311 = vmatpush1.bf16.msra.mxu0 0
        %2312 = vmatprep.subr.bf16.mxu0 0
        %2313 = vmatpush1.bf16.msra.mxu0 0
        %2314 = vmatprep.mubr.bf16.mxu0 %v2277
        %2315 = vmatmul.mubr.bf16.gmra.mrb[0].mxu0 %v2127
        %v2316 = vpop.f32.mrb[0].mxu0
        %v2317 = vadd.f32 0.0, %v2316
        %v2318 = vpop.f32.mrb[0].mxu0
        %v2319 = vadd.f32 0.0, %v2318
        %v2320 = vpop.f32.mrb[0].mxu0
        %v2321 = vadd.f32 0.0, %v2320
        %v2322 = vpop.f32.mrb[0].mxu0
        %v2323 = vadd.f32 0.0, %v2322
        %2324 = vmatprep.mubr.bf16.mxu0 %v2280
        %2325 = vmatmul.mubr.bf16.gmra.mrb[0].mxu0 %v2129
        %v2326 = vpop.f32.mrb[0].mxu0
        %v2327 = vadd.f32 0.0, %v2326
        %v2328 = vpop.f32.mrb[0].mxu0
        %v2329 = vadd.f32 0.0, %v2328
        %v2330 = vpop.f32.mrb[0].mxu0
        %v2331 = vadd.f32 0.0, %v2330
        %v2332 = vpop.f32.mrb[0].mxu0
        %v2333 = vadd.f32 0.0, %v2332
        %2334 = vdwg.mxu0
        %v2335 = vadd.f32 %v2045, %v2317
        %v2336 = vadd.f32 %v2046, %v2319
        %v2337 = vadd.f32 %v2047, %v2321
        %v2338 = vadd.f32 %v2048, %v2323
        %v2339 = vadd.f32 %v2049, %v2327
        %v2340 = vadd.f32 %v2050, %v2329
        %v2341 = vadd.f32 %v2051, %v2331
        %v2342 = vadd.f32 %v2052, %v2333
        %v2343 = vld [vmem:[%s7] sm:$0x3]
        %v2345 = vlaneseq
        %v2346 = vshrl.u32 %v2345, 7
        %v2347 = vsub.s32 0, %v2346
        %v2348 = vrot.slane %v2343, %v2347
        %v2349 = vlaneseq
        %v2350 = vshrl.u32 %v2349, 7
        %v2351 = vsub.s32 1, %v2350
        %v2352 = vrot.slane %v2343, %v2351
        %v2355 = vadd.f32 %v2335, %v2348
        %v2356 = vadd.f32 %v2336, %v2352
        %v2357 = vadd.f32 %v2337, %v2348
        %v2358 = vadd.f32 %v2338, %v2352
        %v2359 = vadd.f32 %v2339, %v2348
        %v2360 = vadd.f32 %v2340, %v2352
        %v2361 = vadd.f32 %v2341, %v2348
        %v2362 = vadd.f32 %v2342, %v2352
        %v2363 = vld [vmem:[%s9] sm:$0xf]
        %v2364 = vld [vmem:[%s9 + $0x4] sm:$0xf]
        %v2365 = vld [vmem:[%s9 + $0x8] sm:$0xf]
        %v2366 = vld [vmem:[%s9 + $0xc] sm:$0xf]
        %v2367 = vld [vmem:[%s9 + $0x10] sm:$0xf]
        %v2368 = vld [vmem:[%s9 + $0x14] sm:$0xf]
        %v2369 = vld [vmem:[%s9 + $0x18] sm:$0xf]
        %v2370 = vld [vmem:[%s9 + $0x1c] sm:$0xf]
        %v2371 = vld [vmem:[%s9 + $0x20] sm:$0xf]
        %v2372 = vld [vmem:[%s9 + $0x24] sm:$0xf]
        %v2373 = vld [vmem:[%s9 + $0x28] sm:$0xf]
        %v2374 = vld [vmem:[%s9 + $0x2c] sm:$0xf]
        %v2375 = vld [vmem:[%s9 + $0x30] sm:$0xf]
        %v2376 = vld [vmem:[%s9 + $0x34] sm:$0xf]
        %v2377 = vld [vmem:[%s9 + $0x38] sm:$0xf]
        %v2378 = vld [vmem:[%s9 + $0x3c] sm:$0xf]
        %v2379 = vld [vmem:[%s9 + $0x40] sm:$0xf]
        %v2380 = vld [vmem:[%s9 + $0x44] sm:$0xf]
        %v2381 = vld [vmem:[%s9 + $0x48] sm:$0xf]
        %v2382 = vld [vmem:[%s9 + $0x4c] sm:$0xf]
        %v2383 = vld [vmem:[%s9 + $0x50] sm:$0xf]
        %v2384 = vld [vmem:[%s9 + $0x54] sm:$0xf]
        %v2385 = vld [vmem:[%s9 + $0x58] sm:$0xf]
        %v2386 = vld [vmem:[%s9 + $0x5c] sm:$0xf]
        %v2387 = vld [vmem:[%s9 + $0x60] sm:$0xf]
        %v2388 = vld [vmem:[%s9 + $0x64] sm:$0xf]
        %v2389 = vld [vmem:[%s9 + $0x68] sm:$0xf]
        %v2390 = vld [vmem:[%s9 + $0x6c] sm:$0xf]
        %v2391 = vld [vmem:[%s9 + $0x70] sm:$0xf]
        %v2392 = vld [vmem:[%s9 + $0x74] sm:$0xf]
        %v2393 = vld [vmem:[%s9 + $0x78] sm:$0xf]
        %v2394 = vld [vmem:[%s9 + $0x7c] sm:$0xf]
        %v2395 = vld [vmem:[%s11] sm:$0xff]
        %v2396 = vadd.f32 %v2355, %v2357
        %v2397 = vadd.f32 %v2396, %v2359
        %v2398 = vadd.f32 %v2397, %v2361
        %v2399 = vrot.slane %v2398, 4
        %v2400 = vadd.f32 %v2398, %v2399
        %v2401 = vrot.slane %v2400, 2
        %v2402 = vadd.f32 %v2400, %v2401
        %v2403 = vrot.slane %v2402, 1
        %v2404 = vadd.f32 %v2402, %v2403
        %v2405 = vadd.f32 %v2356, %v2358
        %v2406 = vadd.f32 %v2405, %v2360
        %v2407 = vadd.f32 %v2406, %v2362
        %v2408 = vrot.slane %v2407, 4
        %v2409 = vadd.f32 %v2407, %v2408
        %v2410 = vrot.slane %v2409, 2
        %v2411 = vadd.f32 %v2409, %v2410
        %v2412 = vrot.slane %v2411, 1
        %v2413 = vadd.f32 %v2411, %v2412
        %v2414 = vpack.c.bf16 %v2404, %v2404
        %v2415 = vpack.c.bf16 %v2413, %v2413
        %v2448 = vunpack.c.l.b16 %v2363
        %v2449 = vunpack.c.l.b16 %v2364
        %v2450 = vunpack.c.l.b16 %v2365
        %v2451 = vunpack.c.l.b16 %v2366
        %v2452 = vunpack.c.l.b16 %v2367
        %v2453 = vunpack.c.l.b16 %v2368
        %v2454 = vunpack.c.l.b16 %v2369
        %v2455 = vunpack.c.l.b16 %v2370
        %v2456 = vunpack.c.l.b16 %v2371
        %v2457 = vunpack.c.l.b16 %v2372
        %v2458 = vunpack.c.l.b16 %v2373
        %v2459 = vunpack.c.l.b16 %v2374
        %v2460 = vunpack.c.l.b16 %v2375
        %v2461 = vunpack.c.l.b16 %v2376
        %v2462 = vunpack.c.l.b16 %v2377
        %v2463 = vunpack.c.l.b16 %v2378
        %v2464 = vunpack.c.l.b16 %v2379
        %v2465 = vunpack.c.l.b16 %v2380
        %v2466 = vunpack.c.l.b16 %v2381
        %v2467 = vunpack.c.l.b16 %v2382
        %v2468 = vunpack.c.l.b16 %v2383
        %v2469 = vunpack.c.l.b16 %v2384
        %v2470 = vunpack.c.l.b16 %v2385
        %v2471 = vunpack.c.l.b16 %v2386
        %v2472 = vunpack.c.l.b16 %v2387
        %v2473 = vunpack.c.l.b16 %v2388
        %v2474 = vunpack.c.l.b16 %v2389
        %v2475 = vunpack.c.l.b16 %v2390
        %v2476 = vunpack.c.l.b16 %v2391
        %v2477 = vunpack.c.l.b16 %v2392
        %v2478 = vunpack.c.l.b16 %v2393
        %v2479 = vunpack.c.l.b16 %v2394
        %v2480 = vpack.c.b16 %v2449, %v2448
        %v2481 = vpack.c.b16 %v2451, %v2450
        %v2482 = vpack.c.b16 %v2453, %v2452
        %v2483 = vpack.c.b16 %v2455, %v2454
        %v2484 = vpack.c.b16 %v2457, %v2456
        %v2485 = vpack.c.b16 %v2459, %v2458
        %v2486 = vpack.c.b16 %v2461, %v2460
        %v2487 = vpack.c.b16 %v2463, %v2462
        %v2488 = vpack.c.b16 %v2465, %v2464
        %v2489 = vpack.c.b16 %v2467, %v2466
        %v2490 = vpack.c.b16 %v2469, %v2468
        %v2491 = vpack.c.b16 %v2471, %v2470
        %v2492 = vpack.c.b16 %v2473, %v2472
        %v2493 = vpack.c.b16 %v2475, %v2474
        %v2494 = vpack.c.b16 %v2477, %v2476
        %v2495 = vpack.c.b16 %v2479, %v2478
        %2512 = vmatprep.subr.bf16.mxu0 0
        %2513 = vmatpush1.bf16.msra.mxu0 %v2480
        %2514 = vmatprep.subr.bf16.mxu0 0
        %2515 = vmatpush1.bf16.msra.mxu0 %v2481
        %2516 = vmatprep.subr.bf16.mxu0 0
        %2517 = vmatpush1.bf16.msra.mxu0 %v2482
        %2518 = vmatprep.subr.bf16.mxu0 0
        %2519 = vmatpush1.bf16.msra.mxu0 %v2483
        %2520 = vmatprep.subr.bf16.mxu0 0
        %2521 = vmatpush1.bf16.msra.mxu0 %v2484
        %2522 = vmatprep.subr.bf16.mxu0 0
        %2523 = vmatpush1.bf16.msra.mxu0 %v2485
        %2524 = vmatprep.subr.bf16.mxu0 0
        %2525 = vmatpush1.bf16.msra.mxu0 %v2486
        %2526 = vmatprep.subr.bf16.mxu0 0
        %2527 = vmatpush1.bf16.msra.mxu0 %v2487
        %2528 = vmatprep.subr.bf16.mxu0 0
        %2529 = vmatpush1.bf16.msra.mxu0 %v2488
        %2530 = vmatprep.subr.bf16.mxu0 0
        %2531 = vmatpush1.bf16.msra.mxu0 %v2489
        %2532 = vmatprep.subr.bf16.mxu0 0
        %2533 = vmatpush1.bf16.msra.mxu0 %v2490
        %2534 = vmatprep.subr.bf16.mxu0 0
        %2535 = vmatpush1.bf16.msra.mxu0 %v2491
        %2536 = vmatprep.subr.bf16.mxu0 0
        %2537 = vmatpush1.bf16.msra.mxu0 %v2492
        %2538 = vmatprep.subr.bf16.mxu0 0
        %2539 = vmatpush1.bf16.msra.mxu0 %v2493
        %2540 = vmatprep.subr.bf16.mxu0 0
        %2541 = vmatpush1.bf16.msra.mxu0 %v2494
        %2542 = vmatprep.subr.bf16.mxu0 0
        %2543 = vmatpush1.bf16.msra.mxu0 %v2495
        %2544 = vmatprep.mubr.bf16.mxu0 %v2415
        %2545 = vmatmul.mubr.bf16.gmra.mrb[0].mxu0 %v2414
        %v2546 = vpop.f32.mrb[0].mxu0
        %v2547 = vadd.f32 0.0, %v2546
        %v2548 = vpop.f32.mrb[0].mxu0
        %v2549 = vpop.f32.mrb[0].mxu0
        %v2550 = vpop.f32.mrb[0].mxu0
        %2551 = vdwg.mxu0
        %v2552 = vpack.c.bf16 %v2547, %v2547
        %v2554 = vunpack.c.l.b16 %v2395
        %v2555 = vunpack.c.h.b16 %v2395
        %v2556 = vpack.c.b16 %v2554, %v2554
        %v2557 = vpack.c.b16 %v2555, %v2555
        %vm2558 = vcmask 64512
        %v2560 = vsel %vm2558, %v2552, 0
        %vm2562 = vcmask 1043456
        %v2564 = vsel %vm2562, %v2556, 0
        %v2567 = vsel %vm2562, %v2557, 0
        %2569 = vmatprep.subr.bf16.mxu0 %v2567
        %2570 = vmatpush1.bf16.msra.mxu0 %v2564
        %2571 = vmatprep.subr.bf16.mxu0 0
        %2572 = vmatpush1.bf16.msra.mxu0 0
        %2573 = vmatprep.subr.bf16.mxu0 0
        %2574 = vmatpush1.bf16.msra.mxu0 0
        %2575 = vmatprep.subr.bf16.mxu0 0
        %2576 = vmatpush1.bf16.msra.mxu0 0
        %2577 = vmatprep.subr.bf16.mxu0 0
        %2578 = vmatpush1.bf16.msra.mxu0 0
        %2579 = vmatprep.subr.bf16.mxu0 0
        %2580 = vmatpush1.bf16.msra.mxu0 0
        %2581 = vmatprep.subr.bf16.mxu0 0
        %2582 = vmatpush1.bf16.msra.mxu0 0
        %2583 = vmatprep.subr.bf16.mxu0 0
        %2584 = vmatpush1.bf16.msra.mxu0 0
        %2585 = vmatprep.subr.bf16.mxu0 0
        %2586 = vmatpush1.bf16.msra.mxu0 0
        %2587 = vmatprep.subr.bf16.mxu0 0
        %2588 = vmatpush1.bf16.msra.mxu0 0
        %2589 = vmatprep.subr.bf16.mxu0 0
        %2590 = vmatpush1.bf16.msra.mxu0 0
        %2591 = vmatprep.subr.bf16.mxu0 0
        %2592 = vmatpush1.bf16.msra.mxu0 0
        %2593 = vmatprep.subr.bf16.mxu0 0
        %2594 = vmatpush1.bf16.msra.mxu0 0
        %2595 = vmatprep.subr.bf16.mxu0 0
        %2596 = vmatpush1.bf16.msra.mxu0 0
        %2597 = vmatprep.subr.bf16.mxu0 0
        %2598 = vmatpush1.bf16.msra.mxu0 0
        %2599 = vmatprep.subr.bf16.mxu0 0
        %2600 = vmatpush1.bf16.msra.mxu0 0
        %2601 = vmatprep.mubr.bf16.mxu0 0
        %2602 = vmatmul.mubr.bf16.gmra.mrb[0].mxu0 %v2560
        %v2603 = vpop.f32.mrb[0].mxu0
        %v2604 = vadd.f32 0.0, %v2603
        %v2605 = vpop.f32.mrb[0].mxu0
        %v2606 = vadd.f32 0.0, %v2605
        %v2607 = vpop.f32.mrb[0].mxu0
        %v2608 = vpop.f32.mrb[0].mxu0
        %2609 = vdwg.mxu0
        %v2610 = vlaneseq
        %v2611 = vshrl.u32 %v2610, 7
        %v2612 = vsub.s32 0, %v2611
        %v2613 = vrot.slane %v2604, %v2612
        %v2614 = vlaneseq
        %v2615 = vshrl.u32 %v2614, 7
        %v2616 = vsub.s32 0, %v2615
        %v2617 = vrot.slane %v2606, %v2616
        %v2618 = vsub.f32 %v2355, %v2613
        %v2619 = vsub.f32 %v2356, %v2617
        %v2620 = vsub.f32 %v2357, %v2613
        %v2621 = vsub.f32 %v2358, %v2617
        %v2622 = vsub.f32 %v2359, %v2613
        %v2623 = vsub.f32 %v2360, %v2617
        %v2624 = vsub.f32 %v2361, %v2613
        %v2625 = vsub.f32 %v2362, %v2617
        %v2626 = vmul.f32 %v2618, %v2618
        %v2627 = vmul.f32 %v2619, %v2619
        %v2628 = vmul.f32 %v2620, %v2620
        %v2629 = vmul.f32 %v2621, %v2621
        %v2630 = vmul.f32 %v2622, %v2622
        %v2631 = vmul.f32 %v2623, %v2623
        %v2632 = vmul.f32 %v2624, %v2624
        %v2633 = vmul.f32 %v2625, %v2625
        %v2634 = vadd.f32 %v2626, %v2628
        %v2635 = vadd.f32 %v2634, %v2630
        %v2636 = vadd.f32 %v2635, %v2632
        %v2637 = vrot.slane %v2636, 4
        %v2638 = vadd.f32 %v2636, %v2637
        %v2639 = vrot.slane %v2638, 2
        %v2640 = vadd.f32 %v2638, %v2639
        %v2641 = vrot.slane %v2640, 1
        %v2642 = vadd.f32 %v2640, %v2641
        %v2643 = vadd.f32 %v2627, %v2629
        %v2644 = vadd.f32 %v2643, %v2631
        %v2645 = vadd.f32 %v2644, %v2633
        %v2646 = vrot.slane %v2645, 4
        %v2647 = vadd.f32 %v2645, %v2646
        %v2648 = vrot.slane %v2647, 2
        %v2649 = vadd.f32 %v2647, %v2648
        %v2650 = vrot.slane %v2649, 1
        %v2651 = vadd.f32 %v2649, %v2650
        %v2652 = vpack.c.bf16 %v2642, %v2642
        %v2653 = vpack.c.bf16 %v2651, %v2651
        %2654 = vmatprep.subr.bf16.mxu0 0
        %2655 = vmatpush1.bf16.msra.mxu0 %v2480
        %2656 = vmatprep.subr.bf16.mxu0 0
        %2657 = vmatpush1.bf16.msra.mxu0 %v2481
        %2658 = vmatprep.subr.bf16.mxu0 0
        %2659 = vmatpush1.bf16.msra.mxu0 %v2482
        %2660 = vmatprep.subr.bf16.mxu0 0
        %2661 = vmatpush1.bf16.msra.mxu0 %v2483
        %2662 = vmatprep.subr.bf16.mxu0 0
        %2663 = vmatpush1.bf16.msra.mxu0 %v2484
        %2664 = vmatprep.subr.bf16.mxu0 0
        %2665 = vmatpush1.bf16.msra.mxu0 %v2485
        %2666 = vmatprep.subr.bf16.mxu0 0
        %2667 = vmatpush1.bf16.msra.mxu0 %v2486
        %2668 = vmatprep.subr.bf16.mxu0 0
        %2669 = vmatpush1.bf16.msra.mxu0 %v2487
        %2670 = vmatprep.subr.bf16.mxu0 0
        %2671 = vmatpush1.bf16.msra.mxu0 %v2488
        %2672 = vmatprep.subr.bf16.mxu0 0
        %2673 = vmatpush1.bf16.msra.mxu0 %v2489
        %2674 = vmatprep.subr.bf16.mxu0 0
        %2675 = vmatpush1.bf16.msra.mxu0 %v2490
        %2676 = vmatprep.subr.bf16.mxu0 0
        %2677 = vmatpush1.bf16.msra.mxu0 %v2491
        %2678 = vmatprep.subr.bf16.mxu0 0
        %2679 = vmatpush1.bf16.msra.mxu0 %v2492
        %2680 = vmatprep.subr.bf16.mxu0 0
        %2681 = vmatpush1.bf16.msra.mxu0 %v2493
        %2682 = vmatprep.subr.bf16.mxu0 0
        %2683 = vmatpush1.bf16.msra.mxu0 %v2494
        %2684 = vmatprep.subr.bf16.mxu0 0
        %2685 = vmatpush1.bf16.msra.mxu0 %v2495
        %2686 = vmatprep.mubr.bf16.mxu0 %v2653
        %2687 = vmatmul.mubr.bf16.gmra.mrb[0].mxu0 %v2652
        %v2688 = vpop.f32.mrb[0].mxu0
        %v2689 = vadd.f32 0.0, %v2688
        %v2690 = vpop.f32.mrb[0].mxu0
        %v2691 = vpop.f32.mrb[0].mxu0
        %v2692 = vpop.f32.mrb[0].mxu0
        %2693 = vdwg.mxu0
        %v2694 = vpack.c.bf16 %v2689, %v2689
        %v2696 = vsel %vm2558, %v2694, 0
        %2698 = vmatprep.subr.bf16.mxu0 %v2567
        %2699 = vmatpush1.bf16.msra.mxu0 %v2564
        %2700 = vmatprep.subr.bf16.mxu0 0
        %2701 = vmatpush1.bf16.msra.mxu0 0
        %2702 = vmatprep.subr.bf16.mxu0 0
        %2703 = vmatpush1.bf16.msra.mxu0 0
        %2704 = vmatprep.subr.bf16.mxu0 0
        %2705 = vmatpush1.bf16.msra.mxu0 0
        %2706 = vmatprep.subr.bf16.mxu0 0
        %2707 = vmatpush1.bf16.msra.mxu0 0
        %2708 = vmatprep.subr.bf16.mxu0 0
        %2709 = vmatpush1.bf16.msra.mxu0 0
        %2710 = vmatprep.subr.bf16.mxu0 0
        %2711 = vmatpush1.bf16.msra.mxu0 0
        %2712 = vmatprep.subr.bf16.mxu0 0
        %2713 = vmatpush1.bf16.msra.mxu0 0
        %2714 = vmatprep.subr.bf16.mxu0 0
        %2715 = vmatpush1.bf16.msra.mxu0 0
        %2716 = vmatprep.subr.bf16.mxu0 0
        %2717 = vmatpush1.bf16.msra.mxu0 0
        %2718 = vmatprep.subr.bf16.mxu0 0
        %2719 = vmatpush1.bf16.msra.mxu0 0
        %2720 = vmatprep.subr.bf16.mxu0 0
        %2721 = vmatpush1.bf16.msra.mxu0 0
        %2722 = vmatprep.subr.bf16.mxu0 0
        %2723 = vmatpush1.bf16.msra.mxu0 0
        %2724 = vmatprep.subr.bf16.mxu0 0
        %2725 = vmatpush1.bf16.msra.mxu0 0
        %2726 = vmatprep.subr.bf16.mxu0 0
        %2727 = vmatpush1.bf16.msra.mxu0 0
        %2728 = vmatprep.subr.bf16.mxu0 0
        %2729 = vmatpush1.bf16.msra.mxu0 0
        %2730 = vmatprep.mubr.bf16.mxu0 0
        %2731 = vmatmul.mubr.bf16.gmra.mrb[0].mxu0 %v2696
        %v2732 = vpop.f32.mrb[0].mxu0
        %v2733 = vadd.f32 1e-05, %v2732
        %v2734 = vpop.f32.mrb[0].mxu0
        %v2735 = vadd.f32 1e-05, %v2734
        %v2736 = vpop.f32.mrb[0].mxu0
        %v2737 = vpop.f32.mrb[0].mxu0
        %2738 = vdwg.mxu0
        %v2739 = vrsqrt.pop %v2733
        %v2740 = vrsqrt.pop %v2735
        %v2741 = vlaneseq
        %v2742 = vshrl.u32 %v2741, 7
        %v2743 = vsub.s32 0, %v2742
        %v2744 = vrot.slane %v2739, %v2743
        %v2745 = vlaneseq
        %v2746 = vshrl.u32 %v2745, 7
        %v2747 = vsub.s32 0, %v2746
        %v2748 = vrot.slane %v2740, %v2747
        %v2749 = vmul.f32 %v2618, %v2744
        %v2750 = vmul.f32 %v2619, %v2748
        %v2751 = vmul.f32 %v2620, %v2744
        %v2752 = vmul.f32 %v2621, %v2748
        %v2753 = vmul.f32 %v2622, %v2744
        %v2754 = vmul.f32 %v2623, %v2748
        %v2755 = vmul.f32 %v2624, %v2744
        %v2756 = vmul.f32 %v2625, %v2748
        %vm2757 = vcmp.ge.f32.partialorder %v2749, 0.0
        %vm2758 = vcmp.ge.f32.partialorder %v2750, 0.0
        %vm2759 = vcmp.ge.f32.partialorder %v2751, 0.0
        %vm2760 = vcmp.ge.f32.partialorder %v2752, 0.0
        %vm2761 = vcmp.ge.f32.partialorder %v2753, 0.0
        %vm2762 = vcmp.ge.f32.partialorder %v2754, 0.0
        %vm2763 = vcmp.ge.f32.partialorder %v2755, 0.0
        %vm2764 = vcmp.ge.f32.partialorder %v2756, 0.0
        %v2765 = vmul.f32 %v2749, 0.01
        %v2766 = vmul.f32 %v2750, 0.01
        %v2767 = vmul.f32 %v2751, 0.01
        %v2768 = vmul.f32 %v2752, 0.01
        %v2769 = vmul.f32 %v2753, 0.01
        %v2770 = vmul.f32 %v2754, 0.01
        %v2771 = vmul.f32 %v2755, 0.01
        %v2772 = vmul.f32 %v2756, 0.01
        %v2773 = vsel %vm2757, %v2749, %v2765
        %v2774 = vsel %vm2758, %v2750, %v2766
        %v2775 = vsel %vm2759, %v2751, %v2767
        %v2776 = vsel %vm2760, %v2752, %v2768
        %v2777 = vsel %vm2761, %v2753, %v2769
        %v2778 = vsel %vm2762, %v2754, %v2770
        %v2779 = vsel %vm2763, %v2755, %v2771
        %v2780 = vsel %vm2764, %v2756, %v2772
        %v2781 = vpack.c.bf16 %v2775, %v2773
        %v2782 = vpack.c.bf16 %v2776, %v2774
        %v2783 = vpack.c.bf16 %v2779, %v2777
        %v2784 = vpack.c.bf16 %v2780, %v2778
        %v2785 = vld [vmem:[#allocation7] sm:$0xf]
        %v2786 = vld [vmem:[#allocation7 + $0x4] sm:$0xf]
        %v2789 = vunpack.c.l.b16 %v2785
        %v2790 = vunpack.c.l.b16 %v2786
        %v2791 = vpack.c.b16 %v2790, %v2789
        %vm2792 = vcmask 261120
        %v2794 = vsel %vm2792, %v2791, 0
        %2796 = vmatprep.subr.bf16.mxu0 %v2782
        %2797 = vmatpush1.bf16.msra.mxu0 %v2781
        %2798 = vmatprep.subr.bf16.mxu0 %v2784
        %2799 = vmatpush1.bf16.msra.mxu0 %v2783
        %2800 = vmatprep.subr.bf16.mxu0 0
        %2801 = vmatpush1.bf16.msra.mxu0 0
        %2802 = vmatprep.subr.bf16.mxu0 0
        %2803 = vmatpush1.bf16.msra.mxu0 0
        %2804 = vmatprep.subr.bf16.mxu0 0
        %2805 = vmatpush1.bf16.msra.mxu0 0
        %2806 = vmatprep.subr.bf16.mxu0 0
        %2807 = vmatpush1.bf16.msra.mxu0 0
        %2808 = vmatprep.subr.bf16.mxu0 0
        %2809 = vmatpush1.bf16.msra.mxu0 0
        %2810 = vmatprep.subr.bf16.mxu0 0
        %2811 = vmatpush1.bf16.msra.mxu0 0
        %2812 = vmatprep.subr.bf16.mxu0 0
        %2813 = vmatpush1.bf16.msra.mxu0 0
        %2814 = vmatprep.subr.bf16.mxu0 0
        %2815 = vmatpush1.bf16.msra.mxu0 0
        %2816 = vmatprep.subr.bf16.mxu0 0
        %2817 = vmatpush1.bf16.msra.mxu0 0
        %2818 = vmatprep.subr.bf16.mxu0 0
        %2819 = vmatpush1.bf16.msra.mxu0 0
        %2820 = vmatprep.subr.bf16.mxu0 0
        %2821 = vmatpush1.bf16.msra.mxu0 0
        %2822 = vmatprep.subr.bf16.mxu0 0
        %2823 = vmatpush1.bf16.msra.mxu0 0
        %2824 = vmatprep.subr.bf16.mxu0 0
        %2825 = vmatpush1.bf16.msra.mxu0 0
        %2826 = vmatprep.subr.bf16.mxu0 0
        %2827 = vmatpush1.bf16.msra.mxu0 0
        %2828 = vmatprep.mubr.bf16.mxu0 0
        %2829 = vmatmul.mubr.bf16.gmra.mrb[0].mxu0 %v2794
        %v2830 = vpop.f32.mrb[0].mxu0
        %v2831 = vadd.f32 0.0, %v2830
        %v2832 = vpop.f32.mrb[0].mxu0
        %v2833 = vadd.f32 0.0, %v2832
        %v2834 = vpop.f32.mrb[0].mxu0
        %v2835 = vadd.f32 0.0, %v2834
        %v2836 = vpop.f32.mrb[0].mxu0
        %v2837 = vadd.f32 0.0, %v2836
        %2838 = vdwg.mxu0
        %v2839 = vpack.c.bf16 %v2835, %v2831
        %v2840 = vpack.c.bf16 %v2837, %v2833
        %v2841 = vld [vmem:[%s15] sm:$0xff]
        %v2842 = vld [vmem:[%s15 + $0x8] sm:$0xff]
        %v2843 = vld [vmem:[%s15 + $0x10] sm:$0xff]
        %v2844 = vld [vmem:[%s15 + $0x18] sm:$0xff]
        %v2845 = vld [vmem:[%s15 + $0x20] sm:$0xff]
        %v2846 = vld [vmem:[%s15 + $0x28] sm:$0xff]
        %v2847 = vld [vmem:[%s15 + $0x30] sm:$0xff]
        %v2848 = vld [vmem:[%s15 + $0x38] sm:$0xff]
        %v2849 = vld [vmem:[%s15 + $0x40] sm:$0xff]
        %v2850 = vld [vmem:[%s15 + $0x48] sm:$0xff]
        %v2851 = vld [vmem:[%s15 + $0x50] sm:$0xff]
        %v2852 = vld [vmem:[%s15 + $0x58] sm:$0xff]
        %v2853 = vld [vmem:[%s15 + $0x60] sm:$0xff]
        %v2854 = vld [vmem:[%s15 + $0x68] sm:$0xff]
        %v2855 = vld [vmem:[%s15 + $0x70] sm:$0xff]
        %v2856 = vld [vmem:[%s15 + $0x78] sm:$0xff]
        %v2857 = vld [vmem:[%s15 + $0x80] sm:$0xff]
        %v2858 = vld [vmem:[%s15 + $0x88] sm:$0xff]
        %v2859 = vld [vmem:[%s15 + $0x90] sm:$0xff]
        %v2860 = vld [vmem:[%s15 + $0x98] sm:$0xff]
        %v2861 = vld [vmem:[%s15 + $0xa0] sm:$0xff]
        %v2862 = vld [vmem:[%s15 + $0xa8] sm:$0xff]
        %v2863 = vld [vmem:[%s15 + $0xb0] sm:$0xff]
        %v2864 = vld [vmem:[%s15 + $0xb8] sm:$0xff]
        %v2865 = vld [vmem:[%s15 + $0xc0] sm:$0xff]
        %v2866 = vld [vmem:[%s15 + $0xc8] sm:$0xff]
        %v2867 = vld [vmem:[%s15 + $0xd0] sm:$0xff]
        %v2868 = vld [vmem:[%s15 + $0xd8] sm:$0xff]
        %v2869 = vld [vmem:[%s15 + $0xe0] sm:$0xff]
        %v2870 = vld [vmem:[%s15 + $0xe8] sm:$0xff]
        %v2871 = vld [vmem:[%s15 + $0xf0] sm:$0xff]
        %v2872 = vld [vmem:[%s15 + $0xf8] sm:$0xff]
        %s2873 = scalar_lea.vmem [#allocation7], 8
        %v2874 = vld [vmem:[%s2873] sm:$0xf]
        %v2875 = vld [vmem:[%s2873 + $0x4] sm:$0xf]
        %v2878 = vunpack.c.l.b16 %v2874
        %v2879 = vunpack.c.l.b16 %v2875
        %v2880 = vpack.c.b16 %v2879, %v2878
        %v2882 = vsel %vm2792, %v2880, 0
        %2884 = vmatprep.subr.bf16.mxu0 %v2782
        %2885 = vmatpush1.bf16.msra.mxu0 %v2781
        %2886 = vmatprep.subr.bf16.mxu0 %v2784
        %2887 = vmatpush1.bf16.msra.mxu0 %v2783
        %2888 = vmatprep.subr.bf16.mxu0 0
        %2889 = vmatpush1.bf16.msra.mxu0 0
        %2890 = vmatprep.subr.bf16.mxu0 0
        %2891 = vmatpush1.bf16.msra.mxu0 0
        %2892 = vmatprep.subr.bf16.mxu0 0
        %2893 = vmatpush1.bf16.msra.mxu0 0
        %2894 = vmatprep.subr.bf16.mxu0 0
        %2895 = vmatpush1.bf16.msra.mxu0 0
        %2896 = vmatprep.subr.bf16.mxu0 0
        %2897 = vmatpush1.bf16.msra.mxu0 0
        %2898 = vmatprep.subr.bf16.mxu0 0
        %2899 = vmatpush1.bf16.msra.mxu0 0
        %2900 = vmatprep.subr.bf16.mxu0 0
        %2901 = vmatpush1.bf16.msra.mxu0 0
        %2902 = vmatprep.subr.bf16.mxu0 0
        %2903 = vmatpush1.bf16.msra.mxu0 0
        %2904 = vmatprep.subr.bf16.mxu0 0
        %2905 = vmatpush1.bf16.msra.mxu0 0
        %2906 = vmatprep.subr.bf16.mxu0 0
        %2907 = vmatpush1.bf16.msra.mxu0 0
        %2908 = vmatprep.subr.bf16.mxu0 0
        %2909 = vmatpush1.bf16.msra.mxu0 0
        %2910 = vmatprep.subr.bf16.mxu0 0
        %2911 = vmatpush1.bf16.msra.mxu0 0
        %2912 = vmatprep.subr.bf16.mxu0 0
        %2913 = vmatpush1.bf16.msra.mxu0 0
        %2914 = vmatprep.subr.bf16.mxu0 0
        %2915 = vmatpush1.bf16.msra.mxu0 0
        %2916 = vmatprep.mubr.bf16.mxu0 0
        %2917 = vmatmul.mubr.bf16.gmra.mrb[0].mxu0 %v2882
        %v2918 = vpop.f32.mrb[0].mxu0
        %v2919 = vadd.f32 0.0, %v2918
        %v2920 = vpop.f32.mrb[0].mxu0
        %v2921 = vadd.f32 0.0, %v2920
        %v2922 = vpop.f32.mrb[0].mxu0
        %v2923 = vadd.f32 0.0, %v2922
        %v2924 = vpop.f32.mrb[0].mxu0
        %v2925 = vadd.f32 0.0, %v2924
        %2926 = vdwg.mxu0
        %v2927 = vpack.c.bf16 %v2923, %v2919
        %v2928 = vpack.c.bf16 %v2925, %v2921
        %s2929 = scalar_lea.vmem %s15, 256
        %v2930 = vld [vmem:[%s2929] sm:$0xff]
        %v2931 = vld [vmem:[%s2929 + $0x8] sm:$0xff]
        %v2932 = vld [vmem:[%s2929 + $0x10] sm:$0xff]
        %v2933 = vld [vmem:[%s2929 + $0x18] sm:$0xff]
        %v2934 = vld [vmem:[%s2929 + $0x20] sm:$0xff]
        %v2935 = vld [vmem:[%s2929 + $0x28] sm:$0xff]
        %v2936 = vld [vmem:[%s2929 + $0x30] sm:$0xff]
        %v2937 = vld [vmem:[%s2929 + $0x38] sm:$0xff]
        %v2938 = vld [vmem:[%s2929 + $0x40] sm:$0xff]
        %v2939 = vld [vmem:[%s2929 + $0x48] sm:$0xff]
        %v2940 = vld [vmem:[%s2929 + $0x50] sm:$0xff]
        %v2941 = vld [vmem:[%s2929 + $0x58] sm:$0xff]
        %v2942 = vld [vmem:[%s2929 + $0x60] sm:$0xff]
        %v2943 = vld [vmem:[%s2929 + $0x68] sm:$0xff]
        %v2944 = vld [vmem:[%s2929 + $0x70] sm:$0xff]
        %v2945 = vld [vmem:[%s2929 + $0x78] sm:$0xff]
        %v2946 = vld [vmem:[%s2929 + $0x80] sm:$0xff]
        %v2947 = vld [vmem:[%s2929 + $0x88] sm:$0xff]
        %v2948 = vld [vmem:[%s2929 + $0x90] sm:$0xff]
        %v2949 = vld [vmem:[%s2929 + $0x98] sm:$0xff]
        %v2950 = vld [vmem:[%s2929 + $0xa0] sm:$0xff]
        %v2951 = vld [vmem:[%s2929 + $0xa8] sm:$0xff]
        %v2952 = vld [vmem:[%s2929 + $0xb0] sm:$0xff]
        %v2953 = vld [vmem:[%s2929 + $0xb8] sm:$0xff]
        %v2954 = vld [vmem:[%s2929 + $0xc0] sm:$0xff]
        %v2955 = vld [vmem:[%s2929 + $0xc8] sm:$0xff]
        %v2956 = vld [vmem:[%s2929 + $0xd0] sm:$0xff]
        %v2957 = vld [vmem:[%s2929 + $0xd8] sm:$0xff]
        %v2958 = vld [vmem:[%s2929 + $0xe0] sm:$0xff]
        %v2959 = vld [vmem:[%s2929 + $0xe8] sm:$0xff]
        %v2960 = vld [vmem:[%s2929 + $0xf0] sm:$0xff]
        %v2961 = vld [vmem:[%s2929 + $0xf8] sm:$0xff]
        %v2994 = vunpack.c.l.b16 %v2930
        %v2995 = vunpack.c.h.b16 %v2930
        %v2996 = vunpack.c.l.b16 %v2931
        %v2997 = vunpack.c.h.b16 %v2931
        %v2998 = vunpack.c.l.b16 %v2932
        %v2999 = vunpack.c.h.b16 %v2932
        %v3000 = vunpack.c.l.b16 %v2933
        %v3001 = vunpack.c.h.b16 %v2933
        %v3002 = vunpack.c.l.b16 %v2934
        %v3003 = vunpack.c.h.b16 %v2934
        %v3004 = vunpack.c.l.b16 %v2935
        %v3005 = vunpack.c.h.b16 %v2935
        %v3006 = vunpack.c.l.b16 %v2936
        %v3007 = vunpack.c.h.b16 %v2936
        %v3008 = vunpack.c.l.b16 %v2937
        %v3009 = vunpack.c.h.b16 %v2937
        %v3010 = vunpack.c.l.b16 %v2938
        %v3011 = vunpack.c.h.b16 %v2938
        %v3012 = vunpack.c.l.b16 %v2939
        %v3013 = vunpack.c.h.b16 %v2939
        %v3014 = vunpack.c.l.b16 %v2940
        %v3015 = vunpack.c.h.b16 %v2940
        %v3016 = vunpack.c.l.b16 %v2941
        %v3017 = vunpack.c.h.b16 %v2941
        %v3018 = vunpack.c.l.b16 %v2942
        %v3019 = vunpack.c.h.b16 %v2942
        %v3020 = vunpack.c.l.b16 %v2943
        %v3021 = vunpack.c.h.b16 %v2943
        %v3022 = vunpack.c.l.b16 %v2944
        %v3023 = vunpack.c.h.b16 %v2944
        %v3024 = vunpack.c.l.b16 %v2945
        %v3025 = vunpack.c.h.b16 %v2945
        %v3026 = vunpack.c.l.b16 %v2946
        %v3027 = vunpack.c.h.b16 %v2946
        %v3028 = vunpack.c.l.b16 %v2947
        %v3029 = vunpack.c.h.b16 %v2947
        %v3030 = vunpack.c.l.b16 %v2948
        %v3031 = vunpack.c.h.b16 %v2948
        %v3032 = vunpack.c.l.b16 %v2949
        %v3033 = vunpack.c.h.b16 %v2949
        %v3034 = vunpack.c.l.b16 %v2950
        %v3035 = vunpack.c.h.b16 %v2950
        %v3036 = vunpack.c.l.b16 %v2951
        %v3037 = vunpack.c.h.b16 %v2951
        %v3038 = vunpack.c.l.b16 %v2952
        %v3039 = vunpack.c.h.b16 %v2952
        %v3040 = vunpack.c.l.b16 %v2953
        %v3041 = vunpack.c.h.b16 %v2953
        %v3042 = vunpack.c.l.b16 %v2954
        %v3043 = vunpack.c.h.b16 %v2954
        %v3044 = vunpack.c.l.b16 %v2955
        %v3045 = vunpack.c.h.b16 %v2955
        %v3046 = vunpack.c.l.b16 %v2956
        %v3047 = vunpack.c.h.b16 %v2956
        %v3048 = vunpack.c.l.b16 %v2957
        %v3049 = vunpack.c.h.b16 %v2957
        %v3050 = vunpack.c.l.b16 %v2958
        %v3051 = vunpack.c.h.b16 %v2958
        %v3052 = vunpack.c.l.b16 %v2959
        %v3053 = vunpack.c.h.b16 %v2959
        %v3054 = vunpack.c.l.b16 %v2960
        %v3055 = vunpack.c.h.b16 %v2960
        %v3056 = vunpack.c.l.b16 %v2961
        %v3057 = vunpack.c.h.b16 %v2961
        %v3058 = vpack.c.b16 %v2996, %v2994
        %v3059 = vpack.c.b16 %v2997, %v2995
        %v3060 = vpack.c.b16 %v3000, %v2998
        %v3061 = vpack.c.b16 %v3001, %v2999
        %v3062 = vpack.c.b16 %v3004, %v3002
        %v3063 = vpack.c.b16 %v3005, %v3003
        %v3064 = vpack.c.b16 %v3008, %v3006
        %v3065 = vpack.c.b16 %v3009, %v3007
        %v3066 = vpack.c.b16 %v3012, %v3010
        %v3067 = vpack.c.b16 %v3013, %v3011
        %v3068 = vpack.c.b16 %v3016, %v3014
        %v3069 = vpack.c.b16 %v3017, %v3015
        %v3070 = vpack.c.b16 %v3020, %v3018
        %v3071 = vpack.c.b16 %v3021, %v3019
        %v3072 = vpack.c.b16 %v3024, %v3022
        %v3073 = vpack.c.b16 %v3025, %v3023
        %v3074 = vpack.c.b16 %v3028, %v3026
        %v3075 = vpack.c.b16 %v3029, %v3027
        %v3076 = vpack.c.b16 %v3032, %v3030
        %v3077 = vpack.c.b16 %v3033, %v3031
        %v3078 = vpack.c.b16 %v3036, %v3034
        %v3079 = vpack.c.b16 %v3037, %v3035
        %v3080 = vpack.c.b16 %v3040, %v3038
        %v3081 = vpack.c.b16 %v3041, %v3039
        %v3082 = vpack.c.b16 %v3044, %v3042
        %v3083 = vpack.c.b16 %v3045, %v3043
        %v3084 = vpack.c.b16 %v3048, %v3046
        %v3085 = vpack.c.b16 %v3049, %v3047
        %v3086 = vpack.c.b16 %v3052, %v3050
        %v3087 = vpack.c.b16 %v3053, %v3051
        %v3088 = vpack.c.b16 %v3056, %v3054
        %v3089 = vpack.c.b16 %v3057, %v3055
        %3122 = vmatprep.subr.bf16.mxu0 %v3059
        %3123 = vmatpush1.bf16.msra.mxu0 %v3058
        %3124 = vmatprep.subr.bf16.mxu0 %v3061
        %3125 = vmatpush1.bf16.msra.mxu0 %v3060
        %3126 = vmatprep.subr.bf16.mxu0 %v3063
        %3127 = vmatpush1.bf16.msra.mxu0 %v3062
        %3128 = vmatprep.subr.bf16.mxu0 %v3065
        %3129 = vmatpush1.bf16.msra.mxu0 %v3064
        %3130 = vmatprep.subr.bf16.mxu0 %v3067
        %3131 = vmatpush1.bf16.msra.mxu0 %v3066
        %3132 = vmatprep.subr.bf16.mxu0 %v3069
        %3133 = vmatpush1.bf16.msra.mxu0 %v3068
        %3134 = vmatprep.subr.bf16.mxu0 %v3071
        %3135 = vmatpush1.bf16.msra.mxu0 %v3070
        %3136 = vmatprep.subr.bf16.mxu0 %v3073
        %3137 = vmatpush1.bf16.msra.mxu0 %v3072
        %3138 = vmatprep.subr.bf16.mxu0 %v3075
        %3139 = vmatpush1.bf16.msra.mxu0 %v3074
        %3140 = vmatprep.subr.bf16.mxu0 %v3077
        %3141 = vmatpush1.bf16.msra.mxu0 %v3076
        %3142 = vmatprep.subr.bf16.mxu0 %v3079
        %3143 = vmatpush1.bf16.msra.mxu0 %v3078
        %3144 = vmatprep.subr.bf16.mxu0 %v3081
        %3145 = vmatpush1.bf16.msra.mxu0 %v3080
        %3146 = vmatprep.subr.bf16.mxu0 %v3083
        %3147 = vmatpush1.bf16.msra.mxu0 %v3082
        %3148 = vmatprep.subr.bf16.mxu0 %v3085
        %3149 = vmatpush1.bf16.msra.mxu0 %v3084
        %3150 = vmatprep.subr.bf16.mxu0 %v3087
        %3151 = vmatpush1.bf16.msra.mxu0 %v3086
        %3152 = vmatprep.subr.bf16.mxu0 %v3089
        %3153 = vmatpush1.bf16.msra.mxu0 %v3088
        %3154 = vmatprep.mubr.bf16.mxu0 %v2928
        %3155 = vmatmul.mubr.bf16.gmra.mrb[0].mxu0 %v2927
        %v3156 = vpop.f32.mrb[0].mxu0
        %v3157 = vadd.f32 0.0, %v3156
        %v3158 = vpop.f32.mrb[0].mxu0
        %v3159 = vadd.f32 0.0, %v3158
        %v3160 = vpop.f32.mrb[0].mxu0
        %v3161 = vadd.f32 0.0, %v3160
        %v3162 = vpop.f32.mrb[0].mxu0
        %v3163 = vadd.f32 0.0, %v3162
        %3164 = vdwg.mxu0
        %v3197 = vunpack.c.l.b16 %v2841
        %v3198 = vunpack.c.h.b16 %v2841
        %v3199 = vunpack.c.l.b16 %v2842
        %v3200 = vunpack.c.h.b16 %v2842
        %v3201 = vunpack.c.l.b16 %v2843
        %v3202 = vunpack.c.h.b16 %v2843
        %v3203 = vunpack.c.l.b16 %v2844
        %v3204 = vunpack.c.h.b16 %v2844
        %v3205 = vunpack.c.l.b16 %v2845
        %v3206 = vunpack.c.h.b16 %v2845
        %v3207 = vunpack.c.l.b16 %v2846
        %v3208 = vunpack.c.h.b16 %v2846
        %v3209 = vunpack.c.l.b16 %v2847
        %v3210 = vunpack.c.h.b16 %v2847
        %v3211 = vunpack.c.l.b16 %v2848
        %v3212 = vunpack.c.h.b16 %v2848
        %v3213 = vunpack.c.l.b16 %v2849
        %v3214 = vunpack.c.h.b16 %v2849
        %v3215 = vunpack.c.l.b16 %v2850
        %v3216 = vunpack.c.h.b16 %v2850
        %v3217 = vunpack.c.l.b16 %v2851
        %v3218 = vunpack.c.h.b16 %v2851
        %v3219 = vunpack.c.l.b16 %v2852
        %v3220 = vunpack.c.h.b16 %v2852
        %v3221 = vunpack.c.l.b16 %v2853
        %v3222 = vunpack.c.h.b16 %v2853
        %v3223 = vunpack.c.l.b16 %v2854
        %v3224 = vunpack.c.h.b16 %v2854
        %v3225 = vunpack.c.l.b16 %v2855
        %v3226 = vunpack.c.h.b16 %v2855
        %v3227 = vunpack.c.l.b16 %v2856
        %v3228 = vunpack.c.h.b16 %v2856
        %v3229 = vunpack.c.l.b16 %v2857
        %v3230 = vunpack.c.h.b16 %v2857
        %v3231 = vunpack.c.l.b16 %v2858
        %v3232 = vunpack.c.h.b16 %v2858
        %v3233 = vunpack.c.l.b16 %v2859
        %v3234 = vunpack.c.h.b16 %v2859
        %v3235 = vunpack.c.l.b16 %v2860
        %v3236 = vunpack.c.h.b16 %v2860
        %v3237 = vunpack.c.l.b16 %v2861
        %v3238 = vunpack.c.h.b16 %v2861
        %v3239 = vunpack.c.l.b16 %v2862
        %v3240 = vunpack.c.h.b16 %v2862
        %v3241 = vunpack.c.l.b16 %v2863
        %v3242 = vunpack.c.h.b16 %v2863
        %v3243 = vunpack.c.l.b16 %v2864
        %v3244 = vunpack.c.h.b16 %v2864
        %v3245 = vunpack.c.l.b16 %v2865
        %v3246 = vunpack.c.h.b16 %v2865
        %v3247 = vunpack.c.l.b16 %v2866
        %v3248 = vunpack.c.h.b16 %v2866
        %v3249 = vunpack.c.l.b16 %v2867
        %v3250 = vunpack.c.h.b16 %v2867
        %v3251 = vunpack.c.l.b16 %v2868
        %v3252 = vunpack.c.h.b16 %v2868
        %v3253 = vunpack.c.l.b16 %v2869
        %v3254 = vunpack.c.h.b16 %v2869
        %v3255 = vunpack.c.l.b16 %v2870
        %v3256 = vunpack.c.h.b16 %v2870
        %v3257 = vunpack.c.l.b16 %v2871
        %v3258 = vunpack.c.h.b16 %v2871
        %v3259 = vunpack.c.l.b16 %v2872
        %v3260 = vunpack.c.h.b16 %v2872
        %v3261 = vpack.c.b16 %v3199, %v3197
        %v3262 = vpack.c.b16 %v3200, %v3198
        %v3263 = vpack.c.b16 %v3203, %v3201
        %v3264 = vpack.c.b16 %v3204, %v3202
        %v3265 = vpack.c.b16 %v3207, %v3205
        %v3266 = vpack.c.b16 %v3208, %v3206
        %v3267 = vpack.c.b16 %v3211, %v3209
        %v3268 = vpack.c.b16 %v3212, %v3210
        %v3269 = vpack.c.b16 %v3215, %v3213
        %v3270 = vpack.c.b16 %v3216, %v3214
        %v3271 = vpack.c.b16 %v3219, %v3217
        %v3272 = vpack.c.b16 %v3220, %v3218
        %v3273 = vpack.c.b16 %v3223, %v3221
        %v3274 = vpack.c.b16 %v3224, %v3222
        %v3275 = vpack.c.b16 %v3227, %v3225
        %v3276 = vpack.c.b16 %v3228, %v3226
        %v3277 = vpack.c.b16 %v3231, %v3229
        %v3278 = vpack.c.b16 %v3232, %v3230
        %v3279 = vpack.c.b16 %v3235, %v3233
        %v3280 = vpack.c.b16 %v3236, %v3234
        %v3281 = vpack.c.b16 %v3239, %v3237
        %v3282 = vpack.c.b16 %v3240, %v3238
        %v3283 = vpack.c.b16 %v3243, %v3241
        %v3284 = vpack.c.b16 %v3244, %v3242
        %v3285 = vpack.c.b16 %v3247, %v3245
        %v3286 = vpack.c.b16 %v3248, %v3246
        %v3287 = vpack.c.b16 %v3251, %v3249
        %v3288 = vpack.c.b16 %v3252, %v3250
        %v3289 = vpack.c.b16 %v3255, %v3253
        %v3290 = vpack.c.b16 %v3256, %v3254
        %v3291 = vpack.c.b16 %v3259, %v3257
        %v3292 = vpack.c.b16 %v3260, %v3258
        %3325 = vmatprep.subr.bf16.mxu0 %v3262
        %3326 = vmatpush1.bf16.msra.mxu0 %v3261
        %3327 = vmatprep.subr.bf16.mxu0 %v3264
        %3328 = vmatpush1.bf16.msra.mxu0 %v3263
        %3329 = vmatprep.subr.bf16.mxu0 %v3266
        %3330 = vmatpush1.bf16.msra.mxu0 %v3265
        %3331 = vmatprep.subr.bf16.mxu0 %v3268
        %3332 = vmatpush1.bf16.msra.mxu0 %v3267
        %3333 = vmatprep.subr.bf16.mxu0 %v3270
        %3334 = vmatpush1.bf16.msra.mxu0 %v3269
        %3335 = vmatprep.subr.bf16.mxu0 %v3272
        %3336 = vmatpush1.bf16.msra.mxu0 %v3271
        %3337 = vmatprep.subr.bf16.mxu0 %v3274
        %3338 = vmatpush1.bf16.msra.mxu0 %v3273
        %3339 = vmatprep.subr.bf16.mxu0 %v3276
        %3340 = vmatpush1.bf16.msra.mxu0 %v3275
        %3341 = vmatprep.subr.bf16.mxu0 %v3278
        %3342 = vmatpush1.bf16.msra.mxu0 %v3277
        %3343 = vmatprep.subr.bf16.mxu0 %v3280
        %3344 = vmatpush1.bf16.msra.mxu0 %v3279
        %3345 = vmatprep.subr.bf16.mxu0 %v3282
        %3346 = vmatpush1.bf16.msra.mxu0 %v3281
        %3347 = vmatprep.subr.bf16.mxu0 %v3284
        %3348 = vmatpush1.bf16.msra.mxu0 %v3283
        %3349 = vmatprep.subr.bf16.mxu0 %v3286
        %3350 = vmatpush1.bf16.msra.mxu0 %v3285
        %3351 = vmatprep.subr.bf16.mxu0 %v3288
        %3352 = vmatpush1.bf16.msra.mxu0 %v3287
        %3353 = vmatprep.subr.bf16.mxu0 %v3290
        %3354 = vmatpush1.bf16.msra.mxu0 %v3289
        %3355 = vmatprep.subr.bf16.mxu0 %v3292
        %3356 = vmatpush1.bf16.msra.mxu0 %v3291
        %3357 = vmatprep.mubr.bf16.mxu0 %v2840
        %3358 = vmatmul.mubr.bf16.gmra.mrb[0].mxu0 %v2839
        %v3359 = vpop.f32.mrb[0].mxu0
        %v3360 = vadd.f32 %v3157, %v3359
        %v3361 = vpop.f32.mrb[0].mxu0
        %v3362 = vadd.f32 %v3159, %v3361
        %v3363 = vpop.f32.mrb[0].mxu0
        %v3364 = vadd.f32 %v3161, %v3363
        %v3365 = vpop.f32.mrb[0].mxu0
        %v3366 = vadd.f32 %v3163, %v3365
        %3367 = vdwg.mxu0
        %s3368 = scalar_lea.vmem [#allocation7], 16
        %v3369 = vld [vmem:[%s3368] sm:$0xf]
        %v3370 = vld [vmem:[%s3368 + $0x4] sm:$0xf]
        %v3373 = vunpack.c.l.b16 %v3369
        %v3374 = vunpack.c.l.b16 %v3370
        %v3375 = vpack.c.b16 %v3374, %v3373
        %v3377 = vsel %vm2792, %v3375, 0
        %3379 = vmatprep.subr.bf16.mxu0 %v2782
        %3380 = vmatpush1.bf16.msra.mxu0 %v2781
        %3381 = vmatprep.subr.bf16.mxu0 %v2784
        %3382 = vmatpush1.bf16.msra.mxu0 %v2783
        %3383 = vmatprep.subr.bf16.mxu0 0
        %3384 = vmatpush1.bf16.msra.mxu0 0
        %3385 = vmatprep.subr.bf16.mxu0 0
        %3386 = vmatpush1.bf16.msra.mxu0 0
        %3387 = vmatprep.subr.bf16.mxu0 0
        %3388 = vmatpush1.bf16.msra.mxu0 0
        %3389 = vmatprep.subr.bf16.mxu0 0
        %3390 = vmatpush1.bf16.msra.mxu0 0
        %3391 = vmatprep.subr.bf16.mxu0 0
        %3392 = vmatpush1.bf16.msra.mxu0 0
        %3393 = vmatprep.subr.bf16.mxu0 0
        %3394 = vmatpush1.bf16.msra.mxu0 0
        %3395 = vmatprep.subr.bf16.mxu0 0
        %3396 = vmatpush1.bf16.msra.mxu0 0
        %3397 = vmatprep.subr.bf16.mxu0 0
        %3398 = vmatpush1.bf16.msra.mxu0 0
        %3399 = vmatprep.subr.bf16.mxu0 0
        %3400 = vmatpush1.bf16.msra.mxu0 0
        %3401 = vmatprep.subr.bf16.mxu0 0
        %3402 = vmatpush1.bf16.msra.mxu0 0
        %3403 = vmatprep.subr.bf16.mxu0 0
        %3404 = vmatpush1.bf16.msra.mxu0 0
        %3405 = vmatprep.subr.bf16.mxu0 0
        %3406 = vmatpush1.bf16.msra.mxu0 0
        %3407 = vmatprep.subr.bf16.mxu0 0
        %3408 = vmatpush1.bf16.msra.mxu0 0
        %3409 = vmatprep.subr.bf16.mxu0 0
        %3410 = vmatpush1.bf16.msra.mxu0 0
        %3411 = vmatprep.mubr.bf16.mxu0 0
        %3412 = vmatmul.mubr.bf16.gmra.mrb[0].mxu0 %v3377
        %v3413 = vpop.f32.mrb[0].mxu0
        %v3414 = vadd.f32 0.0, %v3413
        %v3415 = vpop.f32.mrb[0].mxu0
        %v3416 = vadd.f32 0.0, %v3415
        %v3417 = vpop.f32.mrb[0].mxu0
        %v3418 = vadd.f32 0.0, %v3417
        %v3419 = vpop.f32.mrb[0].mxu0
        %v3420 = vadd.f32 0.0, %v3419
        %3421 = vdwg.mxu0
        %v3422 = vpack.c.bf16 %v3418, %v3414
        %v3423 = vpack.c.bf16 %v3420, %v3416
        %s3424 = scalar_lea.vmem %s15, 512
        %v3425 = vld [vmem:[%s3424] sm:$0xff]
        %v3426 = vld [vmem:[%s3424 + $0x8] sm:$0xff]
        %v3427 = vld [vmem:[%s3424 + $0x10] sm:$0xff]
        %v3428 = vld [vmem:[%s3424 + $0x18] sm:$0xff]
        %v3429 = vld [vmem:[%s3424 + $0x20] sm:$0xff]
        %v3430 = vld [vmem:[%s3424 + $0x28] sm:$0xff]
        %v3431 = vld [vmem:[%s3424 + $0x30] sm:$0xff]
        %v3432 = vld [vmem:[%s3424 + $0x38] sm:$0xff]
        %v3433 = vld [vmem:[%s3424 + $0x40] sm:$0xff]
        %v3434 = vld [vmem:[%s3424 + $0x48] sm:$0xff]
        %v3435 = vld [vmem:[%s3424 + $0x50] sm:$0xff]
        %v3436 = vld [vmem:[%s3424 + $0x58] sm:$0xff]
        %v3437 = vld [vmem:[%s3424 + $0x60] sm:$0xff]
        %v3438 = vld [vmem:[%s3424 + $0x68] sm:$0xff]
        %v3439 = vld [vmem:[%s3424 + $0x70] sm:$0xff]
        %v3440 = vld [vmem:[%s3424 + $0x78] sm:$0xff]
        %v3441 = vld [vmem:[%s3424 + $0x80] sm:$0xff]
        %v3442 = vld [vmem:[%s3424 + $0x88] sm:$0xff]
        %v3443 = vld [vmem:[%s3424 + $0x90] sm:$0xff]
        %v3444 = vld [vmem:[%s3424 + $0x98] sm:$0xff]
        %v3445 = vld [vmem:[%s3424 + $0xa0] sm:$0xff]
        %v3446 = vld [vmem:[%s3424 + $0xa8] sm:$0xff]
        %v3447 = vld [vmem:[%s3424 + $0xb0] sm:$0xff]
        %v3448 = vld [vmem:[%s3424 + $0xb8] sm:$0xff]
        %v3449 = vld [vmem:[%s3424 + $0xc0] sm:$0xff]
        %v3450 = vld [vmem:[%s3424 + $0xc8] sm:$0xff]
        %v3451 = vld [vmem:[%s3424 + $0xd0] sm:$0xff]
        %v3452 = vld [vmem:[%s3424 + $0xd8] sm:$0xff]
        %v3453 = vld [vmem:[%s3424 + $0xe0] sm:$0xff]
        %v3454 = vld [vmem:[%s3424 + $0xe8] sm:$0xff]
        %v3455 = vld [vmem:[%s3424 + $0xf0] sm:$0xff]
        %v3456 = vld [vmem:[%s3424 + $0xf8] sm:$0xff]
        %v3489 = vunpack.c.l.b16 %v3425
        %v3490 = vunpack.c.h.b16 %v3425
        %v3491 = vunpack.c.l.b16 %v3426
        %v3492 = vunpack.c.h.b16 %v3426
        %v3493 = vunpack.c.l.b16 %v3427
        %v3494 = vunpack.c.h.b16 %v3427
        %v3495 = vunpack.c.l.b16 %v3428
        %v3496 = vunpack.c.h.b16 %v3428
        %v3497 = vunpack.c.l.b16 %v3429
        %v3498 = vunpack.c.h.b16 %v3429
        %v3499 = vunpack.c.l.b16 %v3430
        %v3500 = vunpack.c.h.b16 %v3430
        %v3501 = vunpack.c.l.b16 %v3431
        %v3502 = vunpack.c.h.b16 %v3431
        %v3503 = vunpack.c.l.b16 %v3432
        %v3504 = vunpack.c.h.b16 %v3432
        %v3505 = vunpack.c.l.b16 %v3433
        %v3506 = vunpack.c.h.b16 %v3433
        %v3507 = vunpack.c.l.b16 %v3434
        %v3508 = vunpack.c.h.b16 %v3434
        %v3509 = vunpack.c.l.b16 %v3435
        %v3510 = vunpack.c.h.b16 %v3435
        %v3511 = vunpack.c.l.b16 %v3436
        %v3512 = vunpack.c.h.b16 %v3436
        %v3513 = vunpack.c.l.b16 %v3437
        %v3514 = vunpack.c.h.b16 %v3437
        %v3515 = vunpack.c.l.b16 %v3438
        %v3516 = vunpack.c.h.b16 %v3438
        %v3517 = vunpack.c.l.b16 %v3439
        %v3518 = vunpack.c.h.b16 %v3439
        %v3519 = vunpack.c.l.b16 %v3440
        %v3520 = vunpack.c.h.b16 %v3440
        %v3521 = vunpack.c.l.b16 %v3441
        %v3522 = vunpack.c.h.b16 %v3441
        %v3523 = vunpack.c.l.b16 %v3442
        %v3524 = vunpack.c.h.b16 %v3442
        %v3525 = vunpack.c.l.b16 %v3443
        %v3526 = vunpack.c.h.b16 %v3443
        %v3527 = vunpack.c.l.b16 %v3444
        %v3528 = vunpack.c.h.b16 %v3444
        %v3529 = vunpack.c.l.b16 %v3445
        %v3530 = vunpack.c.h.b16 %v3445
        %v3531 = vunpack.c.l.b16 %v3446
        %v3532 = vunpack.c.h.b16 %v3446
        %v3533 = vunpack.c.l.b16 %v3447
        %v3534 = vunpack.c.h.b16 %v3447
        %v3535 = vunpack.c.l.b16 %v3448
        %v3536 = vunpack.c.h.b16 %v3448
        %v3537 = vunpack.c.l.b16 %v3449
        %v3538 = vunpack.c.h.b16 %v3449
        %v3539 = vunpack.c.l.b16 %v3450
        %v3540 = vunpack.c.h.b16 %v3450
        %v3541 = vunpack.c.l.b16 %v3451
        %v3542 = vunpack.c.h.b16 %v3451
        %v3543 = vunpack.c.l.b16 %v3452
        %v3544 = vunpack.c.h.b16 %v3452
        %v3545 = vunpack.c.l.b16 %v3453
        %v3546 = vunpack.c.h.b16 %v3453
        %v3547 = vunpack.c.l.b16 %v3454
        %v3548 = vunpack.c.h.b16 %v3454
        %v3549 = vunpack.c.l.b16 %v3455
        %v3550 = vunpack.c.h.b16 %v3455
        %v3551 = vunpack.c.l.b16 %v3456
        %v3552 = vunpack.c.h.b16 %v3456
        %v3553 = vpack.c.b16 %v3491, %v3489
        %v3554 = vpack.c.b16 %v3492, %v3490
        %v3555 = vpack.c.b16 %v3495, %v3493
        %v3556 = vpack.c.b16 %v3496, %v3494
        %v3557 = vpack.c.b16 %v3499, %v3497
        %v3558 = vpack.c.b16 %v3500, %v3498
        %v3559 = vpack.c.b16 %v3503, %v3501
        %v3560 = vpack.c.b16 %v3504, %v3502
        %v3561 = vpack.c.b16 %v3507, %v3505
        %v3562 = vpack.c.b16 %v3508, %v3506
        %v3563 = vpack.c.b16 %v3511, %v3509
        %v3564 = vpack.c.b16 %v3512, %v3510
        %v3565 = vpack.c.b16 %v3515, %v3513
        %v3566 = vpack.c.b16 %v3516, %v3514
        %v3567 = vpack.c.b16 %v3519, %v3517
        %v3568 = vpack.c.b16 %v3520, %v3518
        %v3569 = vpack.c.b16 %v3523, %v3521
        %v3570 = vpack.c.b16 %v3524, %v3522
        %v3571 = vpack.c.b16 %v3527, %v3525
        %v3572 = vpack.c.b16 %v3528, %v3526
        %v3573 = vpack.c.b16 %v3531, %v3529
        %v3574 = vpack.c.b16 %v3532, %v3530
        %v3575 = vpack.c.b16 %v3535, %v3533
        %v3576 = vpack.c.b16 %v3536, %v3534
        %v3577 = vpack.c.b16 %v3539, %v3537
        %v3578 = vpack.c.b16 %v3540, %v3538
        %v3579 = vpack.c.b16 %v3543, %v3541
        %v3580 = vpack.c.b16 %v3544, %v3542
        %v3581 = vpack.c.b16 %v3547, %v3545
        %v3582 = vpack.c.b16 %v3548, %v3546
        %v3583 = vpack.c.b16 %v3551, %v3549
        %v3584 = vpack.c.b16 %v3552, %v3550
        %3617 = vmatprep.subr.bf16.mxu0 %v3554
        %3618 = vmatpush1.bf16.msra.mxu0 %v3553
        %3619 = vmatprep.subr.bf16.mxu0 %v3556
        %3620 = vmatpush1.bf16.msra.mxu0 %v3555
        %3621 = vmatprep.subr.bf16.mxu0 %v3558
        %3622 = vmatpush1.bf16.msra.mxu0 %v3557
        %3623 = vmatprep.subr.bf16.mxu0 %v3560
        %3624 = vmatpush1.bf16.msra.mxu0 %v3559
        %3625 = vmatprep.subr.bf16.mxu0 %v3562
        %3626 = vmatpush1.bf16.msra.mxu0 %v3561
        %3627 = vmatprep.subr.bf16.mxu0 %v3564
        %3628 = vmatpush1.bf16.msra.mxu0 %v3563
        %3629 = vmatprep.subr.bf16.mxu0 %v3566
        %3630 = vmatpush1.bf16.msra.mxu0 %v3565
        %3631 = vmatprep.subr.bf16.mxu0 %v3568
        %3632 = vmatpush1.bf16.msra.mxu0 %v3567
        %3633 = vmatprep.subr.bf16.mxu0 %v3570
        %3634 = vmatpush1.bf16.msra.mxu0 %v3569
        %3635 = vmatprep.subr.bf16.mxu0 %v3572
        %3636 = vmatpush1.bf16.msra.mxu0 %v3571
        %3637 = vmatprep.subr.bf16.mxu0 %v3574
        %3638 = vmatpush1.bf16.msra.mxu0 %v3573
        %3639 = vmatprep.subr.bf16.mxu0 %v3576
        %3640 = vmatpush1.bf16.msra.mxu0 %v3575
        %3641 = vmatprep.subr.bf16.mxu0 %v3578
        %3642 = vmatpush1.bf16.msra.mxu0 %v3577
        %3643 = vmatprep.subr.bf16.mxu0 %v3580
        %3644 = vmatpush1.bf16.msra.mxu0 %v3579
        %3645 = vmatprep.subr.bf16.mxu0 %v3582
        %3646 = vmatpush1.bf16.msra.mxu0 %v3581
        %3647 = vmatprep.subr.bf16.mxu0 %v3584
        %3648 = vmatpush1.bf16.msra.mxu0 %v3583
        %3649 = vmatprep.mubr.bf16.mxu0 %v3423
        %3650 = vmatmul.mubr.bf16.gmra.mrb[0].mxu0 %v3422
        %v3651 = vpop.f32.mrb[0].mxu0
        %v3652 = vadd.f32 0.0, %v3651
        %v3653 = vpop.f32.mrb[0].mxu0
        %v3654 = vadd.f32 0.0, %v3653
        %v3655 = vpop.f32.mrb[0].mxu0
        %v3656 = vadd.f32 0.0, %v3655
        %v3657 = vpop.f32.mrb[0].mxu0
        %v3658 = vadd.f32 0.0, %v3657
        %3659 = vdwg.mxu0
        %v3660 = vadd.f32 %v3360, %v3652
        %v3661 = vadd.f32 %v3362, %v3654
        %v3662 = vadd.f32 %v3364, %v3656
        %v3663 = vadd.f32 %v3366, %v3658
        %s3664 = scalar_lea.vmem [#allocation7], 24
        %v3665 = vld [vmem:[%s3664] sm:$0xf]
        %v3666 = vld [vmem:[%s3664 + $0x4] sm:$0xf]
        %v3669 = vunpack.c.l.b16 %v3665
        %v3670 = vunpack.c.l.b16 %v3666
        %v3671 = vpack.c.b16 %v3670, %v3669
        %v3673 = vsel %vm2792, %v3671, 0
        %3675 = vmatprep.subr.bf16.mxu0 %v2782
        %3676 = vmatpush1.bf16.msra.mxu0 %v2781
        %3677 = vmatprep.subr.bf16.mxu0 %v2784
        %3678 = vmatpush1.bf16.msra.mxu0 %v2783
        %3679 = vmatprep.subr.bf16.mxu0 0
        %3680 = vmatpush1.bf16.msra.mxu0 0
        %3681 = vmatprep.subr.bf16.mxu0 0
        %3682 = vmatpush1.bf16.msra.mxu0 0
        %3683 = vmatprep.subr.bf16.mxu0 0
        %3684 = vmatpush1.bf16.msra.mxu0 0
        %3685 = vmatprep.subr.bf16.mxu0 0
        %3686 = vmatpush1.bf16.msra.mxu0 0
        %3687 = vmatprep.subr.bf16.mxu0 0
        %3688 = vmatpush1.bf16.msra.mxu0 0
        %3689 = vmatprep.subr.bf16.mxu0 0
        %3690 = vmatpush1.bf16.msra.mxu0 0
        %3691 = vmatprep.subr.bf16.mxu0 0
        %3692 = vmatpush1.bf16.msra.mxu0 0
        %3693 = vmatprep.subr.bf16.mxu0 0
        %3694 = vmatpush1.bf16.msra.mxu0 0
        %3695 = vmatprep.subr.bf16.mxu0 0
        %3696 = vmatpush1.bf16.msra.mxu0 0
        %3697 = vmatprep.subr.bf16.mxu0 0
        %3698 = vmatpush1.bf16.msra.mxu0 0
        %3699 = vmatprep.subr.bf16.mxu0 0
        %3700 = vmatpush1.bf16.msra.mxu0 0
        %3701 = vmatprep.subr.bf16.mxu0 0
        %3702 = vmatpush1.bf16.msra.mxu0 0
        %3703 = vmatprep.subr.bf16.mxu0 0
        %3704 = vmatpush1.bf16.msra.mxu0 0
        %3705 = vmatprep.subr.bf16.mxu0 0
        %3706 = vmatpush1.bf16.msra.mxu0 0
        %3707 = vmatprep.mubr.bf16.mxu0 0
        %3708 = vmatmul.mubr.bf16.gmra.mrb[0].mxu0 %v3673
        %v3709 = vpop.f32.mrb[0].mxu0
        %v3710 = vadd.f32 0.0, %v3709
        %v3711 = vpop.f32.mrb[0].mxu0
        %v3712 = vadd.f32 0.0, %v3711
        %v3713 = vpop.f32.mrb[0].mxu0
        %v3714 = vadd.f32 0.0, %v3713
        %v3715 = vpop.f32.mrb[0].mxu0
        %v3716 = vadd.f32 0.0, %v3715
        %3717 = vdwg.mxu0
        %v3718 = vpack.c.bf16 %v3714, %v3710
        %v3719 = vpack.c.bf16 %v3716, %v3712
        %s3720 = scalar_lea.vmem %s15, 768
        %v3721 = vld [vmem:[%s3720] sm:$0xff]
        %v3722 = vld [vmem:[%s3720 + $0x8] sm:$0xff]
        %v3723 = vld [vmem:[%s3720 + $0x10] sm:$0xff]
        %v3724 = vld [vmem:[%s3720 + $0x18] sm:$0xff]
        %v3725 = vld [vmem:[%s3720 + $0x20] sm:$0xff]
        %v3726 = vld [vmem:[%s3720 + $0x28] sm:$0xff]
        %v3727 = vld [vmem:[%s3720 + $0x30] sm:$0xff]
        %v3728 = vld [vmem:[%s3720 + $0x38] sm:$0xff]
        %v3729 = vld [vmem:[%s3720 + $0x40] sm:$0xff]
        %v3730 = vld [vmem:[%s3720 + $0x48] sm:$0xff]
        %v3731 = vld [vmem:[%s3720 + $0x50] sm:$0xff]
        %v3732 = vld [vmem:[%s3720 + $0x58] sm:$0xff]
        %v3733 = vld [vmem:[%s3720 + $0x60] sm:$0xff]
        %v3734 = vld [vmem:[%s3720 + $0x68] sm:$0xff]
        %v3735 = vld [vmem:[%s3720 + $0x70] sm:$0xff]
        %v3736 = vld [vmem:[%s3720 + $0x78] sm:$0xff]
        %v3737 = vld [vmem:[%s3720 + $0x80] sm:$0xff]
        %v3738 = vld [vmem:[%s3720 + $0x88] sm:$0xff]
        %v3739 = vld [vmem:[%s3720 + $0x90] sm:$0xff]
        %v3740 = vld [vmem:[%s3720 + $0x98] sm:$0xff]
        %v3741 = vld [vmem:[%s3720 + $0xa0] sm:$0xff]
        %v3742 = vld [vmem:[%s3720 + $0xa8] sm:$0xff]
        %v3743 = vld [vmem:[%s3720 + $0xb0] sm:$0xff]
        %v3744 = vld [vmem:[%s3720 + $0xb8] sm:$0xff]
        %v3745 = vld [vmem:[%s3720 + $0xc0] sm:$0xff]
        %v3746 = vld [vmem:[%s3720 + $0xc8] sm:$0xff]
        %v3747 = vld [vmem:[%s3720 + $0xd0] sm:$0xff]
        %v3748 = vld [vmem:[%s3720 + $0xd8] sm:$0xff]
        %v3749 = vld [vmem:[%s3720 + $0xe0] sm:$0xff]
        %v3750 = vld [vmem:[%s3720 + $0xe8] sm:$0xff]
        %v3751 = vld [vmem:[%s3720 + $0xf0] sm:$0xff]
        %v3752 = vld [vmem:[%s3720 + $0xf8] sm:$0xff]
        %v3785 = vunpack.c.l.b16 %v3721
        %v3786 = vunpack.c.h.b16 %v3721
        %v3787 = vunpack.c.l.b16 %v3722
        %v3788 = vunpack.c.h.b16 %v3722
        %v3789 = vunpack.c.l.b16 %v3723
        %v3790 = vunpack.c.h.b16 %v3723
        %v3791 = vunpack.c.l.b16 %v3724
        %v3792 = vunpack.c.h.b16 %v3724
        %v3793 = vunpack.c.l.b16 %v3725
        %v3794 = vunpack.c.h.b16 %v3725
        %v3795 = vunpack.c.l.b16 %v3726
        %v3796 = vunpack.c.h.b16 %v3726
        %v3797 = vunpack.c.l.b16 %v3727
        %v3798 = vunpack.c.h.b16 %v3727
        %v3799 = vunpack.c.l.b16 %v3728
        %v3800 = vunpack.c.h.b16 %v3728
        %v3801 = vunpack.c.l.b16 %v3729
        %v3802 = vunpack.c.h.b16 %v3729
        %v3803 = vunpack.c.l.b16 %v3730
        %v3804 = vunpack.c.h.b16 %v3730
        %v3805 = vunpack.c.l.b16 %v3731
        %v3806 = vunpack.c.h.b16 %v3731
        %v3807 = vunpack.c.l.b16 %v3732
        %v3808 = vunpack.c.h.b16 %v3732
        %v3809 = vunpack.c.l.b16 %v3733
        %v3810 = vunpack.c.h.b16 %v3733
        %v3811 = vunpack.c.l.b16 %v3734
        %v3812 = vunpack.c.h.b16 %v3734
        %v3813 = vunpack.c.l.b16 %v3735
        %v3814 = vunpack.c.h.b16 %v3735
        %v3815 = vunpack.c.l.b16 %v3736
        %v3816 = vunpack.c.h.b16 %v3736
        %v3817 = vunpack.c.l.b16 %v3737
        %v3818 = vunpack.c.h.b16 %v3737
        %v3819 = vunpack.c.l.b16 %v3738
        %v3820 = vunpack.c.h.b16 %v3738
        %v3821 = vunpack.c.l.b16 %v3739
        %v3822 = vunpack.c.h.b16 %v3739
        %v3823 = vunpack.c.l.b16 %v3740
        %v3824 = vunpack.c.h.b16 %v3740
        %v3825 = vunpack.c.l.b16 %v3741
        %v3826 = vunpack.c.h.b16 %v3741
        %v3827 = vunpack.c.l.b16 %v3742
        %v3828 = vunpack.c.h.b16 %v3742
        %v3829 = vunpack.c.l.b16 %v3743
        %v3830 = vunpack.c.h.b16 %v3743
        %v3831 = vunpack.c.l.b16 %v3744
        %v3832 = vunpack.c.h.b16 %v3744
        %v3833 = vunpack.c.l.b16 %v3745
        %v3834 = vunpack.c.h.b16 %v3745
        %v3835 = vunpack.c.l.b16 %v3746
        %v3836 = vunpack.c.h.b16 %v3746
        %v3837 = vunpack.c.l.b16 %v3747
        %v3838 = vunpack.c.h.b16 %v3747
        %v3839 = vunpack.c.l.b16 %v3748
        %v3840 = vunpack.c.h.b16 %v3748
        %v3841 = vunpack.c.l.b16 %v3749
        %v3842 = vunpack.c.h.b16 %v3749
        %v3843 = vunpack.c.l.b16 %v3750
        %v3844 = vunpack.c.h.b16 %v3750
        %v3845 = vunpack.c.l.b16 %v3751
        %v3846 = vunpack.c.h.b16 %v3751
        %v3847 = vunpack.c.l.b16 %v3752
        %v3848 = vunpack.c.h.b16 %v3752
        %v3849 = vpack.c.b16 %v3787, %v3785
        %v3850 = vpack.c.b16 %v3788, %v3786
        %v3851 = vpack.c.b16 %v3791, %v3789
        %v3852 = vpack.c.b16 %v3792, %v3790
        %v3853 = vpack.c.b16 %v3795, %v3793
        %v3854 = vpack.c.b16 %v3796, %v3794
        %v3855 = vpack.c.b16 %v3799, %v3797
        %v3856 = vpack.c.b16 %v3800, %v3798
        %v3857 = vpack.c.b16 %v3803, %v3801
        %v3858 = vpack.c.b16 %v3804, %v3802
        %v3859 = vpack.c.b16 %v3807, %v3805
        %v3860 = vpack.c.b16 %v3808, %v3806
        %v3861 = vpack.c.b16 %v3811, %v3809
        %v3862 = vpack.c.b16 %v3812, %v3810
        %v3863 = vpack.c.b16 %v3815, %v3813
        %v3864 = vpack.c.b16 %v3816, %v3814
        %v3865 = vpack.c.b16 %v3819, %v3817
        %v3866 = vpack.c.b16 %v3820, %v3818
        %v3867 = vpack.c.b16 %v3823, %v3821
        %v3868 = vpack.c.b16 %v3824, %v3822
        %v3869 = vpack.c.b16 %v3827, %v3825
        %v3870 = vpack.c.b16 %v3828, %v3826
        %v3871 = vpack.c.b16 %v3831, %v3829
        %v3872 = vpack.c.b16 %v3832, %v3830
        %v3873 = vpack.c.b16 %v3835, %v3833
        %v3874 = vpack.c.b16 %v3836, %v3834
        %v3875 = vpack.c.b16 %v3839, %v3837
        %v3876 = vpack.c.b16 %v3840, %v3838
        %v3877 = vpack.c.b16 %v3843, %v3841
        %v3878 = vpack.c.b16 %v3844, %v3842
        %v3879 = vpack.c.b16 %v3847, %v3845
        %v3880 = vpack.c.b16 %v3848, %v3846
        %3913 = vmatprep.subr.bf16.mxu0 %v3850
        %3914 = vmatpush1.bf16.msra.mxu0 %v3849
        %3915 = vmatprep.subr.bf16.mxu0 %v3852
        %3916 = vmatpush1.bf16.msra.mxu0 %v3851
        %3917 = vmatprep.subr.bf16.mxu0 %v3854
        %3918 = vmatpush1.bf16.msra.mxu0 %v3853
        %3919 = vmatprep.subr.bf16.mxu0 %v3856
        %3920 = vmatpush1.bf16.msra.mxu0 %v3855
        %3921 = vmatprep.subr.bf16.mxu0 %v3858
        %3922 = vmatpush1.bf16.msra.mxu0 %v3857
        %3923 = vmatprep.subr.bf16.mxu0 %v3860
        %3924 = vmatpush1.bf16.msra.mxu0 %v3859
        %3925 = vmatprep.subr.bf16.mxu0 %v3862
        %3926 = vmatpush1.bf16.msra.mxu0 %v3861
        %3927 = vmatprep.subr.bf16.mxu0 %v3864
        %3928 = vmatpush1.bf16.msra.mxu0 %v3863
        %3929 = vmatprep.subr.bf16.mxu0 %v3866
        %3930 = vmatpush1.bf16.msra.mxu0 %v3865
        %3931 = vmatprep.subr.bf16.mxu0 %v3868
        %3932 = vmatpush1.bf16.msra.mxu0 %v3867
        %3933 = vmatprep.subr.bf16.mxu0 %v3870
        %3934 = vmatpush1.bf16.msra.mxu0 %v3869
        %3935 = vmatprep.subr.bf16.mxu0 %v3872
        %3936 = vmatpush1.bf16.msra.mxu0 %v3871
        %3937 = vmatprep.subr.bf16.mxu0 %v3874
        %3938 = vmatpush1.bf16.msra.mxu0 %v3873
        %3939 = vmatprep.subr.bf16.mxu0 %v3876
        %3940 = vmatpush1.bf16.msra.mxu0 %v3875
        %3941 = vmatprep.subr.bf16.mxu0 %v3878
        %3942 = vmatpush1.bf16.msra.mxu0 %v3877
        %3943 = vmatprep.subr.bf16.mxu0 %v3880
        %3944 = vmatpush1.bf16.msra.mxu0 %v3879
        %3945 = vmatprep.mubr.bf16.mxu0 %v3719
        %3946 = vmatmul.mubr.bf16.gmra.mrb[0].mxu0 %v3718
        %v3947 = vpop.f32.mrb[0].mxu0
        %v3948 = vadd.f32 0.0, %v3947
        %v3949 = vpop.f32.mrb[0].mxu0
        %v3950 = vadd.f32 0.0, %v3949
        %v3951 = vpop.f32.mrb[0].mxu0
        %v3952 = vadd.f32 0.0, %v3951
        %v3953 = vpop.f32.mrb[0].mxu0
        %v3954 = vadd.f32 0.0, %v3953
        %3955 = vdwg.mxu0
        %v3956 = vadd.f32 %v3660, %v3948
        %v3957 = vadd.f32 %v3661, %v3950
        %v3958 = vadd.f32 %v3662, %v3952
        %v3959 = vadd.f32 %v3663, %v3954
        %v3960 = vld [vmem:[#allocation8] sm:$0x3]
        %v3962 = vlaneseq
        %v3963 = vshrl.u32 %v3962, 7
        %v3964 = vsub.s32 0, %v3963
        %v3965 = vrot.slane %v3960, %v3964
        %v3966 = vlaneseq
        %v3967 = vshrl.u32 %v3966, 7
        %v3968 = vsub.s32 1, %v3967
        %v3969 = vrot.slane %v3960, %v3968
        %v3972 = vadd.f32 %v3956, %v3965
        %v3973 = vadd.f32 %v3957, %v3969
        %v3974 = vadd.f32 %v3958, %v3965
        %v3975 = vadd.f32 %v3959, %v3969
        %v3976 = vld [vmem:[%s19] sm:$0xf]
        %v3977 = vld [vmem:[%s19 + $0x4] sm:$0xf]
        %v3978 = vld [vmem:[%s19 + $0x8] sm:$0xf]
        %v3979 = vld [vmem:[%s19 + $0xc] sm:$0xf]
        %v3980 = vld [vmem:[%s19 + $0x10] sm:$0xf]
        %v3981 = vld [vmem:[%s19 + $0x14] sm:$0xf]
        %v3982 = vld [vmem:[%s19 + $0x18] sm:$0xf]
        %v3983 = vld [vmem:[%s19 + $0x1c] sm:$0xf]
        %v3984 = vld [vmem:[%s19 + $0x20] sm:$0xf]
        %v3985 = vld [vmem:[%s19 + $0x24] sm:$0xf]
        %v3986 = vld [vmem:[%s19 + $0x28] sm:$0xf]
        %v3987 = vld [vmem:[%s19 + $0x2c] sm:$0xf]
        %v3988 = vld [vmem:[%s19 + $0x30] sm:$0xf]
        %v3989 = vld [vmem:[%s19 + $0x34] sm:$0xf]
        %v3990 = vld [vmem:[%s19 + $0x38] sm:$0xf]
        %v3991 = vld [vmem:[%s19 + $0x3c] sm:$0xf]
        %v3992 = vld [vmem:[%s19 + $0x40] sm:$0xf]
        %v3993 = vld [vmem:[%s19 + $0x44] sm:$0xf]
        %v3994 = vld [vmem:[%s19 + $0x48] sm:$0xf]
        %v3995 = vld [vmem:[%s19 + $0x4c] sm:$0xf]
        %v3996 = vld [vmem:[%s19 + $0x50] sm:$0xf]
        %v3997 = vld [vmem:[%s19 + $0x54] sm:$0xf]
        %v3998 = vld [vmem:[%s19 + $0x58] sm:$0xf]
        %v3999 = vld [vmem:[%s19 + $0x5c] sm:$0xf]
        %v4000 = vld [vmem:[%s19 + $0x60] sm:$0xf]
        %v4001 = vld [vmem:[%s19 + $0x64] sm:$0xf]
        %v4002 = vld [vmem:[%s19 + $0x68] sm:$0xf]
        %v4003 = vld [vmem:[%s19 + $0x6c] sm:$0xf]
        %v4004 = vld [vmem:[%s19 + $0x70] sm:$0xf]
        %v4005 = vld [vmem:[%s19 + $0x74] sm:$0xf]
        %v4006 = vld [vmem:[%s19 + $0x78] sm:$0xf]
        %v4007 = vld [vmem:[%s19 + $0x7c] sm:$0xf]
        %v4008 = vld [vmem:[#allocation10] sm:$0xff]
        %v4009 = vld [vmem:[#allocation10 + $0x8] sm:$0xff]
        %v4010 = vadd.f32 %v3972, %v3974
        %v4011 = vrot.slane %v4010, 4
        %v4012 = vadd.f32 %v4010, %v4011
        %v4013 = vrot.slane %v4012, 2
        %v4014 = vadd.f32 %v4012, %v4013
        %v4015 = vrot.slane %v4014, 1
        %v4016 = vadd.f32 %v4014, %v4015
        %v4017 = vadd.f32 %v3973, %v3975
        %v4018 = vrot.slane %v4017, 4
        %v4019 = vadd.f32 %v4017, %v4018
        %v4020 = vrot.slane %v4019, 2
        %v4021 = vadd.f32 %v4019, %v4020
        %v4022 = vrot.slane %v4021, 1
        %v4023 = vadd.f32 %v4021, %v4022
        %v4024 = vpack.c.bf16 %v4016, %v4016
        %v4025 = vpack.c.bf16 %v4023, %v4023
        %v4058 = vunpack.c.l.b16 %v3976
        %v4059 = vunpack.c.l.b16 %v3977
        %v4060 = vunpack.c.l.b16 %v3978
        %v4061 = vunpack.c.l.b16 %v3979
        %v4062 = vunpack.c.l.b16 %v3980
        %v4063 = vunpack.c.l.b16 %v3981
        %v4064 = vunpack.c.l.b16 %v3982
        %v4065 = vunpack.c.l.b16 %v3983
        %v4066 = vunpack.c.l.b16 %v3984
        %v4067 = vunpack.c.l.b16 %v3985
        %v4068 = vunpack.c.l.b16 %v3986
        %v4069 = vunpack.c.l.b16 %v3987
        %v4070 = vunpack.c.l.b16 %v3988
        %v4071 = vunpack.c.l.b16 %v3989
        %v4072 = vunpack.c.l.b16 %v3990
        %v4073 = vunpack.c.l.b16 %v3991
        %v4074 = vunpack.c.l.b16 %v3992
        %v4075 = vunpack.c.l.b16 %v3993
        %v4076 = vunpack.c.l.b16 %v3994
        %v4077 = vunpack.c.l.b16 %v3995
        %v4078 = vunpack.c.l.b16 %v3996
        %v4079 = vunpack.c.l.b16 %v3997
        %v4080 = vunpack.c.l.b16 %v3998
        %v4081 = vunpack.c.l.b16 %v3999
        %v4082 = vunpack.c.l.b16 %v4000
        %v4083 = vunpack.c.l.b16 %v4001
        %v4084 = vunpack.c.l.b16 %v4002
        %v4085 = vunpack.c.l.b16 %v4003
        %v4086 = vunpack.c.l.b16 %v4004
        %v4087 = vunpack.c.l.b16 %v4005
        %v4088 = vunpack.c.l.b16 %v4006
        %v4089 = vunpack.c.l.b16 %v4007
        %v4090 = vpack.c.b16 %v4059, %v4058
        %v4091 = vpack.c.b16 %v4061, %v4060
        %v4092 = vpack.c.b16 %v4063, %v4062
        %v4093 = vpack.c.b16 %v4065, %v4064
        %v4094 = vpack.c.b16 %v4067, %v4066
        %v4095 = vpack.c.b16 %v4069, %v4068
        %v4096 = vpack.c.b16 %v4071, %v4070
        %v4097 = vpack.c.b16 %v4073, %v4072
        %v4098 = vpack.c.b16 %v4075, %v4074
        %v4099 = vpack.c.b16 %v4077, %v4076
        %v4100 = vpack.c.b16 %v4079, %v4078
        %v4101 = vpack.c.b16 %v4081, %v4080
        %v4102 = vpack.c.b16 %v4083, %v4082
        %v4103 = vpack.c.b16 %v4085, %v4084
        %v4104 = vpack.c.b16 %v4087, %v4086
        %v4105 = vpack.c.b16 %v4089, %v4088
        %4122 = vmatprep.subr.bf16.mxu0 0
        %4123 = vmatpush1.bf16.msra.mxu0 %v4090
        %4124 = vmatprep.subr.bf16.mxu0 0
        %4125 = vmatpush1.bf16.msra.mxu0 %v4091
        %4126 = vmatprep.subr.bf16.mxu0 0
        %4127 = vmatpush1.bf16.msra.mxu0 %v4092
        %4128 = vmatprep.subr.bf16.mxu0 0
        %4129 = vmatpush1.bf16.msra.mxu0 %v4093
        %4130 = vmatprep.subr.bf16.mxu0 0
        %4131 = vmatpush1.bf16.msra.mxu0 %v4094
        %4132 = vmatprep.subr.bf16.mxu0 0
        %4133 = vmatpush1.bf16.msra.mxu0 %v4095
        %4134 = vmatprep.subr.bf16.mxu0 0
        %4135 = vmatpush1.bf16.msra.mxu0 %v4096
        %4136 = vmatprep.subr.bf16.mxu0 0
        %4137 = vmatpush1.bf16.msra.mxu0 %v4097
        %4138 = vmatprep.subr.bf16.mxu0 0
        %4139 = vmatpush1.bf16.msra.mxu0 %v4098
        %4140 = vmatprep.subr.bf16.mxu0 0
        %4141 = vmatpush1.bf16.msra.mxu0 %v4099
        %4142 = vmatprep.subr.bf16.mxu0 0
        %4143 = vmatpush1.bf16.msra.mxu0 %v4100
        %4144 = vmatprep.subr.bf16.mxu0 0
        %4145 = vmatpush1.bf16.msra.mxu0 %v4101
        %4146 = vmatprep.subr.bf16.mxu0 0
        %4147 = vmatpush1.bf16.msra.mxu0 %v4102
        %4148 = vmatprep.subr.bf16.mxu0 0
        %4149 = vmatpush1.bf16.msra.mxu0 %v4103
        %4150 = vmatprep.subr.bf16.mxu0 0
        %4151 = vmatpush1.bf16.msra.mxu0 %v4104
        %4152 = vmatprep.subr.bf16.mxu0 0
        %4153 = vmatpush1.bf16.msra.mxu0 %v4105
        %4154 = vmatprep.mubr.bf16.mxu0 %v4025
        %4155 = vmatmul.mubr.bf16.gmra.mrb[0].mxu0 %v4024
        %v4156 = vpop.f32.mrb[0].mxu0
        %v4157 = vadd.f32 0.0, %v4156
        %v4158 = vpop.f32.mrb[0].mxu0
        %v4159 = vpop.f32.mrb[0].mxu0
        %v4160 = vpop.f32.mrb[0].mxu0
        %4161 = vdwg.mxu0
        %v4162 = vpack.c.bf16 %v4157, %v4157
        %v4165 = vunpack.c.l.b16 %v4008
        %v4166 = vunpack.c.h.b16 %v4008
        %v4167 = vunpack.c.l.b16 %v4009
        %v4168 = vunpack.c.h.b16 %v4009
        %v4169 = vpack.c.b16 %v4167, %v4165
        %v4170 = vpack.c.b16 %v4168, %v4166
        %vm4173 = vcmask 130048
        %v4175 = vsel %vm4173, %v4162, 0
        %4177 = vmatprep.subr.bf16.mxu0 %v4170
        %4178 = vmatpush1.bf16.msra.mxu0 %v4169
        %4179 = vmatprep.subr.bf16.mxu0 0
        %4180 = vmatpush1.bf16.msra.mxu0 0
        %4181 = vmatprep.subr.bf16.mxu0 0
        %4182 = vmatpush1.bf16.msra.mxu0 0
        %4183 = vmatprep.subr.bf16.mxu0 0
        %4184 = vmatpush1.bf16.msra.mxu0 0
        %4185 = vmatprep.subr.bf16.mxu0 0
        %4186 = vmatpush1.bf16.msra.mxu0 0
        %4187 = vmatprep.subr.bf16.mxu0 0
        %4188 = vmatpush1.bf16.msra.mxu0 0
        %4189 = vmatprep.subr.bf16.mxu0 0
        %4190 = vmatpush1.bf16.msra.mxu0 0
        %4191 = vmatprep.subr.bf16.mxu0 0
        %4192 = vmatpush1.bf16.msra.mxu0 0
        %4193 = vmatprep.subr.bf16.mxu0 0
        %4194 = vmatpush1.bf16.msra.mxu0 0
        %4195 = vmatprep.subr.bf16.mxu0 0
        %4196 = vmatpush1.bf16.msra.mxu0 0
        %4197 = vmatprep.subr.bf16.mxu0 0
        %4198 = vmatpush1.bf16.msra.mxu0 0
        %4199 = vmatprep.subr.bf16.mxu0 0
        %4200 = vmatpush1.bf16.msra.mxu0 0
        %4201 = vmatprep.subr.bf16.mxu0 0
        %4202 = vmatpush1.bf16.msra.mxu0 0
        %4203 = vmatprep.subr.bf16.mxu0 0
        %4204 = vmatpush1.bf16.msra.mxu0 0
        %4205 = vmatprep.subr.bf16.mxu0 0
        %4206 = vmatpush1.bf16.msra.mxu0 0
        %4207 = vmatprep.subr.bf16.mxu0 0
        %4208 = vmatpush1.bf16.msra.mxu0 0
        %4209 = vmatprep.mubr.bf16.mxu0 0
        %4210 = vmatmul.mubr.bf16.gmra.mrb[0].mxu0 %v4175
        %v4211 = vpop.f32.mrb[0].mxu0
        %v4212 = vadd.f32 0.0, %v4211
        %v4213 = vpop.f32.mrb[0].mxu0
        %v4214 = vadd.f32 0.0, %v4213
        %v4215 = vpop.f32.mrb[0].mxu0
        %v4216 = vpop.f32.mrb[0].mxu0
        %4217 = vdwg.mxu0
        %v4218 = vlaneseq
        %v4219 = vshrl.u32 %v4218, 7
        %v4220 = vsub.s32 0, %v4219
        %v4221 = vrot.slane %v4212, %v4220
        %v4222 = vlaneseq
        %v4223 = vshrl.u32 %v4222, 7
        %v4224 = vsub.s32 0, %v4223
        %v4225 = vrot.slane %v4214, %v4224
        %v4226 = vsub.f32 %v3972, %v4221
        %v4227 = vsub.f32 %v3973, %v4225
        %v4228 = vsub.f32 %v3974, %v4221
        %v4229 = vsub.f32 %v3975, %v4225
        %v4230 = vmul.f32 %v4226, %v4226
        %v4231 = vmul.f32 %v4227, %v4227
        %v4232 = vmul.f32 %v4228, %v4228
        %v4233 = vmul.f32 %v4229, %v4229
        %v4234 = vadd.f32 %v4230, %v4232
        %v4235 = vrot.slane %v4234, 4
        %v4236 = vadd.f32 %v4234, %v4235
        %v4237 = vrot.slane %v4236, 2
        %v4238 = vadd.f32 %v4236, %v4237
        %v4239 = vrot.slane %v4238, 1
        %v4240 = vadd.f32 %v4238, %v4239
        %v4241 = vadd.f32 %v4231, %v4233
        %v4242 = vrot.slane %v4241, 4
        %v4243 = vadd.f32 %v4241, %v4242
        %v4244 = vrot.slane %v4243, 2
        %v4245 = vadd.f32 %v4243, %v4244
        %v4246 = vrot.slane %v4245, 1
        %v4247 = vadd.f32 %v4245, %v4246
        %v4248 = vpack.c.bf16 %v4240, %v4240
        %v4249 = vpack.c.bf16 %v4247, %v4247
        %4250 = vmatprep.subr.bf16.mxu0 0
        %4251 = vmatpush1.bf16.msra.mxu0 %v4090
        %4252 = vmatprep.subr.bf16.mxu0 0
        %4253 = vmatpush1.bf16.msra.mxu0 %v4091
        %4254 = vmatprep.subr.bf16.mxu0 0
        %4255 = vmatpush1.bf16.msra.mxu0 %v4092
        %4256 = vmatprep.subr.bf16.mxu0 0
        %4257 = vmatpush1.bf16.msra.mxu0 %v4093
        %4258 = vmatprep.subr.bf16.mxu0 0
        %4259 = vmatpush1.bf16.msra.mxu0 %v4094
        %4260 = vmatprep.subr.bf16.mxu0 0
        %4261 = vmatpush1.bf16.msra.mxu0 %v4095
        %4262 = vmatprep.subr.bf16.mxu0 0
        %4263 = vmatpush1.bf16.msra.mxu0 %v4096
        %4264 = vmatprep.subr.bf16.mxu0 0
        %4265 = vmatpush1.bf16.msra.mxu0 %v4097
        %4266 = vmatprep.subr.bf16.mxu0 0
        %4267 = vmatpush1.bf16.msra.mxu0 %v4098
        %4268 = vmatprep.subr.bf16.mxu0 0
        %4269 = vmatpush1.bf16.msra.mxu0 %v4099
        %4270 = vmatprep.subr.bf16.mxu0 0
        %4271 = vmatpush1.bf16.msra.mxu0 %v4100
        %4272 = vmatprep.subr.bf16.mxu0 0
        %4273 = vmatpush1.bf16.msra.mxu0 %v4101
        %4274 = vmatprep.subr.bf16.mxu0 0
        %4275 = vmatpush1.bf16.msra.mxu0 %v4102
        %4276 = vmatprep.subr.bf16.mxu0 0
        %4277 = vmatpush1.bf16.msra.mxu0 %v4103
        %4278 = vmatprep.subr.bf16.mxu0 0
        %4279 = vmatpush1.bf16.msra.mxu0 %v4104
        %4280 = vmatprep.subr.bf16.mxu0 0
        %4281 = vmatpush1.bf16.msra.mxu0 %v4105
        %4282 = vmatprep.mubr.bf16.mxu0 %v4249
        %4283 = vmatmul.mubr.bf16.gmra.mrb[0].mxu0 %v4248
        %v4284 = vpop.f32.mrb[0].mxu0
        %v4285 = vadd.f32 0.0, %v4284
        %v4286 = vpop.f32.mrb[0].mxu0
        %v4287 = vpop.f32.mrb[0].mxu0
        %v4288 = vpop.f32.mrb[0].mxu0
        %4289 = vdwg.mxu0
        %v4290 = vpack.c.bf16 %v4285, %v4285
        %v4292 = vsel %vm4173, %v4290, 0
        %4294 = vmatprep.subr.bf16.mxu0 %v4170
        %4295 = vmatpush1.bf16.msra.mxu0 %v4169
        %4296 = vmatprep.subr.bf16.mxu0 0
        %4297 = vmatpush1.bf16.msra.mxu0 0
        %4298 = vmatprep.subr.bf16.mxu0 0
        %4299 = vmatpush1.bf16.msra.mxu0 0
        %4300 = vmatprep.subr.bf16.mxu0 0
        %4301 = vmatpush1.bf16.msra.mxu0 0
        %4302 = vmatprep.subr.bf16.mxu0 0
        %4303 = vmatpush1.bf16.msra.mxu0 0
        %4304 = vmatprep.subr.bf16.mxu0 0
        %4305 = vmatpush1.bf16.msra.mxu0 0
        %4306 = vmatprep.subr.bf16.mxu0 0
        %4307 = vmatpush1.bf16.msra.mxu0 0
        %4308 = vmatprep.subr.bf16.mxu0 0
        %4309 = vmatpush1.bf16.msra.mxu0 0
        %4310 = vmatprep.subr.bf16.mxu0 0
        %4311 = vmatpush1.bf16.msra.mxu0 0
        %4312 = vmatprep.subr.bf16.mxu0 0
        %4313 = vmatpush1.bf16.msra.mxu0 0
        %4314 = vmatprep.subr.bf16.mxu0 0
        %4315 = vmatpush1.bf16.msra.mxu0 0
        %4316 = vmatprep.subr.bf16.mxu0 0
        %4317 = vmatpush1.bf16.msra.mxu0 0
        %4318 = vmatprep.subr.bf16.mxu0 0
        %4319 = vmatpush1.bf16.msra.mxu0 0
        %4320 = vmatprep.subr.bf16.mxu0 0
        %4321 = vmatpush1.bf16.msra.mxu0 0
        %4322 = vmatprep.subr.bf16.mxu0 0
        %4323 = vmatpush1.bf16.msra.mxu0 0
        %4324 = vmatprep.subr.bf16.mxu0 0
        %4325 = vmatpush1.bf16.msra.mxu0 0
        %4326 = vmatprep.mubr.bf16.mxu0 0
        %4327 = vmatmul.mubr.bf16.gmra.mrb[0].mxu0 %v4292
        %v4328 = vpop.f32.mrb[0].mxu0
        %v4329 = vadd.f32 1e-05, %v4328
        %v4330 = vpop.f32.mrb[0].mxu0
        %v4331 = vadd.f32 1e-05, %v4330
        %v4332 = vpop.f32.mrb[0].mxu0
        %v4333 = vpop.f32.mrb[0].mxu0
        %4334 = vdwg.mxu0
        %v4335 = vrsqrt.pop %v4329
        %v4336 = vrsqrt.pop %v4331
        %v4337 = vlaneseq
        %v4338 = vshrl.u32 %v4337, 7
        %v4339 = vsub.s32 0, %v4338
        %v4340 = vrot.slane %v4335, %v4339
        %v4341 = vlaneseq
        %v4342 = vshrl.u32 %v4341, 7
        %v4343 = vsub.s32 0, %v4342
        %v4344 = vrot.slane %v4336, %v4343
        %v4345 = vmul.f32 %v4226, %v4340
        %v4346 = vmul.f32 %v4227, %v4344
        %v4347 = vmul.f32 %v4228, %v4340
        %v4348 = vmul.f32 %v4229, %v4344
        %vm4349 = vcmp.ge.f32.partialorder %v4345, 0.0
        %vm4350 = vcmp.ge.f32.partialorder %v4346, 0.0
        %vm4351 = vcmp.ge.f32.partialorder %v4347, 0.0
        %vm4352 = vcmp.ge.f32.partialorder %v4348, 0.0
        %v4353 = vmul.f32 %v4345, 0.01
        %v4354 = vmul.f32 %v4346, 0.01
        %v4355 = vmul.f32 %v4347, 0.01
        %v4356 = vmul.f32 %v4348, 0.01
        %v4357 = vsel %vm4349, %v4345, %v4353
        %v4358 = vsel %vm4350, %v4346, %v4354
        %v4359 = vsel %vm4351, %v4347, %v4355
        %v4360 = vsel %vm4352, %v4348, %v4356
        %v4361 = vpack.c.bf16 %v4359, %v4357
        %v4362 = vpack.c.bf16 %v4360, %v4358
        %v4363 = vld [vmem:[#allocation11] sm:$0xf]
        %v4365 = vsel %vm4173, %v4363, 0
        %4367 = vmatprep.subr.bf16.mxu0 %v4362
        %4368 = vmatpush1.bf16.msra.mxu0 %v4361
        %4369 = vmatprep.subr.bf16.mxu0 0
        %4370 = vmatpush1.bf16.msra.mxu0 0
        %4371 = vmatprep.subr.bf16.mxu0 0
        %4372 = vmatpush1.bf16.msra.mxu0 0
        %4373 = vmatprep.subr.bf16.mxu0 0
        %4374 = vmatpush1.bf16.msra.mxu0 0
        %4375 = vmatprep.subr.bf16.mxu0 0
        %4376 = vmatpush1.bf16.msra.mxu0 0
        %4377 = vmatprep.subr.bf16.mxu0 0
        %4378 = vmatpush1.bf16.msra.mxu0 0
        %4379 = vmatprep.subr.bf16.mxu0 0
        %4380 = vmatpush1.bf16.msra.mxu0 0
        %4381 = vmatprep.subr.bf16.mxu0 0
        %4382 = vmatpush1.bf16.msra.mxu0 0
        %4383 = vmatprep.subr.bf16.mxu0 0
        %4384 = vmatpush1.bf16.msra.mxu0 0
        %4385 = vmatprep.subr.bf16.mxu0 0
        %4386 = vmatpush1.bf16.msra.mxu0 0
        %4387 = vmatprep.subr.bf16.mxu0 0
        %4388 = vmatpush1.bf16.msra.mxu0 0
        %4389 = vmatprep.subr.bf16.mxu0 0
        %4390 = vmatpush1.bf16.msra.mxu0 0
        %4391 = vmatprep.subr.bf16.mxu0 0
        %4392 = vmatpush1.bf16.msra.mxu0 0
        %4393 = vmatprep.subr.bf16.mxu0 0
        %4394 = vmatpush1.bf16.msra.mxu0 0
        %4395 = vmatprep.subr.bf16.mxu0 0
        %4396 = vmatpush1.bf16.msra.mxu0 0
        %4397 = vmatprep.subr.bf16.mxu0 0
        %4398 = vmatpush1.bf16.msra.mxu0 0
        %4399 = vmatprep.mubr.bf16.mxu0 0
        %4400 = vmatmul.mubr.bf16.gmra.mrb[0].mxu0 %v4365
        %v4401 = vpop.f32.mrb[0].mxu0
        %v4402 = vadd.f32 0.0, %v4401
        %v4403 = vpop.f32.mrb[0].mxu0
        %v4404 = vadd.f32 0.0, %v4403
        %v4405 = vpop.f32.mrb[0].mxu0
        %v4406 = vpop.f32.mrb[0].mxu0
        %4407 = vdwg.mxu0
        %v4408 = vpack.c.bf16 %v4402, %v4402
        %v4409 = vpack.c.bf16 %v4404, %v4404
        %v4410 = vld [vmem:[%s25] sm:$0xff]
        %v4411 = vld [vmem:[%s25 + $0x8] sm:$0xff]
        %v4412 = vld [vmem:[%s25 + $0x10] sm:$0xff]
        %v4413 = vld [vmem:[%s25 + $0x18] sm:$0xff]
        %v4414 = vld [vmem:[%s25 + $0x20] sm:$0xff]
        %v4415 = vld [vmem:[%s25 + $0x28] sm:$0xff]
        %v4416 = vld [vmem:[%s25 + $0x30] sm:$0xff]
        %v4417 = vld [vmem:[%s25 + $0x38] sm:$0xff]
        %v4418 = vld [vmem:[%s25 + $0x40] sm:$0xff]
        %v4419 = vld [vmem:[%s25 + $0x48] sm:$0xff]
        %v4420 = vld [vmem:[%s25 + $0x50] sm:$0xff]
        %v4421 = vld [vmem:[%s25 + $0x58] sm:$0xff]
        %v4422 = vld [vmem:[%s25 + $0x60] sm:$0xff]
        %v4423 = vld [vmem:[%s25 + $0x68] sm:$0xff]
        %v4424 = vld [vmem:[%s25 + $0x70] sm:$0xff]
        %v4425 = vld [vmem:[%s25 + $0x78] sm:$0xff]
        %v4426 = vld [vmem:[%s25 + $0x80] sm:$0xff]
        %v4427 = vld [vmem:[%s25 + $0x88] sm:$0xff]
        %v4428 = vld [vmem:[%s25 + $0x90] sm:$0xff]
        %v4429 = vld [vmem:[%s25 + $0x98] sm:$0xff]
        %v4430 = vld [vmem:[%s25 + $0xa0] sm:$0xff]
        %v4431 = vld [vmem:[%s25 + $0xa8] sm:$0xff]
        %v4432 = vld [vmem:[%s25 + $0xb0] sm:$0xff]
        %v4433 = vld [vmem:[%s25 + $0xb8] sm:$0xff]
        %v4434 = vld [vmem:[%s25 + $0xc0] sm:$0xff]
        %v4435 = vld [vmem:[%s25 + $0xc8] sm:$0xff]
        %v4436 = vld [vmem:[%s25 + $0xd0] sm:$0xff]
        %v4437 = vld [vmem:[%s25 + $0xd8] sm:$0xff]
        %v4438 = vld [vmem:[%s25 + $0xe0] sm:$0xff]
        %v4439 = vld [vmem:[%s25 + $0xe8] sm:$0xff]
        %v4440 = vld [vmem:[%s25 + $0xf0] sm:$0xff]
        %v4441 = vld [vmem:[%s25 + $0xf8] sm:$0xff]
        %s4442 = scalar_lea.vmem [#allocation11], 4
        %v4443 = vld [vmem:[%s4442] sm:$0xf]
        %v4445 = vsel %vm4173, %v4443, 0
        %4447 = vmatprep.subr.bf16.mxu0 %v4362
        %4448 = vmatpush1.bf16.msra.mxu0 %v4361
        %4449 = vmatprep.subr.bf16.mxu0 0
        %4450 = vmatpush1.bf16.msra.mxu0 0
        %4451 = vmatprep.subr.bf16.mxu0 0
        %4452 = vmatpush1.bf16.msra.mxu0 0
        %4453 = vmatprep.subr.bf16.mxu0 0
        %4454 = vmatpush1.bf16.msra.mxu0 0
        %4455 = vmatprep.subr.bf16.mxu0 0
        %4456 = vmatpush1.bf16.msra.mxu0 0
        %4457 = vmatprep.subr.bf16.mxu0 0
        %4458 = vmatpush1.bf16.msra.mxu0 0
        %4459 = vmatprep.subr.bf16.mxu0 0
        %4460 = vmatpush1.bf16.msra.mxu0 0
        %4461 = vmatprep.subr.bf16.mxu0 0
        %4462 = vmatpush1.bf16.msra.mxu0 0
        %4463 = vmatprep.subr.bf16.mxu0 0
        %4464 = vmatpush1.bf16.msra.mxu0 0
        %4465 = vmatprep.subr.bf16.mxu0 0
        %4466 = vmatpush1.bf16.msra.mxu0 0
        %4467 = vmatprep.subr.bf16.mxu0 0
        %4468 = vmatpush1.bf16.msra.mxu0 0
        %4469 = vmatprep.subr.bf16.mxu0 0
        %4470 = vmatpush1.bf16.msra.mxu0 0
        %4471 = vmatprep.subr.bf16.mxu0 0
        %4472 = vmatpush1.bf16.msra.mxu0 0
        %4473 = vmatprep.subr.bf16.mxu0 0
        %4474 = vmatpush1.bf16.msra.mxu0 0
        %4475 = vmatprep.subr.bf16.mxu0 0
        %4476 = vmatpush1.bf16.msra.mxu0 0
        %4477 = vmatprep.subr.bf16.mxu0 0
        %4478 = vmatpush1.bf16.msra.mxu0 0
        %4479 = vmatprep.mubr.bf16.mxu0 0
        %4480 = vmatmul.mubr.bf16.gmra.mrb[0].mxu0 %v4445
        %v4481 = vpop.f32.mrb[0].mxu0
        %v4482 = vadd.f32 0.0, %v4481
        %v4483 = vpop.f32.mrb[0].mxu0
        %v4484 = vadd.f32 0.0, %v4483
        %v4485 = vpop.f32.mrb[0].mxu0
        %v4486 = vpop.f32.mrb[0].mxu0
        %4487 = vdwg.mxu0
        %v4488 = vpack.c.bf16 %v4482, %v4482
        %v4489 = vpack.c.bf16 %v4484, %v4484
        %s4490 = scalar_lea.vmem %s25, 256
        %v4491 = vld [vmem:[%s4490] sm:$0xff]
        %v4492 = vld [vmem:[%s4490 + $0x8] sm:$0xff]
        %v4493 = vld [vmem:[%s4490 + $0x10] sm:$0xff]
        %v4494 = vld [vmem:[%s4490 + $0x18] sm:$0xff]
        %v4495 = vld [vmem:[%s4490 + $0x20] sm:$0xff]
        %v4496 = vld [vmem:[%s4490 + $0x28] sm:$0xff]
        %v4497 = vld [vmem:[%s4490 + $0x30] sm:$0xff]
        %v4498 = vld [vmem:[%s4490 + $0x38] sm:$0xff]
        %v4499 = vld [vmem:[%s4490 + $0x40] sm:$0xff]
        %v4500 = vld [vmem:[%s4490 + $0x48] sm:$0xff]
        %v4501 = vld [vmem:[%s4490 + $0x50] sm:$0xff]
        %v4502 = vld [vmem:[%s4490 + $0x58] sm:$0xff]
        %v4503 = vld [vmem:[%s4490 + $0x60] sm:$0xff]
        %v4504 = vld [vmem:[%s4490 + $0x68] sm:$0xff]
        %v4505 = vld [vmem:[%s4490 + $0x70] sm:$0xff]
        %v4506 = vld [vmem:[%s4490 + $0x78] sm:$0xff]
        %v4507 = vld [vmem:[%s4490 + $0x80] sm:$0xff]
        %v4508 = vld [vmem:[%s4490 + $0x88] sm:$0xff]
        %v4509 = vld [vmem:[%s4490 + $0x90] sm:$0xff]
        %v4510 = vld [vmem:[%s4490 + $0x98] sm:$0xff]
        %v4511 = vld [vmem:[%s4490 + $0xa0] sm:$0xff]
        %v4512 = vld [vmem:[%s4490 + $0xa8] sm:$0xff]
        %v4513 = vld [vmem:[%s4490 + $0xb0] sm:$0xff]
        %v4514 = vld [vmem:[%s4490 + $0xb8] sm:$0xff]
        %v4515 = vld [vmem:[%s4490 + $0xc0] sm:$0xff]
        %v4516 = vld [vmem:[%s4490 + $0xc8] sm:$0xff]
        %v4517 = vld [vmem:[%s4490 + $0xd0] sm:$0xff]
        %v4518 = vld [vmem:[%s4490 + $0xd8] sm:$0xff]
        %v4519 = vld [vmem:[%s4490 + $0xe0] sm:$0xff]
        %v4520 = vld [vmem:[%s4490 + $0xe8] sm:$0xff]
        %v4521 = vld [vmem:[%s4490 + $0xf0] sm:$0xff]
        %v4522 = vld [vmem:[%s4490 + $0xf8] sm:$0xff]
        %v4555 = vunpack.c.l.b16 %v4491
        %v4556 = vunpack.c.h.b16 %v4491
        %v4557 = vunpack.c.l.b16 %v4492
        %v4558 = vunpack.c.h.b16 %v4492
        %v4559 = vunpack.c.l.b16 %v4493
        %v4560 = vunpack.c.h.b16 %v4493
        %v4561 = vunpack.c.l.b16 %v4494
        %v4562 = vunpack.c.h.b16 %v4494
        %v4563 = vunpack.c.l.b16 %v4495
        %v4564 = vunpack.c.h.b16 %v4495
        %v4565 = vunpack.c.l.b16 %v4496
        %v4566 = vunpack.c.h.b16 %v4496
        %v4567 = vunpack.c.l.b16 %v4497
        %v4568 = vunpack.c.h.b16 %v4497
        %v4569 = vunpack.c.l.b16 %v4498
        %v4570 = vunpack.c.h.b16 %v4498
        %v4571 = vunpack.c.l.b16 %v4499
        %v4572 = vunpack.c.h.b16 %v4499
        %v4573 = vunpack.c.l.b16 %v4500
        %v4574 = vunpack.c.h.b16 %v4500
        %v4575 = vunpack.c.l.b16 %v4501
        %v4576 = vunpack.c.h.b16 %v4501
        %v4577 = vunpack.c.l.b16 %v4502
        %v4578 = vunpack.c.h.b16 %v4502
        %v4579 = vunpack.c.l.b16 %v4503
        %v4580 = vunpack.c.h.b16 %v4503
        %v4581 = vunpack.c.l.b16 %v4504
        %v4582 = vunpack.c.h.b16 %v4504
        %v4583 = vunpack.c.l.b16 %v4505
        %v4584 = vunpack.c.h.b16 %v4505
        %v4585 = vunpack.c.l.b16 %v4506
        %v4586 = vunpack.c.h.b16 %v4506
        %v4587 = vunpack.c.l.b16 %v4507
        %v4588 = vunpack.c.h.b16 %v4507
        %v4589 = vunpack.c.l.b16 %v4508
        %v4590 = vunpack.c.h.b16 %v4508
        %v4591 = vunpack.c.l.b16 %v4509
        %v4592 = vunpack.c.h.b16 %v4509
        %v4593 = vunpack.c.l.b16 %v4510
        %v4594 = vunpack.c.h.b16 %v4510
        %v4595 = vunpack.c.l.b16 %v4511
        %v4596 = vunpack.c.h.b16 %v4511
        %v4597 = vunpack.c.l.b16 %v4512
        %v4598 = vunpack.c.h.b16 %v4512
        %v4599 = vunpack.c.l.b16 %v4513
        %v4600 = vunpack.c.h.b16 %v4513
        %v4601 = vunpack.c.l.b16 %v4514
        %v4602 = vunpack.c.h.b16 %v4514
        %v4603 = vunpack.c.l.b16 %v4515
        %v4604 = vunpack.c.h.b16 %v4515
        %v4605 = vunpack.c.l.b16 %v4516
        %v4606 = vunpack.c.h.b16 %v4516
        %v4607 = vunpack.c.l.b16 %v4517
        %v4608 = vunpack.c.h.b16 %v4517
        %v4609 = vunpack.c.l.b16 %v4518
        %v4610 = vunpack.c.h.b16 %v4518
        %v4611 = vunpack.c.l.b16 %v4519
        %v4612 = vunpack.c.h.b16 %v4519
        %v4613 = vunpack.c.l.b16 %v4520
        %v4614 = vunpack.c.h.b16 %v4520
        %v4615 = vunpack.c.l.b16 %v4521
        %v4616 = vunpack.c.h.b16 %v4521
        %v4617 = vunpack.c.l.b16 %v4522
        %v4618 = vunpack.c.h.b16 %v4522
        %v4619 = vpack.c.b16 %v4557, %v4555
        %v4620 = vpack.c.b16 %v4558, %v4556
        %v4621 = vpack.c.b16 %v4561, %v4559
        %v4622 = vpack.c.b16 %v4562, %v4560
        %v4623 = vpack.c.b16 %v4565, %v4563
        %v4624 = vpack.c.b16 %v4566, %v4564
        %v4625 = vpack.c.b16 %v4569, %v4567
        %v4626 = vpack.c.b16 %v4570, %v4568
        %v4627 = vpack.c.b16 %v4573, %v4571
        %v4628 = vpack.c.b16 %v4574, %v4572
        %v4629 = vpack.c.b16 %v4577, %v4575
        %v4630 = vpack.c.b16 %v4578, %v4576
        %v4631 = vpack.c.b16 %v4581, %v4579
        %v4632 = vpack.c.b16 %v4582, %v4580
        %v4633 = vpack.c.b16 %v4585, %v4583
        %v4634 = vpack.c.b16 %v4586, %v4584
        %v4635 = vpack.c.b16 %v4589, %v4587
        %v4636 = vpack.c.b16 %v4590, %v4588
        %v4637 = vpack.c.b16 %v4593, %v4591
        %v4638 = vpack.c.b16 %v4594, %v4592
        %v4639 = vpack.c.b16 %v4597, %v4595
        %v4640 = vpack.c.b16 %v4598, %v4596
        %v4641 = vpack.c.b16 %v4601, %v4599
        %v4642 = vpack.c.b16 %v4602, %v4600
        %v4643 = vpack.c.b16 %v4605, %v4603
        %v4644 = vpack.c.b16 %v4606, %v4604
        %v4645 = vpack.c.b16 %v4609, %v4607
        %v4646 = vpack.c.b16 %v4610, %v4608
        %v4647 = vpack.c.b16 %v4613, %v4611
        %v4648 = vpack.c.b16 %v4614, %v4612
        %v4649 = vpack.c.b16 %v4617, %v4615
        %v4650 = vpack.c.b16 %v4618, %v4616
        %4683 = vmatprep.subr.bf16.mxu0 %v4620
        %4684 = vmatpush1.bf16.msra.mxu0 %v4619
        %4685 = vmatprep.subr.bf16.mxu0 %v4622
        %4686 = vmatpush1.bf16.msra.mxu0 %v4621
        %4687 = vmatprep.subr.bf16.mxu0 %v4624
        %4688 = vmatpush1.bf16.msra.mxu0 %v4623
        %4689 = vmatprep.subr.bf16.mxu0 %v4626
        %4690 = vmatpush1.bf16.msra.mxu0 %v4625
        %4691 = vmatprep.subr.bf16.mxu0 %v4628
        %4692 = vmatpush1.bf16.msra.mxu0 %v4627
        %4693 = vmatprep.subr.bf16.mxu0 %v4630
        %4694 = vmatpush1.bf16.msra.mxu0 %v4629
        %4695 = vmatprep.subr.bf16.mxu0 %v4632
        %4696 = vmatpush1.bf16.msra.mxu0 %v4631
        %4697 = vmatprep.subr.bf16.mxu0 %v4634
        %4698 = vmatpush1.bf16.msra.mxu0 %v4633
        %4699 = vmatprep.subr.bf16.mxu0 %v4636
        %4700 = vmatpush1.bf16.msra.mxu0 %v4635
        %4701 = vmatprep.subr.bf16.mxu0 %v4638
        %4702 = vmatpush1.bf16.msra.mxu0 %v4637
        %4703 = vmatprep.subr.bf16.mxu0 %v4640
        %4704 = vmatpush1.bf16.msra.mxu0 %v4639
        %4705 = vmatprep.subr.bf16.mxu0 %v4642
        %4706 = vmatpush1.bf16.msra.mxu0 %v4641
        %4707 = vmatprep.subr.bf16.mxu0 %v4644
        %4708 = vmatpush1.bf16.msra.mxu0 %v4643
        %4709 = vmatprep.subr.bf16.mxu0 %v4646
        %4710 = vmatpush1.bf16.msra.mxu0 %v4645
        %4711 = vmatprep.subr.bf16.mxu0 %v4648
        %4712 = vmatpush1.bf16.msra.mxu0 %v4647
        %4713 = vmatprep.subr.bf16.mxu0 %v4650
        %4714 = vmatpush1.bf16.msra.mxu0 %v4649
        %4715 = vmatprep.mubr.bf16.mxu0 %v4489
        %4716 = vmatmul.mubr.bf16.gmra.mrb[0].mxu0 %v4488
        %v4717 = vpop.f32.mrb[0].mxu0
        %v4718 = vadd.f32 0.0, %v4717
        %v4719 = vpop.f32.mrb[0].mxu0
        %v4720 = vadd.f32 0.0, %v4719
        %v4721 = vpop.f32.mrb[0].mxu0
        %v4722 = vpop.f32.mrb[0].mxu0
        %4723 = vdwg.mxu0
        %v4756 = vunpack.c.l.b16 %v4410
        %v4757 = vunpack.c.h.b16 %v4410
        %v4758 = vunpack.c.l.b16 %v4411
        %v4759 = vunpack.c.h.b16 %v4411
        %v4760 = vunpack.c.l.b16 %v4412
        %v4761 = vunpack.c.h.b16 %v4412
        %v4762 = vunpack.c.l.b16 %v4413
        %v4763 = vunpack.c.h.b16 %v4413
        %v4764 = vunpack.c.l.b16 %v4414
        %v4765 = vunpack.c.h.b16 %v4414
        %v4766 = vunpack.c.l.b16 %v4415
        %v4767 = vunpack.c.h.b16 %v4415
        %v4768 = vunpack.c.l.b16 %v4416
        %v4769 = vunpack.c.h.b16 %v4416
        %v4770 = vunpack.c.l.b16 %v4417
        %v4771 = vunpack.c.h.b16 %v4417
        %v4772 = vunpack.c.l.b16 %v4418
        %v4773 = vunpack.c.h.b16 %v4418
        %v4774 = vunpack.c.l.b16 %v4419
        %v4775 = vunpack.c.h.b16 %v4419
        %v4776 = vunpack.c.l.b16 %v4420
        %v4777 = vunpack.c.h.b16 %v4420
        %v4778 = vunpack.c.l.b16 %v4421
        %v4779 = vunpack.c.h.b16 %v4421
        %v4780 = vunpack.c.l.b16 %v4422
        %v4781 = vunpack.c.h.b16 %v4422
        %v4782 = vunpack.c.l.b16 %v4423
        %v4783 = vunpack.c.h.b16 %v4423
        %v4784 = vunpack.c.l.b16 %v4424
        %v4785 = vunpack.c.h.b16 %v4424
        %v4786 = vunpack.c.l.b16 %v4425
        %v4787 = vunpack.c.h.b16 %v4425
        %v4788 = vunpack.c.l.b16 %v4426
        %v4789 = vunpack.c.h.b16 %v4426
        %v4790 = vunpack.c.l.b16 %v4427
        %v4791 = vunpack.c.h.b16 %v4427
        %v4792 = vunpack.c.l.b16 %v4428
        %v4793 = vunpack.c.h.b16 %v4428
        %v4794 = vunpack.c.l.b16 %v4429
        %v4795 = vunpack.c.h.b16 %v4429
        %v4796 = vunpack.c.l.b16 %v4430
        %v4797 = vunpack.c.h.b16 %v4430
        %v4798 = vunpack.c.l.b16 %v4431
        %v4799 = vunpack.c.h.b16 %v4431
        %v4800 = vunpack.c.l.b16 %v4432
        %v4801 = vunpack.c.h.b16 %v4432
        %v4802 = vunpack.c.l.b16 %v4433
        %v4803 = vunpack.c.h.b16 %v4433
        %v4804 = vunpack.c.l.b16 %v4434
        %v4805 = vunpack.c.h.b16 %v4434
        %v4806 = vunpack.c.l.b16 %v4435
        %v4807 = vunpack.c.h.b16 %v4435
        %v4808 = vunpack.c.l.b16 %v4436
        %v4809 = vunpack.c.h.b16 %v4436
        %v4810 = vunpack.c.l.b16 %v4437
        %v4811 = vunpack.c.h.b16 %v4437
        %v4812 = vunpack.c.l.b16 %v4438
        %v4813 = vunpack.c.h.b16 %v4438
        %v4814 = vunpack.c.l.b16 %v4439
        %v4815 = vunpack.c.h.b16 %v4439
        %v4816 = vunpack.c.l.b16 %v4440
        %v4817 = vunpack.c.h.b16 %v4440
        %v4818 = vunpack.c.l.b16 %v4441
        %v4819 = vunpack.c.h.b16 %v4441
        %v4820 = vpack.c.b16 %v4758, %v4756
        %v4821 = vpack.c.b16 %v4759, %v4757
        %v4822 = vpack.c.b16 %v4762, %v4760
        %v4823 = vpack.c.b16 %v4763, %v4761
        %v4824 = vpack.c.b16 %v4766, %v4764
        %v4825 = vpack.c.b16 %v4767, %v4765
        %v4826 = vpack.c.b16 %v4770, %v4768
        %v4827 = vpack.c.b16 %v4771, %v4769
        %v4828 = vpack.c.b16 %v4774, %v4772
        %v4829 = vpack.c.b16 %v4775, %v4773
        %v4830 = vpack.c.b16 %v4778, %v4776
        %v4831 = vpack.c.b16 %v4779, %v4777
        %v4832 = vpack.c.b16 %v4782, %v4780
        %v4833 = vpack.c.b16 %v4783, %v4781
        %v4834 = vpack.c.b16 %v4786, %v4784
        %v4835 = vpack.c.b16 %v4787, %v4785
        %v4836 = vpack.c.b16 %v4790, %v4788
        %v4837 = vpack.c.b16 %v4791, %v4789
        %v4838 = vpack.c.b16 %v4794, %v4792
        %v4839 = vpack.c.b16 %v4795, %v4793
        %v4840 = vpack.c.b16 %v4798, %v4796
        %v4841 = vpack.c.b16 %v4799, %v4797
        %v4842 = vpack.c.b16 %v4802, %v4800
        %v4843 = vpack.c.b16 %v4803, %v4801
        %v4844 = vpack.c.b16 %v4806, %v4804
        %v4845 = vpack.c.b16 %v4807, %v4805
        %v4846 = vpack.c.b16 %v4810, %v4808
        %v4847 = vpack.c.b16 %v4811, %v4809
        %v4848 = vpack.c.b16 %v4814, %v4812
        %v4849 = vpack.c.b16 %v4815, %v4813
        %v4850 = vpack.c.b16 %v4818, %v4816
        %v4851 = vpack.c.b16 %v4819, %v4817
        %4884 = vmatprep.subr.bf16.mxu0 %v4821
        %4885 = vmatpush1.bf16.msra.mxu0 %v4820
        %4886 = vmatprep.subr.bf16.mxu0 %v4823
        %4887 = vmatpush1.bf16.msra.mxu0 %v4822
        %4888 = vmatprep.subr.bf16.mxu0 %v4825
        %4889 = vmatpush1.bf16.msra.mxu0 %v4824
        %4890 = vmatprep.subr.bf16.mxu0 %v4827
        %4891 = vmatpush1.bf16.msra.mxu0 %v4826
        %4892 = vmatprep.subr.bf16.mxu0 %v4829
        %4893 = vmatpush1.bf16.msra.mxu0 %v4828
        %4894 = vmatprep.subr.bf16.mxu0 %v4831
        %4895 = vmatpush1.bf16.msra.mxu0 %v4830
        %4896 = vmatprep.subr.bf16.mxu0 %v4833
        %4897 = vmatpush1.bf16.msra.mxu0 %v4832
        %4898 = vmatprep.subr.bf16.mxu0 %v4835
        %4899 = vmatpush1.bf16.msra.mxu0 %v4834
        %4900 = vmatprep.subr.bf16.mxu0 %v4837
        %4901 = vmatpush1.bf16.msra.mxu0 %v4836
        %4902 = vmatprep.subr.bf16.mxu0 %v4839
        %4903 = vmatpush1.bf16.msra.mxu0 %v4838
        %4904 = vmatprep.subr.bf16.mxu0 %v4841
        %4905 = vmatpush1.bf16.msra.mxu0 %v4840
        %4906 = vmatprep.subr.bf16.mxu0 %v4843
        %4907 = vmatpush1.bf16.msra.mxu0 %v4842
        %4908 = vmatprep.subr.bf16.mxu0 %v4845
        %4909 = vmatpush1.bf16.msra.mxu0 %v4844
        %4910 = vmatprep.subr.bf16.mxu0 %v4847
        %4911 = vmatpush1.bf16.msra.mxu0 %v4846
        %4912 = vmatprep.subr.bf16.mxu0 %v4849
        %4913 = vmatpush1.bf16.msra.mxu0 %v4848
        %4914 = vmatprep.subr.bf16.mxu0 %v4851
        %4915 = vmatpush1.bf16.msra.mxu0 %v4850
        %4916 = vmatprep.mubr.bf16.mxu0 %v4409
        %4917 = vmatmul.mubr.bf16.gmra.mrb[0].mxu0 %v4408
        %v4918 = vpop.f32.mrb[0].mxu0
        %v4919 = vadd.f32 %v4718, %v4918
        %v4920 = vpop.f32.mrb[0].mxu0
        %v4921 = vadd.f32 %v4720, %v4920
        %v4922 = vpop.f32.mrb[0].mxu0
        %v4923 = vpop.f32.mrb[0].mxu0
        %4924 = vdwg.mxu0
        %s4925 = scalar_lea.vmem [#allocation11], 8
        %v4926 = vld [vmem:[%s4925] sm:$0xf]
        %v4928 = vsel %vm4173, %v4926, 0
        %4930 = vmatprep.subr.bf16.mxu0 %v4362
        %4931 = vmatpush1.bf16.msra.mxu0 %v4361
        %4932 = vmatprep.subr.bf16.mxu0 0
        %4933 = vmatpush1.bf16.msra.mxu0 0
        %4934 = vmatprep.subr.bf16.mxu0 0
        %4935 = vmatpush1.bf16.msra.mxu0 0
        %4936 = vmatprep.subr.bf16.mxu0 0
        %4937 = vmatpush1.bf16.msra.mxu0 0
        %4938 = vmatprep.subr.bf16.mxu0 0
        %4939 = vmatpush1.bf16.msra.mxu0 0
        %4940 = vmatprep.subr.bf16.mxu0 0
        %4941 = vmatpush1.bf16.msra.mxu0 0
        %4942 = vmatprep.subr.bf16.mxu0 0
        %4943 = vmatpush1.bf16.msra.mxu0 0
        %4944 = vmatprep.subr.bf16.mxu0 0
        %4945 = vmatpush1.bf16.msra.mxu0 0
        %4946 = vmatprep.subr.bf16.mxu0 0
        %4947 = vmatpush1.bf16.msra.mxu0 0
        %4948 = vmatprep.subr.bf16.mxu0 0
        %4949 = vmatpush1.bf16.msra.mxu0 0
        %4950 = vmatprep.subr.bf16.mxu0 0
        %4951 = vmatpush1.bf16.msra.mxu0 0
        %4952 = vmatprep.subr.bf16.mxu0 0
        %4953 = vmatpush1.bf16.msra.mxu0 0
        %4954 = vmatprep.subr.bf16.mxu0 0
        %4955 = vmatpush1.bf16.msra.mxu0 0
        %4956 = vmatprep.subr.bf16.mxu0 0
        %4957 = vmatpush1.bf16.msra.mxu0 0
        %4958 = vmatprep.subr.bf16.mxu0 0
        %4959 = vmatpush1.bf16.msra.mxu0 0
        %4960 = vmatprep.subr.bf16.mxu0 0
        %4961 = vmatpush1.bf16.msra.mxu0 0
        %4962 = vmatprep.mubr.bf16.mxu0 0
        %4963 = vmatmul.mubr.bf16.gmra.mrb[0].mxu0 %v4928
        %v4964 = vpop.f32.mrb[0].mxu0
        %v4965 = vadd.f32 0.0, %v4964
        %v4966 = vpop.f32.mrb[0].mxu0
        %v4967 = vadd.f32 0.0, %v4966
        %v4968 = vpop.f32.mrb[0].mxu0
        %v4969 = vpop.f32.mrb[0].mxu0
        %4970 = vdwg.mxu0
        %v4971 = vpack.c.bf16 %v4965, %v4965
        %v4972 = vpack.c.bf16 %v4967, %v4967
        %s4973 = scalar_lea.vmem %s25, 512
        %v4974 = vld [vmem:[%s4973] sm:$0xff]
        %v4975 = vld [vmem:[%s4973 + $0x8] sm:$0xff]
        %v4976 = vld [vmem:[%s4973 + $0x10] sm:$0xff]
        %v4977 = vld [vmem:[%s4973 + $0x18] sm:$0xff]
        %v4978 = vld [vmem:[%s4973 + $0x20] sm:$0xff]
        %v4979 = vld [vmem:[%s4973 + $0x28] sm:$0xff]
        %v4980 = vld [vmem:[%s4973 + $0x30] sm:$0xff]
        %v4981 = vld [vmem:[%s4973 + $0x38] sm:$0xff]
        %v4982 = vld [vmem:[%s4973 + $0x40] sm:$0xff]
        %v4983 = vld [vmem:[%s4973 + $0x48] sm:$0xff]
        %v4984 = vld [vmem:[%s4973 + $0x50] sm:$0xff]
        %v4985 = vld [vmem:[%s4973 + $0x58] sm:$0xff]
        %v4986 = vld [vmem:[%s4973 + $0x60] sm:$0xff]
        %v4987 = vld [vmem:[%s4973 + $0x68] sm:$0xff]
        %v4988 = vld [vmem:[%s4973 + $0x70] sm:$0xff]
        %v4989 = vld [vmem:[%s4973 + $0x78] sm:$0xff]
        %v4990 = vld [vmem:[%s4973 + $0x80] sm:$0xff]
        %v4991 = vld [vmem:[%s4973 + $0x88] sm:$0xff]
        %v4992 = vld [vmem:[%s4973 + $0x90] sm:$0xff]
        %v4993 = vld [vmem:[%s4973 + $0x98] sm:$0xff]
        %v4994 = vld [vmem:[%s4973 + $0xa0] sm:$0xff]
        %v4995 = vld [vmem:[%s4973 + $0xa8] sm:$0xff]
        %v4996 = vld [vmem:[%s4973 + $0xb0] sm:$0xff]
        %v4997 = vld [vmem:[%s4973 + $0xb8] sm:$0xff]
        %v4998 = vld [vmem:[%s4973 + $0xc0] sm:$0xff]
        %v4999 = vld [vmem:[%s4973 + $0xc8] sm:$0xff]
        %v5000 = vld [vmem:[%s4973 + $0xd0] sm:$0xff]
        %v5001 = vld [vmem:[%s4973 + $0xd8] sm:$0xff]
        %v5002 = vld [vmem:[%s4973 + $0xe0] sm:$0xff]
        %v5003 = vld [vmem:[%s4973 + $0xe8] sm:$0xff]
        %v5004 = vld [vmem:[%s4973 + $0xf0] sm:$0xff]
        %v5005 = vld [vmem:[%s4973 + $0xf8] sm:$0xff]
        %v5038 = vunpack.c.l.b16 %v4974
        %v5039 = vunpack.c.h.b16 %v4974
        %v5040 = vunpack.c.l.b16 %v4975
        %v5041 = vunpack.c.h.b16 %v4975
        %v5042 = vunpack.c.l.b16 %v4976
        %v5043 = vunpack.c.h.b16 %v4976
        %v5044 = vunpack.c.l.b16 %v4977
        %v5045 = vunpack.c.h.b16 %v4977
        %v5046 = vunpack.c.l.b16 %v4978
        %v5047 = vunpack.c.h.b16 %v4978
        %v5048 = vunpack.c.l.b16 %v4979
        %v5049 = vunpack.c.h.b16 %v4979
        %v5050 = vunpack.c.l.b16 %v4980
        %v5051 = vunpack.c.h.b16 %v4980
        %v5052 = vunpack.c.l.b16 %v4981
        %v5053 = vunpack.c.h.b16 %v4981
        %v5054 = vunpack.c.l.b16 %v4982
        %v5055 = vunpack.c.h.b16 %v4982
        %v5056 = vunpack.c.l.b16 %v4983
        %v5057 = vunpack.c.h.b16 %v4983
        %v5058 = vunpack.c.l.b16 %v4984
        %v5059 = vunpack.c.h.b16 %v4984
        %v5060 = vunpack.c.l.b16 %v4985
        %v5061 = vunpack.c.h.b16 %v4985
        %v5062 = vunpack.c.l.b16 %v4986
        %v5063 = vunpack.c.h.b16 %v4986
        %v5064 = vunpack.c.l.b16 %v4987
        %v5065 = vunpack.c.h.b16 %v4987
        %v5066 = vunpack.c.l.b16 %v4988
        %v5067 = vunpack.c.h.b16 %v4988
        %v5068 = vunpack.c.l.b16 %v4989
        %v5069 = vunpack.c.h.b16 %v4989
        %v5070 = vunpack.c.l.b16 %v4990
        %v5071 = vunpack.c.h.b16 %v4990
        %v5072 = vunpack.c.l.b16 %v4991
        %v5073 = vunpack.c.h.b16 %v4991
        %v5074 = vunpack.c.l.b16 %v4992
        %v5075 = vunpack.c.h.b16 %v4992
        %v5076 = vunpack.c.l.b16 %v4993
        %v5077 = vunpack.c.h.b16 %v4993
        %v5078 = vunpack.c.l.b16 %v4994
        %v5079 = vunpack.c.h.b16 %v4994
        %v5080 = vunpack.c.l.b16 %v4995
        %v5081 = vunpack.c.h.b16 %v4995
        %v5082 = vunpack.c.l.b16 %v4996
        %v5083 = vunpack.c.h.b16 %v4996
        %v5084 = vunpack.c.l.b16 %v4997
        %v5085 = vunpack.c.h.b16 %v4997
        %v5086 = vunpack.c.l.b16 %v4998
        %v5087 = vunpack.c.h.b16 %v4998
        %v5088 = vunpack.c.l.b16 %v4999
        %v5089 = vunpack.c.h.b16 %v4999
        %v5090 = vunpack.c.l.b16 %v5000
        %v5091 = vunpack.c.h.b16 %v5000
        %v5092 = vunpack.c.l.b16 %v5001
        %v5093 = vunpack.c.h.b16 %v5001
        %v5094 = vunpack.c.l.b16 %v5002
        %v5095 = vunpack.c.h.b16 %v5002
        %v5096 = vunpack.c.l.b16 %v5003
        %v5097 = vunpack.c.h.b16 %v5003
        %v5098 = vunpack.c.l.b16 %v5004
        %v5099 = vunpack.c.h.b16 %v5004
        %v5100 = vunpack.c.l.b16 %v5005
        %v5101 = vunpack.c.h.b16 %v5005
        %v5102 = vpack.c.b16 %v5040, %v5038
        %v5103 = vpack.c.b16 %v5041, %v5039
        %v5104 = vpack.c.b16 %v5044, %v5042
        %v5105 = vpack.c.b16 %v5045, %v5043
        %v5106 = vpack.c.b16 %v5048, %v5046
        %v5107 = vpack.c.b16 %v5049, %v5047
        %v5108 = vpack.c.b16 %v5052, %v5050
        %v5109 = vpack.c.b16 %v5053, %v5051
        %v5110 = vpack.c.b16 %v5056, %v5054
        %v5111 = vpack.c.b16 %v5057, %v5055
        %v5112 = vpack.c.b16 %v5060, %v5058
        %v5113 = vpack.c.b16 %v5061, %v5059
        %v5114 = vpack.c.b16 %v5064, %v5062
        %v5115 = vpack.c.b16 %v5065, %v5063
        %v5116 = vpack.c.b16 %v5068, %v5066
        %v5117 = vpack.c.b16 %v5069, %v5067
        %v5118 = vpack.c.b16 %v5072, %v5070
        %v5119 = vpack.c.b16 %v5073, %v5071
        %v5120 = vpack.c.b16 %v5076, %v5074
        %v5121 = vpack.c.b16 %v5077, %v5075
        %v5122 = vpack.c.b16 %v5080, %v5078
        %v5123 = vpack.c.b16 %v5081, %v5079
        %v5124 = vpack.c.b16 %v5084, %v5082
        %v5125 = vpack.c.b16 %v5085, %v5083
        %v5126 = vpack.c.b16 %v5088, %v5086
        %v5127 = vpack.c.b16 %v5089, %v5087
        %v5128 = vpack.c.b16 %v5092, %v5090
        %v5129 = vpack.c.b16 %v5093, %v5091
        %v5130 = vpack.c.b16 %v5096, %v5094
        %v5131 = vpack.c.b16 %v5097, %v5095
        %v5132 = vpack.c.b16 %v5100, %v5098
        %v5133 = vpack.c.b16 %v5101, %v5099
        %5166 = vmatprep.subr.bf16.mxu0 %v5103
        %5167 = vmatpush1.bf16.msra.mxu0 %v5102
        %5168 = vmatprep.subr.bf16.mxu0 %v5105
        %5169 = vmatpush1.bf16.msra.mxu0 %v5104
        %5170 = vmatprep.subr.bf16.mxu0 %v5107
        %5171 = vmatpush1.bf16.msra.mxu0 %v5106
        %5172 = vmatprep.subr.bf16.mxu0 %v5109
        %5173 = vmatpush1.bf16.msra.mxu0 %v5108
        %5174 = vmatprep.subr.bf16.mxu0 %v5111
        %5175 = vmatpush1.bf16.msra.mxu0 %v5110
        %5176 = vmatprep.subr.bf16.mxu0 %v5113
        %5177 = vmatpush1.bf16.msra.mxu0 %v5112
        %5178 = vmatprep.subr.bf16.mxu0 %v5115
        %5179 = vmatpush1.bf16.msra.mxu0 %v5114
        %5180 = vmatprep.subr.bf16.mxu0 %v5117
        %5181 = vmatpush1.bf16.msra.mxu0 %v5116
        %5182 = vmatprep.subr.bf16.mxu0 %v5119
        %5183 = vmatpush1.bf16.msra.mxu0 %v5118
        %5184 = vmatprep.subr.bf16.mxu0 %v5121
        %5185 = vmatpush1.bf16.msra.mxu0 %v5120
        %5186 = vmatprep.subr.bf16.mxu0 %v5123
        %5187 = vmatpush1.bf16.msra.mxu0 %v5122
        %5188 = vmatprep.subr.bf16.mxu0 %v5125
        %5189 = vmatpush1.bf16.msra.mxu0 %v5124
        %5190 = vmatprep.subr.bf16.mxu0 %v5127
        %5191 = vmatpush1.bf16.msra.mxu0 %v5126
        %5192 = vmatprep.subr.bf16.mxu0 %v5129
        %5193 = vmatpush1.bf16.msra.mxu0 %v5128
        %5194 = vmatprep.subr.bf16.mxu0 %v5131
        %5195 = vmatpush1.bf16.msra.mxu0 %v5130
        %5196 = vmatprep.subr.bf16.mxu0 %v5133
        %5197 = vmatpush1.bf16.msra.mxu0 %v5132
        %5198 = vmatprep.mubr.bf16.mxu0 %v4972
        %5199 = vmatmul.mubr.bf16.gmra.mrb[0].mxu0 %v4971
        %v5200 = vpop.f32.mrb[0].mxu0
        %v5201 = vadd.f32 0.0, %v5200
        %v5202 = vpop.f32.mrb[0].mxu0
        %v5203 = vadd.f32 0.0, %v5202
        %v5204 = vpop.f32.mrb[0].mxu0
        %v5205 = vpop.f32.mrb[0].mxu0
        %5206 = vdwg.mxu0
        %v5207 = vadd.f32 %v4919, %v5201
        %v5208 = vadd.f32 %v4921, %v5203
        %s5209 = scalar_lea.vmem [#allocation11], 12
        %v5210 = vld [vmem:[%s5209] sm:$0xf]
        %v5212 = vsel %vm4173, %v5210, 0
        %5214 = vmatprep.subr.bf16.mxu0 %v4362
        %5215 = vmatpush1.bf16.msra.mxu0 %v4361
        %5216 = vmatprep.subr.bf16.mxu0 0
        %5217 = vmatpush1.bf16.msra.mxu0 0
        %5218 = vmatprep.subr.bf16.mxu0 0
        %5219 = vmatpush1.bf16.msra.mxu0 0
        %5220 = vmatprep.subr.bf16.mxu0 0
        %5221 = vmatpush1.bf16.msra.mxu0 0
        %5222 = vmatprep.subr.bf16.mxu0 0
        %5223 = vmatpush1.bf16.msra.mxu0 0
        %5224 = vmatprep.subr.bf16.mxu0 0
        %5225 = vmatpush1.bf16.msra.mxu0 0
        %5226 = vmatprep.subr.bf16.mxu0 0
        %5227 = vmatpush1.bf16.msra.mxu0 0
        %5228 = vmatprep.subr.bf16.mxu0 0
        %5229 = vmatpush1.bf16.msra.mxu0 0
        %5230 = vmatprep.subr.bf16.mxu0 0
        %5231 = vmatpush1.bf16.msra.mxu0 0
        %5232 = vmatprep.subr.bf16.mxu0 0
        %5233 = vmatpush1.bf16.msra.mxu0 0
        %5234 = vmatprep.subr.bf16.mxu0 0
        %5235 = vmatpush1.bf16.msra.mxu0 0
        %5236 = vmatprep.subr.bf16.mxu0 0
        %5237 = vmatpush1.bf16.msra.mxu0 0
        %5238 = vmatprep.subr.bf16.mxu0 0
        %5239 = vmatpush1.bf16.msra.mxu0 0
        %5240 = vmatprep.subr.bf16.mxu0 0
        %5241 = vmatpush1.bf16.msra.mxu0 0
        %5242 = vmatprep.subr.bf16.mxu0 0
        %5243 = vmatpush1.bf16.msra.mxu0 0
        %5244 = vmatprep.subr.bf16.mxu0 0
        %5245 = vmatpush1.bf16.msra.mxu0 0
        %5246 = vmatprep.mubr.bf16.mxu0 0
        %5247 = vmatmul.mubr.bf16.gmra.mrb[0].mxu0 %v5212
        %v5248 = vpop.f32.mrb[0].mxu0
        %v5249 = vadd.f32 0.0, %v5248
        %v5250 = vpop.f32.mrb[0].mxu0
        %v5251 = vadd.f32 0.0, %v5250
        %v5252 = vpop.f32.mrb[0].mxu0
        %v5253 = vpop.f32.mrb[0].mxu0
        %5254 = vdwg.mxu0
        %v5255 = vpack.c.bf16 %v5249, %v5249
        %v5256 = vpack.c.bf16 %v5251, %v5251
        %s5257 = scalar_lea.vmem %s25, 768
        %v5258 = vld [vmem:[%s5257] sm:$0xff]
        %v5259 = vld [vmem:[%s5257 + $0x8] sm:$0xff]
        %v5260 = vld [vmem:[%s5257 + $0x10] sm:$0xff]
        %v5261 = vld [vmem:[%s5257 + $0x18] sm:$0xff]
        %v5262 = vld [vmem:[%s5257 + $0x20] sm:$0xff]
        %v5263 = vld [vmem:[%s5257 + $0x28] sm:$0xff]
        %v5264 = vld [vmem:[%s5257 + $0x30] sm:$0xff]
        %v5265 = vld [vmem:[%s5257 + $0x38] sm:$0xff]
        %v5266 = vld [vmem:[%s5257 + $0x40] sm:$0xff]
        %v5267 = vld [vmem:[%s5257 + $0x48] sm:$0xff]
        %v5268 = vld [vmem:[%s5257 + $0x50] sm:$0xff]
        %v5269 = vld [vmem:[%s5257 + $0x58] sm:$0xff]
        %v5270 = vld [vmem:[%s5257 + $0x60] sm:$0xff]
        %v5271 = vld [vmem:[%s5257 + $0x68] sm:$0xff]
        %v5272 = vld [vmem:[%s5257 + $0x70] sm:$0xff]
        %v5273 = vld [vmem:[%s5257 + $0x78] sm:$0xff]
        %v5274 = vld [vmem:[%s5257 + $0x80] sm:$0xff]
        %v5275 = vld [vmem:[%s5257 + $0x88] sm:$0xff]
        %v5276 = vld [vmem:[%s5257 + $0x90] sm:$0xff]
        %v5277 = vld [vmem:[%s5257 + $0x98] sm:$0xff]
        %v5278 = vld [vmem:[%s5257 + $0xa0] sm:$0xff]
        %v5279 = vld [vmem:[%s5257 + $0xa8] sm:$0xff]
        %v5280 = vld [vmem:[%s5257 + $0xb0] sm:$0xff]
        %v5281 = vld [vmem:[%s5257 + $0xb8] sm:$0xff]
        %v5282 = vld [vmem:[%s5257 + $0xc0] sm:$0xff]
        %v5283 = vld [vmem:[%s5257 + $0xc8] sm:$0xff]
        %v5284 = vld [vmem:[%s5257 + $0xd0] sm:$0xff]
        %v5285 = vld [vmem:[%s5257 + $0xd8] sm:$0xff]
        %v5286 = vld [vmem:[%s5257 + $0xe0] sm:$0xff]
        %v5287 = vld [vmem:[%s5257 + $0xe8] sm:$0xff]
        %v5288 = vld [vmem:[%s5257 + $0xf0] sm:$0xff]
        %v5289 = vld [vmem:[%s5257 + $0xf8] sm:$0xff]
        %v5322 = vunpack.c.l.b16 %v5258
        %v5323 = vunpack.c.h.b16 %v5258
        %v5324 = vunpack.c.l.b16 %v5259
        %v5325 = vunpack.c.h.b16 %v5259
        %v5326 = vunpack.c.l.b16 %v5260
        %v5327 = vunpack.c.h.b16 %v5260
        %v5328 = vunpack.c.l.b16 %v5261
        %v5329 = vunpack.c.h.b16 %v5261
        %v5330 = vunpack.c.l.b16 %v5262
        %v5331 = vunpack.c.h.b16 %v5262
        %v5332 = vunpack.c.l.b16 %v5263
        %v5333 = vunpack.c.h.b16 %v5263
        %v5334 = vunpack.c.l.b16 %v5264
        %v5335 = vunpack.c.h.b16 %v5264
        %v5336 = vunpack.c.l.b16 %v5265
        %v5337 = vunpack.c.h.b16 %v5265
        %v5338 = vunpack.c.l.b16 %v5266
        %v5339 = vunpack.c.h.b16 %v5266
        %v5340 = vunpack.c.l.b16 %v5267
        %v5341 = vunpack.c.h.b16 %v5267
        %v5342 = vunpack.c.l.b16 %v5268
        %v5343 = vunpack.c.h.b16 %v5268
        %v5344 = vunpack.c.l.b16 %v5269
        %v5345 = vunpack.c.h.b16 %v5269
        %v5346 = vunpack.c.l.b16 %v5270
        %v5347 = vunpack.c.h.b16 %v5270
        %v5348 = vunpack.c.l.b16 %v5271
        %v5349 = vunpack.c.h.b16 %v5271
        %v5350 = vunpack.c.l.b16 %v5272
        %v5351 = vunpack.c.h.b16 %v5272
        %v5352 = vunpack.c.l.b16 %v5273
        %v5353 = vunpack.c.h.b16 %v5273
        %v5354 = vunpack.c.l.b16 %v5274
        %v5355 = vunpack.c.h.b16 %v5274
        %v5356 = vunpack.c.l.b16 %v5275
        %v5357 = vunpack.c.h.b16 %v5275
        %v5358 = vunpack.c.l.b16 %v5276
        %v5359 = vunpack.c.h.b16 %v5276
        %v5360 = vunpack.c.l.b16 %v5277
        %v5361 = vunpack.c.h.b16 %v5277
        %v5362 = vunpack.c.l.b16 %v5278
        %v5363 = vunpack.c.h.b16 %v5278
        %v5364 = vunpack.c.l.b16 %v5279
        %v5365 = vunpack.c.h.b16 %v5279
        %v5366 = vunpack.c.l.b16 %v5280
        %v5367 = vunpack.c.h.b16 %v5280
        %v5368 = vunpack.c.l.b16 %v5281
        %v5369 = vunpack.c.h.b16 %v5281
        %v5370 = vunpack.c.l.b16 %v5282
        %v5371 = vunpack.c.h.b16 %v5282
        %v5372 = vunpack.c.l.b16 %v5283
        %v5373 = vunpack.c.h.b16 %v5283
        %v5374 = vunpack.c.l.b16 %v5284
        %v5375 = vunpack.c.h.b16 %v5284
        %v5376 = vunpack.c.l.b16 %v5285
        %v5377 = vunpack.c.h.b16 %v5285
        %v5378 = vunpack.c.l.b16 %v5286
        %v5379 = vunpack.c.h.b16 %v5286
        %v5380 = vunpack.c.l.b16 %v5287
        %v5381 = vunpack.c.h.b16 %v5287
        %v5382 = vunpack.c.l.b16 %v5288
        %v5383 = vunpack.c.h.b16 %v5288
        %v5384 = vunpack.c.l.b16 %v5289
        %v5385 = vunpack.c.h.b16 %v5289
        %v5386 = vpack.c.b16 %v5324, %v5322
        %v5387 = vpack.c.b16 %v5325, %v5323
        %v5388 = vpack.c.b16 %v5328, %v5326
        %v5389 = vpack.c.b16 %v5329, %v5327
        %v5390 = vpack.c.b16 %v5332, %v5330
        %v5391 = vpack.c.b16 %v5333, %v5331
        %v5392 = vpack.c.b16 %v5336, %v5334
        %v5393 = vpack.c.b16 %v5337, %v5335
        %v5394 = vpack.c.b16 %v5340, %v5338
        %v5395 = vpack.c.b16 %v5341, %v5339
        %v5396 = vpack.c.b16 %v5344, %v5342
        %v5397 = vpack.c.b16 %v5345, %v5343
        %v5398 = vpack.c.b16 %v5348, %v5346
        %v5399 = vpack.c.b16 %v5349, %v5347
        %v5400 = vpack.c.b16 %v5352, %v5350
        %v5401 = vpack.c.b16 %v5353, %v5351
        %v5402 = vpack.c.b16 %v5356, %v5354
        %v5403 = vpack.c.b16 %v5357, %v5355
        %v5404 = vpack.c.b16 %v5360, %v5358
        %v5405 = vpack.c.b16 %v5361, %v5359
        %v5406 = vpack.c.b16 %v5364, %v5362
        %v5407 = vpack.c.b16 %v5365, %v5363
        %v5408 = vpack.c.b16 %v5368, %v5366
        %v5409 = vpack.c.b16 %v5369, %v5367
        %v5410 = vpack.c.b16 %v5372, %v5370
        %v5411 = vpack.c.b16 %v5373, %v5371
        %v5412 = vpack.c.b16 %v5376, %v5374
        %v5413 = vpack.c.b16 %v5377, %v5375
        %v5414 = vpack.c.b16 %v5380, %v5378
        %v5415 = vpack.c.b16 %v5381, %v5379
        %v5416 = vpack.c.b16 %v5384, %v5382
        %v5417 = vpack.c.b16 %v5385, %v5383
        %5450 = vmatprep.subr.bf16.mxu0 %v5387
        %5451 = vmatpush1.bf16.msra.mxu0 %v5386
        %5452 = vmatprep.subr.bf16.mxu0 %v5389
        %5453 = vmatpush1.bf16.msra.mxu0 %v5388
        %5454 = vmatprep.subr.bf16.mxu0 %v5391
        %5455 = vmatpush1.bf16.msra.mxu0 %v5390
        %5456 = vmatprep.subr.bf16.mxu0 %v5393
        %5457 = vmatpush1.bf16.msra.mxu0 %v5392
        %5458 = vmatprep.subr.bf16.mxu0 %v5395
        %5459 = vmatpush1.bf16.msra.mxu0 %v5394
        %5460 = vmatprep.subr.bf16.mxu0 %v5397
        %5461 = vmatpush1.bf16.msra.mxu0 %v5396
        %5462 = vmatprep.subr.bf16.mxu0 %v5399
        %5463 = vmatpush1.bf16.msra.mxu0 %v5398
        %5464 = vmatprep.subr.bf16.mxu0 %v5401
        %5465 = vmatpush1.bf16.msra.mxu0 %v5400
        %5466 = vmatprep.subr.bf16.mxu0 %v5403
        %5467 = vmatpush1.bf16.msra.mxu0 %v5402
        %5468 = vmatprep.subr.bf16.mxu0 %v5405
        %5469 = vmatpush1.bf16.msra.mxu0 %v5404
        %5470 = vmatprep.subr.bf16.mxu0 %v5407
        %5471 = vmatpush1.bf16.msra.mxu0 %v5406
        %5472 = vmatprep.subr.bf16.mxu0 %v5409
        %5473 = vmatpush1.bf16.msra.mxu0 %v5408
        %5474 = vmatprep.subr.bf16.mxu0 %v5411
        %5475 = vmatpush1.bf16.msra.mxu0 %v5410
        %5476 = vmatprep.subr.bf16.mxu0 %v5413
        %5477 = vmatpush1.bf16.msra.mxu0 %v5412
        %5478 = vmatprep.subr.bf16.mxu0 %v5415
        %5479 = vmatpush1.bf16.msra.mxu0 %v5414
        %5480 = vmatprep.subr.bf16.mxu0 %v5417
        %5481 = vmatpush1.bf16.msra.mxu0 %v5416
        %5482 = vmatprep.mubr.bf16.mxu0 %v5256
        %5483 = vmatmul.mubr.bf16.gmra.mrb[0].mxu0 %v5255
        %v5484 = vpop.f32.mrb[0].mxu0
        %v5485 = vadd.f32 0.0, %v5484
        %v5486 = vpop.f32.mrb[0].mxu0
        %v5487 = vadd.f32 0.0, %v5486
        %v5488 = vpop.f32.mrb[0].mxu0
        %v5489 = vpop.f32.mrb[0].mxu0
        %5490 = vdwg.mxu0
        %v5491 = vadd.f32 %v5207, %v5485
        %v5492 = vadd.f32 %v5208, %v5487
        %v5493 = vld [vmem:[#allocation13] sm:$0x3]
        %v5495 = vlaneseq
        %v5496 = vshrl.u32 %v5495, 7
        %v5497 = vsub.s32 0, %v5496
        %v5498 = vrot.slane %v5493, %v5497
        %v5499 = vlaneseq
        %v5500 = vshrl.u32 %v5499, 7
        %v5501 = vsub.s32 1, %v5500
        %v5502 = vrot.slane %v5493, %v5501
        %v5505 = vadd.f32 %v5491, %v5498
        %v5506 = vadd.f32 %v5492, %v5502
        %v5507 = vld [vmem:[%s29] sm:$0xf]
        %v5508 = vld [vmem:[%s29 + $0x4] sm:$0xf]
        %v5509 = vld [vmem:[%s29 + $0x8] sm:$0xf]
        %v5510 = vld [vmem:[%s29 + $0xc] sm:$0xf]
        %v5511 = vld [vmem:[%s29 + $0x10] sm:$0xf]
        %v5512 = vld [vmem:[%s29 + $0x14] sm:$0xf]
        %v5513 = vld [vmem:[%s29 + $0x18] sm:$0xf]
        %v5514 = vld [vmem:[%s29 + $0x1c] sm:$0xf]
        %v5515 = vld [vmem:[%s29 + $0x20] sm:$0xf]
        %v5516 = vld [vmem:[%s29 + $0x24] sm:$0xf]
        %v5517 = vld [vmem:[%s29 + $0x28] sm:$0xf]
        %v5518 = vld [vmem:[%s29 + $0x2c] sm:$0xf]
        %v5519 = vld [vmem:[%s29 + $0x30] sm:$0xf]
        %v5520 = vld [vmem:[%s29 + $0x34] sm:$0xf]
        %v5521 = vld [vmem:[%s29 + $0x38] sm:$0xf]
        %v5522 = vld [vmem:[%s29 + $0x3c] sm:$0xf]
        %v5523 = vld [vmem:[%s29 + $0x40] sm:$0xf]
        %v5524 = vld [vmem:[%s29 + $0x44] sm:$0xf]
        %v5525 = vld [vmem:[%s29 + $0x48] sm:$0xf]
        %v5526 = vld [vmem:[%s29 + $0x4c] sm:$0xf]
        %v5527 = vld [vmem:[%s29 + $0x50] sm:$0xf]
        %v5528 = vld [vmem:[%s29 + $0x54] sm:$0xf]
        %v5529 = vld [vmem:[%s29 + $0x58] sm:$0xf]
        %v5530 = vld [vmem:[%s29 + $0x5c] sm:$0xf]
        %v5531 = vld [vmem:[%s29 + $0x60] sm:$0xf]
        %v5532 = vld [vmem:[%s29 + $0x64] sm:$0xf]
        %v5533 = vld [vmem:[%s29 + $0x68] sm:$0xf]
        %v5534 = vld [vmem:[%s29 + $0x6c] sm:$0xf]
        %v5535 = vld [vmem:[%s29 + $0x70] sm:$0xf]
        %v5536 = vld [vmem:[%s29 + $0x74] sm:$0xf]
        %v5537 = vld [vmem:[%s29 + $0x78] sm:$0xf]
        %v5538 = vld [vmem:[%s29 + $0x7c] sm:$0xf]
        %v5539 = vld [vmem:[#allocation14] sm:$0xff]
        %v5540 = vld [vmem:[#allocation14 + $0x8] sm:$0xff]
        %v5541 = vld [vmem:[#allocation14 + $0x10] sm:$0xff]
        %v5542 = vld [vmem:[#allocation14 + $0x18] sm:$0xff]
        %v5543 = vrot.slane %v5505, 4
        %v5544 = vadd.f32 %v5505, %v5543
        %v5545 = vrot.slane %v5544, 2
        %v5546 = vadd.f32 %v5544, %v5545
        %v5547 = vrot.slane %v5546, 1
        %v5548 = vadd.f32 %v5546, %v5547
        %v5549 = vrot.slane %v5506, 4
        %v5550 = vadd.f32 %v5506, %v5549
        %v5551 = vrot.slane %v5550, 2
        %v5552 = vadd.f32 %v5550, %v5551
        %v5553 = vrot.slane %v5552, 1
        %v5554 = vadd.f32 %v5552, %v5553
        %v5555 = vpack.c.bf16 %v5548, %v5548
        %v5556 = vpack.c.bf16 %v5554, %v5554
        %v5589 = vunpack.c.l.b16 %v5507
        %v5590 = vunpack.c.l.b16 %v5508
        %v5591 = vunpack.c.l.b16 %v5509
        %v5592 = vunpack.c.l.b16 %v5510
        %v5593 = vunpack.c.l.b16 %v5511
        %v5594 = vunpack.c.l.b16 %v5512
        %v5595 = vunpack.c.l.b16 %v5513
        %v5596 = vunpack.c.l.b16 %v5514
        %v5597 = vunpack.c.l.b16 %v5515
        %v5598 = vunpack.c.l.b16 %v5516
        %v5599 = vunpack.c.l.b16 %v5517
        %v5600 = vunpack.c.l.b16 %v5518
        %v5601 = vunpack.c.l.b16 %v5519
        %v5602 = vunpack.c.l.b16 %v5520
        %v5603 = vunpack.c.l.b16 %v5521
        %v5604 = vunpack.c.l.b16 %v5522
        %v5605 = vunpack.c.l.b16 %v5523
        %v5606 = vunpack.c.l.b16 %v5524
        %v5607 = vunpack.c.l.b16 %v5525
        %v5608 = vunpack.c.l.b16 %v5526
        %v5609 = vunpack.c.l.b16 %v5527
        %v5610 = vunpack.c.l.b16 %v5528
        %v5611 = vunpack.c.l.b16 %v5529
        %v5612 = vunpack.c.l.b16 %v5530
        %v5613 = vunpack.c.l.b16 %v5531
        %v5614 = vunpack.c.l.b16 %v5532
        %v5615 = vunpack.c.l.b16 %v5533
        %v5616 = vunpack.c.l.b16 %v5534
        %v5617 = vunpack.c.l.b16 %v5535
        %v5618 = vunpack.c.l.b16 %v5536
        %v5619 = vunpack.c.l.b16 %v5537
        %v5620 = vunpack.c.l.b16 %v5538
        %v5621 = vpack.c.b16 %v5590, %v5589
        %v5622 = vpack.c.b16 %v5592, %v5591
        %v5623 = vpack.c.b16 %v5594, %v5593
        %v5624 = vpack.c.b16 %v5596, %v5595
        %v5625 = vpack.c.b16 %v5598, %v5597
        %v5626 = vpack.c.b16 %v5600, %v5599
        %v5627 = vpack.c.b16 %v5602, %v5601
        %v5628 = vpack.c.b16 %v5604, %v5603
        %v5629 = vpack.c.b16 %v5606, %v5605
        %v5630 = vpack.c.b16 %v5608, %v5607
        %v5631 = vpack.c.b16 %v5610, %v5609
        %v5632 = vpack.c.b16 %v5612, %v5611
        %v5633 = vpack.c.b16 %v5614, %v5613
        %v5634 = vpack.c.b16 %v5616, %v5615
        %v5635 = vpack.c.b16 %v5618, %v5617
        %v5636 = vpack.c.b16 %v5620, %v5619
        %5653 = vmatprep.subr.bf16.mxu0 0
        %5654 = vmatpush1.bf16.msra.mxu0 %v5621
        %5655 = vmatprep.subr.bf16.mxu0 0
        %5656 = vmatpush1.bf16.msra.mxu0 %v5622
        %5657 = vmatprep.subr.bf16.mxu0 0
        %5658 = vmatpush1.bf16.msra.mxu0 %v5623
        %5659 = vmatprep.subr.bf16.mxu0 0
        %5660 = vmatpush1.bf16.msra.mxu0 %v5624
        %5661 = vmatprep.subr.bf16.mxu0 0
        %5662 = vmatpush1.bf16.msra.mxu0 %v5625
        %5663 = vmatprep.subr.bf16.mxu0 0
        %5664 = vmatpush1.bf16.msra.mxu0 %v5626
        %5665 = vmatprep.subr.bf16.mxu0 0
        %5666 = vmatpush1.bf16.msra.mxu0 %v5627
        %5667 = vmatprep.subr.bf16.mxu0 0
        %5668 = vmatpush1.bf16.msra.mxu0 %v5628
        %5669 = vmatprep.subr.bf16.mxu0 0
        %5670 = vmatpush1.bf16.msra.mxu0 %v5629
        %5671 = vmatprep.subr.bf16.mxu0 0
        %5672 = vmatpush1.bf16.msra.mxu0 %v5630
        %5673 = vmatprep.subr.bf16.mxu0 0
        %5674 = vmatpush1.bf16.msra.mxu0 %v5631
        %5675 = vmatprep.subr.bf16.mxu0 0
        %5676 = vmatpush1.bf16.msra.mxu0 %v5632
        %5677 = vmatprep.subr.bf16.mxu0 0
        %5678 = vmatpush1.bf16.msra.mxu0 %v5633
        %5679 = vmatprep.subr.bf16.mxu0 0
        %5680 = vmatpush1.bf16.msra.mxu0 %v5634
        %5681 = vmatprep.subr.bf16.mxu0 0
        %5682 = vmatpush1.bf16.msra.mxu0 %v5635
        %5683 = vmatprep.subr.bf16.mxu0 0
        %5684 = vmatpush1.bf16.msra.mxu0 %v5636
        %5685 = vmatprep.mubr.bf16.mxu0 %v5556
        %5686 = vmatmul.mubr.bf16.gmra.mrb[0].mxu0 %v5555
        %v5687 = vpop.f32.mrb[0].mxu0
        %v5688 = vadd.f32 0.0, %v5687
        %v5689 = vpop.f32.mrb[0].mxu0
        %v5690 = vpop.f32.mrb[0].mxu0
        %v5691 = vpop.f32.mrb[0].mxu0
        %5692 = vdwg.mxu0
        %v5693 = vpack.c.bf16 %v5688, %v5688
        %v5698 = vunpack.c.l.b16 %v5539
        %v5699 = vunpack.c.h.b16 %v5539
        %v5700 = vunpack.c.l.b16 %v5540
        %v5701 = vunpack.c.h.b16 %v5540
        %v5702 = vunpack.c.l.b16 %v5541
        %v5703 = vunpack.c.h.b16 %v5541
        %v5704 = vunpack.c.l.b16 %v5542
        %v5705 = vunpack.c.h.b16 %v5542
        %v5706 = vpack.c.b16 %v5700, %v5698
        %v5707 = vpack.c.b16 %v5701, %v5699
        %v5708 = vpack.c.b16 %v5704, %v5702
        %v5709 = vpack.c.b16 %v5705, %v5703
        %v5715 = vsel %vm2792, %v5693, 0
        %5717 = vmatprep.subr.bf16.mxu0 %v5707
        %5718 = vmatpush1.bf16.msra.mxu0 %v5706
        %5719 = vmatprep.subr.bf16.mxu0 %v5709
        %5720 = vmatpush1.bf16.msra.mxu0 %v5708
        %5721 = vmatprep.subr.bf16.mxu0 0
        %5722 = vmatpush1.bf16.msra.mxu0 0
        %5723 = vmatprep.subr.bf16.mxu0 0
        %5724 = vmatpush1.bf16.msra.mxu0 0
        %5725 = vmatprep.subr.bf16.mxu0 0
        %5726 = vmatpush1.bf16.msra.mxu0 0
        %5727 = vmatprep.subr.bf16.mxu0 0
        %5728 = vmatpush1.bf16.msra.mxu0 0
        %5729 = vmatprep.subr.bf16.mxu0 0
        %5730 = vmatpush1.bf16.msra.mxu0 0
        %5731 = vmatprep.subr.bf16.mxu0 0
        %5732 = vmatpush1.bf16.msra.mxu0 0
        %5733 = vmatprep.subr.bf16.mxu0 0
        %5734 = vmatpush1.bf16.msra.mxu0 0
        %5735 = vmatprep.subr.bf16.mxu0 0
        %5736 = vmatpush1.bf16.msra.mxu0 0
        %5737 = vmatprep.subr.bf16.mxu0 0
        %5738 = vmatpush1.bf16.msra.mxu0 0
        %5739 = vmatprep.subr.bf16.mxu0 0
        %5740 = vmatpush1.bf16.msra.mxu0 0
        %5741 = vmatprep.subr.bf16.mxu0 0
        %5742 = vmatpush1.bf16.msra.mxu0 0
        %5743 = vmatprep.subr.bf16.mxu0 0
        %5744 = vmatpush1.bf16.msra.mxu0 0
        %5745 = vmatprep.subr.bf16.mxu0 0
        %5746 = vmatpush1.bf16.msra.mxu0 0
        %5747 = vmatprep.subr.bf16.mxu0 0
        %5748 = vmatpush1.bf16.msra.mxu0 0
        %5749 = vmatprep.mubr.bf16.mxu0 0
        %5750 = vmatmul.mubr.bf16.gmra.mrb[0].mxu0 %v5715
        %v5751 = vpop.f32.mrb[0].mxu0
        %v5752 = vadd.f32 0.0, %v5751
        %v5753 = vpop.f32.mrb[0].mxu0
        %v5754 = vadd.f32 0.0, %v5753
        %v5755 = vpop.f32.mrb[0].mxu0
        %v5756 = vpop.f32.mrb[0].mxu0
        %5757 = vdwg.mxu0
        %v5758 = vlaneseq
        %v5759 = vshrl.u32 %v5758, 7
        %v5760 = vsub.s32 0, %v5759
        %v5761 = vrot.slane %v5752, %v5760
        %v5762 = vlaneseq
        %v5763 = vshrl.u32 %v5762, 7
        %v5764 = vsub.s32 0, %v5763
        %v5765 = vrot.slane %v5754, %v5764
        %v5766 = vsub.f32 %v5505, %v5761
        %v5767 = vsub.f32 %v5506, %v5765
        %v5768 = vmul.f32 %v5766, %v5766
        %v5769 = vmul.f32 %v5767, %v5767
        %v5770 = vrot.slane %v5768, 4
        %v5771 = vadd.f32 %v5768, %v5770
        %v5772 = vrot.slane %v5771, 2
        %v5773 = vadd.f32 %v5771, %v5772
        %v5774 = vrot.slane %v5773, 1
        %v5775 = vadd.f32 %v5773, %v5774
        %v5776 = vrot.slane %v5769, 4
        %v5777 = vadd.f32 %v5769, %v5776
        %v5778 = vrot.slane %v5777, 2
        %v5779 = vadd.f32 %v5777, %v5778
        %v5780 = vrot.slane %v5779, 1
        %v5781 = vadd.f32 %v5779, %v5780
        %v5782 = vpack.c.bf16 %v5775, %v5775
        %v5783 = vpack.c.bf16 %v5781, %v5781
        %5784 = vmatprep.subr.bf16.mxu0 0
        %5785 = vmatpush1.bf16.msra.mxu0 %v5621
        %5786 = vmatprep.subr.bf16.mxu0 0
        %5787 = vmatpush1.bf16.msra.mxu0 %v5622
        %5788 = vmatprep.subr.bf16.mxu0 0
        %5789 = vmatpush1.bf16.msra.mxu0 %v5623
        %5790 = vmatprep.subr.bf16.mxu0 0
        %5791 = vmatpush1.bf16.msra.mxu0 %v5624
        %5792 = vmatprep.subr.bf16.mxu0 0
        %5793 = vmatpush1.bf16.msra.mxu0 %v5625
        %5794 = vmatprep.subr.bf16.mxu0 0
        %5795 = vmatpush1.bf16.msra.mxu0 %v5626
        %5796 = vmatprep.subr.bf16.mxu0 0
        %5797 = vmatpush1.bf16.msra.mxu0 %v5627
        %5798 = vmatprep.subr.bf16.mxu0 0
        %5799 = vmatpush1.bf16.msra.mxu0 %v5628
        %5800 = vmatprep.subr.bf16.mxu0 0
        %5801 = vmatpush1.bf16.msra.mxu0 %v5629
        %5802 = vmatprep.subr.bf16.mxu0 0
        %5803 = vmatpush1.bf16.msra.mxu0 %v5630
        %5804 = vmatprep.subr.bf16.mxu0 0
        %5805 = vmatpush1.bf16.msra.mxu0 %v5631
        %5806 = vmatprep.subr.bf16.mxu0 0
        %5807 = vmatpush1.bf16.msra.mxu0 %v5632
        %5808 = vmatprep.subr.bf16.mxu0 0
        %5809 = vmatpush1.bf16.msra.mxu0 %v5633
        %5810 = vmatprep.subr.bf16.mxu0 0
        %5811 = vmatpush1.bf16.msra.mxu0 %v5634
        %5812 = vmatprep.subr.bf16.mxu0 0
        %5813 = vmatpush1.bf16.msra.mxu0 %v5635
        %5814 = vmatprep.subr.bf16.mxu0 0
        %5815 = vmatpush1.bf16.msra.mxu0 %v5636
        %5816 = vmatprep.mubr.bf16.mxu0 %v5783
        %5817 = vmatmul.mubr.bf16.gmra.mrb[0].mxu0 %v5782
        %v5818 = vpop.f32.mrb[0].mxu0
        %v5819 = vadd.f32 0.0, %v5818
        %v5820 = vpop.f32.mrb[0].mxu0
        %v5821 = vpop.f32.mrb[0].mxu0
        %v5822 = vpop.f32.mrb[0].mxu0
        %5823 = vdwg.mxu0
        %v5824 = vpack.c.bf16 %v5819, %v5819
        %v5826 = vsel %vm2792, %v5824, 0
        %5828 = vmatprep.subr.bf16.mxu0 %v5707
        %5829 = vmatpush1.bf16.msra.mxu0 %v5706
        %5830 = vmatprep.subr.bf16.mxu0 %v5709
        %5831 = vmatpush1.bf16.msra.mxu0 %v5708
        %5832 = vmatprep.subr.bf16.mxu0 0
        %5833 = vmatpush1.bf16.msra.mxu0 0
        %5834 = vmatprep.subr.bf16.mxu0 0
        %5835 = vmatpush1.bf16.msra.mxu0 0
        %5836 = vmatprep.subr.bf16.mxu0 0
        %5837 = vmatpush1.bf16.msra.mxu0 0
        %5838 = vmatprep.subr.bf16.mxu0 0
        %5839 = vmatpush1.bf16.msra.mxu0 0
        %5840 = vmatprep.subr.bf16.mxu0 0
        %5841 = vmatpush1.bf16.msra.mxu0 0
        %5842 = vmatprep.subr.bf16.mxu0 0
        %5843 = vmatpush1.bf16.msra.mxu0 0
        %5844 = vmatprep.subr.bf16.mxu0 0
        %5845 = vmatpush1.bf16.msra.mxu0 0
        %5846 = vmatprep.subr.bf16.mxu0 0
        %5847 = vmatpush1.bf16.msra.mxu0 0
        %5848 = vmatprep.subr.bf16.mxu0 0
        %5849 = vmatpush1.bf16.msra.mxu0 0
        %5850 = vmatprep.subr.bf16.mxu0 0
        %5851 = vmatpush1.bf16.msra.mxu0 0
        %5852 = vmatprep.subr.bf16.mxu0 0
        %5853 = vmatpush1.bf16.msra.mxu0 0
        %5854 = vmatprep.subr.bf16.mxu0 0
        %5855 = vmatpush1.bf16.msra.mxu0 0
        %5856 = vmatprep.subr.bf16.mxu0 0
        %5857 = vmatpush1.bf16.msra.mxu0 0
        %5858 = vmatprep.subr.bf16.mxu0 0
        %5859 = vmatpush1.bf16.msra.mxu0 0
        %5860 = vmatprep.mubr.bf16.mxu0 0
        %5861 = vmatmul.mubr.bf16.gmra.mrb[0].mxu0 %v5826
        %v5862 = vpop.f32.mrb[0].mxu0
        %v5863 = vadd.f32 1e-05, %v5862
        %v5864 = vpop.f32.mrb[0].mxu0
        %v5865 = vadd.f32 1e-05, %v5864
        %v5866 = vpop.f32.mrb[0].mxu0
        %v5867 = vpop.f32.mrb[0].mxu0
        %5868 = vdwg.mxu0
        %v5869 = vrsqrt.pop %v5863
        %v5870 = vrsqrt.pop %v5865
        %v5871 = vlaneseq
        %v5872 = vshrl.u32 %v5871, 7
        %v5873 = vsub.s32 0, %v5872
        %v5874 = vrot.slane %v5869, %v5873
        %v5875 = vlaneseq
        %v5876 = vshrl.u32 %v5875, 7
        %v5877 = vsub.s32 0, %v5876
        %v5878 = vrot.slane %v5870, %v5877
        %v5879 = vmul.f32 %v5766, %v5874
        %v5880 = vmul.f32 %v5767, %v5878
        %vm5881 = vcmp.ge.f32.partialorder %v5879, 0.0
        %vm5882 = vcmp.ge.f32.partialorder %v5880, 0.0
        %v5883 = vmul.f32 %v5879, 0.01
        %v5884 = vmul.f32 %v5880, 0.01
        %v5885 = vsel %vm5881, %v5879, %v5883
        %v5886 = vsel %vm5882, %v5880, %v5884
        %v5887 = vpack.c.bf16 %v5885, %v5885
        %v5888 = vpack.c.bf16 %v5886, %v5886
        %v5889 = vld [vmem:[#allocation16] sm:$0x3]
        %v5891 = vsel %vm2558, %v5889, 0
        %v5894 = vsel %vm2562, %v5887, 0
        %v5897 = vsel %vm2562, %v5888, 0
        %5899 = vmatprep.subr.bf16.mxu0 %v5897
        %5900 = vmatpush1.bf16.msra.mxu0 %v5894
        %5901 = vmatprep.subr.bf16.mxu0 0
        %5902 = vmatpush1.bf16.msra.mxu0 0
        %5903 = vmatprep.subr.bf16.mxu0 0
        %5904 = vmatpush1.bf16.msra.mxu0 0
        %5905 = vmatprep.subr.bf16.mxu0 0
        %5906 = vmatpush1.bf16.msra.mxu0 0
        %5907 = vmatprep.subr.bf16.mxu0 0
        %5908 = vmatpush1.bf16.msra.mxu0 0
        %5909 = vmatprep.subr.bf16.mxu0 0
        %5910 = vmatpush1.bf16.msra.mxu0 0
        %5911 = vmatprep.subr.bf16.mxu0 0
        %5912 = vmatpush1.bf16.msra.mxu0 0
        %5913 = vmatprep.subr.bf16.mxu0 0
        %5914 = vmatpush1.bf16.msra.mxu0 0
        %5915 = vmatprep.subr.bf16.mxu0 0
        %5916 = vmatpush1.bf16.msra.mxu0 0
        %5917 = vmatprep.subr.bf16.mxu0 0
        %5918 = vmatpush1.bf16.msra.mxu0 0
        %5919 = vmatprep.subr.bf16.mxu0 0
        %5920 = vmatpush1.bf16.msra.mxu0 0
        %5921 = vmatprep.subr.bf16.mxu0 0
        %5922 = vmatpush1.bf16.msra.mxu0 0
        %5923 = vmatprep.subr.bf16.mxu0 0
        %5924 = vmatpush1.bf16.msra.mxu0 0
        %5925 = vmatprep.subr.bf16.mxu0 0
        %5926 = vmatpush1.bf16.msra.mxu0 0
        %5927 = vmatprep.subr.bf16.mxu0 0
        %5928 = vmatpush1.bf16.msra.mxu0 0
        %5929 = vmatprep.subr.bf16.mxu0 0
        %5930 = vmatpush1.bf16.msra.mxu0 0
        %5931 = vmatprep.mubr.bf16.mxu0 0
        %5932 = vmatmul.mubr.bf16.gmra.mrb[0].mxu0 %v5891
        %v5933 = vpop.f32.mrb[0].mxu0
        %v5934 = vadd.f32 0.0, %v5933
        %v5935 = vpop.f32.mrb[0].mxu0
        %v5936 = vadd.f32 0.0, %v5935
        %v5937 = vpop.f32.mrb[0].mxu0
        %v5938 = vpop.f32.mrb[0].mxu0
        %5939 = vdwg.mxu0
        %v5940 = vpack.c.bf16 %v5934, %v5934
        %v5941 = vpack.c.bf16 %v5936, %v5936
        %v5942 = vld [vmem:[#allocation17] sm:$0xff]
        %v5943 = vld [vmem:[#allocation17 + $0x8] sm:$0xff]
        %v5944 = vld [vmem:[#allocation17 + $0x10] sm:$0xff]
        %v5945 = vld [vmem:[#allocation17 + $0x18] sm:$0xff]
        %v5946 = vld [vmem:[#allocation17 + $0x20] sm:$0xff]
        %v5947 = vld [vmem:[#allocation17 + $0x28] sm:$0xff]
        %v5948 = vld [vmem:[#allocation17 + $0x30] sm:$0xff]
        %v5949 = vld [vmem:[#allocation17 + $0x38] sm:$0xff]
        %v5950 = vld [vmem:[#allocation17 + $0x40] sm:$0xff]
        %v5951 = vld [vmem:[#allocation17 + $0x48] sm:$0xff]
        %v5952 = vld [vmem:[#allocation17 + $0x50] sm:$0xff]
        %v5953 = vld [vmem:[#allocation17 + $0x58] sm:$0xff]
        %v5954 = vld [vmem:[#allocation17 + $0x60] sm:$0xff]
        %v5955 = vld [vmem:[#allocation17 + $0x68] sm:$0xff]
        %v5956 = vld [vmem:[#allocation17 + $0x70] sm:$0xff]
        %v5957 = vld [vmem:[#allocation17 + $0x78] sm:$0xff]
        %v5958 = vld [vmem:[#allocation17 + $0x80] sm:$0xff]
        %v5959 = vld [vmem:[#allocation17 + $0x88] sm:$0xff]
        %v5960 = vld [vmem:[#allocation17 + $0x90] sm:$0xff]
        %v5961 = vld [vmem:[#allocation17 + $0x98] sm:$0xff]
        %v5962 = vld [vmem:[#allocation17 + $0xa0] sm:$0xff]
        %v5963 = vld [vmem:[#allocation17 + $0xa8] sm:$0xff]
        %v5964 = vld [vmem:[#allocation17 + $0xb0] sm:$0xff]
        %v5965 = vld [vmem:[#allocation17 + $0xb8] sm:$0xff]
        %v5966 = vld [vmem:[#allocation17 + $0xc0] sm:$0xff]
        %v5967 = vld [vmem:[#allocation17 + $0xc8] sm:$0xff]
        %v5968 = vld [vmem:[#allocation17 + $0xd0] sm:$0xff]
        %v5969 = vld [vmem:[#allocation17 + $0xd8] sm:$0xff]
        %v5970 = vld [vmem:[#allocation17 + $0xe0] sm:$0xff]
        %v5971 = vld [vmem:[#allocation17 + $0xe8] sm:$0xff]
        %v5972 = vld [vmem:[#allocation17 + $0xf0] sm:$0xff]
        %v5973 = vld [vmem:[#allocation17 + $0xf8] sm:$0xff]
        %s5974 = scalar_lea.vmem [#allocation16], 2
        %v5975 = vld [vmem:[%s5974] sm:$0x3]
        %v5977 = vsel %vm2558, %v5975, 0
        %5979 = vmatprep.subr.bf16.mxu0 %v5897
        %5980 = vmatpush1.bf16.msra.mxu0 %v5894
        %5981 = vmatprep.subr.bf16.mxu0 0
        %5982 = vmatpush1.bf16.msra.mxu0 0
        %5983 = vmatprep.subr.bf16.mxu0 0
        %5984 = vmatpush1.bf16.msra.mxu0 0
        %5985 = vmatprep.subr.bf16.mxu0 0
        %5986 = vmatpush1.bf16.msra.mxu0 0
        %5987 = vmatprep.subr.bf16.mxu0 0
        %5988 = vmatpush1.bf16.msra.mxu0 0
        %5989 = vmatprep.subr.bf16.mxu0 0
        %5990 = vmatpush1.bf16.msra.mxu0 0
        %5991 = vmatprep.subr.bf16.mxu0 0
        %5992 = vmatpush1.bf16.msra.mxu0 0
        %5993 = vmatprep.subr.bf16.mxu0 0
        %5994 = vmatpush1.bf16.msra.mxu0 0
        %5995 = vmatprep.subr.bf16.mxu0 0
        %5996 = vmatpush1.bf16.msra.mxu0 0
        %5997 = vmatprep.subr.bf16.mxu0 0
        %5998 = vmatpush1.bf16.msra.mxu0 0
        %5999 = vmatprep.subr.bf16.mxu0 0
        %6000 = vmatpush1.bf16.msra.mxu0 0
        %6001 = vmatprep.subr.bf16.mxu0 0
        %6002 = vmatpush1.bf16.msra.mxu0 0
        %6003 = vmatprep.subr.bf16.mxu0 0
        %6004 = vmatpush1.bf16.msra.mxu0 0
        %6005 = vmatprep.subr.bf16.mxu0 0
        %6006 = vmatpush1.bf16.msra.mxu0 0
        %6007 = vmatprep.subr.bf16.mxu0 0
        %6008 = vmatpush1.bf16.msra.mxu0 0
        %6009 = vmatprep.subr.bf16.mxu0 0
        %6010 = vmatpush1.bf16.msra.mxu0 0
        %6011 = vmatprep.mubr.bf16.mxu0 0
        %6012 = vmatmul.mubr.bf16.gmra.mrb[0].mxu0 %v5977
        %v6013 = vpop.f32.mrb[0].mxu0
        %v6014 = vadd.f32 0.0, %v6013
        %v6015 = vpop.f32.mrb[0].mxu0
        %v6016 = vadd.f32 0.0, %v6015
        %v6017 = vpop.f32.mrb[0].mxu0
        %v6018 = vpop.f32.mrb[0].mxu0
        %6019 = vdwg.mxu0
        %v6020 = vpack.c.bf16 %v6014, %v6014
        %v6021 = vpack.c.bf16 %v6016, %v6016
        %s6022 = scalar_lea.vmem [#allocation17], 256
        %v6023 = vld [vmem:[%s6022] sm:$0xff]
        %v6024 = vld [vmem:[%s6022 + $0x8] sm:$0xff]
        %v6025 = vld [vmem:[%s6022 + $0x10] sm:$0xff]
        %v6026 = vld [vmem:[%s6022 + $0x18] sm:$0xff]
        %v6027 = vld [vmem:[%s6022 + $0x20] sm:$0xff]
        %v6028 = vld [vmem:[%s6022 + $0x28] sm:$0xff]
        %v6029 = vld [vmem:[%s6022 + $0x30] sm:$0xff]
        %v6030 = vld [vmem:[%s6022 + $0x38] sm:$0xff]
        %v6031 = vld [vmem:[%s6022 + $0x40] sm:$0xff]
        %v6032 = vld [vmem:[%s6022 + $0x48] sm:$0xff]
        %v6033 = vld [vmem:[%s6022 + $0x50] sm:$0xff]
        %v6034 = vld [vmem:[%s6022 + $0x58] sm:$0xff]
        %v6035 = vld [vmem:[%s6022 + $0x60] sm:$0xff]
        %v6036 = vld [vmem:[%s6022 + $0x68] sm:$0xff]
        %v6037 = vld [vmem:[%s6022 + $0x70] sm:$0xff]
        %v6038 = vld [vmem:[%s6022 + $0x78] sm:$0xff]
        %v6039 = vld [vmem:[%s6022 + $0x80] sm:$0xff]
        %v6040 = vld [vmem:[%s6022 + $0x88] sm:$0xff]
        %v6041 = vld [vmem:[%s6022 + $0x90] sm:$0xff]
        %v6042 = vld [vmem:[%s6022 + $0x98] sm:$0xff]
        %v6043 = vld [vmem:[%s6022 + $0xa0] sm:$0xff]
        %v6044 = vld [vmem:[%s6022 + $0xa8] sm:$0xff]
        %v6045 = vld [vmem:[%s6022 + $0xb0] sm:$0xff]
        %v6046 = vld [vmem:[%s6022 + $0xb8] sm:$0xff]
        %v6047 = vld [vmem:[%s6022 + $0xc0] sm:$0xff]
        %v6048 = vld [vmem:[%s6022 + $0xc8] sm:$0xff]
        %v6049 = vld [vmem:[%s6022 + $0xd0] sm:$0xff]
        %v6050 = vld [vmem:[%s6022 + $0xd8] sm:$0xff]
        %v6051 = vld [vmem:[%s6022 + $0xe0] sm:$0xff]
        %v6052 = vld [vmem:[%s6022 + $0xe8] sm:$0xff]
        %v6053 = vld [vmem:[%s6022 + $0xf0] sm:$0xff]
        %v6054 = vld [vmem:[%s6022 + $0xf8] sm:$0xff]
        %v6087 = vunpack.c.l.b16 %v6023
        %v6088 = vunpack.c.h.b16 %v6023
        %v6089 = vunpack.c.l.b16 %v6024
        %v6090 = vunpack.c.h.b16 %v6024
        %v6091 = vunpack.c.l.b16 %v6025
        %v6092 = vunpack.c.h.b16 %v6025
        %v6093 = vunpack.c.l.b16 %v6026
        %v6094 = vunpack.c.h.b16 %v6026
        %v6095 = vunpack.c.l.b16 %v6027
        %v6096 = vunpack.c.h.b16 %v6027
        %v6097 = vunpack.c.l.b16 %v6028
        %v6098 = vunpack.c.h.b16 %v6028
        %v6099 = vunpack.c.l.b16 %v6029
        %v6100 = vunpack.c.h.b16 %v6029
        %v6101 = vunpack.c.l.b16 %v6030
        %v6102 = vunpack.c.h.b16 %v6030
        %v6103 = vunpack.c.l.b16 %v6031
        %v6104 = vunpack.c.h.b16 %v6031
        %v6105 = vunpack.c.l.b16 %v6032
        %v6106 = vunpack.c.h.b16 %v6032
        %v6107 = vunpack.c.l.b16 %v6033
        %v6108 = vunpack.c.h.b16 %v6033
        %v6109 = vunpack.c.l.b16 %v6034
        %v6110 = vunpack.c.h.b16 %v6034
        %v6111 = vunpack.c.l.b16 %v6035
        %v6112 = vunpack.c.h.b16 %v6035
        %v6113 = vunpack.c.l.b16 %v6036
        %v6114 = vunpack.c.h.b16 %v6036
        %v6115 = vunpack.c.l.b16 %v6037
        %v6116 = vunpack.c.h.b16 %v6037
        %v6117 = vunpack.c.l.b16 %v6038
        %v6118 = vunpack.c.h.b16 %v6038
        %v6119 = vunpack.c.l.b16 %v6039
        %v6120 = vunpack.c.h.b16 %v6039
        %v6121 = vunpack.c.l.b16 %v6040
        %v6122 = vunpack.c.h.b16 %v6040
        %v6123 = vunpack.c.l.b16 %v6041
        %v6124 = vunpack.c.h.b16 %v6041
        %v6125 = vunpack.c.l.b16 %v6042
        %v6126 = vunpack.c.h.b16 %v6042
        %v6127 = vunpack.c.l.b16 %v6043
        %v6128 = vunpack.c.h.b16 %v6043
        %v6129 = vunpack.c.l.b16 %v6044
        %v6130 = vunpack.c.h.b16 %v6044
        %v6131 = vunpack.c.l.b16 %v6045
        %v6132 = vunpack.c.h.b16 %v6045
        %v6133 = vunpack.c.l.b16 %v6046
        %v6134 = vunpack.c.h.b16 %v6046
        %v6135 = vunpack.c.l.b16 %v6047
        %v6136 = vunpack.c.h.b16 %v6047
        %v6137 = vunpack.c.l.b16 %v6048
        %v6138 = vunpack.c.h.b16 %v6048
        %v6139 = vunpack.c.l.b16 %v6049
        %v6140 = vunpack.c.h.b16 %v6049
        %v6141 = vunpack.c.l.b16 %v6050
        %v6142 = vunpack.c.h.b16 %v6050
        %v6143 = vunpack.c.l.b16 %v6051
        %v6144 = vunpack.c.h.b16 %v6051
        %v6145 = vunpack.c.l.b16 %v6052
        %v6146 = vunpack.c.h.b16 %v6052
        %v6147 = vunpack.c.l.b16 %v6053
        %v6148 = vunpack.c.h.b16 %v6053
        %v6149 = vunpack.c.l.b16 %v6054
        %v6150 = vunpack.c.h.b16 %v6054
        %v6151 = vpack.c.b16 %v6089, %v6087
        %v6152 = vpack.c.b16 %v6090, %v6088
        %v6153 = vpack.c.b16 %v6093, %v6091
        %v6154 = vpack.c.b16 %v6094, %v6092
        %v6155 = vpack.c.b16 %v6097, %v6095
        %v6156 = vpack.c.b16 %v6098, %v6096
        %v6157 = vpack.c.b16 %v6101, %v6099
        %v6158 = vpack.c.b16 %v6102, %v6100
        %v6159 = vpack.c.b16 %v6105, %v6103
        %v6160 = vpack.c.b16 %v6106, %v6104
        %v6161 = vpack.c.b16 %v6109, %v6107
        %v6162 = vpack.c.b16 %v6110, %v6108
        %v6163 = vpack.c.b16 %v6113, %v6111
        %v6164 = vpack.c.b16 %v6114, %v6112
        %v6165 = vpack.c.b16 %v6117, %v6115
        %v6166 = vpack.c.b16 %v6118, %v6116
        %v6167 = vpack.c.b16 %v6121, %v6119
        %v6168 = vpack.c.b16 %v6122, %v6120
        %v6169 = vpack.c.b16 %v6125, %v6123
        %v6170 = vpack.c.b16 %v6126, %v6124
        %v6171 = vpack.c.b16 %v6129, %v6127
        %v6172 = vpack.c.b16 %v6130, %v6128
        %v6173 = vpack.c.b16 %v6133, %v6131
        %v6174 = vpack.c.b16 %v6134, %v6132
        %v6175 = vpack.c.b16 %v6137, %v6135
        %v6176 = vpack.c.b16 %v6138, %v6136
        %v6177 = vpack.c.b16 %v6141, %v6139
        %v6178 = vpack.c.b16 %v6142, %v6140
        %v6179 = vpack.c.b16 %v6145, %v6143
        %v6180 = vpack.c.b16 %v6146, %v6144
        %v6181 = vpack.c.b16 %v6149, %v6147
        %v6182 = vpack.c.b16 %v6150, %v6148
        %6215 = vmatprep.subr.bf16.mxu0 %v6152
        %6216 = vmatpush1.bf16.msra.mxu0 %v6151
        %6217 = vmatprep.subr.bf16.mxu0 %v6154
        %6218 = vmatpush1.bf16.msra.mxu0 %v6153
        %6219 = vmatprep.subr.bf16.mxu0 %v6156
        %6220 = vmatpush1.bf16.msra.mxu0 %v6155
        %6221 = vmatprep.subr.bf16.mxu0 %v6158
        %6222 = vmatpush1.bf16.msra.mxu0 %v6157
        %6223 = vmatprep.subr.bf16.mxu0 %v6160
        %6224 = vmatpush1.bf16.msra.mxu0 %v6159
        %6225 = vmatprep.subr.bf16.mxu0 %v6162
        %6226 = vmatpush1.bf16.msra.mxu0 %v6161
        %6227 = vmatprep.subr.bf16.mxu0 %v6164
        %6228 = vmatpush1.bf16.msra.mxu0 %v6163
        %6229 = vmatprep.subr.bf16.mxu0 %v6166
        %6230 = vmatpush1.bf16.msra.mxu0 %v6165
        %6231 = vmatprep.subr.bf16.mxu0 %v6168
        %6232 = vmatpush1.bf16.msra.mxu0 %v6167
        %6233 = vmatprep.subr.bf16.mxu0 %v6170
        %6234 = vmatpush1.bf16.msra.mxu0 %v6169
        %6235 = vmatprep.subr.bf16.mxu0 %v6172
        %6236 = vmatpush1.bf16.msra.mxu0 %v6171
        %6237 = vmatprep.subr.bf16.mxu0 %v6174
        %6238 = vmatpush1.bf16.msra.mxu0 %v6173
        %6239 = vmatprep.subr.bf16.mxu0 %v6176
        %6240 = vmatpush1.bf16.msra.mxu0 %v6175
        %6241 = vmatprep.subr.bf16.mxu0 %v6178
        %6242 = vmatpush1.bf16.msra.mxu0 %v6177
        %6243 = vmatprep.subr.bf16.mxu0 %v6180
        %6244 = vmatpush1.bf16.msra.mxu0 %v6179
        %6245 = vmatprep.subr.bf16.mxu0 %v6182
        %6246 = vmatpush1.bf16.msra.mxu0 %v6181
        %6247 = vmatprep.mubr.bf16.mxu0 %v6021
        %6248 = vmatmul.mubr.bf16.gmra.mrb[0].mxu0 %v6020
        %v6249 = vpop.f32.mrb[0].mxu0
        %v6250 = vadd.f32 0.0, %v6249
        %v6251 = vpop.f32.mrb[0].mxu0
        %v6252 = vadd.f32 0.0, %v6251
        %v6253 = vpop.f32.mrb[0].mxu0
        %v6254 = vpop.f32.mrb[0].mxu0
        %6255 = vdwg.mxu0
        %v6288 = vunpack.c.l.b16 %v5942
        %v6289 = vunpack.c.h.b16 %v5942
        %v6290 = vunpack.c.l.b16 %v5943
        %v6291 = vunpack.c.h.b16 %v5943
        %v6292 = vunpack.c.l.b16 %v5944
        %v6293 = vunpack.c.h.b16 %v5944
        %v6294 = vunpack.c.l.b16 %v5945
        %v6295 = vunpack.c.h.b16 %v5945
        %v6296 = vunpack.c.l.b16 %v5946
        %v6297 = vunpack.c.h.b16 %v5946
        %v6298 = vunpack.c.l.b16 %v5947
        %v6299 = vunpack.c.h.b16 %v5947
        %v6300 = vunpack.c.l.b16 %v5948
        %v6301 = vunpack.c.h.b16 %v5948
        %v6302 = vunpack.c.l.b16 %v5949
        %v6303 = vunpack.c.h.b16 %v5949
        %v6304 = vunpack.c.l.b16 %v5950
        %v6305 = vunpack.c.h.b16 %v5950
        %v6306 = vunpack.c.l.b16 %v5951
        %v6307 = vunpack.c.h.b16 %v5951
        %v6308 = vunpack.c.l.b16 %v5952
        %v6309 = vunpack.c.h.b16 %v5952
        %v6310 = vunpack.c.l.b16 %v5953
        %v6311 = vunpack.c.h.b16 %v5953
        %v6312 = vunpack.c.l.b16 %v5954
        %v6313 = vunpack.c.h.b16 %v5954
        %v6314 = vunpack.c.l.b16 %v5955
        %v6315 = vunpack.c.h.b16 %v5955
        %v6316 = vunpack.c.l.b16 %v5956
        %v6317 = vunpack.c.h.b16 %v5956
        %v6318 = vunpack.c.l.b16 %v5957
        %v6319 = vunpack.c.h.b16 %v5957
        %v6320 = vunpack.c.l.b16 %v5958
        %v6321 = vunpack.c.h.b16 %v5958
        %v6322 = vunpack.c.l.b16 %v5959
        %v6323 = vunpack.c.h.b16 %v5959
        %v6324 = vunpack.c.l.b16 %v5960
        %v6325 = vunpack.c.h.b16 %v5960
        %v6326 = vunpack.c.l.b16 %v5961
        %v6327 = vunpack.c.h.b16 %v5961
        %v6328 = vunpack.c.l.b16 %v5962
        %v6329 = vunpack.c.h.b16 %v5962
        %v6330 = vunpack.c.l.b16 %v5963
        %v6331 = vunpack.c.h.b16 %v5963
        %v6332 = vunpack.c.l.b16 %v5964
        %v6333 = vunpack.c.h.b16 %v5964
        %v6334 = vunpack.c.l.b16 %v5965
        %v6335 = vunpack.c.h.b16 %v5965
        %v6336 = vunpack.c.l.b16 %v5966
        %v6337 = vunpack.c.h.b16 %v5966
        %v6338 = vunpack.c.l.b16 %v5967
        %v6339 = vunpack.c.h.b16 %v5967
        %v6340 = vunpack.c.l.b16 %v5968
        %v6341 = vunpack.c.h.b16 %v5968
        %v6342 = vunpack.c.l.b16 %v5969
        %v6343 = vunpack.c.h.b16 %v5969
        %v6344 = vunpack.c.l.b16 %v5970
        %v6345 = vunpack.c.h.b16 %v5970
        %v6346 = vunpack.c.l.b16 %v5971
        %v6347 = vunpack.c.h.b16 %v5971
        %v6348 = vunpack.c.l.b16 %v5972
        %v6349 = vunpack.c.h.b16 %v5972
        %v6350 = vunpack.c.l.b16 %v5973
        %v6351 = vunpack.c.h.b16 %v5973
        %v6352 = vpack.c.b16 %v6290, %v6288
        %v6353 = vpack.c.b16 %v6291, %v6289
        %v6354 = vpack.c.b16 %v6294, %v6292
        %v6355 = vpack.c.b16 %v6295, %v6293
        %v6356 = vpack.c.b16 %v6298, %v6296
        %v6357 = vpack.c.b16 %v6299, %v6297
        %v6358 = vpack.c.b16 %v6302, %v6300
        %v6359 = vpack.c.b16 %v6303, %v6301
        %v6360 = vpack.c.b16 %v6306, %v6304
        %v6361 = vpack.c.b16 %v6307, %v6305
        %v6362 = vpack.c.b16 %v6310, %v6308
        %v6363 = vpack.c.b16 %v6311, %v6309
        %v6364 = vpack.c.b16 %v6314, %v6312
        %v6365 = vpack.c.b16 %v6315, %v6313
        %v6366 = vpack.c.b16 %v6318, %v6316
        %v6367 = vpack.c.b16 %v6319, %v6317
        %v6368 = vpack.c.b16 %v6322, %v6320
        %v6369 = vpack.c.b16 %v6323, %v6321
        %v6370 = vpack.c.b16 %v6326, %v6324
        %v6371 = vpack.c.b16 %v6327, %v6325
        %v6372 = vpack.c.b16 %v6330, %v6328
        %v6373 = vpack.c.b16 %v6331, %v6329
        %v6374 = vpack.c.b16 %v6334, %v6332
        %v6375 = vpack.c.b16 %v6335, %v6333
        %v6376 = vpack.c.b16 %v6338, %v6336
        %v6377 = vpack.c.b16 %v6339, %v6337
        %v6378 = vpack.c.b16 %v6342, %v6340
        %v6379 = vpack.c.b16 %v6343, %v6341
        %v6380 = vpack.c.b16 %v6346, %v6344
        %v6381 = vpack.c.b16 %v6347, %v6345
        %v6382 = vpack.c.b16 %v6350, %v6348
        %v6383 = vpack.c.b16 %v6351, %v6349
        %6416 = vmatprep.subr.bf16.mxu0 %v6353
        %6417 = vmatpush1.bf16.msra.mxu0 %v6352
        %6418 = vmatprep.subr.bf16.mxu0 %v6355
        %6419 = vmatpush1.bf16.msra.mxu0 %v6354
        %6420 = vmatprep.subr.bf16.mxu0 %v6357
        %6421 = vmatpush1.bf16.msra.mxu0 %v6356
        %6422 = vmatprep.subr.bf16.mxu0 %v6359
        %6423 = vmatpush1.bf16.msra.mxu0 %v6358
        %6424 = vmatprep.subr.bf16.mxu0 %v6361
        %6425 = vmatpush1.bf16.msra.mxu0 %v6360
        %6426 = vmatprep.subr.bf16.mxu0 %v6363
        %6427 = vmatpush1.bf16.msra.mxu0 %v6362
        %6428 = vmatprep.subr.bf16.mxu0 %v6365
        %6429 = vmatpush1.bf16.msra.mxu0 %v6364
        %6430 = vmatprep.subr.bf16.mxu0 %v6367
        %6431 = vmatpush1.bf16.msra.mxu0 %v6366
        %6432 = vmatprep.subr.bf16.mxu0 %v6369
        %6433 = vmatpush1.bf16.msra.mxu0 %v6368
        %6434 = vmatprep.subr.bf16.mxu0 %v6371
        %6435 = vmatpush1.bf16.msra.mxu0 %v6370
        %6436 = vmatprep.subr.bf16.mxu0 %v6373
        %6437 = vmatpush1.bf16.msra.mxu0 %v6372
        %6438 = vmatprep.subr.bf16.mxu0 %v6375
        %6439 = vmatpush1.bf16.msra.mxu0 %v6374
        %6440 = vmatprep.subr.bf16.mxu0 %v6377
        %6441 = vmatpush1.bf16.msra.mxu0 %v6376
        %6442 = vmatprep.subr.bf16.mxu0 %v6379
        %6443 = vmatpush1.bf16.msra.mxu0 %v6378
        %6444 = vmatprep.subr.bf16.mxu0 %v6381
        %6445 = vmatpush1.bf16.msra.mxu0 %v6380
        %6446 = vmatprep.subr.bf16.mxu0 %v6383
        %6447 = vmatpush1.bf16.msra.mxu0 %v6382
        %6448 = vmatprep.mubr.bf16.mxu0 %v5941
        %6449 = vmatmul.mubr.bf16.gmra.mrb[0].mxu0 %v5940
        %v6450 = vpop.f32.mrb[0].mxu0
        %v6451 = vadd.f32 %v6250, %v6450
        %v6452 = vpop.f32.mrb[0].mxu0
        %v6453 = vadd.f32 %v6252, %v6452
        %v6454 = vpop.f32.mrb[0].mxu0
        %v6455 = vpop.f32.mrb[0].mxu0
        %6456 = vdwg.mxu0
        %s6457 = scalar_lea.vmem [#allocation16], 4
        %v6458 = vld [vmem:[%s6457] sm:$0x3]
        %v6460 = vsel %vm2558, %v6458, 0
        %6462 = vmatprep.subr.bf16.mxu0 %v5897
        %6463 = vmatpush1.bf16.msra.mxu0 %v5894
        %6464 = vmatprep.subr.bf16.mxu0 0
        %6465 = vmatpush1.bf16.msra.mxu0 0
        %6466 = vmatprep.subr.bf16.mxu0 0
        %6467 = vmatpush1.bf16.msra.mxu0 0
        %6468 = vmatprep.subr.bf16.mxu0 0
        %6469 = vmatpush1.bf16.msra.mxu0 0
        %6470 = vmatprep.subr.bf16.mxu0 0
        %6471 = vmatpush1.bf16.msra.mxu0 0
        %6472 = vmatprep.subr.bf16.mxu0 0
        %6473 = vmatpush1.bf16.msra.mxu0 0
        %6474 = vmatprep.subr.bf16.mxu0 0
        %6475 = vmatpush1.bf16.msra.mxu0 0
        %6476 = vmatprep.subr.bf16.mxu0 0
        %6477 = vmatpush1.bf16.msra.mxu0 0
        %6478 = vmatprep.subr.bf16.mxu0 0
        %6479 = vmatpush1.bf16.msra.mxu0 0
        %6480 = vmatprep.subr.bf16.mxu0 0
        %6481 = vmatpush1.bf16.msra.mxu0 0
        %6482 = vmatprep.subr.bf16.mxu0 0
        %6483 = vmatpush1.bf16.msra.mxu0 0
        %6484 = vmatprep.subr.bf16.mxu0 0
        %6485 = vmatpush1.bf16.msra.mxu0 0
        %6486 = vmatprep.subr.bf16.mxu0 0
        %6487 = vmatpush1.bf16.msra.mxu0 0
        %6488 = vmatprep.subr.bf16.mxu0 0
        %6489 = vmatpush1.bf16.msra.mxu0 0
        %6490 = vmatprep.subr.bf16.mxu0 0
        %6491 = vmatpush1.bf16.msra.mxu0 0
        %6492 = vmatprep.subr.bf16.mxu0 0
        %6493 = vmatpush1.bf16.msra.mxu0 0
        %6494 = vmatprep.mubr.bf16.mxu0 0
        %6495 = vmatmul.mubr.bf16.gmra.mrb[0].mxu0 %v6460
        %v6496 = vpop.f32.mrb[0].mxu0
        %v6497 = vadd.f32 0.0, %v6496
        %v6498 = vpop.f32.mrb[0].mxu0
        %v6499 = vadd.f32 0.0, %v6498
        %v6500 = vpop.f32.mrb[0].mxu0
        %v6501 = vpop.f32.mrb[0].mxu0
        %6502 = vdwg.mxu0
        %v6503 = vpack.c.bf16 %v6497, %v6497
        %v6504 = vpack.c.bf16 %v6499, %v6499
        %s6505 = scalar_lea.vmem [#allocation17], 512
        %v6506 = vld [vmem:[%s6505] sm:$0xff]
        %v6507 = vld [vmem:[%s6505 + $0x8] sm:$0xff]
        %v6508 = vld [vmem:[%s6505 + $0x10] sm:$0xff]
        %v6509 = vld [vmem:[%s6505 + $0x18] sm:$0xff]
        %v6510 = vld [vmem:[%s6505 + $0x20] sm:$0xff]
        %v6511 = vld [vmem:[%s6505 + $0x28] sm:$0xff]
        %v6512 = vld [vmem:[%s6505 + $0x30] sm:$0xff]
        %v6513 = vld [vmem:[%s6505 + $0x38] sm:$0xff]
        %v6514 = vld [vmem:[%s6505 + $0x40] sm:$0xff]
        %v6515 = vld [vmem:[%s6505 + $0x48] sm:$0xff]
        %v6516 = vld [vmem:[%s6505 + $0x50] sm:$0xff]
        %v6517 = vld [vmem:[%s6505 + $0x58] sm:$0xff]
        %v6518 = vld [vmem:[%s6505 + $0x60] sm:$0xff]
        %v6519 = vld [vmem:[%s6505 + $0x68] sm:$0xff]
        %v6520 = vld [vmem:[%s6505 + $0x70] sm:$0xff]
        %v6521 = vld [vmem:[%s6505 + $0x78] sm:$0xff]
        %v6522 = vld [vmem:[%s6505 + $0x80] sm:$0xff]
        %v6523 = vld [vmem:[%s6505 + $0x88] sm:$0xff]
        %v6524 = vld [vmem:[%s6505 + $0x90] sm:$0xff]
        %v6525 = vld [vmem:[%s6505 + $0x98] sm:$0xff]
        %v6526 = vld [vmem:[%s6505 + $0xa0] sm:$0xff]
        %v6527 = vld [vmem:[%s6505 + $0xa8] sm:$0xff]
        %v6528 = vld [vmem:[%s6505 + $0xb0] sm:$0xff]
        %v6529 = vld [vmem:[%s6505 + $0xb8] sm:$0xff]
        %v6530 = vld [vmem:[%s6505 + $0xc0] sm:$0xff]
        %v6531 = vld [vmem:[%s6505 + $0xc8] sm:$0xff]
        %v6532 = vld [vmem:[%s6505 + $0xd0] sm:$0xff]
        %v6533 = vld [vmem:[%s6505 + $0xd8] sm:$0xff]
        %v6534 = vld [vmem:[%s6505 + $0xe0] sm:$0xff]
        %v6535 = vld [vmem:[%s6505 + $0xe8] sm:$0xff]
        %v6536 = vld [vmem:[%s6505 + $0xf0] sm:$0xff]
        %v6537 = vld [vmem:[%s6505 + $0xf8] sm:$0xff]
        %v6570 = vunpack.c.l.b16 %v6506
        %v6571 = vunpack.c.h.b16 %v6506
        %v6572 = vunpack.c.l.b16 %v6507
        %v6573 = vunpack.c.h.b16 %v6507
        %v6574 = vunpack.c.l.b16 %v6508
        %v6575 = vunpack.c.h.b16 %v6508
        %v6576 = vunpack.c.l.b16 %v6509
        %v6577 = vunpack.c.h.b16 %v6509
        %v6578 = vunpack.c.l.b16 %v6510
        %v6579 = vunpack.c.h.b16 %v6510
        %v6580 = vunpack.c.l.b16 %v6511
        %v6581 = vunpack.c.h.b16 %v6511
        %v6582 = vunpack.c.l.b16 %v6512
        %v6583 = vunpack.c.h.b16 %v6512
        %v6584 = vunpack.c.l.b16 %v6513
        %v6585 = vunpack.c.h.b16 %v6513
        %v6586 = vunpack.c.l.b16 %v6514
        %v6587 = vunpack.c.h.b16 %v6514
        %v6588 = vunpack.c.l.b16 %v6515
        %v6589 = vunpack.c.h.b16 %v6515
        %v6590 = vunpack.c.l.b16 %v6516
        %v6591 = vunpack.c.h.b16 %v6516
        %v6592 = vunpack.c.l.b16 %v6517
        %v6593 = vunpack.c.h.b16 %v6517
        %v6594 = vunpack.c.l.b16 %v6518
        %v6595 = vunpack.c.h.b16 %v6518
        %v6596 = vunpack.c.l.b16 %v6519
        %v6597 = vunpack.c.h.b16 %v6519
        %v6598 = vunpack.c.l.b16 %v6520
        %v6599 = vunpack.c.h.b16 %v6520
        %v6600 = vunpack.c.l.b16 %v6521
        %v6601 = vunpack.c.h.b16 %v6521
        %v6602 = vunpack.c.l.b16 %v6522
        %v6603 = vunpack.c.h.b16 %v6522
        %v6604 = vunpack.c.l.b16 %v6523
        %v6605 = vunpack.c.h.b16 %v6523
        %v6606 = vunpack.c.l.b16 %v6524
        %v6607 = vunpack.c.h.b16 %v6524
        %v6608 = vunpack.c.l.b16 %v6525
        %v6609 = vunpack.c.h.b16 %v6525
        %v6610 = vunpack.c.l.b16 %v6526
        %v6611 = vunpack.c.h.b16 %v6526
        %v6612 = vunpack.c.l.b16 %v6527
        %v6613 = vunpack.c.h.b16 %v6527
        %v6614 = vunpack.c.l.b16 %v6528
        %v6615 = vunpack.c.h.b16 %v6528
        %v6616 = vunpack.c.l.b16 %v6529
        %v6617 = vunpack.c.h.b16 %v6529
        %v6618 = vunpack.c.l.b16 %v6530
        %v6619 = vunpack.c.h.b16 %v6530
        %v6620 = vunpack.c.l.b16 %v6531
        %v6621 = vunpack.c.h.b16 %v6531
        %v6622 = vunpack.c.l.b16 %v6532
        %v6623 = vunpack.c.h.b16 %v6532
        %v6624 = vunpack.c.l.b16 %v6533
        %v6625 = vunpack.c.h.b16 %v6533
        %v6626 = vunpack.c.l.b16 %v6534
        %v6627 = vunpack.c.h.b16 %v6534
        %v6628 = vunpack.c.l.b16 %v6535
        %v6629 = vunpack.c.h.b16 %v6535
        %v6630 = vunpack.c.l.b16 %v6536
        %v6631 = vunpack.c.h.b16 %v6536
        %v6632 = vunpack.c.l.b16 %v6537
        %v6633 = vunpack.c.h.b16 %v6537
        %v6634 = vpack.c.b16 %v6572, %v6570
        %v6635 = vpack.c.b16 %v6573, %v6571
        %v6636 = vpack.c.b16 %v6576, %v6574
        %v6637 = vpack.c.b16 %v6577, %v6575
        %v6638 = vpack.c.b16 %v6580, %v6578
        %v6639 = vpack.c.b16 %v6581, %v6579
        %v6640 = vpack.c.b16 %v6584, %v6582
        %v6641 = vpack.c.b16 %v6585, %v6583
        %v6642 = vpack.c.b16 %v6588, %v6586
        %v6643 = vpack.c.b16 %v6589, %v6587
        %v6644 = vpack.c.b16 %v6592, %v6590
        %v6645 = vpack.c.b16 %v6593, %v6591
        %v6646 = vpack.c.b16 %v6596, %v6594
        %v6647 = vpack.c.b16 %v6597, %v6595
        %v6648 = vpack.c.b16 %v6600, %v6598
        %v6649 = vpack.c.b16 %v6601, %v6599
        %v6650 = vpack.c.b16 %v6604, %v6602
        %v6651 = vpack.c.b16 %v6605, %v6603
        %v6652 = vpack.c.b16 %v6608, %v6606
        %v6653 = vpack.c.b16 %v6609, %v6607
        %v6654 = vpack.c.b16 %v6612, %v6610
        %v6655 = vpack.c.b16 %v6613, %v6611
        %v6656 = vpack.c.b16 %v6616, %v6614
        %v6657 = vpack.c.b16 %v6617, %v6615
        %v6658 = vpack.c.b16 %v6620, %v6618
        %v6659 = vpack.c.b16 %v6621, %v6619
        %v6660 = vpack.c.b16 %v6624, %v6622
        %v6661 = vpack.c.b16 %v6625, %v6623
        %v6662 = vpack.c.b16 %v6628, %v6626
        %v6663 = vpack.c.b16 %v6629, %v6627
        %v6664 = vpack.c.b16 %v6632, %v6630
        %v6665 = vpack.c.b16 %v6633, %v6631
        %6698 = vmatprep.subr.bf16.mxu0 %v6635
        %6699 = vmatpush1.bf16.msra.mxu0 %v6634
        %6700 = vmatprep.subr.bf16.mxu0 %v6637
        %6701 = vmatpush1.bf16.msra.mxu0 %v6636
        %6702 = vmatprep.subr.bf16.mxu0 %v6639
        %6703 = vmatpush1.bf16.msra.mxu0 %v6638
        %6704 = vmatprep.subr.bf16.mxu0 %v6641
        %6705 = vmatpush1.bf16.msra.mxu0 %v6640
        %6706 = vmatprep.subr.bf16.mxu0 %v6643
        %6707 = vmatpush1.bf16.msra.mxu0 %v6642
        %6708 = vmatprep.subr.bf16.mxu0 %v6645
        %6709 = vmatpush1.bf16.msra.mxu0 %v6644
        %6710 = vmatprep.subr.bf16.mxu0 %v6647
        %6711 = vmatpush1.bf16.msra.mxu0 %v6646
        %6712 = vmatprep.subr.bf16.mxu0 %v6649
        %6713 = vmatpush1.bf16.msra.mxu0 %v6648
        %6714 = vmatprep.subr.bf16.mxu0 %v6651
        %6715 = vmatpush1.bf16.msra.mxu0 %v6650
        %6716 = vmatprep.subr.bf16.mxu0 %v6653
        %6717 = vmatpush1.bf16.msra.mxu0 %v6652
        %6718 = vmatprep.subr.bf16.mxu0 %v6655
        %6719 = vmatpush1.bf16.msra.mxu0 %v6654
        %6720 = vmatprep.subr.bf16.mxu0 %v6657
        %6721 = vmatpush1.bf16.msra.mxu0 %v6656
        %6722 = vmatprep.subr.bf16.mxu0 %v6659
        %6723 = vmatpush1.bf16.msra.mxu0 %v6658
        %6724 = vmatprep.subr.bf16.mxu0 %v6661
        %6725 = vmatpush1.bf16.msra.mxu0 %v6660
        %6726 = vmatprep.subr.bf16.mxu0 %v6663
        %6727 = vmatpush1.bf16.msra.mxu0 %v6662
        %6728 = vmatprep.subr.bf16.mxu0 %v6665
        %6729 = vmatpush1.bf16.msra.mxu0 %v6664
        %6730 = vmatprep.mubr.bf16.mxu0 %v6504
        %6731 = vmatmul.mubr.bf16.gmra.mrb[0].mxu0 %v6503
        %v6732 = vpop.f32.mrb[0].mxu0
        %v6733 = vadd.f32 0.0, %v6732
        %v6734 = vpop.f32.mrb[0].mxu0
        %v6735 = vadd.f32 0.0, %v6734
        %v6736 = vpop.f32.mrb[0].mxu0
        %v6737 = vpop.f32.mrb[0].mxu0
        %6738 = vdwg.mxu0
        %v6739 = vadd.f32 %v6451, %v6733
        %v6740 = vadd.f32 %v6453, %v6735
        %s6741 = scalar_lea.vmem [#allocation16], 6
        %v6742 = vld [vmem:[%s6741] sm:$0x3]
        %v6744 = vsel %vm2558, %v6742, 0
        %6746 = vmatprep.subr.bf16.mxu0 %v5897
        %6747 = vmatpush1.bf16.msra.mxu0 %v5894
        %6748 = vmatprep.subr.bf16.mxu0 0
        %6749 = vmatpush1.bf16.msra.mxu0 0
        %6750 = vmatprep.subr.bf16.mxu0 0
        %6751 = vmatpush1.bf16.msra.mxu0 0
        %6752 = vmatprep.subr.bf16.mxu0 0
        %6753 = vmatpush1.bf16.msra.mxu0 0
        %6754 = vmatprep.subr.bf16.mxu0 0
        %6755 = vmatpush1.bf16.msra.mxu0 0
        %6756 = vmatprep.subr.bf16.mxu0 0
        %6757 = vmatpush1.bf16.msra.mxu0 0
        %6758 = vmatprep.subr.bf16.mxu0 0
        %6759 = vmatpush1.bf16.msra.mxu0 0
        %6760 = vmatprep.subr.bf16.mxu0 0
        %6761 = vmatpush1.bf16.msra.mxu0 0
        %6762 = vmatprep.subr.bf16.mxu0 0
        %6763 = vmatpush1.bf16.msra.mxu0 0
        %6764 = vmatprep.subr.bf16.mxu0 0
        %6765 = vmatpush1.bf16.msra.mxu0 0
        %6766 = vmatprep.subr.bf16.mxu0 0
        %6767 = vmatpush1.bf16.msra.mxu0 0
        %6768 = vmatprep.subr.bf16.mxu0 0
        %6769 = vmatpush1.bf16.msra.mxu0 0
        %6770 = vmatprep.subr.bf16.mxu0 0
        %6771 = vmatpush1.bf16.msra.mxu0 0
        %6772 = vmatprep.subr.bf16.mxu0 0
        %6773 = vmatpush1.bf16.msra.mxu0 0
        %6774 = vmatprep.subr.bf16.mxu0 0
        %6775 = vmatpush1.bf16.msra.mxu0 0
        %6776 = vmatprep.subr.bf16.mxu0 0
        %6777 = vmatpush1.bf16.msra.mxu0 0
        %6778 = vmatprep.mubr.bf16.mxu0 0
        %6779 = vmatmul.mubr.bf16.gmra.mrb[0].mxu0 %v6744
        %v6780 = vpop.f32.mrb[0].mxu0
        %v6781 = vadd.f32 0.0, %v6780
        %v6782 = vpop.f32.mrb[0].mxu0
        %v6783 = vadd.f32 0.0, %v6782
        %v6784 = vpop.f32.mrb[0].mxu0
        %v6785 = vpop.f32.mrb[0].mxu0
        %6786 = vdwg.mxu0
        %v6787 = vpack.c.bf16 %v6781, %v6781
        %v6788 = vpack.c.bf16 %v6783, %v6783
        %s6789 = scalar_lea.vmem [#allocation17], 768
        %v6790 = vld [vmem:[%s6789] sm:$0xff]
        %v6791 = vld [vmem:[%s6789 + $0x8] sm:$0xff]
        %v6792 = vld [vmem:[%s6789 + $0x10] sm:$0xff]
        %v6793 = vld [vmem:[%s6789 + $0x18] sm:$0xff]
        %v6794 = vld [vmem:[%s6789 + $0x20] sm:$0xff]
        %v6795 = vld [vmem:[%s6789 + $0x28] sm:$0xff]
        %v6796 = vld [vmem:[%s6789 + $0x30] sm:$0xff]
        %v6797 = vld [vmem:[%s6789 + $0x38] sm:$0xff]
        %v6798 = vld [vmem:[%s6789 + $0x40] sm:$0xff]
        %v6799 = vld [vmem:[%s6789 + $0x48] sm:$0xff]
        %v6800 = vld [vmem:[%s6789 + $0x50] sm:$0xff]
        %v6801 = vld [vmem:[%s6789 + $0x58] sm:$0xff]
        %v6802 = vld [vmem:[%s6789 + $0x60] sm:$0xff]
        %v6803 = vld [vmem:[%s6789 + $0x68] sm:$0xff]
        %v6804 = vld [vmem:[%s6789 + $0x70] sm:$0xff]
        %v6805 = vld [vmem:[%s6789 + $0x78] sm:$0xff]
        %v6806 = vld [vmem:[%s6789 + $0x80] sm:$0xff]
        %v6807 = vld [vmem:[%s6789 + $0x88] sm:$0xff]
        %v6808 = vld [vmem:[%s6789 + $0x90] sm:$0xff]
        %v6809 = vld [vmem:[%s6789 + $0x98] sm:$0xff]
        %v6810 = vld [vmem:[%s6789 + $0xa0] sm:$0xff]
        %v6811 = vld [vmem:[%s6789 + $0xa8] sm:$0xff]
        %v6812 = vld [vmem:[%s6789 + $0xb0] sm:$0xff]
        %v6813 = vld [vmem:[%s6789 + $0xb8] sm:$0xff]
        %v6814 = vld [vmem:[%s6789 + $0xc0] sm:$0xff]
        %v6815 = vld [vmem:[%s6789 + $0xc8] sm:$0xff]
        %v6816 = vld [vmem:[%s6789 + $0xd0] sm:$0xff]
        %v6817 = vld [vmem:[%s6789 + $0xd8] sm:$0xff]
        %v6818 = vld [vmem:[%s6789 + $0xe0] sm:$0xff]
        %v6819 = vld [vmem:[%s6789 + $0xe8] sm:$0xff]
        %v6820 = vld [vmem:[%s6789 + $0xf0] sm:$0xff]
        %v6821 = vld [vmem:[%s6789 + $0xf8] sm:$0xff]
        %v6854 = vunpack.c.l.b16 %v6790
        %v6855 = vunpack.c.h.b16 %v6790
        %v6856 = vunpack.c.l.b16 %v6791
        %v6857 = vunpack.c.h.b16 %v6791
        %v6858 = vunpack.c.l.b16 %v6792
        %v6859 = vunpack.c.h.b16 %v6792
        %v6860 = vunpack.c.l.b16 %v6793
        %v6861 = vunpack.c.h.b16 %v6793
        %v6862 = vunpack.c.l.b16 %v6794
        %v6863 = vunpack.c.h.b16 %v6794
        %v6864 = vunpack.c.l.b16 %v6795
        %v6865 = vunpack.c.h.b16 %v6795
        %v6866 = vunpack.c.l.b16 %v6796
        %v6867 = vunpack.c.h.b16 %v6796
        %v6868 = vunpack.c.l.b16 %v6797
        %v6869 = vunpack.c.h.b16 %v6797
        %v6870 = vunpack.c.l.b16 %v6798
        %v6871 = vunpack.c.h.b16 %v6798
        %v6872 = vunpack.c.l.b16 %v6799
        %v6873 = vunpack.c.h.b16 %v6799
        %v6874 = vunpack.c.l.b16 %v6800
        %v6875 = vunpack.c.h.b16 %v6800
        %v6876 = vunpack.c.l.b16 %v6801
        %v6877 = vunpack.c.h.b16 %v6801
        %v6878 = vunpack.c.l.b16 %v6802
        %v6879 = vunpack.c.h.b16 %v6802
        %v6880 = vunpack.c.l.b16 %v6803
        %v6881 = vunpack.c.h.b16 %v6803
        %v6882 = vunpack.c.l.b16 %v6804
        %v6883 = vunpack.c.h.b16 %v6804
        %v6884 = vunpack.c.l.b16 %v6805
        %v6885 = vunpack.c.h.b16 %v6805
        %v6886 = vunpack.c.l.b16 %v6806
        %v6887 = vunpack.c.h.b16 %v6806
        %v6888 = vunpack.c.l.b16 %v6807
        %v6889 = vunpack.c.h.b16 %v6807
        %v6890 = vunpack.c.l.b16 %v6808
        %v6891 = vunpack.c.h.b16 %v6808
        %v6892 = vunpack.c.l.b16 %v6809
        %v6893 = vunpack.c.h.b16 %v6809
        %v6894 = vunpack.c.l.b16 %v6810
        %v6895 = vunpack.c.h.b16 %v6810
        %v6896 = vunpack.c.l.b16 %v6811
        %v6897 = vunpack.c.h.b16 %v6811
        %v6898 = vunpack.c.l.b16 %v6812
        %v6899 = vunpack.c.h.b16 %v6812
        %v6900 = vunpack.c.l.b16 %v6813
        %v6901 = vunpack.c.h.b16 %v6813
        %v6902 = vunpack.c.l.b16 %v6814
        %v6903 = vunpack.c.h.b16 %v6814
        %v6904 = vunpack.c.l.b16 %v6815
        %v6905 = vunpack.c.h.b16 %v6815
        %v6906 = vunpack.c.l.b16 %v6816
        %v6907 = vunpack.c.h.b16 %v6816
        %v6908 = vunpack.c.l.b16 %v6817
        %v6909 = vunpack.c.h.b16 %v6817
        %v6910 = vunpack.c.l.b16 %v6818
        %v6911 = vunpack.c.h.b16 %v6818
        %v6912 = vunpack.c.l.b16 %v6819
        %v6913 = vunpack.c.h.b16 %v6819
        %v6914 = vunpack.c.l.b16 %v6820
        %v6915 = vunpack.c.h.b16 %v6820
        %v6916 = vunpack.c.l.b16 %v6821
        %v6917 = vunpack.c.h.b16 %v6821
        %v6918 = vpack.c.b16 %v6856, %v6854
        %v6919 = vpack.c.b16 %v6857, %v6855
        %v6920 = vpack.c.b16 %v6860, %v6858
        %v6921 = vpack.c.b16 %v6861, %v6859
        %v6922 = vpack.c.b16 %v6864, %v6862
        %v6923 = vpack.c.b16 %v6865, %v6863
        %v6924 = vpack.c.b16 %v6868, %v6866
        %v6925 = vpack.c.b16 %v6869, %v6867
        %v6926 = vpack.c.b16 %v6872, %v6870
        %v6927 = vpack.c.b16 %v6873, %v6871
        %v6928 = vpack.c.b16 %v6876, %v6874
        %v6929 = vpack.c.b16 %v6877, %v6875
        %v6930 = vpack.c.b16 %v6880, %v6878
        %v6931 = vpack.c.b16 %v6881, %v6879
        %v6932 = vpack.c.b16 %v6884, %v6882
        %v6933 = vpack.c.b16 %v6885, %v6883
        %v6934 = vpack.c.b16 %v6888, %v6886
        %v6935 = vpack.c.b16 %v6889, %v6887
        %v6936 = vpack.c.b16 %v6892, %v6890
        %v6937 = vpack.c.b16 %v6893, %v6891
        %v6938 = vpack.c.b16 %v6896, %v6894
        %v6939 = vpack.c.b16 %v6897, %v6895
        %v6940 = vpack.c.b16 %v6900, %v6898
        %v6941 = vpack.c.b16 %v6901, %v6899
        %v6942 = vpack.c.b16 %v6904, %v6902
        %v6943 = vpack.c.b16 %v6905, %v6903
        %v6944 = vpack.c.b16 %v6908, %v6906
        %v6945 = vpack.c.b16 %v6909, %v6907
        %v6946 = vpack.c.b16 %v6912, %v6910
        %v6947 = vpack.c.b16 %v6913, %v6911
        %v6948 = vpack.c.b16 %v6916, %v6914
        %v6949 = vpack.c.b16 %v6917, %v6915
        %6982 = vmatprep.subr.bf16.mxu0 %v6919
        %6983 = vmatpush1.bf16.msra.mxu0 %v6918
        %6984 = vmatprep.subr.bf16.mxu0 %v6921
        %6985 = vmatpush1.bf16.msra.mxu0 %v6920
        %6986 = vmatprep.subr.bf16.mxu0 %v6923
        %6987 = vmatpush1.bf16.msra.mxu0 %v6922
        %6988 = vmatprep.subr.bf16.mxu0 %v6925
        %6989 = vmatpush1.bf16.msra.mxu0 %v6924
        %6990 = vmatprep.subr.bf16.mxu0 %v6927
        %6991 = vmatpush1.bf16.msra.mxu0 %v6926
        %6992 = vmatprep.subr.bf16.mxu0 %v6929
        %6993 = vmatpush1.bf16.msra.mxu0 %v6928
        %6994 = vmatprep.subr.bf16.mxu0 %v6931
        %6995 = vmatpush1.bf16.msra.mxu0 %v6930
        %6996 = vmatprep.subr.bf16.mxu0 %v6933
        %6997 = vmatpush1.bf16.msra.mxu0 %v6932
        %6998 = vmatprep.subr.bf16.mxu0 %v6935
        %6999 = vmatpush1.bf16.msra.mxu0 %v6934
        %7000 = vmatprep.subr.bf16.mxu0 %v6937
        %7001 = vmatpush1.bf16.msra.mxu0 %v6936
        %7002 = vmatprep.subr.bf16.mxu0 %v6939
        %7003 = vmatpush1.bf16.msra.mxu0 %v6938
        %7004 = vmatprep.subr.bf16.mxu0 %v6941
        %7005 = vmatpush1.bf16.msra.mxu0 %v6940
        %7006 = vmatprep.subr.bf16.mxu0 %v6943
        %7007 = vmatpush1.bf16.msra.mxu0 %v6942
        %7008 = vmatprep.subr.bf16.mxu0 %v6945
        %7009 = vmatpush1.bf16.msra.mxu0 %v6944
        %7010 = vmatprep.subr.bf16.mxu0 %v6947
        %7011 = vmatpush1.bf16.msra.mxu0 %v6946
        %7012 = vmatprep.subr.bf16.mxu0 %v6949
        %7013 = vmatpush1.bf16.msra.mxu0 %v6948
        %7014 = vmatprep.mubr.bf16.mxu0 %v6788
        %7015 = vmatmul.mubr.bf16.gmra.mrb[0].mxu0 %v6787
        %v7016 = vpop.f32.mrb[0].mxu0
        %v7017 = vadd.f32 0.0, %v7016
        %v7018 = vpop.f32.mrb[0].mxu0
        %v7019 = vadd.f32 0.0, %v7018
        %v7020 = vpop.f32.mrb[0].mxu0
        %v7021 = vpop.f32.mrb[0].mxu0
        %7022 = vdwg.mxu0
        %v7023 = vadd.f32 %v6739, %v7017
        %v7024 = vadd.f32 %v6740, %v7019
        %v7025 = vld [vmem:[#allocation19] sm:$0x3]
        %v7027 = vlaneseq
        %v7028 = vshrl.u32 %v7027, 7
        %v7029 = vsub.s32 0, %v7028
        %v7030 = vrot.slane %v7025, %v7029
        %v7031 = vlaneseq
        %v7032 = vshrl.u32 %v7031, 7
        %v7033 = vsub.s32 1, %v7032
        %v7034 = vrot.slane %v7025, %v7033
        %v7037 = vadd.f32 %v7023, %v7030
        %v7038 = vadd.f32 %v7024, %v7034
        %v7039 = vld [vmem:[%s39] sm:$0xf]
        %v7040 = vld [vmem:[%s39 + $0x4] sm:$0xf]
        %v7041 = vld [vmem:[%s39 + $0x8] sm:$0xf]
        %v7042 = vld [vmem:[%s39 + $0xc] sm:$0xf]
        %v7043 = vld [vmem:[%s39 + $0x10] sm:$0xf]
        %v7044 = vld [vmem:[%s39 + $0x14] sm:$0xf]
        %v7045 = vld [vmem:[%s39 + $0x18] sm:$0xf]
        %v7046 = vld [vmem:[%s39 + $0x1c] sm:$0xf]
        %v7047 = vld [vmem:[%s39 + $0x20] sm:$0xf]
        %v7048 = vld [vmem:[%s39 + $0x24] sm:$0xf]
        %v7049 = vld [vmem:[%s39 + $0x28] sm:$0xf]
        %v7050 = vld [vmem:[%s39 + $0x2c] sm:$0xf]
        %v7051 = vld [vmem:[%s39 + $0x30] sm:$0xf]
        %v7052 = vld [vmem:[%s39 + $0x34] sm:$0xf]
        %v7053 = vld [vmem:[%s39 + $0x38] sm:$0xf]
        %v7054 = vld [vmem:[%s39 + $0x3c] sm:$0xf]
        %v7055 = vld [vmem:[%s39 + $0x40] sm:$0xf]
        %v7056 = vld [vmem:[%s39 + $0x44] sm:$0xf]
        %v7057 = vld [vmem:[%s39 + $0x48] sm:$0xf]
        %v7058 = vld [vmem:[%s39 + $0x4c] sm:$0xf]
        %v7059 = vld [vmem:[%s39 + $0x50] sm:$0xf]
        %v7060 = vld [vmem:[%s39 + $0x54] sm:$0xf]
        %v7061 = vld [vmem:[%s39 + $0x58] sm:$0xf]
        %v7062 = vld [vmem:[%s39 + $0x5c] sm:$0xf]
        %v7063 = vld [vmem:[%s39 + $0x60] sm:$0xf]
        %v7064 = vld [vmem:[%s39 + $0x64] sm:$0xf]
        %v7065 = vld [vmem:[%s39 + $0x68] sm:$0xf]
        %v7066 = vld [vmem:[%s39 + $0x6c] sm:$0xf]
        %v7067 = vld [vmem:[%s39 + $0x70] sm:$0xf]
        %v7068 = vld [vmem:[%s39 + $0x74] sm:$0xf]
        %v7069 = vld [vmem:[%s39 + $0x78] sm:$0xf]
        %v7070 = vld [vmem:[%s39 + $0x7c] sm:$0xf]
        %v7071 = vld [vmem:[#allocation20] sm:$0xff]
        %v7072 = vld [vmem:[#allocation20 + $0x8] sm:$0xff]
        %v7073 = vld [vmem:[#allocation20 + $0x10] sm:$0xff]
        %v7074 = vld [vmem:[#allocation20 + $0x18] sm:$0xff]
        %v7075 = vld [vmem:[#allocation20 + $0x20] sm:$0xff]
        %v7076 = vld [vmem:[#allocation20 + $0x28] sm:$0xff]
        %v7077 = vld [vmem:[#allocation20 + $0x30] sm:$0xff]
        %v7078 = vld [vmem:[#allocation20 + $0x38] sm:$0xff]
        %v7079 = vsel %vm2562, %v7037, 0.0
        %v7080 = vrot.slane %v7079, 4
        %v7081 = vadd.f32 %v7079, %v7080
        %v7082 = vrot.slane %v7081, 2
        %v7083 = vadd.f32 %v7081, %v7082
        %v7084 = vrot.slane %v7083, 1
        %v7085 = vadd.f32 %v7083, %v7084
        %v7086 = vsel %vm2562, %v7038, 0.0
        %v7087 = vrot.slane %v7086, 4
        %v7088 = vadd.f32 %v7086, %v7087
        %v7089 = vrot.slane %v7088, 2
        %v7090 = vadd.f32 %v7088, %v7089
        %v7091 = vrot.slane %v7090, 1
        %v7092 = vadd.f32 %v7090, %v7091
        %v7093 = vpack.c.bf16 %v7085, %v7085
        %v7094 = vpack.c.bf16 %v7092, %v7092
        %v7127 = vunpack.c.l.b16 %v7039
        %v7128 = vunpack.c.l.b16 %v7040
        %v7129 = vunpack.c.l.b16 %v7041
        %v7130 = vunpack.c.l.b16 %v7042
        %v7131 = vunpack.c.l.b16 %v7043
        %v7132 = vunpack.c.l.b16 %v7044
        %v7133 = vunpack.c.l.b16 %v7045
        %v7134 = vunpack.c.l.b16 %v7046
        %v7135 = vunpack.c.l.b16 %v7047
        %v7136 = vunpack.c.l.b16 %v7048
        %v7137 = vunpack.c.l.b16 %v7049
        %v7138 = vunpack.c.l.b16 %v7050
        %v7139 = vunpack.c.l.b16 %v7051
        %v7140 = vunpack.c.l.b16 %v7052
        %v7141 = vunpack.c.l.b16 %v7053
        %v7142 = vunpack.c.l.b16 %v7054
        %v7143 = vunpack.c.l.b16 %v7055
        %v7144 = vunpack.c.l.b16 %v7056
        %v7145 = vunpack.c.l.b16 %v7057
        %v7146 = vunpack.c.l.b16 %v7058
        %v7147 = vunpack.c.l.b16 %v7059
        %v7148 = vunpack.c.l.b16 %v7060
        %v7149 = vunpack.c.l.b16 %v7061
        %v7150 = vunpack.c.l.b16 %v7062
        %v7151 = vunpack.c.l.b16 %v7063
        %v7152 = vunpack.c.l.b16 %v7064
        %v7153 = vunpack.c.l.b16 %v7065
        %v7154 = vunpack.c.l.b16 %v7066
        %v7155 = vunpack.c.l.b16 %v7067
        %v7156 = vunpack.c.l.b16 %v7068
        %v7157 = vunpack.c.l.b16 %v7069
        %v7158 = vunpack.c.l.b16 %v7070
        %v7159 = vpack.c.b16 %v7128, %v7127
        %v7160 = vpack.c.b16 %v7130, %v7129
        %v7161 = vpack.c.b16 %v7132, %v7131
        %v7162 = vpack.c.b16 %v7134, %v7133
        %v7163 = vpack.c.b16 %v7136, %v7135
        %v7164 = vpack.c.b16 %v7138, %v7137
        %v7165 = vpack.c.b16 %v7140, %v7139
        %v7166 = vpack.c.b16 %v7142, %v7141
        %v7167 = vpack.c.b16 %v7144, %v7143
        %v7168 = vpack.c.b16 %v7146, %v7145
        %v7169 = vpack.c.b16 %v7148, %v7147
        %v7170 = vpack.c.b16 %v7150, %v7149
        %v7171 = vpack.c.b16 %v7152, %v7151
        %v7172 = vpack.c.b16 %v7154, %v7153
        %v7173 = vpack.c.b16 %v7156, %v7155
        %v7174 = vpack.c.b16 %v7158, %v7157
        %7191 = vmatprep.subr.bf16.mxu0 0
        %7192 = vmatpush1.bf16.msra.mxu0 %v7159
        %7193 = vmatprep.subr.bf16.mxu0 0
        %7194 = vmatpush1.bf16.msra.mxu0 %v7160
        %7195 = vmatprep.subr.bf16.mxu0 0
        %7196 = vmatpush1.bf16.msra.mxu0 %v7161
        %7197 = vmatprep.subr.bf16.mxu0 0
        %7198 = vmatpush1.bf16.msra.mxu0 %v7162
        %7199 = vmatprep.subr.bf16.mxu0 0
        %7200 = vmatpush1.bf16.msra.mxu0 %v7163
        %7201 = vmatprep.subr.bf16.mxu0 0
        %7202 = vmatpush1.bf16.msra.mxu0 %v7164
        %7203 = vmatprep.subr.bf16.mxu0 0
        %7204 = vmatpush1.bf16.msra.mxu0 %v7165
        %7205 = vmatprep.subr.bf16.mxu0 0
        %7206 = vmatpush1.bf16.msra.mxu0 %v7166
        %7207 = vmatprep.subr.bf16.mxu0 0
        %7208 = vmatpush1.bf16.msra.mxu0 %v7167
        %7209 = vmatprep.subr.bf16.mxu0 0
        %7210 = vmatpush1.bf16.msra.mxu0 %v7168
        %7211 = vmatprep.subr.bf16.mxu0 0
        %7212 = vmatpush1.bf16.msra.mxu0 %v7169
        %7213 = vmatprep.subr.bf16.mxu0 0
        %7214 = vmatpush1.bf16.msra.mxu0 %v7170
        %7215 = vmatprep.subr.bf16.mxu0 0
        %7216 = vmatpush1.bf16.msra.mxu0 %v7171
        %7217 = vmatprep.subr.bf16.mxu0 0
        %7218 = vmatpush1.bf16.msra.mxu0 %v7172
        %7219 = vmatprep.subr.bf16.mxu0 0
        %7220 = vmatpush1.bf16.msra.mxu0 %v7173
        %7221 = vmatprep.subr.bf16.mxu0 0
        %7222 = vmatpush1.bf16.msra.mxu0 %v7174
        %7223 = vmatprep.mubr.bf16.mxu0 %v7094
        %7224 = vmatmul.mubr.bf16.gmra.mrb[0].mxu0 %v7093
        %v7225 = vpop.f32.mrb[0].mxu0
        %v7226 = vadd.f32 0.0, %v7225
        %v7227 = vpop.f32.mrb[0].mxu0
        %v7228 = vpop.f32.mrb[0].mxu0
        %v7229 = vpop.f32.mrb[0].mxu0
        %7230 = vdwg.mxu0
        %v7231 = vpack.c.bf16 %v7226, %v7226
        %v7240 = vunpack.c.l.b16 %v7071
        %v7241 = vunpack.c.h.b16 %v7071
        %v7242 = vunpack.c.l.b16 %v7072
        %v7243 = vunpack.c.h.b16 %v7072
        %v7244 = vunpack.c.l.b16 %v7073
        %v7245 = vunpack.c.h.b16 %v7073
        %v7246 = vunpack.c.l.b16 %v7074
        %v7247 = vunpack.c.h.b16 %v7074
        %v7248 = vunpack.c.l.b16 %v7075
        %v7249 = vunpack.c.h.b16 %v7075
        %v7250 = vunpack.c.l.b16 %v7076
        %v7251 = vunpack.c.h.b16 %v7076
        %v7252 = vunpack.c.l.b16 %v7077
        %v7253 = vunpack.c.h.b16 %v7077
        %v7254 = vunpack.c.l.b16 %v7078
        %v7255 = vunpack.c.h.b16 %v7078
        %v7256 = vpack.c.b16 %v7242, %v7240
        %v7257 = vpack.c.b16 %v7243, %v7241
        %v7258 = vpack.c.b16 %v7246, %v7244
        %v7259 = vpack.c.b16 %v7247, %v7245
        %v7260 = vpack.c.b16 %v7250, %v7248
        %v7261 = vpack.c.b16 %v7251, %v7249
        %v7262 = vpack.c.b16 %v7254, %v7252
        %v7263 = vpack.c.b16 %v7255, %v7253
        %v7273 = vsel %vm1214, %v7231, 0
        %7275 = vmatprep.subr.bf16.mxu0 %v7257
        %7276 = vmatpush1.bf16.msra.mxu0 %v7256
        %7277 = vmatprep.subr.bf16.mxu0 %v7259
        %7278 = vmatpush1.bf16.msra.mxu0 %v7258
        %7279 = vmatprep.subr.bf16.mxu0 %v7261
        %7280 = vmatpush1.bf16.msra.mxu0 %v7260
        %7281 = vmatprep.subr.bf16.mxu0 %v7263
        %7282 = vmatpush1.bf16.msra.mxu0 %v7262
        %7283 = vmatprep.subr.bf16.mxu0 0
        %7284 = vmatpush1.bf16.msra.mxu0 0
        %7285 = vmatprep.subr.bf16.mxu0 0
        %7286 = vmatpush1.bf16.msra.mxu0 0
        %7287 = vmatprep.subr.bf16.mxu0 0
        %7288 = vmatpush1.bf16.msra.mxu0 0
        %7289 = vmatprep.subr.bf16.mxu0 0
        %7290 = vmatpush1.bf16.msra.mxu0 0
        %7291 = vmatprep.subr.bf16.mxu0 0
        %7292 = vmatpush1.bf16.msra.mxu0 0
        %7293 = vmatprep.subr.bf16.mxu0 0
        %7294 = vmatpush1.bf16.msra.mxu0 0
        %7295 = vmatprep.subr.bf16.mxu0 0
        %7296 = vmatpush1.bf16.msra.mxu0 0
        %7297 = vmatprep.subr.bf16.mxu0 0
        %7298 = vmatpush1.bf16.msra.mxu0 0
        %7299 = vmatprep.subr.bf16.mxu0 0
        %7300 = vmatpush1.bf16.msra.mxu0 0
        %7301 = vmatprep.subr.bf16.mxu0 0
        %7302 = vmatpush1.bf16.msra.mxu0 0
        %7303 = vmatprep.subr.bf16.mxu0 0
        %7304 = vmatpush1.bf16.msra.mxu0 0
        %7305 = vmatprep.subr.bf16.mxu0 0
        %7306 = vmatpush1.bf16.msra.mxu0 0
        %7307 = vmatprep.mubr.bf16.mxu0 0
        %7308 = vmatmul.mubr.bf16.gmra.mrb[0].mxu0 %v7273
        %v7309 = vpop.f32.mrb[0].mxu0
        %v7310 = vadd.f32 0.0, %v7309
        %v7311 = vpop.f32.mrb[0].mxu0
        %v7312 = vadd.f32 0.0, %v7311
        %v7313 = vpop.f32.mrb[0].mxu0
        %v7314 = vpop.f32.mrb[0].mxu0
        %7315 = vdwg.mxu0
        %v7316 = vlaneseq
        %v7317 = vshrl.u32 %v7316, 7
        %v7318 = vsub.s32 0, %v7317
        %v7319 = vrot.slane %v7310, %v7318
        %v7320 = vlaneseq
        %v7321 = vshrl.u32 %v7320, 7
        %v7322 = vsub.s32 0, %v7321
        %v7323 = vrot.slane %v7312, %v7322
        %v7324 = vsub.f32 %v7037, %v7319
        %v7325 = vsub.f32 %v7038, %v7323
        %v7326 = vmul.f32 %v7324, %v7324
        %v7327 = vmul.f32 %v7325, %v7325
        %v7328 = vsel %vm2562, %v7326, 0.0
        %v7329 = vrot.slane %v7328, 4
        %v7330 = vadd.f32 %v7328, %v7329
        %v7331 = vrot.slane %v7330, 2
        %v7332 = vadd.f32 %v7330, %v7331
        %v7333 = vrot.slane %v7332, 1
        %v7334 = vadd.f32 %v7332, %v7333
        %v7335 = vsel %vm2562, %v7327, 0.0
        %v7336 = vrot.slane %v7335, 4
        %v7337 = vadd.f32 %v7335, %v7336
        %v7338 = vrot.slane %v7337, 2
        %v7339 = vadd.f32 %v7337, %v7338
        %v7340 = vrot.slane %v7339, 1
        %v7341 = vadd.f32 %v7339, %v7340
        %v7342 = vpack.c.bf16 %v7334, %v7334
        %v7343 = vpack.c.bf16 %v7341, %v7341
        %7344 = vmatprep.subr.bf16.mxu0 0
        %7345 = vmatpush1.bf16.msra.mxu0 %v7159
        %7346 = vmatprep.subr.bf16.mxu0 0
        %7347 = vmatpush1.bf16.msra.mxu0 %v7160
        %7348 = vmatprep.subr.bf16.mxu0 0
        %7349 = vmatpush1.bf16.msra.mxu0 %v7161
        %7350 = vmatprep.subr.bf16.mxu0 0
        %7351 = vmatpush1.bf16.msra.mxu0 %v7162
        %7352 = vmatprep.subr.bf16.mxu0 0
        %7353 = vmatpush1.bf16.msra.mxu0 %v7163
        %7354 = vmatprep.subr.bf16.mxu0 0
        %7355 = vmatpush1.bf16.msra.mxu0 %v7164
        %7356 = vmatprep.subr.bf16.mxu0 0
        %7357 = vmatpush1.bf16.msra.mxu0 %v7165
        %7358 = vmatprep.subr.bf16.mxu0 0
        %7359 = vmatpush1.bf16.msra.mxu0 %v7166
        %7360 = vmatprep.subr.bf16.mxu0 0
        %7361 = vmatpush1.bf16.msra.mxu0 %v7167
        %7362 = vmatprep.subr.bf16.mxu0 0
        %7363 = vmatpush1.bf16.msra.mxu0 %v7168
        %7364 = vmatprep.subr.bf16.mxu0 0
        %7365 = vmatpush1.bf16.msra.mxu0 %v7169
        %7366 = vmatprep.subr.bf16.mxu0 0
        %7367 = vmatpush1.bf16.msra.mxu0 %v7170
        %7368 = vmatprep.subr.bf16.mxu0 0
        %7369 = vmatpush1.bf16.msra.mxu0 %v7171
        %7370 = vmatprep.subr.bf16.mxu0 0
        %7371 = vmatpush1.bf16.msra.mxu0 %v7172
        %7372 = vmatprep.subr.bf16.mxu0 0
        %7373 = vmatpush1.bf16.msra.mxu0 %v7173
        %7374 = vmatprep.subr.bf16.mxu0 0
        %7375 = vmatpush1.bf16.msra.mxu0 %v7174
        %7376 = vmatprep.mubr.bf16.mxu0 %v7343
        %7377 = vmatmul.mubr.bf16.gmra.mrb[0].mxu0 %v7342
        %v7378 = vpop.f32.mrb[0].mxu0
        %v7379 = vadd.f32 0.0, %v7378
        %v7380 = vpop.f32.mrb[0].mxu0
        %v7381 = vpop.f32.mrb[0].mxu0
        %v7382 = vpop.f32.mrb[0].mxu0
        %7383 = vdwg.mxu0
        %v7384 = vpack.c.bf16 %v7379, %v7379
        %v7386 = vsel %vm1214, %v7384, 0
        %7388 = vmatprep.subr.bf16.mxu0 %v7257
        %7389 = vmatpush1.bf16.msra.mxu0 %v7256
        %7390 = vmatprep.subr.bf16.mxu0 %v7259
        %7391 = vmatpush1.bf16.msra.mxu0 %v7258
        %7392 = vmatprep.subr.bf16.mxu0 %v7261
        %7393 = vmatpush1.bf16.msra.mxu0 %v7260
        %7394 = vmatprep.subr.bf16.mxu0 %v7263
        %7395 = vmatpush1.bf16.msra.mxu0 %v7262
        %7396 = vmatprep.subr.bf16.mxu0 0
        %7397 = vmatpush1.bf16.msra.mxu0 0
        %7398 = vmatprep.subr.bf16.mxu0 0
        %7399 = vmatpush1.bf16.msra.mxu0 0
        %7400 = vmatprep.subr.bf16.mxu0 0
        %7401 = vmatpush1.bf16.msra.mxu0 0
        %7402 = vmatprep.subr.bf16.mxu0 0
        %7403 = vmatpush1.bf16.msra.mxu0 0
        %7404 = vmatprep.subr.bf16.mxu0 0
        %7405 = vmatpush1.bf16.msra.mxu0 0
        %7406 = vmatprep.subr.bf16.mxu0 0
        %7407 = vmatpush1.bf16.msra.mxu0 0
        %7408 = vmatprep.subr.bf16.mxu0 0
        %7409 = vmatpush1.bf16.msra.mxu0 0
        %7410 = vmatprep.subr.bf16.mxu0 0
        %7411 = vmatpush1.bf16.msra.mxu0 0
        %7412 = vmatprep.subr.bf16.mxu0 0
        %7413 = vmatpush1.bf16.msra.mxu0 0
        %7414 = vmatprep.subr.bf16.mxu0 0
        %7415 = vmatpush1.bf16.msra.mxu0 0
        %7416 = vmatprep.subr.bf16.mxu0 0
        %7417 = vmatpush1.bf16.msra.mxu0 0
        %7418 = vmatprep.subr.bf16.mxu0 0
        %7419 = vmatpush1.bf16.msra.mxu0 0
        %7420 = vmatprep.mubr.bf16.mxu0 0
        %7421 = vmatmul.mubr.bf16.gmra.mrb[0].mxu0 %v7386
        %v7422 = vpop.f32.mrb[0].mxu0
        %v7423 = vadd.f32 1e-05, %v7422
        %v7424 = vpop.f32.mrb[0].mxu0
        %v7425 = vadd.f32 1e-05, %v7424
        %v7426 = vpop.f32.mrb[0].mxu0
        %v7427 = vpop.f32.mrb[0].mxu0
        %7428 = vdwg.mxu0
        %v7429 = vrsqrt.pop %v7423
        %v7430 = vrsqrt.pop %v7425
        %v7431 = vlaneseq
        %v7432 = vshrl.u32 %v7431, 7
        %v7433 = vsub.s32 0, %v7432
        %v7434 = vrot.slane %v7429, %v7433
        %v7435 = vlaneseq
        %v7436 = vshrl.u32 %v7435, 7
        %v7437 = vsub.s32 0, %v7436
        %v7438 = vrot.slane %v7430, %v7437
        %v7439 = vmul.f32 %v7324, %v7434
        %v7440 = vmul.f32 %v7325, %v7438
        %vm7441 = vcmp.ge.f32.partialorder %v7439, 0.0
        %vm7442 = vcmp.ge.f32.partialorder %v7440, 0.0
        %v7443 = vmul.f32 %v7439, 0.01
        %v7444 = vmul.f32 %v7440, 0.01
        %v7445 = vsel %vm7441, %v7439, %v7443
        %v7446 = vsel %vm7442, %v7440, %v7444
        %v7447 = vpack.c.bf16 %v7445, %v7445
        %v7448 = vpack.c.bf16 %v7446, %v7446
        %v7449 = vld [vmem:[#allocation22] sm:$0x1]
        %vm7450 = vcmask 31744
        %v7452 = vsel %vm7450, %v7449, 0
        %vm7454 = vcmask 1041408
        %v7456 = vsel %vm7454, %v7447, 0
        %v7459 = vsel %vm7454, %v7448, 0
        %7461 = vmatprep.subr.bf16.mxu0 %v7459
        %7462 = vmatpush1.bf16.msra.mxu0 %v7456
        %7463 = vmatprep.subr.bf16.mxu0 0
        %7464 = vmatpush1.bf16.msra.mxu0 0
        %7465 = vmatprep.subr.bf16.mxu0 0
        %7466 = vmatpush1.bf16.msra.mxu0 0
        %7467 = vmatprep.subr.bf16.mxu0 0
        %7468 = vmatpush1.bf16.msra.mxu0 0
        %7469 = vmatprep.subr.bf16.mxu0 0
        %7470 = vmatpush1.bf16.msra.mxu0 0
        %7471 = vmatprep.subr.bf16.mxu0 0
        %7472 = vmatpush1.bf16.msra.mxu0 0
        %7473 = vmatprep.subr.bf16.mxu0 0
        %7474 = vmatpush1.bf16.msra.mxu0 0
        %7475 = vmatprep.subr.bf16.mxu0 0
        %7476 = vmatpush1.bf16.msra.mxu0 0
        %7477 = vmatprep.subr.bf16.mxu0 0
        %7478 = vmatpush1.bf16.msra.mxu0 0
        %7479 = vmatprep.subr.bf16.mxu0 0
        %7480 = vmatpush1.bf16.msra.mxu0 0
        %7481 = vmatprep.subr.bf16.mxu0 0
        %7482 = vmatpush1.bf16.msra.mxu0 0
        %7483 = vmatprep.subr.bf16.mxu0 0
        %7484 = vmatpush1.bf16.msra.mxu0 0
        %7485 = vmatprep.subr.bf16.mxu0 0
        %7486 = vmatpush1.bf16.msra.mxu0 0
        %7487 = vmatprep.subr.bf16.mxu0 0
        %7488 = vmatpush1.bf16.msra.mxu0 0
        %7489 = vmatprep.subr.bf16.mxu0 0
        %7490 = vmatpush1.bf16.msra.mxu0 0
        %7491 = vmatprep.subr.bf16.mxu0 0
        %7492 = vmatpush1.bf16.msra.mxu0 0
        %7493 = vmatprep.mubr.bf16.mxu0 0
        %7494 = vmatmul.mubr.bf16.gmra.mrb[0].mxu0 %v7452
        %v7495 = vpop.f32.mrb[0].mxu0
        %v7496 = vadd.f32 0.0, %v7495
        %v7497 = vpop.f32.mrb[0].mxu0
        %v7498 = vadd.f32 0.0, %v7497
        %v7499 = vpop.f32.mrb[0].mxu0
        %v7500 = vpop.f32.mrb[0].mxu0
        %7501 = vdwg.mxu0
        %v7502 = vpack.c.bf16 %v7496, %v7496
        %v7503 = vpack.c.bf16 %v7498, %v7498
        %v7504 = vld [vmem:[#allocation23] sm:$0xff]
        %v7505 = vld [vmem:[#allocation23 + $0x8] sm:$0xff]
        %v7506 = vld [vmem:[#allocation23 + $0x10] sm:$0xff]
        %v7507 = vld [vmem:[#allocation23 + $0x18] sm:$0xff]
        %v7508 = vld [vmem:[#allocation23 + $0x20] sm:$0xff]
        %v7509 = vld [vmem:[#allocation23 + $0x28] sm:$0xff]
        %v7510 = vld [vmem:[#allocation23 + $0x30] sm:$0xff]
        %v7511 = vld [vmem:[#allocation23 + $0x38] sm:$0xff]
        %v7512 = vld [vmem:[#allocation23 + $0x40] sm:$0xff]
        %v7513 = vld [vmem:[#allocation23 + $0x48] sm:$0xff]
        %v7514 = vld [vmem:[#allocation23 + $0x50] sm:$0xff]
        %v7515 = vld [vmem:[#allocation23 + $0x58] sm:$0xff]
        %v7516 = vld [vmem:[#allocation23 + $0x60] sm:$0xff]
        %v7517 = vld [vmem:[#allocation23 + $0x68] sm:$0xff]
        %v7518 = vld [vmem:[#allocation23 + $0x70] sm:$0xff]
        %v7519 = vld [vmem:[#allocation23 + $0x78] sm:$0xff]
        %v7520 = vld [vmem:[#allocation23 + $0x80] sm:$0xff]
        %v7521 = vld [vmem:[#allocation23 + $0x88] sm:$0xff]
        %v7522 = vld [vmem:[#allocation23 + $0x90] sm:$0xff]
        %v7523 = vld [vmem:[#allocation23 + $0x98] sm:$0xff]
        %v7524 = vld [vmem:[#allocation23 + $0xa0] sm:$0xff]
        %v7525 = vld [vmem:[#allocation23 + $0xa8] sm:$0xff]
        %v7526 = vld [vmem:[#allocation23 + $0xb0] sm:$0xff]
        %v7527 = vld [vmem:[#allocation23 + $0xb8] sm:$0xff]
        %v7528 = vld [vmem:[#allocation23 + $0xc0] sm:$0xff]
        %v7529 = vld [vmem:[#allocation23 + $0xc8] sm:$0xff]
        %v7530 = vld [vmem:[#allocation23 + $0xd0] sm:$0xff]
        %v7531 = vld [vmem:[#allocation23 + $0xd8] sm:$0xff]
        %v7532 = vld [vmem:[#allocation23 + $0xe0] sm:$0xff]
        %v7533 = vld [vmem:[#allocation23 + $0xe8] sm:$0xff]
        %v7534 = vld [vmem:[#allocation23 + $0xf0] sm:$0xff]
        %v7535 = vld [vmem:[#allocation23 + $0xf8] sm:$0xff]
        %s7536 = scalar_lea.vmem [#allocation22], 1
        %v7537 = vld [vmem:[%s7536] sm:$0x1]
        %v7539 = vsel %vm7450, %v7537, 0
        %7541 = vmatprep.subr.bf16.mxu0 %v7459
        %7542 = vmatpush1.bf16.msra.mxu0 %v7456
        %7543 = vmatprep.subr.bf16.mxu0 0
        %7544 = vmatpush1.bf16.msra.mxu0 0
        %7545 = vmatprep.subr.bf16.mxu0 0
        %7546 = vmatpush1.bf16.msra.mxu0 0
        %7547 = vmatprep.subr.bf16.mxu0 0
        %7548 = vmatpush1.bf16.msra.mxu0 0
        %7549 = vmatprep.subr.bf16.mxu0 0
        %7550 = vmatpush1.bf16.msra.mxu0 0
        %7551 = vmatprep.subr.bf16.mxu0 0
        %7552 = vmatpush1.bf16.msra.mxu0 0
        %7553 = vmatprep.subr.bf16.mxu0 0
        %7554 = vmatpush1.bf16.msra.mxu0 0
        %7555 = vmatprep.subr.bf16.mxu0 0
        %7556 = vmatpush1.bf16.msra.mxu0 0
        %7557 = vmatprep.subr.bf16.mxu0 0
        %7558 = vmatpush1.bf16.msra.mxu0 0
        %7559 = vmatprep.subr.bf16.mxu0 0
        %7560 = vmatpush1.bf16.msra.mxu0 0
        %7561 = vmatprep.subr.bf16.mxu0 0
        %7562 = vmatpush1.bf16.msra.mxu0 0
        %7563 = vmatprep.subr.bf16.mxu0 0
        %7564 = vmatpush1.bf16.msra.mxu0 0
        %7565 = vmatprep.subr.bf16.mxu0 0
        %7566 = vmatpush1.bf16.msra.mxu0 0
        %7567 = vmatprep.subr.bf16.mxu0 0
        %7568 = vmatpush1.bf16.msra.mxu0 0
        %7569 = vmatprep.subr.bf16.mxu0 0
        %7570 = vmatpush1.bf16.msra.mxu0 0
        %7571 = vmatprep.subr.bf16.mxu0 0
        %7572 = vmatpush1.bf16.msra.mxu0 0
        %7573 = vmatprep.mubr.bf16.mxu0 0
        %7574 = vmatmul.mubr.bf16.gmra.mrb[0].mxu0 %v7539
        %v7575 = vpop.f32.mrb[0].mxu0
        %v7576 = vadd.f32 0.0, %v7575
        %v7577 = vpop.f32.mrb[0].mxu0
        %v7578 = vadd.f32 0.0, %v7577
        %v7579 = vpop.f32.mrb[0].mxu0
        %v7580 = vpop.f32.mrb[0].mxu0
        %7581 = vdwg.mxu0
        %v7582 = vpack.c.bf16 %v7576, %v7576
        %v7583 = vpack.c.bf16 %v7578, %v7578
        %s7584 = scalar_lea.vmem [#allocation23], 256
        %v7585 = vld [vmem:[%s7584] sm:$0xff]
        %v7586 = vld [vmem:[%s7584 + $0x8] sm:$0xff]
        %v7587 = vld [vmem:[%s7584 + $0x10] sm:$0xff]
        %v7588 = vld [vmem:[%s7584 + $0x18] sm:$0xff]
        %v7589 = vld [vmem:[%s7584 + $0x20] sm:$0xff]
        %v7590 = vld [vmem:[%s7584 + $0x28] sm:$0xff]
        %v7591 = vld [vmem:[%s7584 + $0x30] sm:$0xff]
        %v7592 = vld [vmem:[%s7584 + $0x38] sm:$0xff]
        %v7593 = vld [vmem:[%s7584 + $0x40] sm:$0xff]
        %v7594 = vld [vmem:[%s7584 + $0x48] sm:$0xff]
        %v7595 = vld [vmem:[%s7584 + $0x50] sm:$0xff]
        %v7596 = vld [vmem:[%s7584 + $0x58] sm:$0xff]
        %v7597 = vld [vmem:[%s7584 + $0x60] sm:$0xff]
        %v7598 = vld [vmem:[%s7584 + $0x68] sm:$0xff]
        %v7599 = vld [vmem:[%s7584 + $0x70] sm:$0xff]
        %v7600 = vld [vmem:[%s7584 + $0x78] sm:$0xff]
        %v7601 = vld [vmem:[%s7584 + $0x80] sm:$0xff]
        %v7602 = vld [vmem:[%s7584 + $0x88] sm:$0xff]
        %v7603 = vld [vmem:[%s7584 + $0x90] sm:$0xff]
        %v7604 = vld [vmem:[%s7584 + $0x98] sm:$0xff]
        %v7605 = vld [vmem:[%s7584 + $0xa0] sm:$0xff]
        %v7606 = vld [vmem:[%s7584 + $0xa8] sm:$0xff]
        %v7607 = vld [vmem:[%s7584 + $0xb0] sm:$0xff]
        %v7608 = vld [vmem:[%s7584 + $0xb8] sm:$0xff]
        %v7609 = vld [vmem:[%s7584 + $0xc0] sm:$0xff]
        %v7610 = vld [vmem:[%s7584 + $0xc8] sm:$0xff]
        %v7611 = vld [vmem:[%s7584 + $0xd0] sm:$0xff]
        %v7612 = vld [vmem:[%s7584 + $0xd8] sm:$0xff]
        %v7613 = vld [vmem:[%s7584 + $0xe0] sm:$0xff]
        %v7614 = vld [vmem:[%s7584 + $0xe8] sm:$0xff]
        %v7615 = vld [vmem:[%s7584 + $0xf0] sm:$0xff]
        %v7616 = vld [vmem:[%s7584 + $0xf8] sm:$0xff]
        %v7649 = vunpack.c.l.b16 %v7585
        %v7650 = vunpack.c.h.b16 %v7585
        %v7651 = vunpack.c.l.b16 %v7586
        %v7652 = vunpack.c.h.b16 %v7586
        %v7653 = vunpack.c.l.b16 %v7587
        %v7654 = vunpack.c.h.b16 %v7587
        %v7655 = vunpack.c.l.b16 %v7588
        %v7656 = vunpack.c.h.b16 %v7588
        %v7657 = vunpack.c.l.b16 %v7589
        %v7658 = vunpack.c.h.b16 %v7589
        %v7659 = vunpack.c.l.b16 %v7590
        %v7660 = vunpack.c.h.b16 %v7590
        %v7661 = vunpack.c.l.b16 %v7591
        %v7662 = vunpack.c.h.b16 %v7591
        %v7663 = vunpack.c.l.b16 %v7592
        %v7664 = vunpack.c.h.b16 %v7592
        %v7665 = vunpack.c.l.b16 %v7593
        %v7666 = vunpack.c.h.b16 %v7593
        %v7667 = vunpack.c.l.b16 %v7594
        %v7668 = vunpack.c.h.b16 %v7594
        %v7669 = vunpack.c.l.b16 %v7595
        %v7670 = vunpack.c.h.b16 %v7595
        %v7671 = vunpack.c.l.b16 %v7596
        %v7672 = vunpack.c.h.b16 %v7596
        %v7673 = vunpack.c.l.b16 %v7597
        %v7674 = vunpack.c.h.b16 %v7597
        %v7675 = vunpack.c.l.b16 %v7598
        %v7676 = vunpack.c.h.b16 %v7598
        %v7677 = vunpack.c.l.b16 %v7599
        %v7678 = vunpack.c.h.b16 %v7599
        %v7679 = vunpack.c.l.b16 %v7600
        %v7680 = vunpack.c.h.b16 %v7600
        %v7681 = vunpack.c.l.b16 %v7601
        %v7682 = vunpack.c.h.b16 %v7601
        %v7683 = vunpack.c.l.b16 %v7602
        %v7684 = vunpack.c.h.b16 %v7602
        %v7685 = vunpack.c.l.b16 %v7603
        %v7686 = vunpack.c.h.b16 %v7603
        %v7687 = vunpack.c.l.b16 %v7604
        %v7688 = vunpack.c.h.b16 %v7604
        %v7689 = vunpack.c.l.b16 %v7605
        %v7690 = vunpack.c.h.b16 %v7605
        %v7691 = vunpack.c.l.b16 %v7606
        %v7692 = vunpack.c.h.b16 %v7606
        %v7693 = vunpack.c.l.b16 %v7607
        %v7694 = vunpack.c.h.b16 %v7607
        %v7695 = vunpack.c.l.b16 %v7608
        %v7696 = vunpack.c.h.b16 %v7608
        %v7697 = vunpack.c.l.b16 %v7609
        %v7698 = vunpack.c.h.b16 %v7609
        %v7699 = vunpack.c.l.b16 %v7610
        %v7700 = vunpack.c.h.b16 %v7610
        %v7701 = vunpack.c.l.b16 %v7611
        %v7702 = vunpack.c.h.b16 %v7611
        %v7703 = vunpack.c.l.b16 %v7612
        %v7704 = vunpack.c.h.b16 %v7612
        %v7705 = vunpack.c.l.b16 %v7613
        %v7706 = vunpack.c.h.b16 %v7613
        %v7707 = vunpack.c.l.b16 %v7614
        %v7708 = vunpack.c.h.b16 %v7614
        %v7709 = vunpack.c.l.b16 %v7615
        %v7710 = vunpack.c.h.b16 %v7615
        %v7711 = vunpack.c.l.b16 %v7616
        %v7712 = vunpack.c.h.b16 %v7616
        %v7713 = vpack.c.b16 %v7651, %v7649
        %v7714 = vpack.c.b16 %v7652, %v7650
        %v7715 = vpack.c.b16 %v7655, %v7653
        %v7716 = vpack.c.b16 %v7656, %v7654
        %v7717 = vpack.c.b16 %v7659, %v7657
        %v7718 = vpack.c.b16 %v7660, %v7658
        %v7719 = vpack.c.b16 %v7663, %v7661
        %v7720 = vpack.c.b16 %v7664, %v7662
        %v7721 = vpack.c.b16 %v7667, %v7665
        %v7722 = vpack.c.b16 %v7668, %v7666
        %v7723 = vpack.c.b16 %v7671, %v7669
        %v7724 = vpack.c.b16 %v7672, %v7670
        %v7725 = vpack.c.b16 %v7675, %v7673
        %v7726 = vpack.c.b16 %v7676, %v7674
        %v7727 = vpack.c.b16 %v7679, %v7677
        %v7728 = vpack.c.b16 %v7680, %v7678
        %v7729 = vpack.c.b16 %v7683, %v7681
        %v7730 = vpack.c.b16 %v7684, %v7682
        %v7731 = vpack.c.b16 %v7687, %v7685
        %v7732 = vpack.c.b16 %v7688, %v7686
        %v7733 = vpack.c.b16 %v7691, %v7689
        %v7734 = vpack.c.b16 %v7692, %v7690
        %v7735 = vpack.c.b16 %v7695, %v7693
        %v7736 = vpack.c.b16 %v7696, %v7694
        %v7737 = vpack.c.b16 %v7699, %v7697
        %v7738 = vpack.c.b16 %v7700, %v7698
        %v7739 = vpack.c.b16 %v7703, %v7701
        %v7740 = vpack.c.b16 %v7704, %v7702
        %v7741 = vpack.c.b16 %v7707, %v7705
        %v7742 = vpack.c.b16 %v7708, %v7706
        %v7743 = vpack.c.b16 %v7711, %v7709
        %v7744 = vpack.c.b16 %v7712, %v7710
        %7777 = vmatprep.subr.bf16.mxu0 %v7714
        %7778 = vmatpush1.bf16.msra.mxu0 %v7713
        %7779 = vmatprep.subr.bf16.mxu0 %v7716
        %7780 = vmatpush1.bf16.msra.mxu0 %v7715
        %7781 = vmatprep.subr.bf16.mxu0 %v7718
        %7782 = vmatpush1.bf16.msra.mxu0 %v7717
        %7783 = vmatprep.subr.bf16.mxu0 %v7720
        %7784 = vmatpush1.bf16.msra.mxu0 %v7719
        %7785 = vmatprep.subr.bf16.mxu0 %v7722
        %7786 = vmatpush1.bf16.msra.mxu0 %v7721
        %7787 = vmatprep.subr.bf16.mxu0 %v7724
        %7788 = vmatpush1.bf16.msra.mxu0 %v7723
        %7789 = vmatprep.subr.bf16.mxu0 %v7726
        %7790 = vmatpush1.bf16.msra.mxu0 %v7725
        %7791 = vmatprep.subr.bf16.mxu0 %v7728
        %7792 = vmatpush1.bf16.msra.mxu0 %v7727
        %7793 = vmatprep.subr.bf16.mxu0 %v7730
        %7794 = vmatpush1.bf16.msra.mxu0 %v7729
        %7795 = vmatprep.subr.bf16.mxu0 %v7732
        %7796 = vmatpush1.bf16.msra.mxu0 %v7731
        %7797 = vmatprep.subr.bf16.mxu0 %v7734
        %7798 = vmatpush1.bf16.msra.mxu0 %v7733
        %7799 = vmatprep.subr.bf16.mxu0 %v7736
        %7800 = vmatpush1.bf16.msra.mxu0 %v7735
        %7801 = vmatprep.subr.bf16.mxu0 %v7738
        %7802 = vmatpush1.bf16.msra.mxu0 %v7737
        %7803 = vmatprep.subr.bf16.mxu0 %v7740
        %7804 = vmatpush1.bf16.msra.mxu0 %v7739
        %7805 = vmatprep.subr.bf16.mxu0 %v7742
        %7806 = vmatpush1.bf16.msra.mxu0 %v7741
        %7807 = vmatprep.subr.bf16.mxu0 %v7744
        %7808 = vmatpush1.bf16.msra.mxu0 %v7743
        %7809 = vmatprep.mubr.bf16.mxu0 %v7583
        %7810 = vmatmul.mubr.bf16.gmra.mrb[0].mxu0 %v7582
        %v7811 = vpop.f32.mrb[0].mxu0
        %v7812 = vadd.f32 0.0, %v7811
        %v7813 = vpop.f32.mrb[0].mxu0
        %v7814 = vadd.f32 0.0, %v7813
        %v7815 = vpop.f32.mrb[0].mxu0
        %v7816 = vpop.f32.mrb[0].mxu0
        %7817 = vdwg.mxu0
        %v7850 = vunpack.c.l.b16 %v7504
        %v7851 = vunpack.c.h.b16 %v7504
        %v7852 = vunpack.c.l.b16 %v7505
        %v7853 = vunpack.c.h.b16 %v7505
        %v7854 = vunpack.c.l.b16 %v7506
        %v7855 = vunpack.c.h.b16 %v7506
        %v7856 = vunpack.c.l.b16 %v7507
        %v7857 = vunpack.c.h.b16 %v7507
        %v7858 = vunpack.c.l.b16 %v7508
        %v7859 = vunpack.c.h.b16 %v7508
        %v7860 = vunpack.c.l.b16 %v7509
        %v7861 = vunpack.c.h.b16 %v7509
        %v7862 = vunpack.c.l.b16 %v7510
        %v7863 = vunpack.c.h.b16 %v7510
        %v7864 = vunpack.c.l.b16 %v7511
        %v7865 = vunpack.c.h.b16 %v7511
        %v7866 = vunpack.c.l.b16 %v7512
        %v7867 = vunpack.c.h.b16 %v7512
        %v7868 = vunpack.c.l.b16 %v7513
        %v7869 = vunpack.c.h.b16 %v7513
        %v7870 = vunpack.c.l.b16 %v7514
        %v7871 = vunpack.c.h.b16 %v7514
        %v7872 = vunpack.c.l.b16 %v7515
        %v7873 = vunpack.c.h.b16 %v7515
        %v7874 = vunpack.c.l.b16 %v7516
        %v7875 = vunpack.c.h.b16 %v7516
        %v7876 = vunpack.c.l.b16 %v7517
        %v7877 = vunpack.c.h.b16 %v7517
        %v7878 = vunpack.c.l.b16 %v7518
        %v7879 = vunpack.c.h.b16 %v7518
        %v7880 = vunpack.c.l.b16 %v7519
        %v7881 = vunpack.c.h.b16 %v7519
        %v7882 = vunpack.c.l.b16 %v7520
        %v7883 = vunpack.c.h.b16 %v7520
        %v7884 = vunpack.c.l.b16 %v7521
        %v7885 = vunpack.c.h.b16 %v7521
        %v7886 = vunpack.c.l.b16 %v7522
        %v7887 = vunpack.c.h.b16 %v7522
        %v7888 = vunpack.c.l.b16 %v7523
        %v7889 = vunpack.c.h.b16 %v7523
        %v7890 = vunpack.c.l.b16 %v7524
        %v7891 = vunpack.c.h.b16 %v7524
        %v7892 = vunpack.c.l.b16 %v7525
        %v7893 = vunpack.c.h.b16 %v7525
        %v7894 = vunpack.c.l.b16 %v7526
        %v7895 = vunpack.c.h.b16 %v7526
        %v7896 = vunpack.c.l.b16 %v7527
        %v7897 = vunpack.c.h.b16 %v7527
        %v7898 = vunpack.c.l.b16 %v7528
        %v7899 = vunpack.c.h.b16 %v7528
        %v7900 = vunpack.c.l.b16 %v7529
        %v7901 = vunpack.c.h.b16 %v7529
        %v7902 = vunpack.c.l.b16 %v7530
        %v7903 = vunpack.c.h.b16 %v7530
        %v7904 = vunpack.c.l.b16 %v7531
        %v7905 = vunpack.c.h.b16 %v7531
        %v7906 = vunpack.c.l.b16 %v7532
        %v7907 = vunpack.c.h.b16 %v7532
        %v7908 = vunpack.c.l.b16 %v7533
        %v7909 = vunpack.c.h.b16 %v7533
        %v7910 = vunpack.c.l.b16 %v7534
        %v7911 = vunpack.c.h.b16 %v7534
        %v7912 = vunpack.c.l.b16 %v7535
        %v7913 = vunpack.c.h.b16 %v7535
        %v7914 = vpack.c.b16 %v7852, %v7850
        %v7915 = vpack.c.b16 %v7853, %v7851
        %v7916 = vpack.c.b16 %v7856, %v7854
        %v7917 = vpack.c.b16 %v7857, %v7855
        %v7918 = vpack.c.b16 %v7860, %v7858
        %v7919 = vpack.c.b16 %v7861, %v7859
        %v7920 = vpack.c.b16 %v7864, %v7862
        %v7921 = vpack.c.b16 %v7865, %v7863
        %v7922 = vpack.c.b16 %v7868, %v7866
        %v7923 = vpack.c.b16 %v7869, %v7867
        %v7924 = vpack.c.b16 %v7872, %v7870
        %v7925 = vpack.c.b16 %v7873, %v7871
        %v7926 = vpack.c.b16 %v7876, %v7874
        %v7927 = vpack.c.b16 %v7877, %v7875
        %v7928 = vpack.c.b16 %v7880, %v7878
        %v7929 = vpack.c.b16 %v7881, %v7879
        %v7930 = vpack.c.b16 %v7884, %v7882
        %v7931 = vpack.c.b16 %v7885, %v7883
        %v7932 = vpack.c.b16 %v7888, %v7886
        %v7933 = vpack.c.b16 %v7889, %v7887
        %v7934 = vpack.c.b16 %v7892, %v7890
        %v7935 = vpack.c.b16 %v7893, %v7891
        %v7936 = vpack.c.b16 %v7896, %v7894
        %v7937 = vpack.c.b16 %v7897, %v7895
        %v7938 = vpack.c.b16 %v7900, %v7898
        %v7939 = vpack.c.b16 %v7901, %v7899
        %v7940 = vpack.c.b16 %v7904, %v7902
        %v7941 = vpack.c.b16 %v7905, %v7903
        %v7942 = vpack.c.b16 %v7908, %v7906
        %v7943 = vpack.c.b16 %v7909, %v7907
        %v7944 = vpack.c.b16 %v7912, %v7910
        %v7945 = vpack.c.b16 %v7913, %v7911
        %7978 = vmatprep.subr.bf16.mxu0 %v7915
        %7979 = vmatpush1.bf16.msra.mxu0 %v7914
        %7980 = vmatprep.subr.bf16.mxu0 %v7917
        %7981 = vmatpush1.bf16.msra.mxu0 %v7916
        %7982 = vmatprep.subr.bf16.mxu0 %v7919
        %7983 = vmatpush1.bf16.msra.mxu0 %v7918
        %7984 = vmatprep.subr.bf16.mxu0 %v7921
        %7985 = vmatpush1.bf16.msra.mxu0 %v7920
        %7986 = vmatprep.subr.bf16.mxu0 %v7923
        %7987 = vmatpush1.bf16.msra.mxu0 %v7922
        %7988 = vmatprep.subr.bf16.mxu0 %v7925
        %7989 = vmatpush1.bf16.msra.mxu0 %v7924
        %7990 = vmatprep.subr.bf16.mxu0 %v7927
        %7991 = vmatpush1.bf16.msra.mxu0 %v7926
        %7992 = vmatprep.subr.bf16.mxu0 %v7929
        %7993 = vmatpush1.bf16.msra.mxu0 %v7928
        %7994 = vmatprep.subr.bf16.mxu0 %v7931
        %7995 = vmatpush1.bf16.msra.mxu0 %v7930
        %7996 = vmatprep.subr.bf16.mxu0 %v7933
        %7997 = vmatpush1.bf16.msra.mxu0 %v7932
        %7998 = vmatprep.subr.bf16.mxu0 %v7935
        %7999 = vmatpush1.bf16.msra.mxu0 %v7934
        %8000 = vmatprep.subr.bf16.mxu0 %v7937
        %8001 = vmatpush1.bf16.msra.mxu0 %v7936
        %8002 = vmatprep.subr.bf16.mxu0 %v7939
        %8003 = vmatpush1.bf16.msra.mxu0 %v7938
        %8004 = vmatprep.subr.bf16.mxu0 %v7941
        %8005 = vmatpush1.bf16.msra.mxu0 %v7940
        %8006 = vmatprep.subr.bf16.mxu0 %v7943
        %8007 = vmatpush1.bf16.msra.mxu0 %v7942
        %8008 = vmatprep.subr.bf16.mxu0 %v7945
        %8009 = vmatpush1.bf16.msra.mxu0 %v7944
        %8010 = vmatprep.mubr.bf16.mxu0 %v7503
        %8011 = vmatmul.mubr.bf16.gmra.mrb[0].mxu0 %v7502
        %v8012 = vpop.f32.mrb[0].mxu0
        %v8013 = vadd.f32 %v7812, %v8012
        %v8014 = vpop.f32.mrb[0].mxu0
        %v8015 = vadd.f32 %v7814, %v8014
        %v8016 = vpop.f32.mrb[0].mxu0
        %v8017 = vpop.f32.mrb[0].mxu0
        %8018 = vdwg.mxu0
        %s8019 = scalar_lea.vmem [#allocation22], 2
        %v8020 = vld [vmem:[%s8019] sm:$0x1]
        %v8022 = vsel %vm7450, %v8020, 0
        %8024 = vmatprep.subr.bf16.mxu0 %v7459
        %8025 = vmatpush1.bf16.msra.mxu0 %v7456
        %8026 = vmatprep.subr.bf16.mxu0 0
        %8027 = vmatpush1.bf16.msra.mxu0 0
        %8028 = vmatprep.subr.bf16.mxu0 0
        %8029 = vmatpush1.bf16.msra.mxu0 0
        %8030 = vmatprep.subr.bf16.mxu0 0
        %8031 = vmatpush1.bf16.msra.mxu0 0
        %8032 = vmatprep.subr.bf16.mxu0 0
        %8033 = vmatpush1.bf16.msra.mxu0 0
        %8034 = vmatprep.subr.bf16.mxu0 0
        %8035 = vmatpush1.bf16.msra.mxu0 0
        %8036 = vmatprep.subr.bf16.mxu0 0
        %8037 = vmatpush1.bf16.msra.mxu0 0
        %8038 = vmatprep.subr.bf16.mxu0 0
        %8039 = vmatpush1.bf16.msra.mxu0 0
        %8040 = vmatprep.subr.bf16.mxu0 0
        %8041 = vmatpush1.bf16.msra.mxu0 0
        %8042 = vmatprep.subr.bf16.mxu0 0
        %8043 = vmatpush1.bf16.msra.mxu0 0
        %8044 = vmatprep.subr.bf16.mxu0 0
        %8045 = vmatpush1.bf16.msra.mxu0 0
        %8046 = vmatprep.subr.bf16.mxu0 0
        %8047 = vmatpush1.bf16.msra.mxu0 0
        %8048 = vmatprep.subr.bf16.mxu0 0
        %8049 = vmatpush1.bf16.msra.mxu0 0
        %8050 = vmatprep.subr.bf16.mxu0 0
        %8051 = vmatpush1.bf16.msra.mxu0 0
        %8052 = vmatprep.subr.bf16.mxu0 0
        %8053 = vmatpush1.bf16.msra.mxu0 0
        %8054 = vmatprep.subr.bf16.mxu0 0
        %8055 = vmatpush1.bf16.msra.mxu0 0
        %8056 = vmatprep.mubr.bf16.mxu0 0
        %8057 = vmatmul.mubr.bf16.gmra.mrb[0].mxu0 %v8022
        %v8058 = vpop.f32.mrb[0].mxu0
        %v8059 = vadd.f32 0.0, %v8058
        %v8060 = vpop.f32.mrb[0].mxu0
        %v8061 = vadd.f32 0.0, %v8060
        %v8062 = vpop.f32.mrb[0].mxu0
        %v8063 = vpop.f32.mrb[0].mxu0
        %8064 = vdwg.mxu0
        %v8065 = vpack.c.bf16 %v8059, %v8059
        %v8066 = vpack.c.bf16 %v8061, %v8061
        %s8067 = scalar_lea.vmem [#allocation23], 512
        %v8068 = vld [vmem:[%s8067] sm:$0xff]
        %v8069 = vld [vmem:[%s8067 + $0x8] sm:$0xff]
        %v8070 = vld [vmem:[%s8067 + $0x10] sm:$0xff]
        %v8071 = vld [vmem:[%s8067 + $0x18] sm:$0xff]
        %v8072 = vld [vmem:[%s8067 + $0x20] sm:$0xff]
        %v8073 = vld [vmem:[%s8067 + $0x28] sm:$0xff]
        %v8074 = vld [vmem:[%s8067 + $0x30] sm:$0xff]
        %v8075 = vld [vmem:[%s8067 + $0x38] sm:$0xff]
        %v8076 = vld [vmem:[%s8067 + $0x40] sm:$0xff]
        %v8077 = vld [vmem:[%s8067 + $0x48] sm:$0xff]
        %v8078 = vld [vmem:[%s8067 + $0x50] sm:$0xff]
        %v8079 = vld [vmem:[%s8067 + $0x58] sm:$0xff]
        %v8080 = vld [vmem:[%s8067 + $0x60] sm:$0xff]
        %v8081 = vld [vmem:[%s8067 + $0x68] sm:$0xff]
        %v8082 = vld [vmem:[%s8067 + $0x70] sm:$0xff]
        %v8083 = vld [vmem:[%s8067 + $0x78] sm:$0xff]
        %v8084 = vld [vmem:[%s8067 + $0x80] sm:$0xff]
        %v8085 = vld [vmem:[%s8067 + $0x88] sm:$0xff]
        %v8086 = vld [vmem:[%s8067 + $0x90] sm:$0xff]
        %v8087 = vld [vmem:[%s8067 + $0x98] sm:$0xff]
        %v8088 = vld [vmem:[%s8067 + $0xa0] sm:$0xff]
        %v8089 = vld [vmem:[%s8067 + $0xa8] sm:$0xff]
        %v8090 = vld [vmem:[%s8067 + $0xb0] sm:$0xff]
        %v8091 = vld [vmem:[%s8067 + $0xb8] sm:$0xff]
        %v8092 = vld [vmem:[%s8067 + $0xc0] sm:$0xff]
        %v8093 = vld [vmem:[%s8067 + $0xc8] sm:$0xff]
        %v8094 = vld [vmem:[%s8067 + $0xd0] sm:$0xff]
        %v8095 = vld [vmem:[%s8067 + $0xd8] sm:$0xff]
        %v8096 = vld [vmem:[%s8067 + $0xe0] sm:$0xff]
        %v8097 = vld [vmem:[%s8067 + $0xe8] sm:$0xff]
        %v8098 = vld [vmem:[%s8067 + $0xf0] sm:$0xff]
        %v8099 = vld [vmem:[%s8067 + $0xf8] sm:$0xff]
        %v8132 = vunpack.c.l.b16 %v8068
        %v8133 = vunpack.c.h.b16 %v8068
        %v8134 = vunpack.c.l.b16 %v8069
        %v8135 = vunpack.c.h.b16 %v8069
        %v8136 = vunpack.c.l.b16 %v8070
        %v8137 = vunpack.c.h.b16 %v8070
        %v8138 = vunpack.c.l.b16 %v8071
        %v8139 = vunpack.c.h.b16 %v8071
        %v8140 = vunpack.c.l.b16 %v8072
        %v8141 = vunpack.c.h.b16 %v8072
        %v8142 = vunpack.c.l.b16 %v8073
        %v8143 = vunpack.c.h.b16 %v8073
        %v8144 = vunpack.c.l.b16 %v8074
        %v8145 = vunpack.c.h.b16 %v8074
        %v8146 = vunpack.c.l.b16 %v8075
        %v8147 = vunpack.c.h.b16 %v8075
        %v8148 = vunpack.c.l.b16 %v8076
        %v8149 = vunpack.c.h.b16 %v8076
        %v8150 = vunpack.c.l.b16 %v8077
        %v8151 = vunpack.c.h.b16 %v8077
        %v8152 = vunpack.c.l.b16 %v8078
        %v8153 = vunpack.c.h.b16 %v8078
        %v8154 = vunpack.c.l.b16 %v8079
        %v8155 = vunpack.c.h.b16 %v8079
        %v8156 = vunpack.c.l.b16 %v8080
        %v8157 = vunpack.c.h.b16 %v8080
        %v8158 = vunpack.c.l.b16 %v8081
        %v8159 = vunpack.c.h.b16 %v8081
        %v8160 = vunpack.c.l.b16 %v8082
        %v8161 = vunpack.c.h.b16 %v8082
        %v8162 = vunpack.c.l.b16 %v8083
        %v8163 = vunpack.c.h.b16 %v8083
        %v8164 = vunpack.c.l.b16 %v8084
        %v8165 = vunpack.c.h.b16 %v8084
        %v8166 = vunpack.c.l.b16 %v8085
        %v8167 = vunpack.c.h.b16 %v8085
        %v8168 = vunpack.c.l.b16 %v8086
        %v8169 = vunpack.c.h.b16 %v8086
        %v8170 = vunpack.c.l.b16 %v8087
        %v8171 = vunpack.c.h.b16 %v8087
        %v8172 = vunpack.c.l.b16 %v8088
        %v8173 = vunpack.c.h.b16 %v8088
        %v8174 = vunpack.c.l.b16 %v8089
        %v8175 = vunpack.c.h.b16 %v8089
        %v8176 = vunpack.c.l.b16 %v8090
        %v8177 = vunpack.c.h.b16 %v8090
        %v8178 = vunpack.c.l.b16 %v8091
        %v8179 = vunpack.c.h.b16 %v8091
        %v8180 = vunpack.c.l.b16 %v8092
        %v8181 = vunpack.c.h.b16 %v8092
        %v8182 = vunpack.c.l.b16 %v8093
        %v8183 = vunpack.c.h.b16 %v8093
        %v8184 = vunpack.c.l.b16 %v8094
        %v8185 = vunpack.c.h.b16 %v8094
        %v8186 = vunpack.c.l.b16 %v8095
        %v8187 = vunpack.c.h.b16 %v8095
        %v8188 = vunpack.c.l.b16 %v8096
        %v8189 = vunpack.c.h.b16 %v8096
        %v8190 = vunpack.c.l.b16 %v8097
        %v8191 = vunpack.c.h.b16 %v8097
        %v8192 = vunpack.c.l.b16 %v8098
        %v8193 = vunpack.c.h.b16 %v8098
        %v8194 = vunpack.c.l.b16 %v8099
        %v8195 = vunpack.c.h.b16 %v8099
        %v8196 = vpack.c.b16 %v8134, %v8132
        %v8197 = vpack.c.b16 %v8135, %v8133
        %v8198 = vpack.c.b16 %v8138, %v8136
        %v8199 = vpack.c.b16 %v8139, %v8137
        %v8200 = vpack.c.b16 %v8142, %v8140
        %v8201 = vpack.c.b16 %v8143, %v8141
        %v8202 = vpack.c.b16 %v8146, %v8144
        %v8203 = vpack.c.b16 %v8147, %v8145
        %v8204 = vpack.c.b16 %v8150, %v8148
        %v8205 = vpack.c.b16 %v8151, %v8149
        %v8206 = vpack.c.b16 %v8154, %v8152
        %v8207 = vpack.c.b16 %v8155, %v8153
        %v8208 = vpack.c.b16 %v8158, %v8156
        %v8209 = vpack.c.b16 %v8159, %v8157
        %v8210 = vpack.c.b16 %v8162, %v8160
        %v8211 = vpack.c.b16 %v8163, %v8161
        %v8212 = vpack.c.b16 %v8166, %v8164
        %v8213 = vpack.c.b16 %v8167, %v8165
        %v8214 = vpack.c.b16 %v8170, %v8168
        %v8215 = vpack.c.b16 %v8171, %v8169
        %v8216 = vpack.c.b16 %v8174, %v8172
        %v8217 = vpack.c.b16 %v8175, %v8173
        %v8218 = vpack.c.b16 %v8178, %v8176
        %v8219 = vpack.c.b16 %v8179, %v8177
        %v8220 = vpack.c.b16 %v8182, %v8180
        %v8221 = vpack.c.b16 %v8183, %v8181
        %v8222 = vpack.c.b16 %v8186, %v8184
        %v8223 = vpack.c.b16 %v8187, %v8185
        %v8224 = vpack.c.b16 %v8190, %v8188
        %v8225 = vpack.c.b16 %v8191, %v8189
        %v8226 = vpack.c.b16 %v8194, %v8192
        %v8227 = vpack.c.b16 %v8195, %v8193
        %8260 = vmatprep.subr.bf16.mxu0 %v8197
        %8261 = vmatpush1.bf16.msra.mxu0 %v8196
        %8262 = vmatprep.subr.bf16.mxu0 %v8199
        %8263 = vmatpush1.bf16.msra.mxu0 %v8198
        %8264 = vmatprep.subr.bf16.mxu0 %v8201
        %8265 = vmatpush1.bf16.msra.mxu0 %v8200
        %8266 = vmatprep.subr.bf16.mxu0 %v8203
        %8267 = vmatpush1.bf16.msra.mxu0 %v8202
        %8268 = vmatprep.subr.bf16.mxu0 %v8205
        %8269 = vmatpush1.bf16.msra.mxu0 %v8204
        %8270 = vmatprep.subr.bf16.mxu0 %v8207
        %8271 = vmatpush1.bf16.msra.mxu0 %v8206
        %8272 = vmatprep.subr.bf16.mxu0 %v8209
        %8273 = vmatpush1.bf16.msra.mxu0 %v8208
        %8274 = vmatprep.subr.bf16.mxu0 %v8211
        %8275 = vmatpush1.bf16.msra.mxu0 %v8210
        %8276 = vmatprep.subr.bf16.mxu0 %v8213
        %8277 = vmatpush1.bf16.msra.mxu0 %v8212
        %8278 = vmatprep.subr.bf16.mxu0 %v8215
        %8279 = vmatpush1.bf16.msra.mxu0 %v8214
        %8280 = vmatprep.subr.bf16.mxu0 %v8217
        %8281 = vmatpush1.bf16.msra.mxu0 %v8216
        %8282 = vmatprep.subr.bf16.mxu0 %v8219
        %8283 = vmatpush1.bf16.msra.mxu0 %v8218
        %8284 = vmatprep.subr.bf16.mxu0 %v8221
        %8285 = vmatpush1.bf16.msra.mxu0 %v8220
        %8286 = vmatprep.subr.bf16.mxu0 %v8223
        %8287 = vmatpush1.bf16.msra.mxu0 %v8222
        %8288 = vmatprep.subr.bf16.mxu0 %v8225
        %8289 = vmatpush1.bf16.msra.mxu0 %v8224
        %8290 = vmatprep.subr.bf16.mxu0 %v8227
        %8291 = vmatpush1.bf16.msra.mxu0 %v8226
        %8292 = vmatprep.mubr.bf16.mxu0 %v8066
        %8293 = vmatmul.mubr.bf16.gmra.mrb[0].mxu0 %v8065
        %v8294 = vpop.f32.mrb[0].mxu0
        %v8295 = vadd.f32 0.0, %v8294
        %v8296 = vpop.f32.mrb[0].mxu0
        %v8297 = vadd.f32 0.0, %v8296
        %v8298 = vpop.f32.mrb[0].mxu0
        %v8299 = vpop.f32.mrb[0].mxu0
        %8300 = vdwg.mxu0
        %v8301 = vadd.f32 %v8013, %v8295
        %v8302 = vadd.f32 %v8015, %v8297
        %s8303 = scalar_lea.vmem [#allocation22], 3
        %v8304 = vld [vmem:[%s8303] sm:$0x1]
        %v8306 = vsel %vm7450, %v8304, 0
        %8308 = vmatprep.subr.bf16.mxu0 %v7459
        %8309 = vmatpush1.bf16.msra.mxu0 %v7456
        %8310 = vmatprep.subr.bf16.mxu0 0
        %8311 = vmatpush1.bf16.msra.mxu0 0
        %8312 = vmatprep.subr.bf16.mxu0 0
        %8313 = vmatpush1.bf16.msra.mxu0 0
        %8314 = vmatprep.subr.bf16.mxu0 0
        %8315 = vmatpush1.bf16.msra.mxu0 0
        %8316 = vmatprep.subr.bf16.mxu0 0
        %8317 = vmatpush1.bf16.msra.mxu0 0
        %8318 = vmatprep.subr.bf16.mxu0 0
        %8319 = vmatpush1.bf16.msra.mxu0 0
        %8320 = vmatprep.subr.bf16.mxu0 0
        %8321 = vmatpush1.bf16.msra.mxu0 0
        %8322 = vmatprep.subr.bf16.mxu0 0
        %8323 = vmatpush1.bf16.msra.mxu0 0
        %8324 = vmatprep.subr.bf16.mxu0 0
        %8325 = vmatpush1.bf16.msra.mxu0 0
        %8326 = vmatprep.subr.bf16.mxu0 0
        %8327 = vmatpush1.bf16.msra.mxu0 0
        %8328 = vmatprep.subr.bf16.mxu0 0
        %8329 = vmatpush1.bf16.msra.mxu0 0
        %8330 = vmatprep.subr.bf16.mxu0 0
        %8331 = vmatpush1.bf16.msra.mxu0 0
        %8332 = vmatprep.subr.bf16.mxu0 0
        %8333 = vmatpush1.bf16.msra.mxu0 0
        %8334 = vmatprep.subr.bf16.mxu0 0
        %8335 = vmatpush1.bf16.msra.mxu0 0
        %8336 = vmatprep.subr.bf16.mxu0 0
        %8337 = vmatpush1.bf16.msra.mxu0 0
        %8338 = vmatprep.subr.bf16.mxu0 0
        %8339 = vmatpush1.bf16.msra.mxu0 0
        %8340 = vmatprep.mubr.bf16.mxu0 0
        %8341 = vmatmul.mubr.bf16.gmra.mrb[0].mxu0 %v8306
        %v8342 = vpop.f32.mrb[0].mxu0
        %v8343 = vadd.f32 0.0, %v8342
        %v8344 = vpop.f32.mrb[0].mxu0
        %v8345 = vadd.f32 0.0, %v8344
        %v8346 = vpop.f32.mrb[0].mxu0
        %v8347 = vpop.f32.mrb[0].mxu0
        %8348 = vdwg.mxu0
        %v8349 = vpack.c.bf16 %v8343, %v8343
        %v8350 = vpack.c.bf16 %v8345, %v8345
        %s8351 = scalar_lea.vmem [#allocation23], 768
        %v8352 = vld [vmem:[%s8351] sm:$0xff]
        %v8353 = vld [vmem:[%s8351 + $0x8] sm:$0xff]
        %v8354 = vld [vmem:[%s8351 + $0x10] sm:$0xff]
        %v8355 = vld [vmem:[%s8351 + $0x18] sm:$0xff]
        %v8356 = vld [vmem:[%s8351 + $0x20] sm:$0xff]
        %v8357 = vld [vmem:[%s8351 + $0x28] sm:$0xff]
        %v8358 = vld [vmem:[%s8351 + $0x30] sm:$0xff]
        %v8359 = vld [vmem:[%s8351 + $0x38] sm:$0xff]
        %v8360 = vld [vmem:[%s8351 + $0x40] sm:$0xff]
        %v8361 = vld [vmem:[%s8351 + $0x48] sm:$0xff]
        %v8362 = vld [vmem:[%s8351 + $0x50] sm:$0xff]
        %v8363 = vld [vmem:[%s8351 + $0x58] sm:$0xff]
        %v8364 = vld [vmem:[%s8351 + $0x60] sm:$0xff]
        %v8365 = vld [vmem:[%s8351 + $0x68] sm:$0xff]
        %v8366 = vld [vmem:[%s8351 + $0x70] sm:$0xff]
        %v8367 = vld [vmem:[%s8351 + $0x78] sm:$0xff]
        %v8368 = vld [vmem:[%s8351 + $0x80] sm:$0xff]
        %v8369 = vld [vmem:[%s8351 + $0x88] sm:$0xff]
        %v8370 = vld [vmem:[%s8351 + $0x90] sm:$0xff]
        %v8371 = vld [vmem:[%s8351 + $0x98] sm:$0xff]
        %v8372 = vld [vmem:[%s8351 + $0xa0] sm:$0xff]
        %v8373 = vld [vmem:[%s8351 + $0xa8] sm:$0xff]
        %v8374 = vld [vmem:[%s8351 + $0xb0] sm:$0xff]
        %v8375 = vld [vmem:[%s8351 + $0xb8] sm:$0xff]
        %v8376 = vld [vmem:[%s8351 + $0xc0] sm:$0xff]
        %v8377 = vld [vmem:[%s8351 + $0xc8] sm:$0xff]
        %v8378 = vld [vmem:[%s8351 + $0xd0] sm:$0xff]
        %v8379 = vld [vmem:[%s8351 + $0xd8] sm:$0xff]
        %v8380 = vld [vmem:[%s8351 + $0xe0] sm:$0xff]
        %v8381 = vld [vmem:[%s8351 + $0xe8] sm:$0xff]
        %v8382 = vld [vmem:[%s8351 + $0xf0] sm:$0xff]
        %v8383 = vld [vmem:[%s8351 + $0xf8] sm:$0xff]
        %v8416 = vunpack.c.l.b16 %v8352
        %v8417 = vunpack.c.h.b16 %v8352
        %v8418 = vunpack.c.l.b16 %v8353
        %v8419 = vunpack.c.h.b16 %v8353
        %v8420 = vunpack.c.l.b16 %v8354
        %v8421 = vunpack.c.h.b16 %v8354
        %v8422 = vunpack.c.l.b16 %v8355
        %v8423 = vunpack.c.h.b16 %v8355
        %v8424 = vunpack.c.l.b16 %v8356
        %v8425 = vunpack.c.h.b16 %v8356
        %v8426 = vunpack.c.l.b16 %v8357
        %v8427 = vunpack.c.h.b16 %v8357
        %v8428 = vunpack.c.l.b16 %v8358
        %v8429 = vunpack.c.h.b16 %v8358
        %v8430 = vunpack.c.l.b16 %v8359
        %v8431 = vunpack.c.h.b16 %v8359
        %v8432 = vunpack.c.l.b16 %v8360
        %v8433 = vunpack.c.h.b16 %v8360
        %v8434 = vunpack.c.l.b16 %v8361
        %v8435 = vunpack.c.h.b16 %v8361
        %v8436 = vunpack.c.l.b16 %v8362
        %v8437 = vunpack.c.h.b16 %v8362
        %v8438 = vunpack.c.l.b16 %v8363
        %v8439 = vunpack.c.h.b16 %v8363
        %v8440 = vunpack.c.l.b16 %v8364
        %v8441 = vunpack.c.h.b16 %v8364
        %v8442 = vunpack.c.l.b16 %v8365
        %v8443 = vunpack.c.h.b16 %v8365
        %v8444 = vunpack.c.l.b16 %v8366
        %v8445 = vunpack.c.h.b16 %v8366
        %v8446 = vunpack.c.l.b16 %v8367
        %v8447 = vunpack.c.h.b16 %v8367
        %v8448 = vunpack.c.l.b16 %v8368
        %v8449 = vunpack.c.h.b16 %v8368
        %v8450 = vunpack.c.l.b16 %v8369
        %v8451 = vunpack.c.h.b16 %v8369
        %v8452 = vunpack.c.l.b16 %v8370
        %v8453 = vunpack.c.h.b16 %v8370
        %v8454 = vunpack.c.l.b16 %v8371
        %v8455 = vunpack.c.h.b16 %v8371
        %v8456 = vunpack.c.l.b16 %v8372
        %v8457 = vunpack.c.h.b16 %v8372
        %v8458 = vunpack.c.l.b16 %v8373
        %v8459 = vunpack.c.h.b16 %v8373
        %v8460 = vunpack.c.l.b16 %v8374
        %v8461 = vunpack.c.h.b16 %v8374
        %v8462 = vunpack.c.l.b16 %v8375
        %v8463 = vunpack.c.h.b16 %v8375
        %v8464 = vunpack.c.l.b16 %v8376
        %v8465 = vunpack.c.h.b16 %v8376
        %v8466 = vunpack.c.l.b16 %v8377
        %v8467 = vunpack.c.h.b16 %v8377
        %v8468 = vunpack.c.l.b16 %v8378
        %v8469 = vunpack.c.h.b16 %v8378
        %v8470 = vunpack.c.l.b16 %v8379
        %v8471 = vunpack.c.h.b16 %v8379
        %v8472 = vunpack.c.l.b16 %v8380
        %v8473 = vunpack.c.h.b16 %v8380
        %v8474 = vunpack.c.l.b16 %v8381
        %v8475 = vunpack.c.h.b16 %v8381
        %v8476 = vunpack.c.l.b16 %v8382
        %v8477 = vunpack.c.h.b16 %v8382
        %v8478 = vunpack.c.l.b16 %v8383
        %v8479 = vunpack.c.h.b16 %v8383
        %v8480 = vpack.c.b16 %v8418, %v8416
        %v8481 = vpack.c.b16 %v8419, %v8417
        %v8482 = vpack.c.b16 %v8422, %v8420
        %v8483 = vpack.c.b16 %v8423, %v8421
        %v8484 = vpack.c.b16 %v8426, %v8424
        %v8485 = vpack.c.b16 %v8427, %v8425
        %v8486 = vpack.c.b16 %v8430, %v8428
        %v8487 = vpack.c.b16 %v8431, %v8429
        %v8488 = vpack.c.b16 %v8434, %v8432
        %v8489 = vpack.c.b16 %v8435, %v8433
        %v8490 = vpack.c.b16 %v8438, %v8436
        %v8491 = vpack.c.b16 %v8439, %v8437
        %v8492 = vpack.c.b16 %v8442, %v8440
        %v8493 = vpack.c.b16 %v8443, %v8441
        %v8494 = vpack.c.b16 %v8446, %v8444
        %v8495 = vpack.c.b16 %v8447, %v8445
        %v8496 = vpack.c.b16 %v8450, %v8448
        %v8497 = vpack.c.b16 %v8451, %v8449
        %v8498 = vpack.c.b16 %v8454, %v8452
        %v8499 = vpack.c.b16 %v8455, %v8453
        %v8500 = vpack.c.b16 %v8458, %v8456
        %v8501 = vpack.c.b16 %v8459, %v8457
        %v8502 = vpack.c.b16 %v8462, %v8460
        %v8503 = vpack.c.b16 %v8463, %v8461
        %v8504 = vpack.c.b16 %v8466, %v8464
        %v8505 = vpack.c.b16 %v8467, %v8465
        %v8506 = vpack.c.b16 %v8470, %v8468
        %v8507 = vpack.c.b16 %v8471, %v8469
        %v8508 = vpack.c.b16 %v8474, %v8472
        %v8509 = vpack.c.b16 %v8475, %v8473
        %v8510 = vpack.c.b16 %v8478, %v8476
        %v8511 = vpack.c.b16 %v8479, %v8477
        %8544 = vmatprep.subr.bf16.mxu0 %v8481
        %8545 = vmatpush1.bf16.msra.mxu0 %v8480
        %8546 = vmatprep.subr.bf16.mxu0 %v8483
        %8547 = vmatpush1.bf16.msra.mxu0 %v8482
        %8548 = vmatprep.subr.bf16.mxu0 %v8485
        %8549 = vmatpush1.bf16.msra.mxu0 %v8484
        %8550 = vmatprep.subr.bf16.mxu0 %v8487
        %8551 = vmatpush1.bf16.msra.mxu0 %v8486
        %8552 = vmatprep.subr.bf16.mxu0 %v8489
        %8553 = vmatpush1.bf16.msra.mxu0 %v8488
        %8554 = vmatprep.subr.bf16.mxu0 %v8491
        %8555 = vmatpush1.bf16.msra.mxu0 %v8490
        %8556 = vmatprep.subr.bf16.mxu0 %v8493
        %8557 = vmatpush1.bf16.msra.mxu0 %v8492
        %8558 = vmatprep.subr.bf16.mxu0 %v8495
        %8559 = vmatpush1.bf16.msra.mxu0 %v8494
        %8560 = vmatprep.subr.bf16.mxu0 %v8497
        %8561 = vmatpush1.bf16.msra.mxu0 %v8496
        %8562 = vmatprep.subr.bf16.mxu0 %v8499
        %8563 = vmatpush1.bf16.msra.mxu0 %v8498
        %8564 = vmatprep.subr.bf16.mxu0 %v8501
        %8565 = vmatpush1.bf16.msra.mxu0 %v8500
        %8566 = vmatprep.subr.bf16.mxu0 %v8503
        %8567 = vmatpush1.bf16.msra.mxu0 %v8502
        %8568 = vmatprep.subr.bf16.mxu0 %v8505
        %8569 = vmatpush1.bf16.msra.mxu0 %v8504
        %8570 = vmatprep.subr.bf16.mxu0 %v8507
        %8571 = vmatpush1.bf16.msra.mxu0 %v8506
        %8572 = vmatprep.subr.bf16.mxu0 %v8509
        %8573 = vmatpush1.bf16.msra.mxu0 %v8508
        %8574 = vmatprep.subr.bf16.mxu0 %v8511
        %8575 = vmatpush1.bf16.msra.mxu0 %v8510
        %8576 = vmatprep.mubr.bf16.mxu0 %v8350
        %8577 = vmatmul.mubr.bf16.gmra.mrb[0].mxu0 %v8349
        %v8578 = vpop.f32.mrb[0].mxu0
        %v8579 = vadd.f32 0.0, %v8578
        %v8580 = vpop.f32.mrb[0].mxu0
        %v8581 = vadd.f32 0.0, %v8580
        %v8582 = vpop.f32.mrb[0].mxu0
        %v8583 = vpop.f32.mrb[0].mxu0
        %8584 = vdwg.mxu0
        %v8585 = vadd.f32 %v8301, %v8579
        %v8586 = vadd.f32 %v8302, %v8581
        %v8587 = vld [vmem:[#allocation25] sm:$0x3]
        %v8589 = vlaneseq
        %v8590 = vshrl.u32 %v8589, 7
        %v8591 = vsub.s32 0, %v8590
        %v8592 = vrot.slane %v8587, %v8591
        %v8593 = vlaneseq
        %v8594 = vshrl.u32 %v8593, 7
        %v8595 = vsub.s32 1, %v8594
        %v8596 = vrot.slane %v8587, %v8595
        %v8599 = vadd.f32 %v8585, %v8592
        %v8600 = vadd.f32 %v8586, %v8596
        %v8601 = vld [vmem:[%s49] sm:$0xf]
        %v8602 = vld [vmem:[%s49 + $0x4] sm:$0xf]
        %v8603 = vld [vmem:[%s49 + $0x8] sm:$0xf]
        %v8604 = vld [vmem:[%s49 + $0xc] sm:$0xf]
        %v8605 = vld [vmem:[%s49 + $0x10] sm:$0xf]
        %v8606 = vld [vmem:[%s49 + $0x14] sm:$0xf]
        %v8607 = vld [vmem:[%s49 + $0x18] sm:$0xf]
        %v8608 = vld [vmem:[%s49 + $0x1c] sm:$0xf]
        %v8609 = vld [vmem:[%s49 + $0x20] sm:$0xf]
        %v8610 = vld [vmem:[%s49 + $0x24] sm:$0xf]
        %v8611 = vld [vmem:[%s49 + $0x28] sm:$0xf]
        %v8612 = vld [vmem:[%s49 + $0x2c] sm:$0xf]
        %v8613 = vld [vmem:[%s49 + $0x30] sm:$0xf]
        %v8614 = vld [vmem:[%s49 + $0x34] sm:$0xf]
        %v8615 = vld [vmem:[%s49 + $0x38] sm:$0xf]
        %v8616 = vld [vmem:[%s49 + $0x3c] sm:$0xf]
        %v8617 = vld [vmem:[%s49 + $0x40] sm:$0xf]
        %v8618 = vld [vmem:[%s49 + $0x44] sm:$0xf]
        %v8619 = vld [vmem:[%s49 + $0x48] sm:$0xf]
        %v8620 = vld [vmem:[%s49 + $0x4c] sm:$0xf]
        %v8621 = vld [vmem:[%s49 + $0x50] sm:$0xf]
        %v8622 = vld [vmem:[%s49 + $0x54] sm:$0xf]
        %v8623 = vld [vmem:[%s49 + $0x58] sm:$0xf]
        %v8624 = vld [vmem:[%s49 + $0x5c] sm:$0xf]
        %v8625 = vld [vmem:[%s49 + $0x60] sm:$0xf]
        %v8626 = vld [vmem:[%s49 + $0x64] sm:$0xf]
        %v8627 = vld [vmem:[%s49 + $0x68] sm:$0xf]
        %v8628 = vld [vmem:[%s49 + $0x6c] sm:$0xf]
        %v8629 = vld [vmem:[%s49 + $0x70] sm:$0xf]
        %v8630 = vld [vmem:[%s49 + $0x74] sm:$0xf]
        %v8631 = vld [vmem:[%s49 + $0x78] sm:$0xf]
        %v8632 = vld [vmem:[%s49 + $0x7c] sm:$0xf]
        %v8633 = vld [vmem:[%s51] sm:$0xff]
        %v8634 = vld [vmem:[%s51 + $0x8] sm:$0xff]
        %v8635 = vld [vmem:[%s51 + $0x10] sm:$0xff]
        %v8636 = vld [vmem:[%s51 + $0x18] sm:$0xff]
        %v8637 = vld [vmem:[%s51 + $0x20] sm:$0xff]
        %v8638 = vld [vmem:[%s51 + $0x28] sm:$0xff]
        %v8639 = vld [vmem:[%s51 + $0x30] sm:$0xff]
        %v8640 = vld [vmem:[%s51 + $0x38] sm:$0xff]
        %v8641 = vld [vmem:[%s51 + $0x40] sm:$0xff]
        %v8642 = vld [vmem:[%s51 + $0x48] sm:$0xff]
        %v8643 = vld [vmem:[%s51 + $0x50] sm:$0xff]
        %v8644 = vld [vmem:[%s51 + $0x58] sm:$0xff]
        %v8645 = vld [vmem:[%s51 + $0x60] sm:$0xff]
        %v8646 = vld [vmem:[%s51 + $0x68] sm:$0xff]
        %v8647 = vld [vmem:[%s51 + $0x70] sm:$0xff]
        %v8648 = vld [vmem:[%s51 + $0x78] sm:$0xff]
        %v8649 = vsel %vm7454, %v8599, 0.0
        %v8650 = vrot.slane %v8649, 4
        %v8651 = vadd.f32 %v8649, %v8650
        %v8652 = vrot.slane %v8651, 2
        %v8653 = vadd.f32 %v8651, %v8652
        %v8654 = vrot.slane %v8653, 1
        %v8655 = vadd.f32 %v8653, %v8654
        %v8656 = vsel %vm7454, %v8600, 0.0
        %v8657 = vrot.slane %v8656, 4
        %v8658 = vadd.f32 %v8656, %v8657
        %v8659 = vrot.slane %v8658, 2
        %v8660 = vadd.f32 %v8658, %v8659
        %v8661 = vrot.slane %v8660, 1
        %v8662 = vadd.f32 %v8660, %v8661
        %v8663 = vpack.c.bf16 %v8655, %v8655
        %v8664 = vpack.c.bf16 %v8662, %v8662
        %v8697 = vunpack.c.l.b16 %v8601
        %v8698 = vunpack.c.l.b16 %v8602
        %v8699 = vunpack.c.l.b16 %v8603
        %v8700 = vunpack.c.l.b16 %v8604
        %v8701 = vunpack.c.l.b16 %v8605
        %v8702 = vunpack.c.l.b16 %v8606
        %v8703 = vunpack.c.l.b16 %v8607
        %v8704 = vunpack.c.l.b16 %v8608
        %v8705 = vunpack.c.l.b16 %v8609
        %v8706 = vunpack.c.l.b16 %v8610
        %v8707 = vunpack.c.l.b16 %v8611
        %v8708 = vunpack.c.l.b16 %v8612
        %v8709 = vunpack.c.l.b16 %v8613
        %v8710 = vunpack.c.l.b16 %v8614
        %v8711 = vunpack.c.l.b16 %v8615
        %v8712 = vunpack.c.l.b16 %v8616
        %v8713 = vunpack.c.l.b16 %v8617
        %v8714 = vunpack.c.l.b16 %v8618
        %v8715 = vunpack.c.l.b16 %v8619
        %v8716 = vunpack.c.l.b16 %v8620
        %v8717 = vunpack.c.l.b16 %v8621
        %v8718 = vunpack.c.l.b16 %v8622
        %v8719 = vunpack.c.l.b16 %v8623
        %v8720 = vunpack.c.l.b16 %v8624
        %v8721 = vunpack.c.l.b16 %v8625
        %v8722 = vunpack.c.l.b16 %v8626
        %v8723 = vunpack.c.l.b16 %v8627
        %v8724 = vunpack.c.l.b16 %v8628
        %v8725 = vunpack.c.l.b16 %v8629
        %v8726 = vunpack.c.l.b16 %v8630
        %v8727 = vunpack.c.l.b16 %v8631
        %v8728 = vunpack.c.l.b16 %v8632
        %v8729 = vpack.c.b16 %v8698, %v8697
        %v8730 = vpack.c.b16 %v8700, %v8699
        %v8731 = vpack.c.b16 %v8702, %v8701
        %v8732 = vpack.c.b16 %v8704, %v8703
        %v8733 = vpack.c.b16 %v8706, %v8705
        %v8734 = vpack.c.b16 %v8708, %v8707
        %v8735 = vpack.c.b16 %v8710, %v8709
        %v8736 = vpack.c.b16 %v8712, %v8711
        %v8737 = vpack.c.b16 %v8714, %v8713
        %v8738 = vpack.c.b16 %v8716, %v8715
        %v8739 = vpack.c.b16 %v8718, %v8717
        %v8740 = vpack.c.b16 %v8720, %v8719
        %v8741 = vpack.c.b16 %v8722, %v8721
        %v8742 = vpack.c.b16 %v8724, %v8723
        %v8743 = vpack.c.b16 %v8726, %v8725
        %v8744 = vpack.c.b16 %v8728, %v8727
        %8761 = vmatprep.subr.bf16.mxu0 0
        %8762 = vmatpush1.bf16.msra.mxu0 %v8729
        %8763 = vmatprep.subr.bf16.mxu0 0
        %8764 = vmatpush1.bf16.msra.mxu0 %v8730
        %8765 = vmatprep.subr.bf16.mxu0 0
        %8766 = vmatpush1.bf16.msra.mxu0 %v8731
        %8767 = vmatprep.subr.bf16.mxu0 0
        %8768 = vmatpush1.bf16.msra.mxu0 %v8732
        %8769 = vmatprep.subr.bf16.mxu0 0
        %8770 = vmatpush1.bf16.msra.mxu0 %v8733
        %8771 = vmatprep.subr.bf16.mxu0 0
        %8772 = vmatpush1.bf16.msra.mxu0 %v8734
        %8773 = vmatprep.subr.bf16.mxu0 0
        %8774 = vmatpush1.bf16.msra.mxu0 %v8735
        %8775 = vmatprep.subr.bf16.mxu0 0
        %8776 = vmatpush1.bf16.msra.mxu0 %v8736
        %8777 = vmatprep.subr.bf16.mxu0 0
        %8778 = vmatpush1.bf16.msra.mxu0 %v8737
        %8779 = vmatprep.subr.bf16.mxu0 0
        %8780 = vmatpush1.bf16.msra.mxu0 %v8738
        %8781 = vmatprep.subr.bf16.mxu0 0
        %8782 = vmatpush1.bf16.msra.mxu0 %v8739
        %8783 = vmatprep.subr.bf16.mxu0 0
        %8784 = vmatpush1.bf16.msra.mxu0 %v8740
        %8785 = vmatprep.subr.bf16.mxu0 0
        %8786 = vmatpush1.bf16.msra.mxu0 %v8741
        %8787 = vmatprep.subr.bf16.mxu0 0
        %8788 = vmatpush1.bf16.msra.mxu0 %v8742
        %8789 = vmatprep.subr.bf16.mxu0 0
        %8790 = vmatpush1.bf16.msra.mxu0 %v8743
        %8791 = vmatprep.subr.bf16.mxu0 0
        %8792 = vmatpush1.bf16.msra.mxu0 %v8744
        %8793 = vmatprep.mubr.bf16.mxu0 %v8664
        %8794 = vmatmul.mubr.bf16.gmra.mrb[0].mxu0 %v8663
        %v8795 = vpop.f32.mrb[0].mxu0
        %v8796 = vadd.f32 0.0, %v8795
        %v8797 = vpop.f32.mrb[0].mxu0
        %v8798 = vpop.f32.mrb[0].mxu0
        %v8799 = vpop.f32.mrb[0].mxu0
        %8800 = vdwg.mxu0
        %v8801 = vpack.c.bf16 %v8796, %v8796
        %v8818 = vunpack.c.l.b16 %v8633
        %v8819 = vunpack.c.h.b16 %v8633
        %v8820 = vunpack.c.l.b16 %v8634
        %v8821 = vunpack.c.h.b16 %v8634
        %v8822 = vunpack.c.l.b16 %v8635
        %v8823 = vunpack.c.h.b16 %v8635
        %v8824 = vunpack.c.l.b16 %v8636
        %v8825 = vunpack.c.h.b16 %v8636
        %v8826 = vunpack.c.l.b16 %v8637
        %v8827 = vunpack.c.h.b16 %v8637
        %v8828 = vunpack.c.l.b16 %v8638
        %v8829 = vunpack.c.h.b16 %v8638
        %v8830 = vunpack.c.l.b16 %v8639
        %v8831 = vunpack.c.h.b16 %v8639
        %v8832 = vunpack.c.l.b16 %v8640
        %v8833 = vunpack.c.h.b16 %v8640
        %v8834 = vunpack.c.l.b16 %v8641
        %v8835 = vunpack.c.h.b16 %v8641
        %v8836 = vunpack.c.l.b16 %v8642
        %v8837 = vunpack.c.h.b16 %v8642
        %v8838 = vunpack.c.l.b16 %v8643
        %v8839 = vunpack.c.h.b16 %v8643
        %v8840 = vunpack.c.l.b16 %v8644
        %v8841 = vunpack.c.h.b16 %v8644
        %v8842 = vunpack.c.l.b16 %v8645
        %v8843 = vunpack.c.h.b16 %v8645
        %v8844 = vunpack.c.l.b16 %v8646
        %v8845 = vunpack.c.h.b16 %v8646
        %v8846 = vunpack.c.l.b16 %v8647
        %v8847 = vunpack.c.h.b16 %v8647
        %v8848 = vunpack.c.l.b16 %v8648
        %v8849 = vunpack.c.h.b16 %v8648
        %v8850 = vpack.c.b16 %v8820, %v8818
        %v8851 = vpack.c.b16 %v8821, %v8819
        %v8852 = vpack.c.b16 %v8824, %v8822
        %v8853 = vpack.c.b16 %v8825, %v8823
        %v8854 = vpack.c.b16 %v8828, %v8826
        %v8855 = vpack.c.b16 %v8829, %v8827
        %v8856 = vpack.c.b16 %v8832, %v8830
        %v8857 = vpack.c.b16 %v8833, %v8831
        %v8858 = vpack.c.b16 %v8836, %v8834
        %v8859 = vpack.c.b16 %v8837, %v8835
        %v8860 = vpack.c.b16 %v8840, %v8838
        %v8861 = vpack.c.b16 %v8841, %v8839
        %v8862 = vpack.c.b16 %v8844, %v8842
        %v8863 = vpack.c.b16 %v8845, %v8843
        %v8864 = vpack.c.b16 %v8848, %v8846
        %v8865 = vpack.c.b16 %v8849, %v8847
        %8882 = vmatprep.subr.bf16.mxu0 %v8851
        %8883 = vmatpush1.bf16.msra.mxu0 %v8850
        %8884 = vmatprep.subr.bf16.mxu0 %v8853
        %8885 = vmatpush1.bf16.msra.mxu0 %v8852
        %8886 = vmatprep.subr.bf16.mxu0 %v8855
        %8887 = vmatpush1.bf16.msra.mxu0 %v8854
        %8888 = vmatprep.subr.bf16.mxu0 %v8857
        %8889 = vmatpush1.bf16.msra.mxu0 %v8856
        %8890 = vmatprep.subr.bf16.mxu0 %v8859
        %8891 = vmatpush1.bf16.msra.mxu0 %v8858
        %8892 = vmatprep.subr.bf16.mxu0 %v8861
        %8893 = vmatpush1.bf16.msra.mxu0 %v8860
        %8894 = vmatprep.subr.bf16.mxu0 %v8863
        %8895 = vmatpush1.bf16.msra.mxu0 %v8862
        %8896 = vmatprep.subr.bf16.mxu0 %v8865
        %8897 = vmatpush1.bf16.msra.mxu0 %v8864
        %8898 = vmatprep.subr.bf16.mxu0 0
        %8899 = vmatpush1.bf16.msra.mxu0 0
        %8900 = vmatprep.subr.bf16.mxu0 0
        %8901 = vmatpush1.bf16.msra.mxu0 0
        %8902 = vmatprep.subr.bf16.mxu0 0
        %8903 = vmatpush1.bf16.msra.mxu0 0
        %8904 = vmatprep.subr.bf16.mxu0 0
        %8905 = vmatpush1.bf16.msra.mxu0 0
        %8906 = vmatprep.subr.bf16.mxu0 0
        %8907 = vmatpush1.bf16.msra.mxu0 0
        %8908 = vmatprep.subr.bf16.mxu0 0
        %8909 = vmatpush1.bf16.msra.mxu0 0
        %8910 = vmatprep.subr.bf16.mxu0 0
        %8911 = vmatpush1.bf16.msra.mxu0 0
        %8912 = vmatprep.subr.bf16.mxu0 0
        %8913 = vmatpush1.bf16.msra.mxu0 0
        %8914 = vmatprep.mubr.bf16.mxu0 0
        %8915 = vmatmul.mubr.bf16.gmra.mrb[0].mxu0 %v8801
        %v8916 = vpop.f32.mrb[0].mxu0
        %v8917 = vadd.f32 0.0, %v8916
        %v8918 = vpop.f32.mrb[0].mxu0
        %v8919 = vadd.f32 0.0, %v8918
        %v8920 = vpop.f32.mrb[0].mxu0
        %v8921 = vpop.f32.mrb[0].mxu0
        %8922 = vdwg.mxu0
        %v8923 = vlaneseq
        %v8924 = vshrl.u32 %v8923, 7
        %v8925 = vsub.s32 0, %v8924
        %v8926 = vrot.slane %v8917, %v8925
        %v8927 = vlaneseq
        %v8928 = vshrl.u32 %v8927, 7
        %v8929 = vsub.s32 0, %v8928
        %v8930 = vrot.slane %v8919, %v8929
        %v8931 = vsub.f32 %v8599, %v8926
        %v8932 = vsub.f32 %v8600, %v8930
        %v8933 = vmul.f32 %v8931, %v8931
        %v8934 = vmul.f32 %v8932, %v8932
        %v8935 = vsel %vm7454, %v8933, 0.0
        %v8936 = vrot.slane %v8935, 4
        %v8937 = vadd.f32 %v8935, %v8936
        %v8938 = vrot.slane %v8937, 2
        %v8939 = vadd.f32 %v8937, %v8938
        %v8940 = vrot.slane %v8939, 1
        %v8941 = vadd.f32 %v8939, %v8940
        %v8942 = vsel %vm7454, %v8934, 0.0
        %v8943 = vrot.slane %v8942, 4
        %v8944 = vadd.f32 %v8942, %v8943
        %v8945 = vrot.slane %v8944, 2
        %v8946 = vadd.f32 %v8944, %v8945
        %v8947 = vrot.slane %v8946, 1
        %v8948 = vadd.f32 %v8946, %v8947
        %v8949 = vpack.c.bf16 %v8941, %v8941
        %v8950 = vpack.c.bf16 %v8948, %v8948
        %8951 = vmatprep.subr.bf16.mxu0 0
        %8952 = vmatpush1.bf16.msra.mxu0 %v8729
        %8953 = vmatprep.subr.bf16.mxu0 0
        %8954 = vmatpush1.bf16.msra.mxu0 %v8730
        %8955 = vmatprep.subr.bf16.mxu0 0
        %8956 = vmatpush1.bf16.msra.mxu0 %v8731
        %8957 = vmatprep.subr.bf16.mxu0 0
        %8958 = vmatpush1.bf16.msra.mxu0 %v8732
        %8959 = vmatprep.subr.bf16.mxu0 0
        %8960 = vmatpush1.bf16.msra.mxu0 %v8733
        %8961 = vmatprep.subr.bf16.mxu0 0
        %8962 = vmatpush1.bf16.msra.mxu0 %v8734
        %8963 = vmatprep.subr.bf16.mxu0 0
        %8964 = vmatpush1.bf16.msra.mxu0 %v8735
        %8965 = vmatprep.subr.bf16.mxu0 0
        %8966 = vmatpush1.bf16.msra.mxu0 %v8736
        %8967 = vmatprep.subr.bf16.mxu0 0
        %8968 = vmatpush1.bf16.msra.mxu0 %v8737
        %8969 = vmatprep.subr.bf16.mxu0 0
        %8970 = vmatpush1.bf16.msra.mxu0 %v8738
        %8971 = vmatprep.subr.bf16.mxu0 0
        %8972 = vmatpush1.bf16.msra.mxu0 %v8739
        %8973 = vmatprep.subr.bf16.mxu0 0
        %8974 = vmatpush1.bf16.msra.mxu0 %v8740
        %8975 = vmatprep.subr.bf16.mxu0 0
        %8976 = vmatpush1.bf16.msra.mxu0 %v8741
        %8977 = vmatprep.subr.bf16.mxu0 0
        %8978 = vmatpush1.bf16.msra.mxu0 %v8742
        %8979 = vmatprep.subr.bf16.mxu0 0
        %8980 = vmatpush1.bf16.msra.mxu0 %v8743
        %8981 = vmatprep.subr.bf16.mxu0 0
        %8982 = vmatpush1.bf16.msra.mxu0 %v8744
        %8983 = vmatprep.mubr.bf16.mxu0 %v8950
        %8984 = vmatmul.mubr.bf16.gmra.mrb[0].mxu0 %v8949
        %v8985 = vpop.f32.mrb[0].mxu0
        %v8986 = vadd.f32 0.0, %v8985
        %v8987 = vpop.f32.mrb[0].mxu0
        %v8988 = vpop.f32.mrb[0].mxu0
        %v8989 = vpop.f32.mrb[0].mxu0
        %8990 = vdwg.mxu0
        %v8991 = vpack.c.bf16 %v8986, %v8986
        %8992 = vmatprep.subr.bf16.mxu0 %v8851
        %8993 = vmatpush1.bf16.msra.mxu0 %v8850
        %8994 = vmatprep.subr.bf16.mxu0 %v8853
        %8995 = vmatpush1.bf16.msra.mxu0 %v8852
        %8996 = vmatprep.subr.bf16.mxu0 %v8855
        %8997 = vmatpush1.bf16.msra.mxu0 %v8854
        %8998 = vmatprep.subr.bf16.mxu0 %v8857
        %8999 = vmatpush1.bf16.msra.mxu0 %v8856
        %9000 = vmatprep.subr.bf16.mxu0 %v8859
        %9001 = vmatpush1.bf16.msra.mxu0 %v8858
        %9002 = vmatprep.subr.bf16.mxu0 %v8861
        %9003 = vmatpush1.bf16.msra.mxu0 %v8860
        %9004 = vmatprep.subr.bf16.mxu0 %v8863
        %9005 = vmatpush1.bf16.msra.mxu0 %v8862
        %9006 = vmatprep.subr.bf16.mxu0 %v8865
        %9007 = vmatpush1.bf16.msra.mxu0 %v8864
        %9008 = vmatprep.subr.bf16.mxu0 0
        %9009 = vmatpush1.bf16.msra.mxu0 0
        %9010 = vmatprep.subr.bf16.mxu0 0
        %9011 = vmatpush1.bf16.msra.mxu0 0
        %9012 = vmatprep.subr.bf16.mxu0 0
        %9013 = vmatpush1.bf16.msra.mxu0 0
        %9014 = vmatprep.subr.bf16.mxu0 0
        %9015 = vmatpush1.bf16.msra.mxu0 0
        %9016 = vmatprep.subr.bf16.mxu0 0
        %9017 = vmatpush1.bf16.msra.mxu0 0
        %9018 = vmatprep.subr.bf16.mxu0 0
        %9019 = vmatpush1.bf16.msra.mxu0 0
        %9020 = vmatprep.subr.bf16.mxu0 0
        %9021 = vmatpush1.bf16.msra.mxu0 0
        %9022 = vmatprep.subr.bf16.mxu0 0
        %9023 = vmatpush1.bf16.msra.mxu0 0
        %9024 = vmatprep.mubr.bf16.mxu0 0
        %9025 = vmatmul.mubr.bf16.gmra.mrb[0].mxu0 %v8991
        %v9026 = vpop.f32.mrb[0].mxu0
        %v9027 = vadd.f32 1e-05, %v9026
        %v9028 = vpop.f32.mrb[0].mxu0
        %v9029 = vadd.f32 1e-05, %v9028
        %v9030 = vpop.f32.mrb[0].mxu0
        %v9031 = vpop.f32.mrb[0].mxu0
        %9032 = vdwg.mxu0
        %v9033 = vrsqrt.pop %v9027
        %v9034 = vrsqrt.pop %v9029
        %v9035 = vlaneseq
        %v9036 = vshrl.u32 %v9035, 7
        %v9037 = vsub.s32 0, %v9036
        %v9038 = vrot.slane %v9033, %v9037
        %v9039 = vlaneseq
        %v9040 = vshrl.u32 %v9039, 7
        %v9041 = vsub.s32 0, %v9040
        %v9042 = vrot.slane %v9034, %v9041
        %v9043 = vmul.f32 %v8931, %v9038
        %v9044 = vmul.f32 %v8932, %v9042
        %vm9045 = vcmp.ge.f32.partialorder %v9043, 0.0
        %vm9046 = vcmp.ge.f32.partialorder %v9044, 0.0
        %v9047 = vmul.f32 %v9043, 0.01
        %v9048 = vmul.f32 %v9044, 0.01
        %v9049 = vsel %vm9045, %v9043, %v9047
        %v9050 = vsel %vm9046, %v9044, %v9048
        %v9051 = vpack.c.bf16 %v9049, %v9049
        %v9052 = vpack.c.bf16 %v9050, %v9050
        %v9054 = vshrl.u32 %v9051, 16
        %v9057 = vshrl.u32 %v9052, 16
        %v9061 = vld [vmem:[%s53] sm:$0xf]
        %v9062 = vld [vmem:[%s53 + $0x4] sm:$0xf]
        %v9063 = vld [vmem:[%s53 + $0x8] sm:$0xf]
        %v9064 = vld [vmem:[%s53 + $0xc] sm:$0xf]
        %v9065 = vld [vmem:[%s53 + $0x10] sm:$0xf]
        %v9066 = vld [vmem:[%s53 + $0x14] sm:$0xf]
        %v9067 = vld [vmem:[%s53 + $0x18] sm:$0xf]
        %v9068 = vld [vmem:[%s53 + $0x1c] sm:$0xf]
        %v9069 = vld [vmem:[%s53 + $0x20] sm:$0xf]
        %v9070 = vld [vmem:[%s53 + $0x24] sm:$0xf]
        %v9071 = vld [vmem:[%s53 + $0x28] sm:$0xf]
        %v9072 = vld [vmem:[%s53 + $0x2c] sm:$0xf]
        %v9073 = vld [vmem:[%s53 + $0x30] sm:$0xf]
        %v9074 = vld [vmem:[%s53 + $0x34] sm:$0xf]
        %v9075 = vld [vmem:[%s53 + $0x38] sm:$0xf]
        %v9076 = vld [vmem:[%s53 + $0x3c] sm:$0xf]
        %v9077 = vld [vmem:[%s53 + $0x40] sm:$0xf]
        %v9078 = vld [vmem:[%s53 + $0x44] sm:$0xf]
        %v9079 = vld [vmem:[%s53 + $0x48] sm:$0xf]
        %v9080 = vld [vmem:[%s53 + $0x4c] sm:$0xf]
        %v9081 = vld [vmem:[%s53 + $0x50] sm:$0xf]
        %v9082 = vld [vmem:[%s53 + $0x54] sm:$0xf]
        %v9083 = vld [vmem:[%s53 + $0x58] sm:$0xf]
        %v9084 = vld [vmem:[%s53 + $0x5c] sm:$0xf]
        %v9085 = vld [vmem:[%s53 + $0x60] sm:$0xf]
        %v9086 = vld [vmem:[%s53 + $0x64] sm:$0xf]
        %v9087 = vld [vmem:[%s53 + $0x68] sm:$0xf]
        %v9088 = vld [vmem:[%s53 + $0x6c] sm:$0xf]
        %v9089 = vld [vmem:[%s53 + $0x70] sm:$0xf]
        %v9090 = vld [vmem:[%s53 + $0x74] sm:$0xf]
        %v9091 = vld [vmem:[%s53 + $0x78] sm:$0xf]
        %v9092 = vld [vmem:[%s53 + $0x7c] sm:$0xf]
        %v9093 = vld [vmem:[%s53 + $0x80] sm:$0xf]
        %v9094 = vld [vmem:[%s53 + $0x84] sm:$0xf]
        %v9095 = vld [vmem:[%s53 + $0x88] sm:$0xf]
        %v9096 = vld [vmem:[%s53 + $0x8c] sm:$0xf]
        %v9097 = vld [vmem:[%s53 + $0x90] sm:$0xf]
        %v9098 = vld [vmem:[%s53 + $0x94] sm:$0xf]
        %v9099 = vld [vmem:[%s53 + $0x98] sm:$0xf]
        %v9100 = vld [vmem:[%s53 + $0x9c] sm:$0xf]
        %v9101 = vld [vmem:[%s53 + $0xa0] sm:$0xf]
        %v9102 = vld [vmem:[%s53 + $0xa4] sm:$0xf]
        %v9103 = vld [vmem:[%s53 + $0xa8] sm:$0xf]
        %v9104 = vld [vmem:[%s53 + $0xac] sm:$0xf]
        %v9105 = vld [vmem:[%s53 + $0xb0] sm:$0xf]
        %v9106 = vld [vmem:[%s53 + $0xb4] sm:$0xf]
        %v9107 = vld [vmem:[%s53 + $0xb8] sm:$0xf]
        %v9108 = vld [vmem:[%s53 + $0xbc] sm:$0xf]
        %v9109 = vld [vmem:[%s53 + $0xc0] sm:$0xf]
        %v9110 = vld [vmem:[%s53 + $0xc4] sm:$0xf]
        %v9111 = vld [vmem:[%s53 + $0xc8] sm:$0xf]
        %v9112 = vld [vmem:[%s53 + $0xcc] sm:$0xf]
        %v9113 = vld [vmem:[%s53 + $0xd0] sm:$0xf]
        %v9114 = vld [vmem:[%s53 + $0xd4] sm:$0xf]
        %v9115 = vld [vmem:[%s53 + $0xd8] sm:$0xf]
        %v9116 = vld [vmem:[%s53 + $0xdc] sm:$0xf]
        %v9117 = vld [vmem:[%s53 + $0xe0] sm:$0xf]
        %v9118 = vld [vmem:[%s53 + $0xe4] sm:$0xf]
        %v9119 = vld [vmem:[%s53 + $0xe8] sm:$0xf]
        %v9120 = vld [vmem:[%s53 + $0xec] sm:$0xf]
        %v9121 = vld [vmem:[%s53 + $0xf0] sm:$0xf]
        %v9122 = vld [vmem:[%s53 + $0xf4] sm:$0xf]
        %v9123 = vld [vmem:[%s53 + $0xf8] sm:$0xf]
        %v9124 = vld [vmem:[%s53 + $0xfc] sm:$0xf]
        %v9125 = vld [vmem:[%s55] sm:$0x1]
        %v9190 = vunpack.c.l.b16 %v9061
        %v9191 = vunpack.c.l.b16 %v9062
        %v9192 = vunpack.c.l.b16 %v9063
        %v9193 = vunpack.c.l.b16 %v9064
        %v9194 = vunpack.c.l.b16 %v9065
        %v9195 = vunpack.c.l.b16 %v9066
        %v9196 = vunpack.c.l.b16 %v9067
        %v9197 = vunpack.c.l.b16 %v9068
        %v9198 = vunpack.c.l.b16 %v9069
        %v9199 = vunpack.c.l.b16 %v9070
        %v9200 = vunpack.c.l.b16 %v9071
        %v9201 = vunpack.c.l.b16 %v9072
        %v9202 = vunpack.c.l.b16 %v9073
        %v9203 = vunpack.c.l.b16 %v9074
        %v9204 = vunpack.c.l.b16 %v9075
        %v9205 = vunpack.c.l.b16 %v9076
        %v9206 = vunpack.c.l.b16 %v9077
        %v9207 = vunpack.c.l.b16 %v9078
        %v9208 = vunpack.c.l.b16 %v9079
        %v9209 = vunpack.c.l.b16 %v9080
        %v9210 = vunpack.c.l.b16 %v9081
        %v9211 = vunpack.c.l.b16 %v9082
        %v9212 = vunpack.c.l.b16 %v9083
        %v9213 = vunpack.c.l.b16 %v9084
        %v9214 = vunpack.c.l.b16 %v9085
        %v9215 = vunpack.c.l.b16 %v9086
        %v9216 = vunpack.c.l.b16 %v9087
        %v9217 = vunpack.c.l.b16 %v9088
        %v9218 = vunpack.c.l.b16 %v9089
        %v9219 = vunpack.c.l.b16 %v9090
        %v9220 = vunpack.c.l.b16 %v9091
        %v9221 = vunpack.c.l.b16 %v9092
        %v9222 = vunpack.c.l.b16 %v9093
        %v9223 = vunpack.c.l.b16 %v9094
        %v9224 = vunpack.c.l.b16 %v9095
        %v9225 = vunpack.c.l.b16 %v9096
        %v9226 = vunpack.c.l.b16 %v9097
        %v9227 = vunpack.c.l.b16 %v9098
        %v9228 = vunpack.c.l.b16 %v9099
        %v9229 = vunpack.c.l.b16 %v9100
        %v9230 = vunpack.c.l.b16 %v9101
        %v9231 = vunpack.c.l.b16 %v9102
        %v9232 = vunpack.c.l.b16 %v9103
        %v9233 = vunpack.c.l.b16 %v9104
        %v9234 = vunpack.c.l.b16 %v9105
        %v9235 = vunpack.c.l.b16 %v9106
        %v9236 = vunpack.c.l.b16 %v9107
        %v9237 = vunpack.c.l.b16 %v9108
        %v9238 = vunpack.c.l.b16 %v9109
        %v9239 = vunpack.c.l.b16 %v9110
        %v9240 = vunpack.c.l.b16 %v9111
        %v9241 = vunpack.c.l.b16 %v9112
        %v9242 = vunpack.c.l.b16 %v9113
        %v9243 = vunpack.c.l.b16 %v9114
        %v9244 = vunpack.c.l.b16 %v9115
        %v9245 = vunpack.c.l.b16 %v9116
        %v9246 = vunpack.c.l.b16 %v9117
        %v9247 = vunpack.c.l.b16 %v9118
        %v9248 = vunpack.c.l.b16 %v9119
        %v9249 = vunpack.c.l.b16 %v9120
        %v9250 = vunpack.c.l.b16 %v9121
        %v9251 = vunpack.c.l.b16 %v9122
        %v9252 = vunpack.c.l.b16 %v9123
        %v9253 = vunpack.c.l.b16 %v9124
        %v9254 = vpack.c.b16 %v9191, %v9190
        %v9255 = vpack.c.b16 %v9193, %v9192
        %v9256 = vpack.c.b16 %v9195, %v9194
        %v9257 = vpack.c.b16 %v9197, %v9196
        %v9258 = vpack.c.b16 %v9199, %v9198
        %v9259 = vpack.c.b16 %v9201, %v9200
        %v9260 = vpack.c.b16 %v9203, %v9202
        %v9261 = vpack.c.b16 %v9205, %v9204
        %v9262 = vpack.c.b16 %v9207, %v9206
        %v9263 = vpack.c.b16 %v9209, %v9208
        %v9264 = vpack.c.b16 %v9211, %v9210
        %v9265 = vpack.c.b16 %v9213, %v9212
        %v9266 = vpack.c.b16 %v9215, %v9214
        %v9267 = vpack.c.b16 %v9217, %v9216
        %v9268 = vpack.c.b16 %v9219, %v9218
        %v9269 = vpack.c.b16 %v9221, %v9220
        %v9270 = vpack.c.b16 %v9223, %v9222
        %v9271 = vpack.c.b16 %v9225, %v9224
        %v9272 = vpack.c.b16 %v9227, %v9226
        %v9273 = vpack.c.b16 %v9229, %v9228
        %v9274 = vpack.c.b16 %v9231, %v9230
        %v9275 = vpack.c.b16 %v9233, %v9232
        %v9276 = vpack.c.b16 %v9235, %v9234
        %v9277 = vpack.c.b16 %v9237, %v9236
        %v9278 = vpack.c.b16 %v9239, %v9238
        %v9279 = vpack.c.b16 %v9241, %v9240
        %v9280 = vpack.c.b16 %v9243, %v9242
        %v9281 = vpack.c.b16 %v9245, %v9244
        %v9282 = vpack.c.b16 %v9247, %v9246
        %v9283 = vpack.c.b16 %v9249, %v9248
        %v9284 = vpack.c.b16 %v9251, %v9250
        %v9285 = vpack.c.b16 %v9253, %v9252
        %9318 = vmatprep.subr.bf16.mxu0 0
        %9319 = vmatpush1.bf16.msra.mxu0 %v9254
        %9320 = vmatprep.subr.bf16.mxu0 0
        %9321 = vmatpush1.bf16.msra.mxu0 %v9255
        %9322 = vmatprep.subr.bf16.mxu0 0
        %9323 = vmatpush1.bf16.msra.mxu0 %v9256
        %9324 = vmatprep.subr.bf16.mxu0 0
        %9325 = vmatpush1.bf16.msra.mxu0 %v9257
        %9326 = vmatprep.subr.bf16.mxu0 0
        %9327 = vmatpush1.bf16.msra.mxu0 %v9258
        %9328 = vmatprep.subr.bf16.mxu0 0
        %9329 = vmatpush1.bf16.msra.mxu0 %v9259
        %9330 = vmatprep.subr.bf16.mxu0 0
        %9331 = vmatpush1.bf16.msra.mxu0 %v9260
        %9332 = vmatprep.subr.bf16.mxu0 0
        %9333 = vmatpush1.bf16.msra.mxu0 %v9261
        %9334 = vmatprep.subr.bf16.mxu0 0
        %9335 = vmatpush1.bf16.msra.mxu0 %v9262
        %9336 = vmatprep.subr.bf16.mxu0 0
        %9337 = vmatpush1.bf16.msra.mxu0 %v9263
        %9338 = vmatprep.subr.bf16.mxu0 0
        %9339 = vmatpush1.bf16.msra.mxu0 %v9264
        %9340 = vmatprep.subr.bf16.mxu0 0
        %9341 = vmatpush1.bf16.msra.mxu0 %v9265
        %9342 = vmatprep.subr.bf16.mxu0 0
        %9343 = vmatpush1.bf16.msra.mxu0 %v9266
        %9344 = vmatprep.subr.bf16.mxu0 0
        %9345 = vmatpush1.bf16.msra.mxu0 %v9267
        %9346 = vmatprep.subr.bf16.mxu0 0
        %9347 = vmatpush1.bf16.msra.mxu0 %v9268
        %9348 = vmatprep.subr.bf16.mxu0 0
        %9349 = vmatpush1.bf16.msra.mxu0 %v9269
        %9350 = vmatprep.mubr.bf16.mxu0 %v9052
        %9351 = vmatmul.mubr.bf16.gmra.mrb[0].mxu0 %v9051
        %v9352 = vpop.f32.mrb[0].mxu0
        %v9353 = vadd.f32 %v9125, %v9352
        %v9354 = vpop.f32.mrb[0].mxu0
        %v9355 = vpop.f32.mrb[0].mxu0
        %v9356 = vpop.f32.mrb[0].mxu0
        %9357 = vdwg.mxu0
        %9358 = vmatprep.subr.bf16.mxu0 0
        %9359 = vmatpush1.bf16.msra.mxu0 %v9270
        %9360 = vmatprep.subr.bf16.mxu0 0
        %9361 = vmatpush1.bf16.msra.mxu0 %v9271
        %9362 = vmatprep.subr.bf16.mxu0 0
        %9363 = vmatpush1.bf16.msra.mxu0 %v9272
        %9364 = vmatprep.subr.bf16.mxu0 0
        %9365 = vmatpush1.bf16.msra.mxu0 %v9273
        %9366 = vmatprep.subr.bf16.mxu0 0
        %9367 = vmatpush1.bf16.msra.mxu0 %v9274
        %9368 = vmatprep.subr.bf16.mxu0 0
        %9369 = vmatpush1.bf16.msra.mxu0 %v9275
        %9370 = vmatprep.subr.bf16.mxu0 0
        %9371 = vmatpush1.bf16.msra.mxu0 %v9276
        %9372 = vmatprep.subr.bf16.mxu0 0
        %9373 = vmatpush1.bf16.msra.mxu0 %v9277
        %9374 = vmatprep.subr.bf16.mxu0 0
        %9375 = vmatpush1.bf16.msra.mxu0 %v9278
        %9376 = vmatprep.subr.bf16.mxu0 0
        %9377 = vmatpush1.bf16.msra.mxu0 %v9279
        %9378 = vmatprep.subr.bf16.mxu0 0
        %9379 = vmatpush1.bf16.msra.mxu0 %v9280
        %9380 = vmatprep.subr.bf16.mxu0 0
        %9381 = vmatpush1.bf16.msra.mxu0 %v9281
        %9382 = vmatprep.subr.bf16.mxu0 0
        %9383 = vmatpush1.bf16.msra.mxu0 %v9282
        %9384 = vmatprep.subr.bf16.mxu0 0
        %9385 = vmatpush1.bf16.msra.mxu0 %v9283
        %9386 = vmatprep.subr.bf16.mxu0 0
        %9387 = vmatpush1.bf16.msra.mxu0 %v9284
        %9388 = vmatprep.subr.bf16.mxu0 0
        %9389 = vmatpush1.bf16.msra.mxu0 %v9285
        %9390 = vmatprep.mubr.bf16.mxu0 %v9057
        %9391 = vmatmul.mubr.bf16.gmra.mrb[0].mxu0 %v9054
        %v9392 = vpop.f32.mrb[0].mxu0
        %v9393 = vadd.f32 %v9353, %v9392
        %v9394 = vpop.f32.mrb[0].mxu0
        %v9395 = vpop.f32.mrb[0].mxu0
        %v9396 = vpop.f32.mrb[0].mxu0
        %9397 = vdwg.mxu0
        %vm9398 = vcmp.ge.f32.partialorder %v9393, 0.0
        %v9399 = vmul.f32 %v9393, 0.01
        %v9400 = vsel %vm9398, %v9393, %v9399
        %v9401 = vpack.c.bf16 %v9400, %v9400
        %v9402 = vld [vmem:[%s57] sm:$0xf]
        %v9403 = vld [vmem:[%s57 + $0x4] sm:$0xf]
        %v9404 = vld [vmem:[%s57 + $0x8] sm:$0xf]
        %v9405 = vld [vmem:[%s57 + $0xc] sm:$0xf]
        %v9406 = vld [vmem:[#allocation26] sm:$0x1]
        %v9411 = vunpack.c.l.b16 %v9402
        %v9412 = vunpack.c.l.b16 %v9403
        %v9413 = vunpack.c.l.b16 %v9404
        %v9414 = vunpack.c.l.b16 %v9405
        %v9415 = vpack.c.b16 %v9412, %v9411
        %v9416 = vpack.c.b16 %v9414, %v9413
        %v9420 = vsel %vm2792, %v9401, 0
        %9422 = vmatprep.subr.bf16.mxu0 0
        %9423 = vmatpush1.bf16.msra.mxu0 %v9415
        %9424 = vmatprep.subr.bf16.mxu0 0
        %9425 = vmatpush1.bf16.msra.mxu0 %v9416
        %9426 = vmatprep.subr.bf16.mxu0 0
        %9427 = vmatpush1.bf16.msra.mxu0 0
        %9428 = vmatprep.subr.bf16.mxu0 0
        %9429 = vmatpush1.bf16.msra.mxu0 0
        %9430 = vmatprep.subr.bf16.mxu0 0
        %9431 = vmatpush1.bf16.msra.mxu0 0
        %9432 = vmatprep.subr.bf16.mxu0 0
        %9433 = vmatpush1.bf16.msra.mxu0 0
        %9434 = vmatprep.subr.bf16.mxu0 0
        %9435 = vmatpush1.bf16.msra.mxu0 0
        %9436 = vmatprep.subr.bf16.mxu0 0
        %9437 = vmatpush1.bf16.msra.mxu0 0
        %9438 = vmatprep.subr.bf16.mxu0 0
        %9439 = vmatpush1.bf16.msra.mxu0 0
        %9440 = vmatprep.subr.bf16.mxu0 0
        %9441 = vmatpush1.bf16.msra.mxu0 0
        %9442 = vmatprep.subr.bf16.mxu0 0
        %9443 = vmatpush1.bf16.msra.mxu0 0
        %9444 = vmatprep.subr.bf16.mxu0 0
        %9445 = vmatpush1.bf16.msra.mxu0 0
        %9446 = vmatprep.subr.bf16.mxu0 0
        %9447 = vmatpush1.bf16.msra.mxu0 0
        %9448 = vmatprep.subr.bf16.mxu0 0
        %9449 = vmatpush1.bf16.msra.mxu0 0
        %9450 = vmatprep.subr.bf16.mxu0 0
        %9451 = vmatpush1.bf16.msra.mxu0 0
        %9452 = vmatprep.subr.bf16.mxu0 0
        %9453 = vmatpush1.bf16.msra.mxu0 0
        %9454 = vmatprep.mubr.bf16.mxu0 0
        %9455 = vmatmul.mubr.bf16.gmra.mrb[0].mxu0 %v9420
        %v9456 = vpop.f32.mrb[0].mxu0
        %v9457 = vadd.f32 %v9406, %v9456
        %v9458 = vpop.f32.mrb[0].mxu0
        %v9459 = vpop.f32.mrb[0].mxu0
        %v9460 = vpop.f32.mrb[0].mxu0
        %9461 = vdwg.mxu0
        %9462 = vst [vmem:[%s1145] sm:$0x1] %v9457
        %s9463 = sand.u32 %s727, 1
        %s9464 = scalar_lea.sflag [#allocation4], %s9463
        %s9465 = sand.u32 %s727, 1
        %s9466 = scalar_lea.vmem [#allocation28], %s9465
        // Predicated region
        $region205: #{classifier_forward.1} parent=139 // pred_check
          %p9467 = pneg %p737
        $region206: #{classifier_forward.1} parent=139 // pred_check_branch
          %9469 = sbr.rel (%p9467) target = $region208
        $region207: #{classifier_forward.1} parent=139 // pred_region
          %s9471 = ssub.s32 16, 16
          %9472 = vsyncadd %s9464, %s9471
          %s9473 = smul.addr %s84, 16
          %s9474 = scalar_lea.hbm %s61, %s9473
          %s9476 = sshll.u32 %s9466, 4
          %s9477 = int_to_ptr.vmem [resolvable:$true] %s9476
          %9479 = dma.vmem_to_hbm [thread:$0]  %s9477, 16, %s9474, %s9464
        $region208: #{classifier_forward.1} parent=139 // pred_fallthru
          _
      $region140: #{classifier_forward.1} parent=5 // pred_fallthru
        _
      %p9480 = scmp.le.s32.totalorder 2, %s79
      // Predicated region
      $region209: #{classifier_forward.1} parent=5 // pred_check
        %p9481 = pneg %p9480
      $region210: #{classifier_forward.1} parent=5 // pred_check_branch
        %9483 = sbr.rel (%p9481) target = $region212
      $region211: #{classifier_forward.1} parent=5 // pred_region
        %s9484 = ssub.s32 %s79, 2
        // Predicated region
        $region213: #{classifier_forward.1} parent=211 // pred_check
          %p9485 = pneg %p743
        $region214: #{classifier_forward.1} parent=211 // pred_check_branch
          %9487 = sbr.rel (%p9485) target = $region216
        $region215: #{classifier_forward.1} parent=211 // pred_region
          %s9488 = sand.u32 %s728, 1
          %s9489 = scalar_lea.sflag [#allocation4], %s9488
          %s9490 = sand.u32 %s728, 1
          %s9491 = scalar_lea.vmem [#allocation28], %s9490
          %9492 = dma.done %s9489, 16
        $region216: #{classifier_forward.1} parent=211 // pred_fallthru
          _
      $region212: #{classifier_forward.1} parent=5 // pred_fallthru
        _
    $region6: #{classifier_forward.1} parent=1 // loop_footer
      %s83 = sadd.s32 1, %s79
    $region7: #{classifier_forward.1} parent=1 // loop_footer_branch
      %78 = sbr.rel target = $region3
    $region8: #{classifier_forward.1} parent=1 // loop_exit
      _
    %9493 = vsyncpa [#allocation3], 1
    %s9494 = scalar_lea.sflag [#allocation3], 1
    %9495 = vsyncpa %s9494, 1
    %9496 = vsyncpa [#allocation6], 1
    %9497 = vsyncpa [#allocation9], 1
    %9498 = vsyncpa [#allocation12], 1
    %9499 = vsyncpa [#allocation15], 1
    %9500 = vsyncpa [#allocation18], 1
    %9501 = vsyncpa [#allocation21], 1
    %9502 = vsyncpa [#allocation24], 1
    %9503 = vsyncpa [#allocation27], 1
    %9504 = vsyncpa [#allocation4], 1
    %s9505 = scalar_lea.sflag [#allocation4], 1
    %9506 = vsyncpa %s9505, 1

</llo_original>
